<compile_context>
chip_gen: v6e
topology: v6e:2x2x1
jax: 0.10.0
libtpu: 0.0.40
codegen_flags: <defaults>
</compile_context>

<pallas_src>
import functools

import jax
import jax.numpy as jnp
import numpy as np
from jax import lax
from jax.experimental import pallas as pl
from jax.experimental.pallas import tpu as pltpu


def _round_up(n, m):
    return ((n + m - 1) // m) * m


# ----------------------------- Pallas kernel -----------------------------
def bidir_lstm_kernel(x_ref, wih_ref, b_ref, whh_f_ref, whh_b_ref,
                      wemb_f_ref, wemb_b_ref, bemb_ref,
                      out_ref,
                      gates_ref, hf_ref, hb_ref,
                      *, T, B):
    """
    x_ref      : (T*B, nIn_p)     flat, padded input
    wih_ref    : (nIn_p, 8*H_p)   [W_ih_fwd | W_ih_bwd] (pre-transposed, padded)
    b_ref      : (1, 8*H_p)       [b_fwd | b_bwd]  (b_ih + b_hh)
    whh_*_ref  : (H_p, 4*H_p)
    wemb_*_ref : (H_p, nOut_p)    split-K halves of the Linear weight (transposed)
    bemb_ref   : (1, nOut_p)
    out_ref    : (T*B, nOut_p)    flat, lane-dense output
    gates_ref  : (T*B, 8*H_p)     scratch: precomputed input projection
    hf_ref     : (T*B, H_p)       scratch: forward hidden states
    hb_ref     : (T*B, H_p)       scratch: backward hidden states
    """
    H = whh_f_ref.shape[0]          # padded hidden size (multiple of 128)
    G = 4 * H

    # (1) Input projection for BOTH directions + biases: one large MXU matmul,
    #     removed from the serial recurrence entirely.
    gates_ref[...] = (jnp.dot(x_ref[...], wih_ref[...],
                              preferred_element_type=jnp.float32)
                      + b_ref[...])

    def gate_block(g, c):
        # gate slices are 128-lane aligned (H is padded to a multiple of 128)
        i = jax.nn.sigmoid(g[:, 0:H])
        f = jax.nn.sigmoid(g[:, H:2 * H])
        gg = jnp.tanh(g[:, 2 * H:3 * H])
        o = jax.nn.sigmoid(g[:, 3 * H:4 * H])
        c_new = f * c + i * gg
        h_new = o * jnp.tanh(c_new)
        return h_new, c_new

    zeros = jnp.zeros((B, H), jnp.float32)

    # (2) Fused fwd+bwd recurrence: two independent h @ W_hh matmuls + two
    #     independent nonlinearity blocks per step -> MXU/EUP/VPU overlap.
    def body(s, carry):
        hf, cf, hb, cb = carry
        rf = pl.multiple_of(s * B, B)               # forward rows  (t = s)
        rb = pl.multiple_of((T - 1 - s) * B, B)     # backward rows (t = T-1-s)

        gf = gates_ref[pl.ds(rf, B), 0:G] + jnp.dot(
            hf, whh_f_ref[...], preferred_element_type=jnp.float32)
        gb = gates_ref[pl.ds(rb, B), G:2 * G] + jnp.dot(
            hb, whh_b_ref[...], preferred_element_type=jnp.float32)

        hf_new, cf_new = gate_block(gf, cf)
        hb_new, cb_new = gate_block(gb, cb)

        hf_ref[pl.ds(rf, B), :] = hf_new
        hb_ref[pl.ds(rb, B), :] = hb_new
        return hf_new, cf_new, hb_new, cb_new

    # (3) Unrolled — T is static and small; gives LLO cross-iteration visibility.
    lax.fori_loop(0, T, body, (zeros, zeros, zeros, zeros), unroll=True)

    # (4) Embedding as split-K matmul on flat, lane-dense slabs (no reshape /
    #     relayout, unmasked 128-lane stores).
    out_ref[...] = (jnp.dot(hf_ref[...], wemb_f_ref[...],
                            preferred_element_type=jnp.float32)
                    + jnp.dot(hb_ref[...], wemb_b_ref[...],
                              preferred_element_type=jnp.float32)
                    + bemb_ref[...])


# ------------------------------ wrapper ------------------------------
def _pad2(w, rows, cols):
    return jnp.pad(w, ((0, rows - w.shape[0]), (0, cols - w.shape[1])))


def _pad_gate_cols(w, rows_pad, H, H_pad):
    """(K, 4H) -> (rows_pad, 4*H_pad) with each i/f/g/o block placed at g*H_pad."""
    return jnp.concatenate(
        [_pad2(w[:, g * H:(g + 1) * H], rows_pad, H_pad) for g in range(4)],
        axis=1)


def bidirectional_lstm(x, params):
    T, B, nIn = x.shape
    H = params["whh_f"].shape[0]
    nOut = params["wemb"].shape[1]

    B_pad = _round_up(max(B, 8), 8)         # sublane-friendly batch
    H_pad = _round_up(H, 128)               # lane-aligned hidden (per gate)
    nIn_pad = _round_up(nIn, 128)
    nOut_pad = _round_up(nOut, 128)

    # --- weight repack / padding (wrapper-side plumbing only; zeros keep
    #     padded hidden units exactly 0 through the recurrence) ---
    wih_f = _pad_gate_cols(params["wih_f"], nIn_pad, H, H_pad)
    wih_b = _pad_gate_cols(params["wih_b"], nIn_pad, H, H_pad)
    wih_cat = jnp.concatenate([wih_f, wih_b], axis=1)            # (nIn_p, 8H_p)

    b_f = _pad_gate_cols(params["b_f"], 1, H, H_pad)
    b_b = _pad_gate_cols(params["b_b"], 1, H, H_pad)
    b_cat = jnp.concatenate([b_f, b_b], axis=1)                  # (1, 8H_p)

    whh_f = _pad_gate_cols(params["whh_f"], H_pad, H, H_pad)     # (H_p, 4H_p)
    whh_b = _pad_gate_cols(params["whh_b"], H_pad, H, H_pad)

    wemb_f = _pad2(params["wemb"][:H, :], H_pad, nOut_pad)       # (H_p, nOut_p)
    wemb_b = _pad2(params["wemb"][H:, :], H_pad, nOut_pad)
    bemb = _pad2(params["bemb"], 1, nOut_pad)                    # (1, nOut_p)

    # --- input: pad B/nIn and flatten to a lane/sublane-friendly slab ---
    x_pad = jnp.pad(x, ((0, 0), (0, B_pad - B), (0, nIn_pad - nIn)))
    x_flat = x_pad.reshape(T * B_pad, nIn_pad)

    kernel = functools.partial(bidir_lstm_kernel, T=T, B=B_pad)

    # TODO(synk): for large (T, B) on v7x, chunk the sequence with
    # memory_space=pl.ANY + make_async_copy double-buffering and split the batch
    # across the two TensorCores; unnecessary at these small resident shapes.
    out_flat = pl.pallas_call(
        kernel,
        out_shape=jax.ShapeDtypeStruct((T * B_pad, nOut_pad), jnp.float32),
        in_specs=[pl.BlockSpec(memory_space=pltpu.MemorySpace.VMEM)] * 8,
        out_specs=pl.BlockSpec(memory_space=pltpu.MemorySpace.VMEM),
        scratch_shapes=[
            pltpu.VMEM((T * B_pad, 8 * H_pad), jnp.float32),  # x@Wih (+b) slab
            pltpu.VMEM((T * B_pad, H_pad), jnp.float32),      # fwd hidden slab
            pltpu.VMEM((T * B_pad, H_pad), jnp.float32),      # bwd hidden slab
        ],
    )(x_flat, wih_cat, b_cat, whh_f, whh_b, wemb_f, wemb_b, bemb)

    return out_flat.reshape(T, B_pad, nOut_pad)[:, :B, :nOut]


# -------------------- pure-JAX reference (PyTorch semantics) --------------------
def _lstm_dir_ref(x, wih, whh, b):
    T, B, _ = x.shape
    H = whh.shape[0]

    def step(carry, x_t):
        h, c = carry
        gates = x_t @ wih + h @ whh + b
        i, f, g, o = jnp.split(gates, 4, axis=-1)
        i, f, o = jax.nn.sigmoid(i), jax.nn.sigmoid(f), jax.nn.sigmoid(o)
        g = jnp.tanh(g)
        c = f * c + i * g
        h = o * jnp.tanh(c)
        return (h, c), h

    init = (jnp.zeros((B, H), jnp.float32), jnp.zeros((B, H), jnp.float32))
    _, hs = lax.scan(step, init, x)
    return hs  # (T, B, H)


def bidirectional_lstm_ref(x, params):
    T, B, _ = x.shape
    hf = _lstm_dir_ref(x, params["wih_f"], params["whh_f"], params["b_f"])
    hb = _lstm_dir_ref(x[::-1], params["wih_b"], params["whh_b"], params["b_b"])[::-1]
    hcat = jnp.concatenate([hf, hb], axis=-1)          # (T, B, 2H)
    out = hcat.reshape(T * B, -1) @ params["wemb"] + params["bemb"]
    return out.reshape(T, B, -1)


# -------------------- deterministic parameter init --------------------
def init_params(key, nIn, nHidden, nOut):
    k = 1.0 / np.sqrt(nHidden)
    keys = jax.random.split(key, 11)

    def u(kk, shape):
        return jax.random.uniform(kk, shape, jnp.float32, minval=-k, maxval=k)

    # PyTorch layouts, then transpose for the kernel.
    w_ih_f = u(keys[0], (4 * nHidden, nIn))
    w_hh_f = u(keys[1], (4 * nHidden, nHidden))
    b_f = u(keys[2], (4 * nHidden,)) + u(keys[3], (4 * nHidden,))  # b_ih + b_hh
    w_ih_b = u(keys[4], (4 * nHidden, nIn))
    w_hh_b = u(keys[5], (4 * nHidden, nHidden))
    b_b = u(keys[6], (4 * nHidden,)) + u(keys[7], (4 * nHidden,))
    ke = 1.0 / np.sqrt(2 * nHidden)
    w_emb = jax.random.uniform(keys[8], (nOut, 2 * nHidden), jnp.float32, -ke, ke)
    b_emb = jax.random.uniform(keys[9], (nOut,), jnp.float32, -ke, ke)

    return {
        "wih_f": w_ih_f.T, "whh_f": w_hh_f.T, "b_f": b_f[None, :],
        "wih_b": w_ih_b.T, "whh_b": w_hh_b.T, "b_b": b_b[None, :],
        "wemb": w_emb.T, "bemb": b_emb[None, :],
    }


if __name__ == "__main__":
    T, B, nIn, nHidden, nOut = 8, 2, 16, 32, 16
    key = jax.random.PRNGKey(0)
    kx, kp = jax.random.split(key)
    x = jax.random.normal(kx, (T, B, nIn), jnp.float32)
    params = init_params(kp, nIn, nHidden, nOut)

    out = bidirectional_lstm(x, params)
    out = jax.block_until_ready(out)

    ref = jax.block_until_ready(bidirectional_lstm_ref(x, params))
    assert out.shape == (T, B, nOut)
    np.testing.assert_allclose(np.asarray(out), np.asarray(ref), atol=2e-5, rtol=2e-5)

    print("KERNEL_OK")
</pallas_src>

<mosaic_0001>
module attributes {stable_mosaic.version = 11 : i64} {
  func.func @bidir_lstm_kernel(%arg0: memref<64x128xf32, #tpu.memory_space<vmem>>, %arg1: memref<128x1024xf32, #tpu.memory_space<vmem>>, %arg2: memref<1x1024xf32, #tpu.memory_space<vmem>>, %arg3: memref<128x512xf32, #tpu.memory_space<vmem>>, %arg4: memref<128x512xf32, #tpu.memory_space<vmem>>, %arg5: memref<128x128xf32, #tpu.memory_space<vmem>>, %arg6: memref<128x128xf32, #tpu.memory_space<vmem>>, %arg7: memref<1x128xf32, #tpu.memory_space<vmem>>, %arg8: memref<64x128xf32, #tpu.memory_space<vmem>>, %arg9: memref<64x1024xf32, #tpu.memory_space<vmem>>, %arg10: memref<64x128xf32, #tpu.memory_space<vmem>>, %arg11: memref<64x128xf32, #tpu.memory_space<vmem>>) attributes {dimension_semantics = [], scalar_prefetch = 0 : i64, scratch_operands = 3 : i64, tpu.core_type = #tpu.core_type<tc>} {
    %c0 = arith.constant 0 : index
    %c0_0 = arith.constant 0 : index
    %0 = vector.load %arg0[%c0, %c0_0] : memref<64x128xf32, #tpu.memory_space<vmem>>, vector<64x128xf32>
    %c0_1 = arith.constant 0 : index
    %c0_2 = arith.constant 0 : index
    %1 = vector.load %arg1[%c0_1, %c0_2] : memref<128x1024xf32, #tpu.memory_space<vmem>>, vector<128x1024xf32>
    %cst = arith.constant dense<0.000000e+00> : vector<64x1024xf32>
    %2 = tpu.matmul %0, %1, %cst {dimension_numbers = #tpu.dot_dimension_numbers<[1], [0], [0], [1], [0, 0, 1, 1], [], []>} : vector<64x128xf32>, vector<128x1024xf32>, vector<64x1024xf32> -> vector<64x1024xf32>
    %c0_3 = arith.constant 0 : index
    %c0_4 = arith.constant 0 : index
    %3 = vector.load %arg2[%c0_3, %c0_4] : memref<1x1024xf32, #tpu.memory_space<vmem>>, vector<1x1024xf32>
    %4 = vector.broadcast %3 : vector<1x1024xf32> to vector<64x1024xf32>
    %5 = arith.addf %2, %4 : vector<64x1024xf32>
    %c0_5 = arith.constant 0 : index
    %c0_6 = arith.constant 0 : index
    %6 = vector.load %arg9[%c0_5, %c0_6] : memref<64x1024xf32, #tpu.memory_space<vmem>>, vector<64x1024xf32>
    tpu.vector_store %arg9[%c0_5, %c0_6], %5 {strides = array<i32>} : memref<64x1024xf32, #tpu.memory_space<vmem>>, vector<64x1024xf32>,
    %cst_7 = arith.constant 0.000000e+00 : f32
    %7 = vector.broadcast %cst_7 : f32 to vector<8x128xf32>
    %c0_i32 = arith.constant 0 : i32
    %c8_i32 = arith.constant 8 : i32
    %8 = arith.muli %c0_i32, %c8_i32 : i32
    %9 = tpu.assume_multiple %8, 8 : i32
    %c7_i32 = arith.constant 7 : i32
    %10 = arith.subi %c7_i32, %c0_i32 : i32
    %c8_i32_8 = arith.constant 8 : i32
    %11 = arith.muli %10, %c8_i32_8 : i32
    %12 = tpu.assume_multiple %11, 8 : i32
    %13 = arith.index_cast %9 : i32 to index
    %c0_9 = arith.constant 0 : index
    %14 = vector.load %arg9[%13, %c0_9] : memref<64x1024xf32, #tpu.memory_space<vmem>>, vector<8x512xf32>
    %c0_10 = arith.constant 0 : index
    %c0_11 = arith.constant 0 : index
    %15 = vector.load %arg3[%c0_10, %c0_11] : memref<128x512xf32, #tpu.memory_space<vmem>>, vector<128x512xf32>
    %cst_12 = arith.constant dense<0.000000e+00> : vector<8x512xf32>
    %16 = tpu.matmul %7, %15, %cst_12 {dimension_numbers = #tpu.dot_dimension_numbers<[1], [0], [0], [1], [0, 0, 1, 1], [], []>} : vector<8x128xf32>, vector<128x512xf32>, vector<8x512xf32> -> vector<8x512xf32>
    %17 = arith.addf %14, %16 : vector<8x512xf32>
    %18 = arith.index_cast %12 : i32 to index
    %c512 = arith.constant 512 : index
    %19 = vector.load %arg9[%18, %c512] : memref<64x1024xf32, #tpu.memory_space<vmem>>, vector<8x512xf32>
    %c0_13 = arith.constant 0 : index
    %c0_14 = arith.constant 0 : index
    %20 = vector.load %arg4[%c0_13, %c0_14] : memref<128x512xf32, #tpu.memory_space<vmem>>, vector<128x512xf32>
    %cst_15 = arith.constant dense<0.000000e+00> : vector<8x512xf32>
    %21 = tpu.matmul %7, %20, %cst_15 {dimension_numbers = #tpu.dot_dimension_numbers<[1], [0], [0], [1], [0, 0, 1, 1], [], []>} : vector<8x128xf32>, vector<128x512xf32>, vector<8x512xf32> -> vector<8x512xf32>
    %22 = arith.addf %19, %21 : vector<8x512xf32>
    %23 = vector.extract_strided_slice %17 {offsets = [0, 0], sizes = [8, 128], strides = [1, 1]} : vector<8x512xf32> to vector<8x128xf32>
    %24 = arith.negf %23 : vector<8x128xf32>
    %25 = math.exp %24 : vector<8x128xf32>
    %cst_16 = arith.constant 1.000000e+00 : f32
    %26 = vector.broadcast %cst_16 : f32 to vector<8x128xf32>
    %27 = arith.addf %26, %25 : vector<8x128xf32>
    %28 = arith.divf %26, %27 : vector<8x128xf32>
    %29 = vector.extract_strided_slice %17 {offsets = [0, 128], sizes = [8, 128], strides = [1, 1]} : vector<8x512xf32> to vector<8x128xf32>
    %30 = arith.negf %29 : vector<8x128xf32>
    %31 = math.exp %30 : vector<8x128xf32>
    %cst_17 = arith.constant 1.000000e+00 : f32
    %32 = vector.broadcast %cst_17 : f32 to vector<8x128xf32>
    %33 = arith.addf %32, %31 : vector<8x128xf32>
    %34 = arith.divf %32, %33 : vector<8x128xf32>
    %35 = vector.extract_strided_slice %17 {offsets = [0, 256], sizes = [8, 128], strides = [1, 1]} : vector<8x512xf32> to vector<8x128xf32>
    %36 = math.tanh %35 : vector<8x128xf32>
    %37 = vector.extract_strided_slice %17 {offsets = [0, 384], sizes = [8, 128], strides = [1, 1]} : vector<8x512xf32> to vector<8x128xf32>
    %38 = arith.negf %37 : vector<8x128xf32>
    %39 = math.exp %38 : vector<8x128xf32>
    %cst_18 = arith.constant 1.000000e+00 : f32
    %40 = vector.broadcast %cst_18 : f32 to vector<8x128xf32>
    %41 = arith.addf %40, %39 : vector<8x128xf32>
    %42 = arith.divf %40, %41 : vector<8x128xf32>
    %43 = arith.mulf %34, %7 : vector<8x128xf32>
    %44 = arith.mulf %28, %36 : vector<8x128xf32>
    %45 = arith.addf %43, %44 : vector<8x128xf32>
    %46 = math.tanh %45 : vector<8x128xf32>
    %47 = arith.mulf %42, %46 : vector<8x128xf32>
    %48 = vector.extract_strided_slice %22 {offsets = [0, 0], sizes = [8, 128], strides = [1, 1]} : vector<8x512xf32> to vector<8x128xf32>
    %49 = arith.negf %48 : vector<8x128xf32>
    %50 = math.exp %49 : vector<8x128xf32>
    %cst_19 = arith.constant 1.000000e+00 : f32
    %51 = vector.broadcast %cst_19 : f32 to vector<8x128xf32>
    %52 = arith.addf %51, %50 : vector<8x128xf32>
    %53 = arith.divf %51, %52 : vector<8x128xf32>
    %54 = vector.extract_strided_slice %22 {offsets = [0, 128], sizes = [8, 128], strides = [1, 1]} : vector<8x512xf32> to vector<8x128xf32>
    %55 = arith.negf %54 : vector<8x128xf32>
    %56 = math.exp %55 : vector<8x128xf32>
    %cst_20 = arith.constant 1.000000e+00 : f32
    %57 = vector.broadcast %cst_20 : f32 to vector<8x128xf32>
    %58 = arith.addf %57, %56 : vector<8x128xf32>
    %59 = arith.divf %57, %58 : vector<8x128xf32>
    %60 = vector.extract_strided_slice %22 {offsets = [0, 256], sizes = [8, 128], strides = [1, 1]} : vector<8x512xf32> to vector<8x128xf32>
    %61 = math.tanh %60 : vector<8x128xf32>
    %62 = vector.extract_strided_slice %22 {offsets = [0, 384], sizes = [8, 128], strides = [1, 1]} : vector<8x512xf32> to vector<8x128xf32>
    %63 = arith.negf %62 : vector<8x128xf32>
    %64 = math.exp %63 : vector<8x128xf32>
    %cst_21 = arith.constant 1.000000e+00 : f32
    %65 = vector.broadcast %cst_21 : f32 to vector<8x128xf32>
    %66 = arith.addf %65, %64 : vector<8x128xf32>
    %67 = arith.divf %65, %66 : vector<8x128xf32>
    %68 = arith.mulf %59, %7 : vector<8x128xf32>
    %69 = arith.mulf %53, %61 : vector<8x128xf32>
    %70 = arith.addf %68, %69 : vector<8x128xf32>
    %71 = math.tanh %70 : vector<8x128xf32>
    %72 = arith.mulf %67, %71 : vector<8x128xf32>
    %73 = arith.index_cast %9 : i32 to index
    %c0_22 = arith.constant 0 : index
    %74 = vector.load %arg10[%73, %c0_22] : memref<64x128xf32, #tpu.memory_space<vmem>>, vector<8x128xf32>
    tpu.vector_store %arg10[%73, %c0_22], %47 {strides = array<i32>} : memref<64x128xf32, #tpu.memory_space<vmem>>, vector<8x128xf32>,
    %75 = arith.index_cast %12 : i32 to index
    %c0_23 = arith.constant 0 : index
    %76 = vector.load %arg11[%75, %c0_23] : memref<64x128xf32, #tpu.memory_space<vmem>>, vector<8x128xf32>
    tpu.vector_store %arg11[%75, %c0_23], %72 {strides = array<i32>} : memref<64x128xf32, #tpu.memory_space<vmem>>, vector<8x128xf32>,
    %c1_i32 = arith.constant 1 : i32
    %c8_i32_24 = arith.constant 8 : i32
    %77 = arith.muli %c1_i32, %c8_i32_24 : i32
    %78 = tpu.assume_multiple %77, 8 : i32
    %c7_i32_25 = arith.constant 7 : i32
    %79 = arith.subi %c7_i32_25, %c1_i32 : i32
    %c8_i32_26 = arith.constant 8 : i32
    %80 = arith.muli %79, %c8_i32_26 : i32
    %81 = tpu.assume_multiple %80, 8 : i32
    %82 = arith.index_cast %78 : i32 to index
    %c0_27 = arith.constant 0 : index
    %83 = vector.load %arg9[%82, %c0_27] : memref<64x1024xf32, #tpu.memory_space<vmem>>, vector<8x512xf32>
    %c0_28 = arith.constant 0 : index
    %c0_29 = arith.constant 0 : index
    %84 = vector.load %arg3[%c0_28, %c0_29] : memref<128x512xf32, #tpu.memory_space<vmem>>, vector<128x512xf32>
    %cst_30 = arith.constant dense<0.000000e+00> : vector<8x512xf32>
    %85 = tpu.matmul %47, %84, %cst_30 {dimension_numbers = #tpu.dot_dimension_numbers<[1], [0], [0], [1], [0, 0, 1, 1], [], []>} : vector<8x128xf32>, vector<128x512xf32>, vector<8x512xf32> -> vector<8x512xf32>
    %86 = arith.addf %83, %85 : vector<8x512xf32>
    %87 = arith.index_cast %81 : i32 to index
    %c512_31 = arith.constant 512 : index
    %88 = vector.load %arg9[%87, %c512_31] : memref<64x1024xf32, #tpu.memory_space<vmem>>, vector<8x512xf32>
    %c0_32 = arith.constant 0 : index
    %c0_33 = arith.constant 0 : index
    %89 = vector.load %arg4[%c0_32, %c0_33] : memref<128x512xf32, #tpu.memory_space<vmem>>, vector<128x512xf32>
    %cst_34 = arith.constant dense<0.000000e+00> : vector<8x512xf32>
    %90 = tpu.matmul %72, %89, %cst_34 {dimension_numbers = #tpu.dot_dimension_numbers<[1], [0], [0], [1], [0, 0, 1, 1], [], []>} : vector<8x128xf32>, vector<128x512xf32>, vector<8x512xf32> -> vector<8x512xf32>
    %91 = arith.addf %88, %90 : vector<8x512xf32>
    %92 = vector.extract_strided_slice %86 {offsets = [0, 0], sizes = [8, 128], strides = [1, 1]} : vector<8x512xf32> to vector<8x128xf32>
    %93 = arith.negf %92 : vector<8x128xf32>
    %94 = math.exp %93 : vector<8x128xf32>
    %cst_35 = arith.constant 1.000000e+00 : f32
    %95 = vector.broadcast %cst_35 : f32 to vector<8x128xf32>
    %96 = arith.addf %95, %94 : vector<8x128xf32>
    %97 = arith.divf %95, %96 : vector<8x128xf32>
    %98 = vector.extract_strided_slice %86 {offsets = [0, 128], sizes = [8, 128], strides = [1, 1]} : vector<8x512xf32> to vector<8x128xf32>
    %99 = arith.negf %98 : vector<8x128xf32>
    %100 = math.exp %99 : vector<8x128xf32>
    %cst_36 = arith.constant 1.000000e+00 : f32
    %101 = vector.broadcast %cst_36 : f32 to vector<8x128xf32>
    %102 = arith.addf %101, %100 : vector<8x128xf32>
    %103 = arith.divf %101, %102 : vector<8x128xf32>
    %104 = vector.extract_strided_slice %86 {offsets = [0, 256], sizes = [8, 128], strides = [1, 1]} : vector<8x512xf32> to vector<8x128xf32>
    %105 = math.tanh %104 : vector<8x128xf32>
    %106 = vector.extract_strided_slice %86 {offsets = [0, 384], sizes = [8, 128], strides = [1, 1]} : vector<8x512xf32> to vector<8x128xf32>
    %107 = arith.negf %106 : vector<8x128xf32>
    %108 = math.exp %107 : vector<8x128xf32>
    %cst_37 = arith.constant 1.000000e+00 : f32
    %109 = vector.broadcast %cst_37 : f32 to vector<8x128xf32>
    %110 = arith.addf %109, %108 : vector<8x128xf32>
    %111 = arith.divf %109, %110 : vector<8x128xf32>
    %112 = arith.mulf %103, %45 : vector<8x128xf32>
    %113 = arith.mulf %97, %105 : vector<8x128xf32>
    %114 = arith.addf %112, %113 : vector<8x128xf32>
    %115 = math.tanh %114 : vector<8x128xf32>
    %116 = arith.mulf %111, %115 : vector<8x128xf32>
    %117 = vector.extract_strided_slice %91 {offsets = [0, 0], sizes = [8, 128], strides = [1, 1]} : vector<8x512xf32> to vector<8x128xf32>
    %118 = arith.negf %117 : vector<8x128xf32>
    %119 = math.exp %118 : vector<8x128xf32>
    %cst_38 = arith.constant 1.000000e+00 : f32
    %120 = vector.broadcast %cst_38 : f32 to vector<8x128xf32>
    %121 = arith.addf %120, %119 : vector<8x128xf32>
    %122 = arith.divf %120, %121 : vector<8x128xf32>
    %123 = vector.extract_strided_slice %91 {offsets = [0, 128], sizes = [8, 128], strides = [1, 1]} : vector<8x512xf32> to vector<8x128xf32>
    %124 = arith.negf %123 : vector<8x128xf32>
    %125 = math.exp %124 : vector<8x128xf32>
    %cst_39 = arith.constant 1.000000e+00 : f32
    %126 = vector.broadcast %cst_39 : f32 to vector<8x128xf32>
    %127 = arith.addf %126, %125 : vector<8x128xf32>
    %128 = arith.divf %126, %127 : vector<8x128xf32>
    %129 = vector.extract_strided_slice %91 {offsets = [0, 256], sizes = [8, 128], strides = [1, 1]} : vector<8x512xf32> to vector<8x128xf32>
    %130 = math.tanh %129 : vector<8x128xf32>
    %131 = vector.extract_strided_slice %91 {offsets = [0, 384], sizes = [8, 128], strides = [1, 1]} : vector<8x512xf32> to vector<8x128xf32>
    %132 = arith.negf %131 : vector<8x128xf32>
    %133 = math.exp %132 : vector<8x128xf32>
    %cst_40 = arith.constant 1.000000e+00 : f32
    %134 = vector.broadcast %cst_40 : f32 to vector<8x128xf32>
    %135 = arith.addf %134, %133 : vector<8x128xf32>
    %136 = arith.divf %134, %135 : vector<8x128xf32>
    %137 = arith.mulf %128, %70 : vector<8x128xf32>
    %138 = arith.mulf %122, %130 : vector<8x128xf32>
    %139 = arith.addf %137, %138 : vector<8x128xf32>
    %140 = math.tanh %139 : vector<8x128xf32>
    %141 = arith.mulf %136, %140 : vector<8x128xf32>
    %142 = arith.index_cast %78 : i32 to index
    %c0_41 = arith.constant 0 : index
    %143 = vector.load %arg10[%142, %c0_41] : memref<64x128xf32, #tpu.memory_space<vmem>>, vector<8x128xf32>
    tpu.vector_store %arg10[%142, %c0_41], %116 {strides = array<i32>} : memref<64x128xf32, #tpu.memory_space<vmem>>, vector<8x128xf32>,
    %144 = arith.index_cast %81 : i32 to index
    %c0_42 = arith.constant 0 : index
    %145 = vector.load %arg11[%144, %c0_42] : memref<64x128xf32, #tpu.memory_space<vmem>>, vector<8x128xf32>
    tpu.vector_store %arg11[%144, %c0_42], %141 {strides = array<i32>} : memref<64x128xf32, #tpu.memory_space<vmem>>, vector<8x128xf32>,
    %c2_i32 = arith.constant 2 : i32
    %c8_i32_43 = arith.constant 8 : i32
    %146 = arith.muli %c2_i32, %c8_i32_43 : i32
    %147 = tpu.assume_multiple %146, 8 : i32
    %c7_i32_44 = arith.constant 7 : i32
    %148 = arith.subi %c7_i32_44, %c2_i32 : i32
    %c8_i32_45 = arith.constant 8 : i32
    %149 = arith.muli %148, %c8_i32_45 : i32
    %150 = tpu.assume_multiple %149, 8 : i32
    %151 = arith.index_cast %147 : i32 to index
    %c0_46 = arith.constant 0 : index
    %152 = vector.load %arg9[%151, %c0_46] : memref<64x1024xf32, #tpu.memory_space<vmem>>, vector<8x512xf32>
    %c0_47 = arith.constant 0 : index
    %c0_48 = arith.constant 0 : index
    %153 = vector.load %arg3[%c0_47, %c0_48] : memref<128x512xf32, #tpu.memory_space<vmem>>, vector<128x512xf32>
    %cst_49 = arith.constant dense<0.000000e+00> : vector<8x512xf32>
    %154 = tpu.matmul %116, %153, %cst_49 {dimension_numbers = #tpu.dot_dimension_numbers<[1], [0], [0], [1], [0, 0, 1, 1], [], []>} : vector<8x128xf32>, vector<128x512xf32>, vector<8x512xf32> -> vector<8x512xf32>
    %155 = arith.addf %152, %154 : vector<8x512xf32>
    %156 = arith.index_cast %150 : i32 to index
    %c512_50 = arith.constant 512 : index
    %157 = vector.load %arg9[%156, %c512_50] : memref<64x1024xf32, #tpu.memory_space<vmem>>, vector<8x512xf32>
    %c0_51 = arith.constant 0 : index
    %c0_52 = arith.constant 0 : index
    %158 = vector.load %arg4[%c0_51, %c0_52] : memref<128x512xf32, #tpu.memory_space<vmem>>, vector<128x512xf32>
    %cst_53 = arith.constant dense<0.000000e+00> : vector<8x512xf32>
    %159 = tpu.matmul %141, %158, %cst_53 {dimension_numbers = #tpu.dot_dimension_numbers<[1], [0], [0], [1], [0, 0, 1, 1], [], []>} : vector<8x128xf32>, vector<128x512xf32>, vector<8x512xf32> -> vector<8x512xf32>
    %160 = arith.addf %157, %159 : vector<8x512xf32>
    %161 = vector.extract_strided_slice %155 {offsets = [0, 0], sizes = [8, 128], strides = [1, 1]} : vector<8x512xf32> to vector<8x128xf32>
    %162 = arith.negf %161 : vector<8x128xf32>
    %163 = math.exp %162 : vector<8x128xf32>
    %cst_54 = arith.constant 1.000000e+00 : f32
    %164 = vector.broadcast %cst_54 : f32 to vector<8x128xf32>
    %165 = arith.addf %164, %163 : vector<8x128xf32>
    %166 = arith.divf %164, %165 : vector<8x128xf32>
    %167 = vector.extract_strided_slice %155 {offsets = [0, 128], sizes = [8, 128], strides = [1, 1]} : vector<8x512xf32> to vector<8x128xf32>
    %168 = arith.negf %167 : vector<8x128xf32>
    %169 = math.exp %168 : vector<8x128xf32>
    %cst_55 = arith.constant 1.000000e+00 : f32
    %170 = vector.broadcast %cst_55 : f32 to vector<8x128xf32>
    %171 = arith.addf %170, %169 : vector<8x128xf32>
    %172 = arith.divf %170, %171 : vector<8x128xf32>
    %173 = vector.extract_strided_slice %155 {offsets = [0, 256], sizes = [8, 128], strides = [1, 1]} : vector<8x512xf32> to vector<8x128xf32>
    %174 = math.tanh %173 : vector<8x128xf32>
    %175 = vector.extract_strided_slice %155 {offsets = [0, 384], sizes = [8, 128], strides = [1, 1]} : vector<8x512xf32> to vector<8x128xf32>
    %176 = arith.negf %175 : vector<8x128xf32>
    %177 = math.exp %176 : vector<8x128xf32>
    %cst_56 = arith.constant 1.000000e+00 : f32
    %178 = vector.broadcast %cst_56 : f32 to vector<8x128xf32>
    %179 = arith.addf %178, %177 : vector<8x128xf32>
    %180 = arith.divf %178, %179 : vector<8x128xf32>
    %181 = arith.mulf %172, %114 : vector<8x128xf32>
    %182 = arith.mulf %166, %174 : vector<8x128xf32>
    %183 = arith.addf %181, %182 : vector<8x128xf32>
    %184 = math.tanh %183 : vector<8x128xf32>
    %185 = arith.mulf %180, %184 : vector<8x128xf32>
    %186 = vector.extract_strided_slice %160 {offsets = [0, 0], sizes = [8, 128], strides = [1, 1]} : vector<8x512xf32> to vector<8x128xf32>
    %187 = arith.negf %186 : vector<8x128xf32>
    %188 = math.exp %187 : vector<8x128xf32>
    %cst_57 = arith.constant 1.000000e+00 : f32
    %189 = vector.broadcast %cst_57 : f32 to vector<8x128xf32>
    %190 = arith.addf %189, %188 : vector<8x128xf32>
    %191 = arith.divf %189, %190 : vector<8x128xf32>
    %192 = vector.extract_strided_slice %160 {offsets = [0, 128], sizes = [8, 128], strides = [1, 1]} : vector<8x512xf32> to vector<8x128xf32>
    %193 = arith.negf %192 : vector<8x128xf32>
    %194 = math.exp %193 : vector<8x128xf32>
    %cst_58 = arith.constant 1.000000e+00 : f32
    %195 = vector.broadcast %cst_58 : f32 to vector<8x128xf32>
    %196 = arith.addf %195, %194 : vector<8x128xf32>
    %197 = arith.divf %195, %196 : vector<8x128xf32>
    %198 = vector.extract_strided_slice %160 {offsets = [0, 256], sizes = [8, 128], strides = [1, 1]} : vector<8x512xf32> to vector<8x128xf32>
    %199 = math.tanh %198 : vector<8x128xf32>
    %200 = vector.extract_strided_slice %160 {offsets = [0, 384], sizes = [8, 128], strides = [1, 1]} : vector<8x512xf32> to vector<8x128xf32>
    %201 = arith.negf %200 : vector<8x128xf32>
    %202 = math.exp %201 : vector<8x128xf32>
    %cst_59 = arith.constant 1.000000e+00 : f32
    %203 = vector.broadcast %cst_59 : f32 to vector<8x128xf32>
    %204 = arith.addf %203, %202 : vector<8x128xf32>
    %205 = arith.divf %203, %204 : vector<8x128xf32>
    %206 = arith.mulf %197, %139 : vector<8x128xf32>
    %207 = arith.mulf %191, %199 : vector<8x128xf32>
    %208 = arith.addf %206, %207 : vector<8x128xf32>
    %209 = math.tanh %208 : vector<8x128xf32>
    %210 = arith.mulf %205, %209 : vector<8x128xf32>
    %211 = arith.index_cast %147 : i32 to index
    %c0_60 = arith.constant 0 : index
    %212 = vector.load %arg10[%211, %c0_60] : memref<64x128xf32, #tpu.memory_space<vmem>>, vector<8x128xf32>
    tpu.vector_store %arg10[%211, %c0_60], %185 {strides = array<i32>} : memref<64x128xf32, #tpu.memory_space<vmem>>, vector<8x128xf32>,
    %213 = arith.index_cast %150 : i32 to index
    %c0_61 = arith.constant 0 : index
    %214 = vector.load %arg11[%213, %c0_61] : memref<64x128xf32, #tpu.memory_space<vmem>>, vector<8x128xf32>
    tpu.vector_store %arg11[%213, %c0_61], %210 {strides = array<i32>} : memref<64x128xf32, #tpu.memory_space<vmem>>, vector<8x128xf32>,
    %c3_i32 = arith.constant 3 : i32
    %c8_i32_62 = arith.constant 8 : i32
    %215 = arith.muli %c3_i32, %c8_i32_62 : i32
    %216 = tpu.assume_multiple %215, 8 : i32
    %c7_i32_63 = arith.constant 7 : i32
    %217 = arith.subi %c7_i32_63, %c3_i32 : i32
    %c8_i32_64 = arith.constant 8 : i32
    %218 = arith.muli %217, %c8_i32_64 : i32
    %219 = tpu.assume_multiple %218, 8 : i32
    %220 = arith.index_cast %216 : i32 to index
    %c0_65 = arith.constant 0 : index
    %221 = vector.load %arg9[%220, %c0_65] : memref<64x1024xf32, #tpu.memory_space<vmem>>, vector<8x512xf32>
    %c0_66 = arith.constant 0 : index
    %c0_67 = arith.constant 0 : index
    %222 = vector.load %arg3[%c0_66, %c0_67] : memref<128x512xf32, #tpu.memory_space<vmem>>, vector<128x512xf32>
    %cst_68 = arith.constant dense<0.000000e+00> : vector<8x512xf32>
    %223 = tpu.matmul %185, %222, %cst_68 {dimension_numbers = #tpu.dot_dimension_numbers<[1], [0], [0], [1], [0, 0, 1, 1], [], []>} : vector<8x128xf32>, vector<128x512xf32>, vector<8x512xf32> -> vector<8x512xf32>
    %224 = arith.addf %221, %223 : vector<8x512xf32>
    %225 = arith.index_cast %219 : i32 to index
    %c512_69 = arith.constant 512 : index
    %226 = vector.load %arg9[%225, %c512_69] : memref<64x1024xf32, #tpu.memory_space<vmem>>, vector<8x512xf32>
    %c0_70 = arith.constant 0 : index
    %c0_71 = arith.constant 0 : index
    %227 = vector.load %arg4[%c0_70, %c0_71] : memref<128x512xf32, #tpu.memory_space<vmem>>, vector<128x512xf32>
    %cst_72 = arith.constant dense<0.000000e+00> : vector<8x512xf32>
    %228 = tpu.matmul %210, %227, %cst_72 {dimension_numbers = #tpu.dot_dimension_numbers<[1], [0], [0], [1], [0, 0, 1, 1], [], []>} : vector<8x128xf32>, vector<128x512xf32>, vector<8x512xf32> -> vector<8x512xf32>
    %229 = arith.addf %226, %228 : vector<8x512xf32>
    %230 = vector.extract_strided_slice %224 {offsets = [0, 0], sizes = [8, 128], strides = [1, 1]} : vector<8x512xf32> to vector<8x128xf32>
    %231 = arith.negf %230 : vector<8x128xf32>
    %232 = math.exp %231 : vector<8x128xf32>
    %cst_73 = arith.constant 1.000000e+00 : f32
    %233 = vector.broadcast %cst_73 : f32 to vector<8x128xf32>
    %234 = arith.addf %233, %232 : vector<8x128xf32>
    %235 = arith.divf %233, %234 : vector<8x128xf32>
    %236 = vector.extract_strided_slice %224 {offsets = [0, 128], sizes = [8, 128], strides = [1, 1]} : vector<8x512xf32> to vector<8x128xf32>
    %237 = arith.negf %236 : vector<8x128xf32>
    %238 = math.exp %237 : vector<8x128xf32>
    %cst_74 = arith.constant 1.000000e+00 : f32
    %239 = vector.broadcast %cst_74 : f32 to vector<8x128xf32>
    %240 = arith.addf %239, %238 : vector<8x128xf32>
    %241 = arith.divf %239, %240 : vector<8x128xf32>
    %242 = vector.extract_strided_slice %224 {offsets = [0, 256], sizes = [8, 128], strides = [1, 1]} : vector<8x512xf32> to vector<8x128xf32>
    %243 = math.tanh %242 : vector<8x128xf32>
    %244 = vector.extract_strided_slice %224 {offsets = [0, 384], sizes = [8, 128], strides = [1, 1]} : vector<8x512xf32> to vector<8x128xf32>
    %245 = arith.negf %244 : vector<8x128xf32>
    %246 = math.exp %245 : vector<8x128xf32>
    %cst_75 = arith.constant 1.000000e+00 : f32
    %247 = vector.broadcast %cst_75 : f32 to vector<8x128xf32>
    %248 = arith.addf %247, %246 : vector<8x128xf32>
    %249 = arith.divf %247, %248 : vector<8x128xf32>
    %250 = arith.mulf %241, %183 : vector<8x128xf32>
    %251 = arith.mulf %235, %243 : vector<8x128xf32>
    %252 = arith.addf %250, %251 : vector<8x128xf32>
    %253 = math.tanh %252 : vector<8x128xf32>
    %254 = arith.mulf %249, %253 : vector<8x128xf32>
    %255 = vector.extract_strided_slice %229 {offsets = [0, 0], sizes = [8, 128], strides = [1, 1]} : vector<8x512xf32> to vector<8x128xf32>
    %256 = arith.negf %255 : vector<8x128xf32>
    %257 = math.exp %256 : vector<8x128xf32>
    %cst_76 = arith.constant 1.000000e+00 : f32
    %258 = vector.broadcast %cst_76 : f32 to vector<8x128xf32>
    %259 = arith.addf %258, %257 : vector<8x128xf32>
    %260 = arith.divf %258, %259 : vector<8x128xf32>
    %261 = vector.extract_strided_slice %229 {offsets = [0, 128], sizes = [8, 128], strides = [1, 1]} : vector<8x512xf32> to vector<8x128xf32>
    %262 = arith.negf %261 : vector<8x128xf32>
    %263 = math.exp %262 : vector<8x128xf32>
    %cst_77 = arith.constant 1.000000e+00 : f32
    %264 = vector.broadcast %cst_77 : f32 to vector<8x128xf32>
    %265 = arith.addf %264, %263 : vector<8x128xf32>
    %266 = arith.divf %264, %265 : vector<8x128xf32>
    %267 = vector.extract_strided_slice %229 {offsets = [0, 256], sizes = [8, 128], strides = [1, 1]} : vector<8x512xf32> to vector<8x128xf32>
    %268 = math.tanh %267 : vector<8x128xf32>
    %269 = vector.extract_strided_slice %229 {offsets = [0, 384], sizes = [8, 128], strides = [1, 1]} : vector<8x512xf32> to vector<8x128xf32>
    %270 = arith.negf %269 : vector<8x128xf32>
    %271 = math.exp %270 : vector<8x128xf32>
    %cst_78 = arith.constant 1.000000e+00 : f32
    %272 = vector.broadcast %cst_78 : f32 to vector<8x128xf32>
    %273 = arith.addf %272, %271 : vector<8x128xf32>
    %274 = arith.divf %272, %273 : vector<8x128xf32>
    %275 = arith.mulf %266, %208 : vector<8x128xf32>
    %276 = arith.mulf %260, %268 : vector<8x128xf32>
    %277 = arith.addf %275, %276 : vector<8x128xf32>
    %278 = math.tanh %277 : vector<8x128xf32>
    %279 = arith.mulf %274, %278 : vector<8x128xf32>
    %280 = arith.index_cast %216 : i32 to index
    %c0_79 = arith.constant 0 : index
    %281 = vector.load %arg10[%280, %c0_79] : memref<64x128xf32, #tpu.memory_space<vmem>>, vector<8x128xf32>
    tpu.vector_store %arg10[%280, %c0_79], %254 {strides = array<i32>} : memref<64x128xf32, #tpu.memory_space<vmem>>, vector<8x128xf32>,
    %282 = arith.index_cast %219 : i32 to index
    %c0_80 = arith.constant 0 : index
    %283 = vector.load %arg11[%282, %c0_80] : memref<64x128xf32, #tpu.memory_space<vmem>>, vector<8x128xf32>
    tpu.vector_store %arg11[%282, %c0_80], %279 {strides = array<i32>} : memref<64x128xf32, #tpu.memory_space<vmem>>, vector<8x128xf32>,
    %c4_i32 = arith.constant 4 : i32
    %c8_i32_81 = arith.constant 8 : i32
    %284 = arith.muli %c4_i32, %c8_i32_81 : i32
    %285 = tpu.assume_multiple %284, 8 : i32
    %c7_i32_82 = arith.constant 7 : i32
    %286 = arith.subi %c7_i32_82, %c4_i32 : i32
    %c8_i32_83 = arith.constant 8 : i32
    %287 = arith.muli %286, %c8_i32_83 : i32
    %288 = tpu.assume_multiple %287, 8 : i32
    %289 = arith.index_cast %285 : i32 to index
    %c0_84 = arith.constant 0 : index
    %290 = vector.load %arg9[%289, %c0_84] : memref<64x1024xf32, #tpu.memory_space<vmem>>, vector<8x512xf32>
    %c0_85 = arith.constant 0 : index
    %c0_86 = arith.constant 0 : index
    %291 = vector.load %arg3[%c0_85, %c0_86] : memref<128x512xf32, #tpu.memory_space<vmem>>, vector<128x512xf32>
    %cst_87 = arith.constant dense<0.000000e+00> : vector<8x512xf32>
    %292 = tpu.matmul %254, %291, %cst_87 {dimension_numbers = #tpu.dot_dimension_numbers<[1], [0], [0], [1], [0, 0, 1, 1], [], []>} : vector<8x128xf32>, vector<128x512xf32>, vector<8x512xf32> -> vector<8x512xf32>
    %293 = arith.addf %290, %292 : vector<8x512xf32>
    %294 = arith.index_cast %288 : i32 to index
    %c512_88 = arith.constant 512 : index
    %295 = vector.load %arg9[%294, %c512_88] : memref<64x1024xf32, #tpu.memory_space<vmem>>, vector<8x512xf32>
    %c0_89 = arith.constant 0 : index
    %c0_90 = arith.constant 0 : index
    %296 = vector.load %arg4[%c0_89, %c0_90] : memref<128x512xf32, #tpu.memory_space<vmem>>, vector<128x512xf32>
    %cst_91 = arith.constant dense<0.000000e+00> : vector<8x512xf32>
    %297 = tpu.matmul %279, %296, %cst_91 {dimension_numbers = #tpu.dot_dimension_numbers<[1], [0], [0], [1], [0, 0, 1, 1], [], []>} : vector<8x128xf32>, vector<128x512xf32>, vector<8x512xf32> -> vector<8x512xf32>
    %298 = arith.addf %295, %297 : vector<8x512xf32>
    %299 = vector.extract_strided_slice %293 {offsets = [0, 0], sizes = [8, 128], strides = [1, 1]} : vector<8x512xf32> to vector<8x128xf32>
    %300 = arith.negf %299 : vector<8x128xf32>
    %301 = math.exp %300 : vector<8x128xf32>
    %cst_92 = arith.constant 1.000000e+00 : f32
    %302 = vector.broadcast %cst_92 : f32 to vector<8x128xf32>
    %303 = arith.addf %302, %301 : vector<8x128xf32>
    %304 = arith.divf %302, %303 : vector<8x128xf32>
    %305 = vector.extract_strided_slice %293 {offsets = [0, 128], sizes = [8, 128], strides = [1, 1]} : vector<8x512xf32> to vector<8x128xf32>
    %306 = arith.negf %305 : vector<8x128xf32>
    %307 = math.exp %306 : vector<8x128xf32>
    %cst_93 = arith.constant 1.000000e+00 : f32
    %308 = vector.broadcast %cst_93 : f32 to vector<8x128xf32>
    %309 = arith.addf %308, %307 : vector<8x128xf32>
    %310 = arith.divf %308, %309 : vector<8x128xf32>
    %311 = vector.extract_strided_slice %293 {offsets = [0, 256], sizes = [8, 128], strides = [1, 1]} : vector<8x512xf32> to vector<8x128xf32>
    %312 = math.tanh %311 : vector<8x128xf32>
    %313 = vector.extract_strided_slice %293 {offsets = [0, 384], sizes = [8, 128], strides = [1, 1]} : vector<8x512xf32> to vector<8x128xf32>
    %314 = arith.negf %313 : vector<8x128xf32>
    %315 = math.exp %314 : vector<8x128xf32>
    %cst_94 = arith.constant 1.000000e+00 : f32
    %316 = vector.broadcast %cst_94 : f32 to vector<8x128xf32>
    %317 = arith.addf %316, %315 : vector<8x128xf32>
    %318 = arith.divf %316, %317 : vector<8x128xf32>
    %319 = arith.mulf %310, %252 : vector<8x128xf32>
    %320 = arith.mulf %304, %312 : vector<8x128xf32>
    %321 = arith.addf %319, %320 : vector<8x128xf32>
    %322 = math.tanh %321 : vector<8x128xf32>
    %323 = arith.mulf %318, %322 : vector<8x128xf32>
    %324 = vector.extract_strided_slice %298 {offsets = [0, 0], sizes = [8, 128], strides = [1, 1]} : vector<8x512xf32> to vector<8x128xf32>
    %325 = arith.negf %324 : vector<8x128xf32>
    %326 = math.exp %325 : vector<8x128xf32>
    %cst_95 = arith.constant 1.000000e+00 : f32
    %327 = vector.broadcast %cst_95 : f32 to vector<8x128xf32>
    %328 = arith.addf %327, %326 : vector<8x128xf32>
    %329 = arith.divf %327, %328 : vector<8x128xf32>
    %330 = vector.extract_strided_slice %298 {offsets = [0, 128], sizes = [8, 128], strides = [1, 1]} : vector<8x512xf32> to vector<8x128xf32>
    %331 = arith.negf %330 : vector<8x128xf32>
    %332 = math.exp %331 : vector<8x128xf32>
    %cst_96 = arith.constant 1.000000e+00 : f32
    %333 = vector.broadcast %cst_96 : f32 to vector<8x128xf32>
    %334 = arith.addf %333, %332 : vector<8x128xf32>
    %335 = arith.divf %333, %334 : vector<8x128xf32>
    %336 = vector.extract_strided_slice %298 {offsets = [0, 256], sizes = [8, 128], strides = [1, 1]} : vector<8x512xf32> to vector<8x128xf32>
    %337 = math.tanh %336 : vector<8x128xf32>
    %338 = vector.extract_strided_slice %298 {offsets = [0, 384], sizes = [8, 128], strides = [1, 1]} : vector<8x512xf32> to vector<8x128xf32>
    %339 = arith.negf %338 : vector<8x128xf32>
    %340 = math.exp %339 : vector<8x128xf32>
    %cst_97 = arith.constant 1.000000e+00 : f32
    %341 = vector.broadcast %cst_97 : f32 to vector<8x128xf32>
    %342 = arith.addf %341, %340 : vector<8x128xf32>
    %343 = arith.divf %341, %342 : vector<8x128xf32>
    %344 = arith.mulf %335, %277 : vector<8x128xf32>
    %345 = arith.mulf %329, %337 : vector<8x128xf32>
    %346 = arith.addf %344, %345 : vector<8x128xf32>
    %347 = math.tanh %346 : vector<8x128xf32>
    %348 = arith.mulf %343, %347 : vector<8x128xf32>
    %349 = arith.index_cast %285 : i32 to index
    %c0_98 = arith.constant 0 : index
    %350 = vector.load %arg10[%349, %c0_98] : memref<64x128xf32, #tpu.memory_space<vmem>>, vector<8x128xf32>
    tpu.vector_store %arg10[%349, %c0_98], %323 {strides = array<i32>} : memref<64x128xf32, #tpu.memory_space<vmem>>, vector<8x128xf32>,
    %351 = arith.index_cast %288 : i32 to index
    %c0_99 = arith.constant 0 : index
    %352 = vector.load %arg11[%351, %c0_99] : memref<64x128xf32, #tpu.memory_space<vmem>>, vector<8x128xf32>
    tpu.vector_store %arg11[%351, %c0_99], %348 {strides = array<i32>} : memref<64x128xf32, #tpu.memory_space<vmem>>, vector<8x128xf32>,
    %c5_i32 = arith.constant 5 : i32
    %c8_i32_100 = arith.constant 8 : i32
    %353 = arith.muli %c5_i32, %c8_i32_100 : i32
    %354 = tpu.assume_multiple %353, 8 : i32
    %c7_i32_101 = arith.constant 7 : i32
    %355 = arith.subi %c7_i32_101, %c5_i32 : i32
    %c8_i32_102 = arith.constant 8 : i32
    %356 = arith.muli %355, %c8_i32_102 : i32
    %357 = tpu.assume_multiple %356, 8 : i32
    %358 = arith.index_cast %354 : i32 to index
    %c0_103 = arith.constant 0 : index
    %359 = vector.load %arg9[%358, %c0_103] : memref<64x1024xf32, #tpu.memory_space<vmem>>, vector<8x512xf32>
    %c0_104 = arith.constant 0 : index
    %c0_105 = arith.constant 0 : index
    %360 = vector.load %arg3[%c0_104, %c0_105] : memref<128x512xf32, #tpu.memory_space<vmem>>, vector<128x512xf32>
    %cst_106 = arith.constant dense<0.000000e+00> : vector<8x512xf32>
    %361 = tpu.matmul %323, %360, %cst_106 {dimension_numbers = #tpu.dot_dimension_numbers<[1], [0], [0], [1], [0, 0, 1, 1], [], []>} : vector<8x128xf32>, vector<128x512xf32>, vector<8x512xf32> -> vector<8x512xf32>
    %362 = arith.addf %359, %361 : vector<8x512xf32>
    %363 = arith.index_cast %357 : i32 to index
    %c512_107 = arith.constant 512 : index
    %364 = vector.load %arg9[%363, %c512_107] : memref<64x1024xf32, #tpu.memory_space<vmem>>, vector<8x512xf32>
    %c0_108 = arith.constant 0 : index
    %c0_109 = arith.constant 0 : index
    %365 = vector.load %arg4[%c0_108, %c0_109] : memref<128x512xf32, #tpu.memory_space<vmem>>, vector<128x512xf32>
    %cst_110 = arith.constant dense<0.000000e+00> : vector<8x512xf32>
    %366 = tpu.matmul %348, %365, %cst_110 {dimension_numbers = #tpu.dot_dimension_numbers<[1], [0], [0], [1], [0, 0, 1, 1], [], []>} : vector<8x128xf32>, vector<128x512xf32>, vector<8x512xf32> -> vector<8x512xf32>
    %367 = arith.addf %364, %366 : vector<8x512xf32>
    %368 = vector.extract_strided_slice %362 {offsets = [0, 0], sizes = [8, 128], strides = [1, 1]} : vector<8x512xf32> to vector<8x128xf32>
    %369 = arith.negf %368 : vector<8x128xf32>
    %370 = math.exp %369 : vector<8x128xf32>
    %cst_111 = arith.constant 1.000000e+00 : f32
    %371 = vector.broadcast %cst_111 : f32 to vector<8x128xf32>
    %372 = arith.addf %371, %370 : vector<8x128xf32>
    %373 = arith.divf %371, %372 : vector<8x128xf32>
    %374 = vector.extract_strided_slice %362 {offsets = [0, 128], sizes = [8, 128], strides = [1, 1]} : vector<8x512xf32> to vector<8x128xf32>
    %375 = arith.negf %374 : vector<8x128xf32>
    %376 = math.exp %375 : vector<8x128xf32>
    %cst_112 = arith.constant 1.000000e+00 : f32
    %377 = vector.broadcast %cst_112 : f32 to vector<8x128xf32>
    %378 = arith.addf %377, %376 : vector<8x128xf32>
    %379 = arith.divf %377, %378 : vector<8x128xf32>
    %380 = vector.extract_strided_slice %362 {offsets = [0, 256], sizes = [8, 128], strides = [1, 1]} : vector<8x512xf32> to vector<8x128xf32>
    %381 = math.tanh %380 : vector<8x128xf32>
    %382 = vector.extract_strided_slice %362 {offsets = [0, 384], sizes = [8, 128], strides = [1, 1]} : vector<8x512xf32> to vector<8x128xf32>
    %383 = arith.negf %382 : vector<8x128xf32>
    %384 = math.exp %383 : vector<8x128xf32>
    %cst_113 = arith.constant 1.000000e+00 : f32
    %385 = vector.broadcast %cst_113 : f32 to vector<8x128xf32>
    %386 = arith.addf %385, %384 : vector<8x128xf32>
    %387 = arith.divf %385, %386 : vector<8x128xf32>
    %388 = arith.mulf %379, %321 : vector<8x128xf32>
    %389 = arith.mulf %373, %381 : vector<8x128xf32>
    %390 = arith.addf %388, %389 : vector<8x128xf32>
    %391 = math.tanh %390 : vector<8x128xf32>
    %392 = arith.mulf %387, %391 : vector<8x128xf32>
    %393 = vector.extract_strided_slice %367 {offsets = [0, 0], sizes = [8, 128], strides = [1, 1]} : vector<8x512xf32> to vector<8x128xf32>
    %394 = arith.negf %393 : vector<8x128xf32>
    %395 = math.exp %394 : vector<8x128xf32>
    %cst_114 = arith.constant 1.000000e+00 : f32
    %396 = vector.broadcast %cst_114 : f32 to vector<8x128xf32>
    %397 = arith.addf %396, %395 : vector<8x128xf32>
    %398 = arith.divf %396, %397 : vector<8x128xf32>
    %399 = vector.extract_strided_slice %367 {offsets = [0, 128], sizes = [8, 128], strides = [1, 1]} : vector<8x512xf32> to vector<8x128xf32>
    %400 = arith.negf %399 : vector<8x128xf32>
    %401 = math.exp %400 : vector<8x128xf32>
    %cst_115 = arith.constant 1.000000e+00 : f32
    %402 = vector.broadcast %cst_115 : f32 to vector<8x128xf32>
    %403 = arith.addf %402, %401 : vector<8x128xf32>
    %404 = arith.divf %402, %403 : vector<8x128xf32>
    %405 = vector.extract_strided_slice %367 {offsets = [0, 256], sizes = [8, 128], strides = [1, 1]} : vector<8x512xf32> to vector<8x128xf32>
    %406 = math.tanh %405 : vector<8x128xf32>
    %407 = vector.extract_strided_slice %367 {offsets = [0, 384], sizes = [8, 128], strides = [1, 1]} : vector<8x512xf32> to vector<8x128xf32>
    %408 = arith.negf %407 : vector<8x128xf32>
    %409 = math.exp %408 : vector<8x128xf32>
    %cst_116 = arith.constant 1.000000e+00 : f32
    %410 = vector.broadcast %cst_116 : f32 to vector<8x128xf32>
    %411 = arith.addf %410, %409 : vector<8x128xf32>
    %412 = arith.divf %410, %411 : vector<8x128xf32>
    %413 = arith.mulf %404, %346 : vector<8x128xf32>
    %414 = arith.mulf %398, %406 : vector<8x128xf32>
    %415 = arith.addf %413, %414 : vector<8x128xf32>
    %416 = math.tanh %415 : vector<8x128xf32>
    %417 = arith.mulf %412, %416 : vector<8x128xf32>
    %418 = arith.index_cast %354 : i32 to index
    %c0_117 = arith.constant 0 : index
    %419 = vector.load %arg10[%418, %c0_117] : memref<64x128xf32, #tpu.memory_space<vmem>>, vector<8x128xf32>
    tpu.vector_store %arg10[%418, %c0_117], %392 {strides = array<i32>} : memref<64x128xf32, #tpu.memory_space<vmem>>, vector<8x128xf32>,
    %420 = arith.index_cast %357 : i32 to index
    %c0_118 = arith.constant 0 : index
    %421 = vector.load %arg11[%420, %c0_118] : memref<64x128xf32, #tpu.memory_space<vmem>>, vector<8x128xf32>
    tpu.vector_store %arg11[%420, %c0_118], %417 {strides = array<i32>} : memref<64x128xf32, #tpu.memory_space<vmem>>, vector<8x128xf32>,
    %c6_i32 = arith.constant 6 : i32
    %c8_i32_119 = arith.constant 8 : i32
    %422 = arith.muli %c6_i32, %c8_i32_119 : i32
    %423 = tpu.assume_multiple %422, 8 : i32
    %c7_i32_120 = arith.constant 7 : i32
    %424 = arith.subi %c7_i32_120, %c6_i32 : i32
    %c8_i32_121 = arith.constant 8 : i32
    %425 = arith.muli %424, %c8_i32_121 : i32
    %426 = tpu.assume_multiple %425, 8 : i32
    %427 = arith.index_cast %423 : i32 to index
    %c0_122 = arith.constant 0 : index
    %428 = vector.load %arg9[%427, %c0_122] : memref<64x1024xf32, #tpu.memory_space<vmem>>, vector<8x512xf32>
    %c0_123 = arith.constant 0 : index
    %c0_124 = arith.constant 0 : index
    %429 = vector.load %arg3[%c0_123, %c0_124] : memref<128x512xf32, #tpu.memory_space<vmem>>, vector<128x512xf32>
    %cst_125 = arith.constant dense<0.000000e+00> : vector<8x512xf32>
    %430 = tpu.matmul %392, %429, %cst_125 {dimension_numbers = #tpu.dot_dimension_numbers<[1], [0], [0], [1], [0, 0, 1, 1], [], []>} : vector<8x128xf32>, vector<128x512xf32>, vector<8x512xf32> -> vector<8x512xf32>
    %431 = arith.addf %428, %430 : vector<8x512xf32>
    %432 = arith.index_cast %426 : i32 to index
    %c512_126 = arith.constant 512 : index
    %433 = vector.load %arg9[%432, %c512_126] : memref<64x1024xf32, #tpu.memory_space<vmem>>, vector<8x512xf32>
    %c0_127 = arith.constant 0 : index
    %c0_128 = arith.constant 0 : index
    %434 = vector.load %arg4[%c0_127, %c0_128] : memref<128x512xf32, #tpu.memory_space<vmem>>, vector<128x512xf32>
    %cst_129 = arith.constant dense<0.000000e+00> : vector<8x512xf32>
    %435 = tpu.matmul %417, %434, %cst_129 {dimension_numbers = #tpu.dot_dimension_numbers<[1], [0], [0], [1], [0, 0, 1, 1], [], []>} : vector<8x128xf32>, vector<128x512xf32>, vector<8x512xf32> -> vector<8x512xf32>
    %436 = arith.addf %433, %435 : vector<8x512xf32>
    %437 = vector.extract_strided_slice %431 {offsets = [0, 0], sizes = [8, 128], strides = [1, 1]} : vector<8x512xf32> to vector<8x128xf32>
    %438 = arith.negf %437 : vector<8x128xf32>
    %439 = math.exp %438 : vector<8x128xf32>
    %cst_130 = arith.constant 1.000000e+00 : f32
    %440 = vector.broadcast %cst_130 : f32 to vector<8x128xf32>
    %441 = arith.addf %440, %439 : vector<8x128xf32>
    %442 = arith.divf %440, %441 : vector<8x128xf32>
    %443 = vector.extract_strided_slice %431 {offsets = [0, 128], sizes = [8, 128], strides = [1, 1]} : vector<8x512xf32> to vector<8x128xf32>
    %444 = arith.negf %443 : vector<8x128xf32>
    %445 = math.exp %444 : vector<8x128xf32>
    %cst_131 = arith.constant 1.000000e+00 : f32
    %446 = vector.broadcast %cst_131 : f32 to vector<8x128xf32>
    %447 = arith.addf %446, %445 : vector<8x128xf32>
    %448 = arith.divf %446, %447 : vector<8x128xf32>
    %449 = vector.extract_strided_slice %431 {offsets = [0, 256], sizes = [8, 128], strides = [1, 1]} : vector<8x512xf32> to vector<8x128xf32>
    %450 = math.tanh %449 : vector<8x128xf32>
    %451 = vector.extract_strided_slice %431 {offsets = [0, 384], sizes = [8, 128], strides = [1, 1]} : vector<8x512xf32> to vector<8x128xf32>
    %452 = arith.negf %451 : vector<8x128xf32>
    %453 = math.exp %452 : vector<8x128xf32>
    %cst_132 = arith.constant 1.000000e+00 : f32
    %454 = vector.broadcast %cst_132 : f32 to vector<8x128xf32>
    %455 = arith.addf %454, %453 : vector<8x128xf32>
    %456 = arith.divf %454, %455 : vector<8x128xf32>
    %457 = arith.mulf %448, %390 : vector<8x128xf32>
    %458 = arith.mulf %442, %450 : vector<8x128xf32>
    %459 = arith.addf %457, %458 : vector<8x128xf32>
    %460 = math.tanh %459 : vector<8x128xf32>
    %461 = arith.mulf %456, %460 : vector<8x128xf32>
    %462 = vector.extract_strided_slice %436 {offsets = [0, 0], sizes = [8, 128], strides = [1, 1]} : vector<8x512xf32> to vector<8x128xf32>
    %463 = arith.negf %462 : vector<8x128xf32>
    %464 = math.exp %463 : vector<8x128xf32>
    %cst_133 = arith.constant 1.000000e+00 : f32
    %465 = vector.broadcast %cst_133 : f32 to vector<8x128xf32>
    %466 = arith.addf %465, %464 : vector<8x128xf32>
    %467 = arith.divf %465, %466 : vector<8x128xf32>
    %468 = vector.extract_strided_slice %436 {offsets = [0, 128], sizes = [8, 128], strides = [1, 1]} : vector<8x512xf32> to vector<8x128xf32>
    %469 = arith.negf %468 : vector<8x128xf32>
    %470 = math.exp %469 : vector<8x128xf32>
    %cst_134 = arith.constant 1.000000e+00 : f32
    %471 = vector.broadcast %cst_134 : f32 to vector<8x128xf32>
    %472 = arith.addf %471, %470 : vector<8x128xf32>
    %473 = arith.divf %471, %472 : vector<8x128xf32>
    %474 = vector.extract_strided_slice %436 {offsets = [0, 256], sizes = [8, 128], strides = [1, 1]} : vector<8x512xf32> to vector<8x128xf32>
    %475 = math.tanh %474 : vector<8x128xf32>
    %476 = vector.extract_strided_slice %436 {offsets = [0, 384], sizes = [8, 128], strides = [1, 1]} : vector<8x512xf32> to vector<8x128xf32>
    %477 = arith.negf %476 : vector<8x128xf32>
    %478 = math.exp %477 : vector<8x128xf32>
    %cst_135 = arith.constant 1.000000e+00 : f32
    %479 = vector.broadcast %cst_135 : f32 to vector<8x128xf32>
    %480 = arith.addf %479, %478 : vector<8x128xf32>
    %481 = arith.divf %479, %480 : vector<8x128xf32>
    %482 = arith.mulf %473, %415 : vector<8x128xf32>
    %483 = arith.mulf %467, %475 : vector<8x128xf32>
    %484 = arith.addf %482, %483 : vector<8x128xf32>
    %485 = math.tanh %484 : vector<8x128xf32>
    %486 = arith.mulf %481, %485 : vector<8x128xf32>
    %487 = arith.index_cast %423 : i32 to index
    %c0_136 = arith.constant 0 : index
    %488 = vector.load %arg10[%487, %c0_136] : memref<64x128xf32, #tpu.memory_space<vmem>>, vector<8x128xf32>
    tpu.vector_store %arg10[%487, %c0_136], %461 {strides = array<i32>} : memref<64x128xf32, #tpu.memory_space<vmem>>, vector<8x128xf32>,
    %489 = arith.index_cast %426 : i32 to index
    %c0_137 = arith.constant 0 : index
    %490 = vector.load %arg11[%489, %c0_137] : memref<64x128xf32, #tpu.memory_space<vmem>>, vector<8x128xf32>
    tpu.vector_store %arg11[%489, %c0_137], %486 {strides = array<i32>} : memref<64x128xf32, #tpu.memory_space<vmem>>, vector<8x128xf32>,
    %c7_i32_138 = arith.constant 7 : i32
    %c8_i32_139 = arith.constant 8 : i32
    %491 = arith.muli %c7_i32_138, %c8_i32_139 : i32
    %492 = tpu.assume_multiple %491, 8 : i32
    %c7_i32_140 = arith.constant 7 : i32
    %493 = arith.subi %c7_i32_140, %c7_i32_138 : i32
    %c8_i32_141 = arith.constant 8 : i32
    %494 = arith.muli %493, %c8_i32_141 : i32
    %495 = tpu.assume_multiple %494, 8 : i32
    %496 = arith.index_cast %492 : i32 to index
    %c0_142 = arith.constant 0 : index
    %497 = vector.load %arg9[%496, %c0_142] : memref<64x1024xf32, #tpu.memory_space<vmem>>, vector<8x512xf32>
    %c0_143 = arith.constant 0 : index
    %c0_144 = arith.constant 0 : index
    %498 = vector.load %arg3[%c0_143, %c0_144] : memref<128x512xf32, #tpu.memory_space<vmem>>, vector<128x512xf32>
    %cst_145 = arith.constant dense<0.000000e+00> : vector<8x512xf32>
    %499 = tpu.matmul %461, %498, %cst_145 {dimension_numbers = #tpu.dot_dimension_numbers<[1], [0], [0], [1], [0, 0, 1, 1], [], []>} : vector<8x128xf32>, vector<128x512xf32>, vector<8x512xf32> -> vector<8x512xf32>
    %500 = arith.addf %497, %499 : vector<8x512xf32>
    %501 = arith.index_cast %495 : i32 to index
    %c512_146 = arith.constant 512 : index
    %502 = vector.load %arg9[%501, %c512_146] : memref<64x1024xf32, #tpu.memory_space<vmem>>, vector<8x512xf32>
    %c0_147 = arith.constant 0 : index
    %c0_148 = arith.constant 0 : index
    %503 = vector.load %arg4[%c0_147, %c0_148] : memref<128x512xf32, #tpu.memory_space<vmem>>, vector<128x512xf32>
    %cst_149 = arith.constant dense<0.000000e+00> : vector<8x512xf32>
    %504 = tpu.matmul %486, %503, %cst_149 {dimension_numbers = #tpu.dot_dimension_numbers<[1], [0], [0], [1], [0, 0, 1, 1], [], []>} : vector<8x128xf32>, vector<128x512xf32>, vector<8x512xf32> -> vector<8x512xf32>
    %505 = arith.addf %502, %504 : vector<8x512xf32>
    %506 = vector.extract_strided_slice %500 {offsets = [0, 0], sizes = [8, 128], strides = [1, 1]} : vector<8x512xf32> to vector<8x128xf32>
    %507 = arith.negf %506 : vector<8x128xf32>
    %508 = math.exp %507 : vector<8x128xf32>
    %cst_150 = arith.constant 1.000000e+00 : f32
    %509 = vector.broadcast %cst_150 : f32 to vector<8x128xf32>
    %510 = arith.addf %509, %508 : vector<8x128xf32>
    %511 = arith.divf %509, %510 : vector<8x128xf32>
    %512 = vector.extract_strided_slice %500 {offsets = [0, 128], sizes = [8, 128], strides = [1, 1]} : vector<8x512xf32> to vector<8x128xf32>
    %513 = arith.negf %512 : vector<8x128xf32>
    %514 = math.exp %513 : vector<8x128xf32>
    %cst_151 = arith.constant 1.000000e+00 : f32
    %515 = vector.broadcast %cst_151 : f32 to vector<8x128xf32>
    %516 = arith.addf %515, %514 : vector<8x128xf32>
    %517 = arith.divf %515, %516 : vector<8x128xf32>
    %518 = vector.extract_strided_slice %500 {offsets = [0, 256], sizes = [8, 128], strides = [1, 1]} : vector<8x512xf32> to vector<8x128xf32>
    %519 = math.tanh %518 : vector<8x128xf32>
    %520 = vector.extract_strided_slice %500 {offsets = [0, 384], sizes = [8, 128], strides = [1, 1]} : vector<8x512xf32> to vector<8x128xf32>
    %521 = arith.negf %520 : vector<8x128xf32>
    %522 = math.exp %521 : vector<8x128xf32>
    %cst_152 = arith.constant 1.000000e+00 : f32
    %523 = vector.broadcast %cst_152 : f32 to vector<8x128xf32>
    %524 = arith.addf %523, %522 : vector<8x128xf32>
    %525 = arith.divf %523, %524 : vector<8x128xf32>
    %526 = arith.mulf %517, %459 : vector<8x128xf32>
    %527 = arith.mulf %511, %519 : vector<8x128xf32>
    %528 = arith.addf %526, %527 : vector<8x128xf32>
    %529 = math.tanh %528 : vector<8x128xf32>
    %530 = arith.mulf %525, %529 : vector<8x128xf32>
    %531 = vector.extract_strided_slice %505 {offsets = [0, 0], sizes = [8, 128], strides = [1, 1]} : vector<8x512xf32> to vector<8x128xf32>
    %532 = arith.negf %531 : vector<8x128xf32>
    %533 = math.exp %532 : vector<8x128xf32>
    %cst_153 = arith.constant 1.000000e+00 : f32
    %534 = vector.broadcast %cst_153 : f32 to vector<8x128xf32>
    %535 = arith.addf %534, %533 : vector<8x128xf32>
    %536 = arith.divf %534, %535 : vector<8x128xf32>
    %537 = vector.extract_strided_slice %505 {offsets = [0, 128], sizes = [8, 128], strides = [1, 1]} : vector<8x512xf32> to vector<8x128xf32>
    %538 = arith.negf %537 : vector<8x128xf32>
    %539 = math.exp %538 : vector<8x128xf32>
    %cst_154 = arith.constant 1.000000e+00 : f32
    %540 = vector.broadcast %cst_154 : f32 to vector<8x128xf32>
    %541 = arith.addf %540, %539 : vector<8x128xf32>
    %542 = arith.divf %540, %541 : vector<8x128xf32>
    %543 = vector.extract_strided_slice %505 {offsets = [0, 256], sizes = [8, 128], strides = [1, 1]} : vector<8x512xf32> to vector<8x128xf32>
    %544 = math.tanh %543 : vector<8x128xf32>
    %545 = vector.extract_strided_slice %505 {offsets = [0, 384], sizes = [8, 128], strides = [1, 1]} : vector<8x512xf32> to vector<8x128xf32>
    %546 = arith.negf %545 : vector<8x128xf32>
    %547 = math.exp %546 : vector<8x128xf32>
    %cst_155 = arith.constant 1.000000e+00 : f32
    %548 = vector.broadcast %cst_155 : f32 to vector<8x128xf32>
    %549 = arith.addf %548, %547 : vector<8x128xf32>
    %550 = arith.divf %548, %549 : vector<8x128xf32>
    %551 = arith.mulf %542, %484 : vector<8x128xf32>
    %552 = arith.mulf %536, %544 : vector<8x128xf32>
    %553 = arith.addf %551, %552 : vector<8x128xf32>
    %554 = math.tanh %553 : vector<8x128xf32>
    %555 = arith.mulf %550, %554 : vector<8x128xf32>
    %556 = arith.index_cast %492 : i32 to index
    %c0_156 = arith.constant 0 : index
    %557 = vector.load %arg10[%556, %c0_156] : memref<64x128xf32, #tpu.memory_space<vmem>>, vector<8x128xf32>
    tpu.vector_store %arg10[%556, %c0_156], %530 {strides = array<i32>} : memref<64x128xf32, #tpu.memory_space<vmem>>, vector<8x128xf32>,
    %558 = arith.index_cast %495 : i32 to index
    %c0_157 = arith.constant 0 : index
    %559 = vector.load %arg11[%558, %c0_157] : memref<64x128xf32, #tpu.memory_space<vmem>>, vector<8x128xf32>
    tpu.vector_store %arg11[%558, %c0_157], %555 {strides = array<i32>} : memref<64x128xf32, #tpu.memory_space<vmem>>, vector<8x128xf32>,
    %c8_i32_158 = arith.constant 8 : i32
    %c0_159 = arith.constant 0 : index
    %c0_160 = arith.constant 0 : index
    %560 = vector.load %arg10[%c0_159, %c0_160] : memref<64x128xf32, #tpu.memory_space<vmem>>, vector<64x128xf32>
    %c0_161 = arith.constant 0 : index
    %c0_162 = arith.constant 0 : index
    %561 = vector.load %arg5[%c0_161, %c0_162] : memref<128x128xf32, #tpu.memory_space<vmem>>, vector<128x128xf32>
    %cst_163 = arith.constant dense<0.000000e+00> : vector<64x128xf32>
    %562 = tpu.matmul %560, %561, %cst_163 {dimension_numbers = #tpu.dot_dimension_numbers<[1], [0], [0], [1], [0, 0, 1, 1], [], []>} : vector<64x128xf32>, vector<128x128xf32>, vector<64x128xf32> -> vector<64x128xf32>
    %c0_164 = arith.constant 0 : index
    %c0_165 = arith.constant 0 : index
    %563 = vector.load %arg11[%c0_164, %c0_165] : memref<64x128xf32, #tpu.memory_space<vmem>>, vector<64x128xf32>
    %c0_166 = arith.constant 0 : index
    %c0_167 = arith.constant 0 : index
    %564 = vector.load %arg6[%c0_166, %c0_167] : memref<128x128xf32, #tpu.memory_space<vmem>>, vector<128x128xf32>
    %cst_168 = arith.constant dense<0.000000e+00> : vector<64x128xf32>
    %565 = tpu.matmul %563, %564, %cst_168 {dimension_numbers = #tpu.dot_dimension_numbers<[1], [0], [0], [1], [0, 0, 1, 1], [], []>} : vector<64x128xf32>, vector<128x128xf32>, vector<64x128xf32> -> vector<64x128xf32>
    %566 = arith.addf %562, %565 : vector<64x128xf32>
    %c0_169 = arith.constant 0 : index
    %c0_170 = arith.constant 0 : index
    %567 = vector.load %arg7[%c0_169, %c0_170] : memref<1x128xf32, #tpu.memory_space<vmem>>, vector<1x128xf32>
    %568 = vector.broadcast %567 : vector<1x128xf32> to vector<64x128xf32>
    %569 = arith.addf %566, %568 : vector<64x128xf32>
    %c0_171 = arith.constant 0 : index
    %c0_172 = arith.constant 0 : index
    %570 = vector.load %arg8[%c0_171, %c0_172] : memref<64x128xf32, #tpu.memory_space<vmem>>, vector<64x128xf32>
    tpu.vector_store %arg8[%c0_171, %c0_172], %569 {strides = array<i32>} : memref<64x128xf32, #tpu.memory_space<vmem>>, vector<64x128xf32>,
    return
  }
}

</mosaic_0001>

<llo_original>
// kernel: tpu_custom_call.1
$region0: #{tpu_custom_call.1}
  #allocation0 [shape = 'u32[]', space=smem, size = 0x4, offset = 0x4, fixed_abs, tag = 'smem constant byte address 0x4 - core index']
  #allocation1 [shape = 'u32[144,128]{1,0:T(1,128)}', space=vmem, size = 0x12000, scoped, tag = 'internal scratch']
  #allocation2 [shape = 'f32[64,1024]{1,0:T(8,128)}', space=vmem, size = 0x40000, scoped, tag = 'scratch operand']
  #allocation3 [shape = 'f32[64,128]{1,0:T(8,128)}', space=vmem, size = 0x8000, scoped, tag = 'scratch operand']
  #allocation4 [shape = 'f32[64,128]{1,0:T(8,128)}', space=vmem, size = 0x8000, scoped, tag = 'scratch operand']
  %s0 = inlined_call_operand.hbm [shape: f32[64,128], index: 0, kind: input, shape index: {}]
  %s1 = inlined_call_operand.hbm [shape: f32[128,1024], index: 1, kind: input, shape index: {}]
  %s2 = inlined_call_operand.hbm [shape: f32[1,1024], index: 2, kind: input, shape index: {}]
  %s3 = inlined_call_operand.hbm [shape: f32[128,512], index: 3, kind: input, shape index: {}]
  %s4 = inlined_call_operand.hbm [shape: f32[128,512], index: 4, kind: input, shape index: {}]
  %s5 = inlined_call_operand.hbm [shape: f32[128,128], index: 5, kind: input, shape index: {}]
  %s6 = inlined_call_operand.hbm [shape: f32[128,128], index: 6, kind: input, shape index: {}]
  %s7 = inlined_call_operand.vmem [shape: f32[1,128], index: 7, kind: input, shape index: {}]
  %s8 = inlined_call_operand.hbm [shape: f32[64,128], index: 8, kind: output, shape index: {}]
  %s9 = sld [smem:[#allocation0]]
  $region70: #{tpu_custom_call.1} parent=0
    _
  %s11 = ssub.s32 1, %s9
  %s12 = scalar_select 0, %s11, %s9
  $region1: #{tpu_custom_call.1} parent=0
    #allocation5 [shape = 'u8[32768]{0}', space=vmem, size = 0x8000, scoped, tag = 'input window, operand 0, single buffered']
    #allocation6 [shape = 's32[1]{0}', space=sflag, size = 0x4, scoped, tag = 'scoped memory for tpu_custom_call.1']
    #allocation7 [shape = 's32[1]{0}', space=sflag, size = 0x4, scoped, tag = 'scoped memory for tpu_custom_call.1']
    #allocation8 [shape = 'u8[524288]{0}', space=vmem, size = 0x80000, scoped, tag = 'input window, operand 1, single buffered']
    #allocation9 [shape = 's32[1]{0}', space=sflag, size = 0x4, scoped, tag = 'scoped memory for tpu_custom_call.1']
    #allocation10 [shape = 'u8[4096]{0}', space=vmem, size = 0x1000, scoped, tag = 'input window, operand 2, single buffered']
    #allocation11 [shape = 'u8[262144]{0}', space=vmem, size = 0x40000, scoped, tag = 'input window, operand 3, single buffered']
    #allocation12 [shape = 's32[1]{0}', space=sflag, size = 0x4, scoped, tag = 'scoped memory for tpu_custom_call.1']
    #allocation13 [shape = 'u8[262144]{0}', space=vmem, size = 0x40000, scoped, tag = 'input window, operand 4, single buffered']
    #allocation14 [shape = 'u8[65536]{0}', space=vmem, size = 0x10000, scoped, tag = 'input window, operand 5, single buffered']
    #allocation15 [shape = 's32[1]{0}', space=sflag, size = 0x4, scoped, tag = 'scoped memory for tpu_custom_call.1']
    #allocation16 [shape = 'u8[65536]{0}', space=vmem, size = 0x10000, scoped, tag = 'input window, operand 6, single buffered']
    #allocation17 [shape = 'u8[32768]{0}', space=vmem, size = 0x8000, scoped, tag = 'output window, operand 0, single buffered']
    %13 = vsyncpa [#allocation6], 0
    %14 = vsyncpa [#allocation9], 0
    %15 = vsyncpa [#allocation12], 0
    %16 = vsyncpa [#allocation15], 0
    %17 = vsyncpa [#allocation7], 0
    // Predicated region
    $region2: #{tpu_custom_call.1} parent=1 // pred_check
      _
    $region3: #{tpu_custom_call.1} parent=1 // pred_check_branch
      %19 = sbr.rel (0) target = $region5
    $region4: #{tpu_custom_call.1} parent=1 // pred_region
      %s21 = ssub.s32 1024, 1024
      %22 = vsyncadd [#allocation6], %s21
      %s23 = sshll.u32 [#allocation5], 4
      %s24 = int_to_ptr.vmem [resolvable:$true] %s23
      %29 = dma.hbm_to_vmem [thread:$0]  %s0, 1024, %s24, [#allocation6], 128, 128, 8
    $region5: #{tpu_custom_call.1} parent=1 // pred_fallthru
      _
    // Predicated region
    $region6: #{tpu_custom_call.1} parent=1 // pred_check
      _
    $region7: #{tpu_custom_call.1} parent=1 // pred_check_branch
      %31 = sbr.rel (0) target = $region9
    $region8: #{tpu_custom_call.1} parent=1 // pred_region
      %s33 = ssub.s32 16384, 16384
      %34 = vsyncadd [#allocation9], %s33
      %s35 = sshll.u32 [#allocation8], 4
      %s36 = int_to_ptr.vmem [resolvable:$true] %s35
      %41 = dma.hbm_to_vmem [thread:$0]  %s1, 16384, %s36, [#allocation9], 1024, 1024, 64
    $region9: #{tpu_custom_call.1} parent=1 // pred_fallthru
      _
    // Predicated region
    $region10: #{tpu_custom_call.1} parent=1 // pred_check
      _
    $region11: #{tpu_custom_call.1} parent=1 // pred_check_branch
      %43 = sbr.rel (0) target = $region13
    $region12: #{tpu_custom_call.1} parent=1 // pred_region
      %s45 = ssub.s32 128, 128
      %46 = vsyncadd [#allocation9], %s45
      %s48 = sshll.u32 [#allocation10], 4
      %s49 = int_to_ptr.vmem [resolvable:$true] %s48
      %51 = dma.hbm_to_vmem [thread:$0]  %s2, 128, %s49, [#allocation9]
    $region13: #{tpu_custom_call.1} parent=1 // pred_fallthru
      _
    // Predicated region
    $region14: #{tpu_custom_call.1} parent=1 // pred_check
      _
    $region15: #{tpu_custom_call.1} parent=1 // pred_check_branch
      %53 = sbr.rel (0) target = $region17
    $region16: #{tpu_custom_call.1} parent=1 // pred_region
      %s55 = ssub.s32 8192, 8192
      %56 = vsyncadd [#allocation12], %s55
      %s57 = sshll.u32 [#allocation11], 4
      %s58 = int_to_ptr.vmem [resolvable:$true] %s57
      %63 = dma.hbm_to_vmem [thread:$0]  %s3, 8192, %s58, [#allocation12], 512, 512, 32
    $region17: #{tpu_custom_call.1} parent=1 // pred_fallthru
      _
    // Predicated region
    $region18: #{tpu_custom_call.1} parent=1 // pred_check
      _
    $region19: #{tpu_custom_call.1} parent=1 // pred_check_branch
      %65 = sbr.rel (0) target = $region21
    $region20: #{tpu_custom_call.1} parent=1 // pred_region
      %s67 = ssub.s32 8192, 8192
      %68 = vsyncadd [#allocation12], %s67
      %s69 = sshll.u32 [#allocation13], 4
      %s70 = int_to_ptr.vmem [resolvable:$true] %s69
      %75 = dma.hbm_to_vmem [thread:$0]  %s4, 8192, %s70, [#allocation12], 512, 512, 32
    $region21: #{tpu_custom_call.1} parent=1 // pred_fallthru
      _
    // Predicated region
    $region22: #{tpu_custom_call.1} parent=1 // pred_check
      _
    $region23: #{tpu_custom_call.1} parent=1 // pred_check_branch
      %77 = sbr.rel (0) target = $region25
    $region24: #{tpu_custom_call.1} parent=1 // pred_region
      %s79 = ssub.s32 2048, 2048
      %80 = vsyncadd [#allocation15], %s79
      %s81 = sshll.u32 [#allocation14], 4
      %s82 = int_to_ptr.vmem [resolvable:$true] %s81
      %87 = dma.hbm_to_vmem [thread:$0]  %s5, 2048, %s82, [#allocation15], 128, 128, 8
    $region25: #{tpu_custom_call.1} parent=1 // pred_fallthru
      _
    // Predicated region
    $region26: #{tpu_custom_call.1} parent=1 // pred_check
      _
    $region27: #{tpu_custom_call.1} parent=1 // pred_check_branch
      %89 = sbr.rel (0) target = $region29
    $region28: #{tpu_custom_call.1} parent=1 // pred_region
      %s91 = ssub.s32 2048, 2048
      %92 = vsyncadd [#allocation15], %s91
      %s93 = sshll.u32 [#allocation16], 4
      %s94 = int_to_ptr.vmem [resolvable:$true] %s93
      %99 = dma.hbm_to_vmem [thread:$0]  %s6, 2048, %s94, [#allocation15], 128, 128, 8
    $region29: #{tpu_custom_call.1} parent=1 // pred_fallthru
      _
    // Predicated region
    $region30: #{tpu_custom_call.1} parent=1 // pred_check
      _
    $region31: #{tpu_custom_call.1} parent=1 // pred_check_branch
      %101 = sbr.rel (0) target = $region33
    $region32: #{tpu_custom_call.1} parent=1 // pred_region
      _
    $region33: #{tpu_custom_call.1} parent=1 // pred_fallthru
      _
    // Predicated region
    $region34: #{tpu_custom_call.1} parent=1 // pred_check
      _
    $region35: #{tpu_custom_call.1} parent=1 // pred_check_branch
      %103 = sbr.rel (0) target = $region37
    $region36: #{tpu_custom_call.1} parent=1 // pred_region
      %104 = dma.done [#allocation6], 1024
    $region37: #{tpu_custom_call.1} parent=1 // pred_fallthru
      _
    // Predicated region
    $region38: #{tpu_custom_call.1} parent=1 // pred_check
      _
    $region39: #{tpu_custom_call.1} parent=1 // pred_check_branch
      %106 = sbr.rel (0) target = $region41
    $region40: #{tpu_custom_call.1} parent=1 // pred_region
      %107 = dma.done [#allocation9], 16384
    $region41: #{tpu_custom_call.1} parent=1 // pred_fallthru
      _
    // Predicated region
    $region42: #{tpu_custom_call.1} parent=1 // pred_check
      _
    $region43: #{tpu_custom_call.1} parent=1 // pred_check_branch
      %109 = sbr.rel (0) target = $region45
    $region44: #{tpu_custom_call.1} parent=1 // pred_region
      %110 = dma.done [#allocation9], 128
    $region45: #{tpu_custom_call.1} parent=1 // pred_fallthru
      _
    // Predicated region
    $region46: #{tpu_custom_call.1} parent=1 // pred_check
      _
    $region47: #{tpu_custom_call.1} parent=1 // pred_check_branch
      %112 = sbr.rel (0) target = $region49
    $region48: #{tpu_custom_call.1} parent=1 // pred_region
      %113 = dma.done [#allocation12], 8192
    $region49: #{tpu_custom_call.1} parent=1 // pred_fallthru
      _
    // Predicated region
    $region50: #{tpu_custom_call.1} parent=1 // pred_check
      _
    $region51: #{tpu_custom_call.1} parent=1 // pred_check_branch
      %115 = sbr.rel (0) target = $region53
    $region52: #{tpu_custom_call.1} parent=1 // pred_region
      %116 = dma.done [#allocation12], 8192
    $region53: #{tpu_custom_call.1} parent=1 // pred_fallthru
      _
    // Predicated region
    $region54: #{tpu_custom_call.1} parent=1 // pred_check
      _
    $region55: #{tpu_custom_call.1} parent=1 // pred_check_branch
      %118 = sbr.rel (0) target = $region57
    $region56: #{tpu_custom_call.1} parent=1 // pred_region
      %119 = dma.done [#allocation15], 2048
    $region57: #{tpu_custom_call.1} parent=1 // pred_fallthru
      _
    // Predicated region
    $region58: #{tpu_custom_call.1} parent=1 // pred_check
      _
    $region59: #{tpu_custom_call.1} parent=1 // pred_check_branch
      %121 = sbr.rel (0) target = $region61
    $region60: #{tpu_custom_call.1} parent=1 // pred_region
      %122 = dma.done [#allocation15], 2048
    $region61: #{tpu_custom_call.1} parent=1 // pred_fallthru
      _
    %v123 = vld [vmem:[#allocation5] sm:$0xff]
    %v124 = vld [vmem:[#allocation5 + $0x8] sm:$0xff]
    %v125 = vld [vmem:[#allocation5 + $0x10] sm:$0xff]
    %v126 = vld [vmem:[#allocation5 + $0x18] sm:$0xff]
    %v127 = vld [vmem:[#allocation5 + $0x20] sm:$0xff]
    %v128 = vld [vmem:[#allocation5 + $0x28] sm:$0xff]
    %v129 = vld [vmem:[#allocation5 + $0x30] sm:$0xff]
    %v130 = vld [vmem:[#allocation5 + $0x38] sm:$0xff]
    %v131 = vld [vmem:[#allocation8] sm:$0xff]
    %v132 = vld [vmem:[#allocation8 + $0x8] sm:$0xff]
    %v133 = vld [vmem:[#allocation8 + $0x10] sm:$0xff]
    %v134 = vld [vmem:[#allocation8 + $0x18] sm:$0xff]
    %v135 = vld [vmem:[#allocation8 + $0x20] sm:$0xff]
    %v136 = vld [vmem:[#allocation8 + $0x28] sm:$0xff]
    %v137 = vld [vmem:[#allocation8 + $0x30] sm:$0xff]
    %v138 = vld [vmem:[#allocation8 + $0x38] sm:$0xff]
    %v139 = vld [vmem:[#allocation8 + $0x40] sm:$0xff]
    %v140 = vld [vmem:[#allocation8 + $0x48] sm:$0xff]
    %v141 = vld [vmem:[#allocation8 + $0x50] sm:$0xff]
    %v142 = vld [vmem:[#allocation8 + $0x58] sm:$0xff]
    %v143 = vld [vmem:[#allocation8 + $0x60] sm:$0xff]
    %v144 = vld [vmem:[#allocation8 + $0x68] sm:$0xff]
    %v145 = vld [vmem:[#allocation8 + $0x70] sm:$0xff]
    %v146 = vld [vmem:[#allocation8 + $0x78] sm:$0xff]
    %v147 = vld [vmem:[#allocation8 + $0x80] sm:$0xff]
    %v148 = vld [vmem:[#allocation8 + $0x88] sm:$0xff]
    %v149 = vld [vmem:[#allocation8 + $0x90] sm:$0xff]
    %v150 = vld [vmem:[#allocation8 + $0x98] sm:$0xff]
    %v151 = vld [vmem:[#allocation8 + $0xa0] sm:$0xff]
    %v152 = vld [vmem:[#allocation8 + $0xa8] sm:$0xff]
    %v153 = vld [vmem:[#allocation8 + $0xb0] sm:$0xff]
    %v154 = vld [vmem:[#allocation8 + $0xb8] sm:$0xff]
    %v155 = vld [vmem:[#allocation8 + $0xc0] sm:$0xff]
    %v156 = vld [vmem:[#allocation8 + $0xc8] sm:$0xff]
    %v157 = vld [vmem:[#allocation8 + $0xd0] sm:$0xff]
    %v158 = vld [vmem:[#allocation8 + $0xd8] sm:$0xff]
    %v159 = vld [vmem:[#allocation8 + $0xe0] sm:$0xff]
    %v160 = vld [vmem:[#allocation8 + $0xe8] sm:$0xff]
    %v161 = vld [vmem:[#allocation8 + $0xf0] sm:$0xff]
    %v162 = vld [vmem:[#allocation8 + $0xf8] sm:$0xff]
    %v163 = vld [vmem:[#allocation8 + $0x100] sm:$0xff]
    %v164 = vld [vmem:[#allocation8 + $0x108] sm:$0xff]
    %v165 = vld [vmem:[#allocation8 + $0x110] sm:$0xff]
    %v166 = vld [vmem:[#allocation8 + $0x118] sm:$0xff]
    %v167 = vld [vmem:[#allocation8 + $0x120] sm:$0xff]
    %v168 = vld [vmem:[#allocation8 + $0x128] sm:$0xff]
    %v169 = vld [vmem:[#allocation8 + $0x130] sm:$0xff]
    %v170 = vld [vmem:[#allocation8 + $0x138] sm:$0xff]
    %v171 = vld [vmem:[#allocation8 + $0x140] sm:$0xff]
    %v172 = vld [vmem:[#allocation8 + $0x148] sm:$0xff]
    %v173 = vld [vmem:[#allocation8 + $0x150] sm:$0xff]
    %v174 = vld [vmem:[#allocation8 + $0x158] sm:$0xff]
    %v175 = vld [vmem:[#allocation8 + $0x160] sm:$0xff]
    %v176 = vld [vmem:[#allocation8 + $0x168] sm:$0xff]
    %v177 = vld [vmem:[#allocation8 + $0x170] sm:$0xff]
    %v178 = vld [vmem:[#allocation8 + $0x178] sm:$0xff]
    %v179 = vld [vmem:[#allocation8 + $0x180] sm:$0xff]
    %v180 = vld [vmem:[#allocation8 + $0x188] sm:$0xff]
    %v181 = vld [vmem:[#allocation8 + $0x190] sm:$0xff]
    %v182 = vld [vmem:[#allocation8 + $0x198] sm:$0xff]
    %v183 = vld [vmem:[#allocation8 + $0x1a0] sm:$0xff]
    %v184 = vld [vmem:[#allocation8 + $0x1a8] sm:$0xff]
    %v185 = vld [vmem:[#allocation8 + $0x1b0] sm:$0xff]
    %v186 = vld [vmem:[#allocation8 + $0x1b8] sm:$0xff]
    %v187 = vld [vmem:[#allocation8 + $0x1c0] sm:$0xff]
    %v188 = vld [vmem:[#allocation8 + $0x1c8] sm:$0xff]
    %v189 = vld [vmem:[#allocation8 + $0x1d0] sm:$0xff]
    %v190 = vld [vmem:[#allocation8 + $0x1d8] sm:$0xff]
    %v191 = vld [vmem:[#allocation8 + $0x1e0] sm:$0xff]
    %v192 = vld [vmem:[#allocation8 + $0x1e8] sm:$0xff]
    %v193 = vld [vmem:[#allocation8 + $0x1f0] sm:$0xff]
    %v194 = vld [vmem:[#allocation8 + $0x1f8] sm:$0xff]
    %v195 = vld [vmem:[#allocation8 + $0x200] sm:$0xff]
    %v196 = vld [vmem:[#allocation8 + $0x208] sm:$0xff]
    %v197 = vld [vmem:[#allocation8 + $0x210] sm:$0xff]
    %v198 = vld [vmem:[#allocation8 + $0x218] sm:$0xff]
    %v199 = vld [vmem:[#allocation8 + $0x220] sm:$0xff]
    %v200 = vld [vmem:[#allocation8 + $0x228] sm:$0xff]
    %v201 = vld [vmem:[#allocation8 + $0x230] sm:$0xff]
    %v202 = vld [vmem:[#allocation8 + $0x238] sm:$0xff]
    %v203 = vld [vmem:[#allocation8 + $0x240] sm:$0xff]
    %v204 = vld [vmem:[#allocation8 + $0x248] sm:$0xff]
    %v205 = vld [vmem:[#allocation8 + $0x250] sm:$0xff]
    %v206 = vld [vmem:[#allocation8 + $0x258] sm:$0xff]
    %v207 = vld [vmem:[#allocation8 + $0x260] sm:$0xff]
    %v208 = vld [vmem:[#allocation8 + $0x268] sm:$0xff]
    %v209 = vld [vmem:[#allocation8 + $0x270] sm:$0xff]
    %v210 = vld [vmem:[#allocation8 + $0x278] sm:$0xff]
    %v211 = vld [vmem:[#allocation8 + $0x280] sm:$0xff]
    %v212 = vld [vmem:[#allocation8 + $0x288] sm:$0xff]
    %v213 = vld [vmem:[#allocation8 + $0x290] sm:$0xff]
    %v214 = vld [vmem:[#allocation8 + $0x298] sm:$0xff]
    %v215 = vld [vmem:[#allocation8 + $0x2a0] sm:$0xff]
    %v216 = vld [vmem:[#allocation8 + $0x2a8] sm:$0xff]
    %v217 = vld [vmem:[#allocation8 + $0x2b0] sm:$0xff]
    %v218 = vld [vmem:[#allocation8 + $0x2b8] sm:$0xff]
    %v219 = vld [vmem:[#allocation8 + $0x2c0] sm:$0xff]
    %v220 = vld [vmem:[#allocation8 + $0x2c8] sm:$0xff]
    %v221 = vld [vmem:[#allocation8 + $0x2d0] sm:$0xff]
    %v222 = vld [vmem:[#allocation8 + $0x2d8] sm:$0xff]
    %v223 = vld [vmem:[#allocation8 + $0x2e0] sm:$0xff]
    %v224 = vld [vmem:[#allocation8 + $0x2e8] sm:$0xff]
    %v225 = vld [vmem:[#allocation8 + $0x2f0] sm:$0xff]
    %v226 = vld [vmem:[#allocation8 + $0x2f8] sm:$0xff]
    %v227 = vld [vmem:[#allocation8 + $0x300] sm:$0xff]
    %v228 = vld [vmem:[#allocation8 + $0x308] sm:$0xff]
    %v229 = vld [vmem:[#allocation8 + $0x310] sm:$0xff]
    %v230 = vld [vmem:[#allocation8 + $0x318] sm:$0xff]
    %v231 = vld [vmem:[#allocation8 + $0x320] sm:$0xff]
    %v232 = vld [vmem:[#allocation8 + $0x328] sm:$0xff]
    %v233 = vld [vmem:[#allocation8 + $0x330] sm:$0xff]
    %v234 = vld [vmem:[#allocation8 + $0x338] sm:$0xff]
    %v235 = vld [vmem:[#allocation8 + $0x340] sm:$0xff]
    %v236 = vld [vmem:[#allocation8 + $0x348] sm:$0xff]
    %v237 = vld [vmem:[#allocation8 + $0x350] sm:$0xff]
    %v238 = vld [vmem:[#allocation8 + $0x358] sm:$0xff]
    %v239 = vld [vmem:[#allocation8 + $0x360] sm:$0xff]
    %v240 = vld [vmem:[#allocation8 + $0x368] sm:$0xff]
    %v241 = vld [vmem:[#allocation8 + $0x370] sm:$0xff]
    %v242 = vld [vmem:[#allocation8 + $0x378] sm:$0xff]
    %v243 = vld [vmem:[#allocation8 + $0x380] sm:$0xff]
    %v244 = vld [vmem:[#allocation8 + $0x388] sm:$0xff]
    %v245 = vld [vmem:[#allocation8 + $0x390] sm:$0xff]
    %v246 = vld [vmem:[#allocation8 + $0x398] sm:$0xff]
    %v247 = vld [vmem:[#allocation8 + $0x3a0] sm:$0xff]
    %v248 = vld [vmem:[#allocation8 + $0x3a8] sm:$0xff]
    %v249 = vld [vmem:[#allocation8 + $0x3b0] sm:$0xff]
    %v250 = vld [vmem:[#allocation8 + $0x3b8] sm:$0xff]
    %v251 = vld [vmem:[#allocation8 + $0x3c0] sm:$0xff]
    %v252 = vld [vmem:[#allocation8 + $0x3c8] sm:$0xff]
    %v253 = vld [vmem:[#allocation8 + $0x3d0] sm:$0xff]
    %v254 = vld [vmem:[#allocation8 + $0x3d8] sm:$0xff]
    %v255 = vld [vmem:[#allocation8 + $0x3e0] sm:$0xff]
    %v256 = vld [vmem:[#allocation8 + $0x3e8] sm:$0xff]
    %v257 = vld [vmem:[#allocation8 + $0x3f0] sm:$0xff]
    %v258 = vld [vmem:[#allocation8 + $0x3f8] sm:$0xff]
    %v259 = vld [vmem:[#allocation10] sm:$0xff]
    %v261 = vlaneseq
    %v262 = vshrl.u32 %v261, 7
    %v263 = vsub.s32 0, %v262
    %v264 = vrot.slane %v259, %v263
    %v265 = vlaneseq
    %v266 = vshrl.u32 %v265, 7
    %v267 = vsub.s32 1, %v266
    %v268 = vrot.slane %v259, %v267
    %v269 = vlaneseq
    %v270 = vshrl.u32 %v269, 7
    %v271 = vsub.s32 2, %v270
    %v272 = vrot.slane %v259, %v271
    %v273 = vlaneseq
    %v274 = vshrl.u32 %v273, 7
    %v275 = vsub.s32 3, %v274
    %v276 = vrot.slane %v259, %v275
    %v277 = vlaneseq
    %v278 = vshrl.u32 %v277, 7
    %v279 = vsub.s32 4, %v278
    %v280 = vrot.slane %v259, %v279
    %v281 = vlaneseq
    %v282 = vshrl.u32 %v281, 7
    %v283 = vsub.s32 5, %v282
    %v284 = vrot.slane %v259, %v283
    %v285 = vlaneseq
    %v286 = vshrl.u32 %v285, 7
    %v287 = vsub.s32 6, %v286
    %v288 = vrot.slane %v259, %v287
    %v289 = vlaneseq
    %v290 = vshrl.u32 %v289, 7
    %v291 = vsub.s32 7, %v290
    %v292 = vrot.slane %v259, %v291
    %301 = vmatprep.subr.mxu0 %v252
    %302 = vmatpush1.msra.mxu0 %v251
    %303 = vmatprep.subr.mxu0 %v244
    %304 = vmatpush1.msra.mxu0 %v243
    %305 = vmatprep.subr.mxu0 %v236
    %306 = vmatpush1.msra.mxu0 %v235
    %307 = vmatprep.subr.mxu0 %v228
    %308 = vmatpush1.msra.mxu0 %v227
    %309 = vmatprep.subr.mxu0 %v220
    %310 = vmatpush1.msra.mxu0 %v219
    %311 = vmatprep.subr.mxu0 %v212
    %312 = vmatpush1.msra.mxu0 %v211
    %313 = vmatprep.subr.mxu0 %v204
    %314 = vmatpush1.msra.mxu0 %v203
    %315 = vmatprep.subr.mxu0 %v196
    %316 = vmatpush1.msra.mxu0 %v195
    %317 = vmatprep.subr.mxu0 %v188
    %318 = vmatpush1.msra.mxu0 %v187
    %319 = vmatprep.subr.mxu0 %v180
    %320 = vmatpush1.msra.mxu0 %v179
    %321 = vmatprep.subr.mxu0 %v172
    %322 = vmatpush1.msra.mxu0 %v171
    %323 = vmatprep.subr.mxu0 %v164
    %324 = vmatpush1.msra.mxu0 %v163
    %325 = vmatprep.subr.mxu0 %v156
    %326 = vmatpush1.msra.mxu0 %v155
    %327 = vmatprep.subr.mxu0 %v148
    %328 = vmatpush1.msra.mxu0 %v147
    %329 = vmatprep.subr.mxu0 %v140
    %330 = vmatpush1.msra.mxu0 %v139
    %331 = vmatprep.subr.mxu0 %v132
    %332 = vmatpush1.msra.mxu0 %v131
    %333 = vmatprep.subr.mxu0 0.0
    %334 = vmatpush2.msra.mxu0 0.0
    %335 = vmatprep.subr.mxu0 0.0
    %336 = vmatpush2.msra.mxu0 0.0
    %337 = vmatprep.subr.mxu0 0.0
    %338 = vmatpush2.msra.mxu0 0.0
    %339 = vmatprep.subr.mxu0 0.0
    %340 = vmatpush2.msra.mxu0 0.0
    %341 = vmatprep.subr.mxu0 0.0
    %342 = vmatpush2.msra.mxu0 0.0
    %343 = vmatprep.subr.mxu0 0.0
    %344 = vmatpush2.msra.mxu0 0.0
    %345 = vmatprep.subr.mxu0 0.0
    %346 = vmatpush2.msra.mxu0 0.0
    %347 = vmatprep.subr.mxu0 0.0
    %348 = vmatpush2.msra.mxu0 0.0
    %349 = vmatprep.subr.mxu0 0.0
    %350 = vmatpush2.msra.mxu0 0.0
    %351 = vmatprep.subr.mxu0 0.0
    %352 = vmatpush2.msra.mxu0 0.0
    %353 = vmatprep.subr.mxu0 0.0
    %354 = vmatpush2.msra.mxu0 0.0
    %355 = vmatprep.subr.mxu0 0.0
    %356 = vmatpush2.msra.mxu0 0.0
    %357 = vmatprep.subr.mxu0 0.0
    %358 = vmatpush2.msra.mxu0 0.0
    %359 = vmatprep.subr.mxu0 0.0
    %360 = vmatpush2.msra.mxu0 0.0
    %361 = vmatprep.subr.mxu0 0.0
    %362 = vmatpush2.msra.mxu0 0.0
    %363 = vmatprep.subr.mxu0 0.0
    %364 = vmatpush2.msra.mxu0 0.0
    %365 = vmatprep.mubr.f32.mxu0 0.0
    %366 = vmatmul.mubr.f32.gmra.mxu0 %v123
    %v367 = vpop.f32.mrf.mxu0
    %v368 = vadd.f32 %v264, %v367
    %v369 = vpop.f32.mrf.mxu0
    %v370 = vadd.f32 %v268, %v369
    %371 = vmatprep.mubr.f32.mxu0 0.0
    %372 = vmatmul.mubr.f32.gmra.mxu0 %v124
    %v373 = vpop.f32.mrf.mxu0
    %v374 = vadd.f32 %v264, %v373
    %v375 = vpop.f32.mrf.mxu0
    %v376 = vadd.f32 %v268, %v375
    %377 = vmatprep.mubr.f32.mxu0 0.0
    %378 = vmatmul.mubr.f32.gmra.mxu0 %v125
    %v379 = vpop.f32.mrf.mxu0
    %v380 = vadd.f32 %v264, %v379
    %v381 = vpop.f32.mrf.mxu0
    %v382 = vadd.f32 %v268, %v381
    %383 = vmatprep.mubr.f32.mxu0 0.0
    %384 = vmatmul.mubr.f32.gmra.mxu0 %v126
    %v385 = vpop.f32.mrf.mxu0
    %v386 = vadd.f32 %v264, %v385
    %v387 = vpop.f32.mrf.mxu0
    %v388 = vadd.f32 %v268, %v387
    %389 = vmatprep.mubr.f32.mxu0 0.0
    %390 = vmatmul.mubr.f32.gmra.mxu0 %v127
    %v391 = vpop.f32.mrf.mxu0
    %v392 = vadd.f32 %v264, %v391
    %v393 = vpop.f32.mrf.mxu0
    %v394 = vadd.f32 %v268, %v393
    %395 = vmatprep.mubr.f32.mxu0 0.0
    %396 = vmatmul.mubr.f32.gmra.mxu0 %v128
    %v397 = vpop.f32.mrf.mxu0
    %v398 = vadd.f32 %v264, %v397
    %v399 = vpop.f32.mrf.mxu0
    %v400 = vadd.f32 %v268, %v399
    %401 = vmatprep.mubr.f32.mxu0 0.0
    %402 = vmatmul.mubr.f32.gmra.mxu0 %v129
    %v403 = vpop.f32.mrf.mxu0
    %v404 = vadd.f32 %v264, %v403
    %v405 = vpop.f32.mrf.mxu0
    %v406 = vadd.f32 %v268, %v405
    %407 = vmatprep.mubr.f32.mxu0 0.0
    %408 = vmatmul.mubr.f32.gmra.mxu0 %v130
    %v409 = vpop.f32.mrf.mxu0
    %v410 = vadd.f32 %v264, %v409
    %v411 = vpop.f32.mrf.mxu0
    %v412 = vadd.f32 %v268, %v411
    %413 = vdwg.mxu0
    %414 = vmatprep.subr.mxu0 %v254
    %415 = vmatpush1.msra.mxu0 %v253
    %416 = vmatprep.subr.mxu0 %v246
    %417 = vmatpush1.msra.mxu0 %v245
    %418 = vmatprep.subr.mxu0 %v238
    %419 = vmatpush1.msra.mxu0 %v237
    %420 = vmatprep.subr.mxu0 %v230
    %421 = vmatpush1.msra.mxu0 %v229
    %422 = vmatprep.subr.mxu0 %v222
    %423 = vmatpush1.msra.mxu0 %v221
    %424 = vmatprep.subr.mxu0 %v214
    %425 = vmatpush1.msra.mxu0 %v213
    %426 = vmatprep.subr.mxu0 %v206
    %427 = vmatpush1.msra.mxu0 %v205
    %428 = vmatprep.subr.mxu0 %v198
    %429 = vmatpush1.msra.mxu0 %v197
    %430 = vmatprep.subr.mxu0 %v190
    %431 = vmatpush1.msra.mxu0 %v189
    %432 = vmatprep.subr.mxu0 %v182
    %433 = vmatpush1.msra.mxu0 %v181
    %434 = vmatprep.subr.mxu0 %v174
    %435 = vmatpush1.msra.mxu0 %v173
    %436 = vmatprep.subr.mxu0 %v166
    %437 = vmatpush1.msra.mxu0 %v165
    %438 = vmatprep.subr.mxu0 %v158
    %439 = vmatpush1.msra.mxu0 %v157
    %440 = vmatprep.subr.mxu0 %v150
    %441 = vmatpush1.msra.mxu0 %v149
    %442 = vmatprep.subr.mxu0 %v142
    %443 = vmatpush1.msra.mxu0 %v141
    %444 = vmatprep.subr.mxu0 %v134
    %445 = vmatpush1.msra.mxu0 %v133
    %446 = vmatprep.subr.mxu0 0.0
    %447 = vmatpush2.msra.mxu0 0.0
    %448 = vmatprep.subr.mxu0 0.0
    %449 = vmatpush2.msra.mxu0 0.0
    %450 = vmatprep.subr.mxu0 0.0
    %451 = vmatpush2.msra.mxu0 0.0
    %452 = vmatprep.subr.mxu0 0.0
    %453 = vmatpush2.msra.mxu0 0.0
    %454 = vmatprep.subr.mxu0 0.0
    %455 = vmatpush2.msra.mxu0 0.0
    %456 = vmatprep.subr.mxu0 0.0
    %457 = vmatpush2.msra.mxu0 0.0
    %458 = vmatprep.subr.mxu0 0.0
    %459 = vmatpush2.msra.mxu0 0.0
    %460 = vmatprep.subr.mxu0 0.0
    %461 = vmatpush2.msra.mxu0 0.0
    %462 = vmatprep.subr.mxu0 0.0
    %463 = vmatpush2.msra.mxu0 0.0
    %464 = vmatprep.subr.mxu0 0.0
    %465 = vmatpush2.msra.mxu0 0.0
    %466 = vmatprep.subr.mxu0 0.0
    %467 = vmatpush2.msra.mxu0 0.0
    %468 = vmatprep.subr.mxu0 0.0
    %469 = vmatpush2.msra.mxu0 0.0
    %470 = vmatprep.subr.mxu0 0.0
    %471 = vmatpush2.msra.mxu0 0.0
    %472 = vmatprep.subr.mxu0 0.0
    %473 = vmatpush2.msra.mxu0 0.0
    %474 = vmatprep.subr.mxu0 0.0
    %475 = vmatpush2.msra.mxu0 0.0
    %476 = vmatprep.subr.mxu0 0.0
    %477 = vmatpush2.msra.mxu0 0.0
    %478 = vmatprep.mubr.f32.mxu0 0.0
    %479 = vmatmul.mubr.f32.gmra.mxu0 %v123
    %v480 = vpop.f32.mrf.mxu0
    %v481 = vadd.f32 %v272, %v480
    %v482 = vpop.f32.mrf.mxu0
    %v483 = vadd.f32 %v276, %v482
    %484 = vmatprep.mubr.f32.mxu0 0.0
    %485 = vmatmul.mubr.f32.gmra.mxu0 %v124
    %v486 = vpop.f32.mrf.mxu0
    %v487 = vadd.f32 %v272, %v486
    %v488 = vpop.f32.mrf.mxu0
    %v489 = vadd.f32 %v276, %v488
    %490 = vmatprep.mubr.f32.mxu0 0.0
    %491 = vmatmul.mubr.f32.gmra.mxu0 %v125
    %v492 = vpop.f32.mrf.mxu0
    %v493 = vadd.f32 %v272, %v492
    %v494 = vpop.f32.mrf.mxu0
    %v495 = vadd.f32 %v276, %v494
    %496 = vmatprep.mubr.f32.mxu0 0.0
    %497 = vmatmul.mubr.f32.gmra.mxu0 %v126
    %v498 = vpop.f32.mrf.mxu0
    %v499 = vadd.f32 %v272, %v498
    %v500 = vpop.f32.mrf.mxu0
    %v501 = vadd.f32 %v276, %v500
    %502 = vmatprep.mubr.f32.mxu0 0.0
    %503 = vmatmul.mubr.f32.gmra.mxu0 %v127
    %v504 = vpop.f32.mrf.mxu0
    %v505 = vadd.f32 %v272, %v504
    %v506 = vpop.f32.mrf.mxu0
    %v507 = vadd.f32 %v276, %v506
    %508 = vmatprep.mubr.f32.mxu0 0.0
    %509 = vmatmul.mubr.f32.gmra.mxu0 %v128
    %v510 = vpop.f32.mrf.mxu0
    %v511 = vadd.f32 %v272, %v510
    %v512 = vpop.f32.mrf.mxu0
    %v513 = vadd.f32 %v276, %v512
    %514 = vmatprep.mubr.f32.mxu0 0.0
    %515 = vmatmul.mubr.f32.gmra.mxu0 %v129
    %v516 = vpop.f32.mrf.mxu0
    %v517 = vadd.f32 %v272, %v516
    %v518 = vpop.f32.mrf.mxu0
    %v519 = vadd.f32 %v276, %v518
    %520 = vmatprep.mubr.f32.mxu0 0.0
    %521 = vmatmul.mubr.f32.gmra.mxu0 %v130
    %v522 = vpop.f32.mrf.mxu0
    %v523 = vadd.f32 %v272, %v522
    %v524 = vpop.f32.mrf.mxu0
    %v525 = vadd.f32 %v276, %v524
    %526 = vdwg.mxu0
    %527 = vmatprep.subr.mxu0 %v256
    %528 = vmatpush1.msra.mxu0 %v255
    %529 = vmatprep.subr.mxu0 %v248
    %530 = vmatpush1.msra.mxu0 %v247
    %531 = vmatprep.subr.mxu0 %v240
    %532 = vmatpush1.msra.mxu0 %v239
    %533 = vmatprep.subr.mxu0 %v232
    %534 = vmatpush1.msra.mxu0 %v231
    %535 = vmatprep.subr.mxu0 %v224
    %536 = vmatpush1.msra.mxu0 %v223
    %537 = vmatprep.subr.mxu0 %v216
    %538 = vmatpush1.msra.mxu0 %v215
    %539 = vmatprep.subr.mxu0 %v208
    %540 = vmatpush1.msra.mxu0 %v207
    %541 = vmatprep.subr.mxu0 %v200
    %542 = vmatpush1.msra.mxu0 %v199
    %543 = vmatprep.subr.mxu0 %v192
    %544 = vmatpush1.msra.mxu0 %v191
    %545 = vmatprep.subr.mxu0 %v184
    %546 = vmatpush1.msra.mxu0 %v183
    %547 = vmatprep.subr.mxu0 %v176
    %548 = vmatpush1.msra.mxu0 %v175
    %549 = vmatprep.subr.mxu0 %v168
    %550 = vmatpush1.msra.mxu0 %v167
    %551 = vmatprep.subr.mxu0 %v160
    %552 = vmatpush1.msra.mxu0 %v159
    %553 = vmatprep.subr.mxu0 %v152
    %554 = vmatpush1.msra.mxu0 %v151
    %555 = vmatprep.subr.mxu0 %v144
    %556 = vmatpush1.msra.mxu0 %v143
    %557 = vmatprep.subr.mxu0 %v136
    %558 = vmatpush1.msra.mxu0 %v135
    %559 = vmatprep.subr.mxu0 0.0
    %560 = vmatpush2.msra.mxu0 0.0
    %561 = vmatprep.subr.mxu0 0.0
    %562 = vmatpush2.msra.mxu0 0.0
    %563 = vmatprep.subr.mxu0 0.0
    %564 = vmatpush2.msra.mxu0 0.0
    %565 = vmatprep.subr.mxu0 0.0
    %566 = vmatpush2.msra.mxu0 0.0
    %567 = vmatprep.subr.mxu0 0.0
    %568 = vmatpush2.msra.mxu0 0.0
    %569 = vmatprep.subr.mxu0 0.0
    %570 = vmatpush2.msra.mxu0 0.0
    %571 = vmatprep.subr.mxu0 0.0
    %572 = vmatpush2.msra.mxu0 0.0
    %573 = vmatprep.subr.mxu0 0.0
    %574 = vmatpush2.msra.mxu0 0.0
    %575 = vmatprep.subr.mxu0 0.0
    %576 = vmatpush2.msra.mxu0 0.0
    %577 = vmatprep.subr.mxu0 0.0
    %578 = vmatpush2.msra.mxu0 0.0
    %579 = vmatprep.subr.mxu0 0.0
    %580 = vmatpush2.msra.mxu0 0.0
    %581 = vmatprep.subr.mxu0 0.0
    %582 = vmatpush2.msra.mxu0 0.0
    %583 = vmatprep.subr.mxu0 0.0
    %584 = vmatpush2.msra.mxu0 0.0
    %585 = vmatprep.subr.mxu0 0.0
    %586 = vmatpush2.msra.mxu0 0.0
    %587 = vmatprep.subr.mxu0 0.0
    %588 = vmatpush2.msra.mxu0 0.0
    %589 = vmatprep.subr.mxu0 0.0
    %590 = vmatpush2.msra.mxu0 0.0
    %591 = vmatprep.mubr.f32.mxu0 0.0
    %592 = vmatmul.mubr.f32.gmra.mxu0 %v123
    %v593 = vpop.f32.mrf.mxu0
    %v594 = vadd.f32 %v280, %v593
    %v595 = vpop.f32.mrf.mxu0
    %v596 = vadd.f32 %v284, %v595
    %597 = vmatprep.mubr.f32.mxu0 0.0
    %598 = vmatmul.mubr.f32.gmra.mxu0 %v124
    %v599 = vpop.f32.mrf.mxu0
    %v600 = vadd.f32 %v280, %v599
    %v601 = vpop.f32.mrf.mxu0
    %v602 = vadd.f32 %v284, %v601
    %603 = vmatprep.mubr.f32.mxu0 0.0
    %604 = vmatmul.mubr.f32.gmra.mxu0 %v125
    %v605 = vpop.f32.mrf.mxu0
    %v606 = vadd.f32 %v280, %v605
    %v607 = vpop.f32.mrf.mxu0
    %v608 = vadd.f32 %v284, %v607
    %609 = vmatprep.mubr.f32.mxu0 0.0
    %610 = vmatmul.mubr.f32.gmra.mxu0 %v126
    %v611 = vpop.f32.mrf.mxu0
    %v612 = vadd.f32 %v280, %v611
    %v613 = vpop.f32.mrf.mxu0
    %v614 = vadd.f32 %v284, %v613
    %615 = vmatprep.mubr.f32.mxu0 0.0
    %616 = vmatmul.mubr.f32.gmra.mxu0 %v127
    %v617 = vpop.f32.mrf.mxu0
    %v618 = vadd.f32 %v280, %v617
    %v619 = vpop.f32.mrf.mxu0
    %v620 = vadd.f32 %v284, %v619
    %621 = vmatprep.mubr.f32.mxu0 0.0
    %622 = vmatmul.mubr.f32.gmra.mxu0 %v128
    %v623 = vpop.f32.mrf.mxu0
    %v624 = vadd.f32 %v280, %v623
    %v625 = vpop.f32.mrf.mxu0
    %v626 = vadd.f32 %v284, %v625
    %627 = vmatprep.mubr.f32.mxu0 0.0
    %628 = vmatmul.mubr.f32.gmra.mxu0 %v129
    %v629 = vpop.f32.mrf.mxu0
    %v630 = vadd.f32 %v280, %v629
    %v631 = vpop.f32.mrf.mxu0
    %v632 = vadd.f32 %v284, %v631
    %633 = vmatprep.mubr.f32.mxu0 0.0
    %634 = vmatmul.mubr.f32.gmra.mxu0 %v130
    %v635 = vpop.f32.mrf.mxu0
    %v636 = vadd.f32 %v280, %v635
    %v637 = vpop.f32.mrf.mxu0
    %v638 = vadd.f32 %v284, %v637
    %639 = vdwg.mxu0
    %640 = vmatprep.subr.mxu0 %v258
    %641 = vmatpush1.msra.mxu0 %v257
    %642 = vmatprep.subr.mxu0 %v250
    %643 = vmatpush1.msra.mxu0 %v249
    %644 = vmatprep.subr.mxu0 %v242
    %645 = vmatpush1.msra.mxu0 %v241
    %646 = vmatprep.subr.mxu0 %v234
    %647 = vmatpush1.msra.mxu0 %v233
    %648 = vmatprep.subr.mxu0 %v226
    %649 = vmatpush1.msra.mxu0 %v225
    %650 = vmatprep.subr.mxu0 %v218
    %651 = vmatpush1.msra.mxu0 %v217
    %652 = vmatprep.subr.mxu0 %v210
    %653 = vmatpush1.msra.mxu0 %v209
    %654 = vmatprep.subr.mxu0 %v202
    %655 = vmatpush1.msra.mxu0 %v201
    %656 = vmatprep.subr.mxu0 %v194
    %657 = vmatpush1.msra.mxu0 %v193
    %658 = vmatprep.subr.mxu0 %v186
    %659 = vmatpush1.msra.mxu0 %v185
    %660 = vmatprep.subr.mxu0 %v178
    %661 = vmatpush1.msra.mxu0 %v177
    %662 = vmatprep.subr.mxu0 %v170
    %663 = vmatpush1.msra.mxu0 %v169
    %664 = vmatprep.subr.mxu0 %v162
    %665 = vmatpush1.msra.mxu0 %v161
    %666 = vmatprep.subr.mxu0 %v154
    %667 = vmatpush1.msra.mxu0 %v153
    %668 = vmatprep.subr.mxu0 %v146
    %669 = vmatpush1.msra.mxu0 %v145
    %670 = vmatprep.subr.mxu0 %v138
    %671 = vmatpush1.msra.mxu0 %v137
    %672 = vmatprep.subr.mxu0 0.0
    %673 = vmatpush2.msra.mxu0 0.0
    %674 = vmatprep.subr.mxu0 0.0
    %675 = vmatpush2.msra.mxu0 0.0
    %676 = vmatprep.subr.mxu0 0.0
    %677 = vmatpush2.msra.mxu0 0.0
    %678 = vmatprep.subr.mxu0 0.0
    %679 = vmatpush2.msra.mxu0 0.0
    %680 = vmatprep.subr.mxu0 0.0
    %681 = vmatpush2.msra.mxu0 0.0
    %682 = vmatprep.subr.mxu0 0.0
    %683 = vmatpush2.msra.mxu0 0.0
    %684 = vmatprep.subr.mxu0 0.0
    %685 = vmatpush2.msra.mxu0 0.0
    %686 = vmatprep.subr.mxu0 0.0
    %687 = vmatpush2.msra.mxu0 0.0
    %688 = vmatprep.subr.mxu0 0.0
    %689 = vmatpush2.msra.mxu0 0.0
    %690 = vmatprep.subr.mxu0 0.0
    %691 = vmatpush2.msra.mxu0 0.0
    %692 = vmatprep.subr.mxu0 0.0
    %693 = vmatpush2.msra.mxu0 0.0
    %694 = vmatprep.subr.mxu0 0.0
    %695 = vmatpush2.msra.mxu0 0.0
    %696 = vmatprep.subr.mxu0 0.0
    %697 = vmatpush2.msra.mxu0 0.0
    %698 = vmatprep.subr.mxu0 0.0
    %699 = vmatpush2.msra.mxu0 0.0
    %700 = vmatprep.subr.mxu0 0.0
    %701 = vmatpush2.msra.mxu0 0.0
    %702 = vmatprep.subr.mxu0 0.0
    %703 = vmatpush2.msra.mxu0 0.0
    %704 = vmatprep.mubr.f32.mxu0 0.0
    %705 = vmatmul.mubr.f32.gmra.mxu0 %v123
    %v706 = vpop.f32.mrf.mxu0
    %v707 = vadd.f32 %v288, %v706
    %v708 = vpop.f32.mrf.mxu0
    %v709 = vadd.f32 %v292, %v708
    %710 = vmatprep.mubr.f32.mxu0 0.0
    %711 = vmatmul.mubr.f32.gmra.mxu0 %v124
    %v712 = vpop.f32.mrf.mxu0
    %v713 = vadd.f32 %v288, %v712
    %v714 = vpop.f32.mrf.mxu0
    %v715 = vadd.f32 %v292, %v714
    %716 = vmatprep.mubr.f32.mxu0 0.0
    %717 = vmatmul.mubr.f32.gmra.mxu0 %v125
    %v718 = vpop.f32.mrf.mxu0
    %v719 = vadd.f32 %v288, %v718
    %v720 = vpop.f32.mrf.mxu0
    %v721 = vadd.f32 %v292, %v720
    %722 = vmatprep.mubr.f32.mxu0 0.0
    %723 = vmatmul.mubr.f32.gmra.mxu0 %v126
    %v724 = vpop.f32.mrf.mxu0
    %v725 = vadd.f32 %v288, %v724
    %v726 = vpop.f32.mrf.mxu0
    %v727 = vadd.f32 %v292, %v726
    %728 = vmatprep.mubr.f32.mxu0 0.0
    %729 = vmatmul.mubr.f32.gmra.mxu0 %v127
    %v730 = vpop.f32.mrf.mxu0
    %v731 = vadd.f32 %v288, %v730
    %v732 = vpop.f32.mrf.mxu0
    %v733 = vadd.f32 %v292, %v732
    %734 = vmatprep.mubr.f32.mxu0 0.0
    %735 = vmatmul.mubr.f32.gmra.mxu0 %v128
    %v736 = vpop.f32.mrf.mxu0
    %v737 = vadd.f32 %v288, %v736
    %v738 = vpop.f32.mrf.mxu0
    %v739 = vadd.f32 %v292, %v738
    %740 = vmatprep.mubr.f32.mxu0 0.0
    %741 = vmatmul.mubr.f32.gmra.mxu0 %v129
    %v742 = vpop.f32.mrf.mxu0
    %v743 = vadd.f32 %v288, %v742
    %v744 = vpop.f32.mrf.mxu0
    %v745 = vadd.f32 %v292, %v744
    %746 = vmatprep.mubr.f32.mxu0 0.0
    %747 = vmatmul.mubr.f32.gmra.mxu0 %v130
    %v748 = vpop.f32.mrf.mxu0
    %v749 = vadd.f32 %v288, %v748
    %v750 = vpop.f32.mrf.mxu0
    %v751 = vadd.f32 %v292, %v750
    %752 = vdwg.mxu0
    %753 = vst [vmem:[#allocation2] sm:$0xff] %v368
    %754 = vst [vmem:[#allocation2 + $0x8] sm:$0xff] %v370
    %755 = vst [vmem:[#allocation2 + $0x10] sm:$0xff] %v481
    %756 = vst [vmem:[#allocation2 + $0x18] sm:$0xff] %v483
    %757 = vst [vmem:[#allocation2 + $0x20] sm:$0xff] %v594
    %758 = vst [vmem:[#allocation2 + $0x28] sm:$0xff] %v596
    %759 = vst [vmem:[#allocation2 + $0x30] sm:$0xff] %v707
    %760 = vst [vmem:[#allocation2 + $0x38] sm:$0xff] %v709
    %761 = vst [vmem:[#allocation2 + $0x40] sm:$0xff] %v374
    %762 = vst [vmem:[#allocation2 + $0x48] sm:$0xff] %v376
    %763 = vst [vmem:[#allocation2 + $0x50] sm:$0xff] %v487
    %764 = vst [vmem:[#allocation2 + $0x58] sm:$0xff] %v489
    %765 = vst [vmem:[#allocation2 + $0x60] sm:$0xff] %v600
    %766 = vst [vmem:[#allocation2 + $0x68] sm:$0xff] %v602
    %767 = vst [vmem:[#allocation2 + $0x70] sm:$0xff] %v713
    %768 = vst [vmem:[#allocation2 + $0x78] sm:$0xff] %v715
    %769 = vst [vmem:[#allocation2 + $0x80] sm:$0xff] %v380
    %770 = vst [vmem:[#allocation2 + $0x88] sm:$0xff] %v382
    %771 = vst [vmem:[#allocation2 + $0x90] sm:$0xff] %v493
    %772 = vst [vmem:[#allocation2 + $0x98] sm:$0xff] %v495
    %773 = vst [vmem:[#allocation2 + $0xa0] sm:$0xff] %v606
    %774 = vst [vmem:[#allocation2 + $0xa8] sm:$0xff] %v608
    %775 = vst [vmem:[#allocation2 + $0xb0] sm:$0xff] %v719
    %776 = vst [vmem:[#allocation2 + $0xb8] sm:$0xff] %v721
    %777 = vst [vmem:[#allocation2 + $0xc0] sm:$0xff] %v386
    %778 = vst [vmem:[#allocation2 + $0xc8] sm:$0xff] %v388
    %779 = vst [vmem:[#allocation2 + $0xd0] sm:$0xff] %v499
    %780 = vst [vmem:[#allocation2 + $0xd8] sm:$0xff] %v501
    %781 = vst [vmem:[#allocation2 + $0xe0] sm:$0xff] %v612
    %782 = vst [vmem:[#allocation2 + $0xe8] sm:$0xff] %v614
    %783 = vst [vmem:[#allocation2 + $0xf0] sm:$0xff] %v725
    %784 = vst [vmem:[#allocation2 + $0xf8] sm:$0xff] %v727
    %785 = vst [vmem:[#allocation2 + $0x100] sm:$0xff] %v392
    %786 = vst [vmem:[#allocation2 + $0x108] sm:$0xff] %v394
    %787 = vst [vmem:[#allocation2 + $0x110] sm:$0xff] %v505
    %788 = vst [vmem:[#allocation2 + $0x118] sm:$0xff] %v507
    %789 = vst [vmem:[#allocation2 + $0x120] sm:$0xff] %v618
    %790 = vst [vmem:[#allocation2 + $0x128] sm:$0xff] %v620
    %791 = vst [vmem:[#allocation2 + $0x130] sm:$0xff] %v731
    %792 = vst [vmem:[#allocation2 + $0x138] sm:$0xff] %v733
    %793 = vst [vmem:[#allocation2 + $0x140] sm:$0xff] %v398
    %794 = vst [vmem:[#allocation2 + $0x148] sm:$0xff] %v400
    %795 = vst [vmem:[#allocation2 + $0x150] sm:$0xff] %v511
    %796 = vst [vmem:[#allocation2 + $0x158] sm:$0xff] %v513
    %797 = vst [vmem:[#allocation2 + $0x160] sm:$0xff] %v624
    %798 = vst [vmem:[#allocation2 + $0x168] sm:$0xff] %v626
    %799 = vst [vmem:[#allocation2 + $0x170] sm:$0xff] %v737
    %800 = vst [vmem:[#allocation2 + $0x178] sm:$0xff] %v739
    %801 = vst [vmem:[#allocation2 + $0x180] sm:$0xff] %v404
    %802 = vst [vmem:[#allocation2 + $0x188] sm:$0xff] %v406
    %803 = vst [vmem:[#allocation2 + $0x190] sm:$0xff] %v517
    %804 = vst [vmem:[#allocation2 + $0x198] sm:$0xff] %v519
    %805 = vst [vmem:[#allocation2 + $0x1a0] sm:$0xff] %v630
    %806 = vst [vmem:[#allocation2 + $0x1a8] sm:$0xff] %v632
    %807 = vst [vmem:[#allocation2 + $0x1b0] sm:$0xff] %v743
    %808 = vst [vmem:[#allocation2 + $0x1b8] sm:$0xff] %v745
    %809 = vst [vmem:[#allocation2 + $0x1c0] sm:$0xff] %v410
    %810 = vst [vmem:[#allocation2 + $0x1c8] sm:$0xff] %v412
    %811 = vst [vmem:[#allocation2 + $0x1d0] sm:$0xff] %v523
    %812 = vst [vmem:[#allocation2 + $0x1d8] sm:$0xff] %v525
    %813 = vst [vmem:[#allocation2 + $0x1e0] sm:$0xff] %v636
    %814 = vst [vmem:[#allocation2 + $0x1e8] sm:$0xff] %v638
    %815 = vst [vmem:[#allocation2 + $0x1f0] sm:$0xff] %v749
    %816 = vst [vmem:[#allocation2 + $0x1f8] sm:$0xff] %v751
    %s817 = smul.u32 0, 8
    %s818 = smul.addr %s817, 8
    %s819 = scalar_lea.vmem [#allocation2], %s818
    %v820 = vld [vmem:[%s819] sm:$0xff]
    %v821 = vld [vmem:[%s819 + $0x8] sm:$0xff]
    %v822 = vld [vmem:[%s819 + $0x10] sm:$0xff]
    %v823 = vld [vmem:[%s819 + $0x18] sm:$0xff]
    %v824 = vld [vmem:[#allocation11] sm:$0xff]
    %v825 = vld [vmem:[#allocation11 + $0x8] sm:$0xff]
    %v826 = vld [vmem:[#allocation11 + $0x10] sm:$0xff]
    %v827 = vld [vmem:[#allocation11 + $0x18] sm:$0xff]
    %v828 = vld [vmem:[#allocation11 + $0x20] sm:$0xff]
    %v829 = vld [vmem:[#allocation11 + $0x28] sm:$0xff]
    %v830 = vld [vmem:[#allocation11 + $0x30] sm:$0xff]
    %v831 = vld [vmem:[#allocation11 + $0x38] sm:$0xff]
    %v832 = vld [vmem:[#allocation11 + $0x40] sm:$0xff]
    %v833 = vld [vmem:[#allocation11 + $0x48] sm:$0xff]
    %v834 = vld [vmem:[#allocation11 + $0x50] sm:$0xff]
    %v835 = vld [vmem:[#allocation11 + $0x58] sm:$0xff]
    %v836 = vld [vmem:[#allocation11 + $0x60] sm:$0xff]
    %v837 = vld [vmem:[#allocation11 + $0x68] sm:$0xff]
    %v838 = vld [vmem:[#allocation11 + $0x70] sm:$0xff]
    %v839 = vld [vmem:[#allocation11 + $0x78] sm:$0xff]
    %v840 = vld [vmem:[#allocation11 + $0x80] sm:$0xff]
    %v841 = vld [vmem:[#allocation11 + $0x88] sm:$0xff]
    %v842 = vld [vmem:[#allocation11 + $0x90] sm:$0xff]
    %v843 = vld [vmem:[#allocation11 + $0x98] sm:$0xff]
    %v844 = vld [vmem:[#allocation11 + $0xa0] sm:$0xff]
    %v845 = vld [vmem:[#allocation11 + $0xa8] sm:$0xff]
    %v846 = vld [vmem:[#allocation11 + $0xb0] sm:$0xff]
    %v847 = vld [vmem:[#allocation11 + $0xb8] sm:$0xff]
    %v848 = vld [vmem:[#allocation11 + $0xc0] sm:$0xff]
    %v849 = vld [vmem:[#allocation11 + $0xc8] sm:$0xff]
    %v850 = vld [vmem:[#allocation11 + $0xd0] sm:$0xff]
    %v851 = vld [vmem:[#allocation11 + $0xd8] sm:$0xff]
    %v852 = vld [vmem:[#allocation11 + $0xe0] sm:$0xff]
    %v853 = vld [vmem:[#allocation11 + $0xe8] sm:$0xff]
    %v854 = vld [vmem:[#allocation11 + $0xf0] sm:$0xff]
    %v855 = vld [vmem:[#allocation11 + $0xf8] sm:$0xff]
    %v856 = vld [vmem:[#allocation11 + $0x100] sm:$0xff]
    %v857 = vld [vmem:[#allocation11 + $0x108] sm:$0xff]
    %v858 = vld [vmem:[#allocation11 + $0x110] sm:$0xff]
    %v859 = vld [vmem:[#allocation11 + $0x118] sm:$0xff]
    %v860 = vld [vmem:[#allocation11 + $0x120] sm:$0xff]
    %v861 = vld [vmem:[#allocation11 + $0x128] sm:$0xff]
    %v862 = vld [vmem:[#allocation11 + $0x130] sm:$0xff]
    %v863 = vld [vmem:[#allocation11 + $0x138] sm:$0xff]
    %v864 = vld [vmem:[#allocation11 + $0x140] sm:$0xff]
    %v865 = vld [vmem:[#allocation11 + $0x148] sm:$0xff]
    %v866 = vld [vmem:[#allocation11 + $0x150] sm:$0xff]
    %v867 = vld [vmem:[#allocation11 + $0x158] sm:$0xff]
    %v868 = vld [vmem:[#allocation11 + $0x160] sm:$0xff]
    %v869 = vld [vmem:[#allocation11 + $0x168] sm:$0xff]
    %v870 = vld [vmem:[#allocation11 + $0x170] sm:$0xff]
    %v871 = vld [vmem:[#allocation11 + $0x178] sm:$0xff]
    %v872 = vld [vmem:[#allocation11 + $0x180] sm:$0xff]
    %v873 = vld [vmem:[#allocation11 + $0x188] sm:$0xff]
    %v874 = vld [vmem:[#allocation11 + $0x190] sm:$0xff]
    %v875 = vld [vmem:[#allocation11 + $0x198] sm:$0xff]
    %v876 = vld [vmem:[#allocation11 + $0x1a0] sm:$0xff]
    %v877 = vld [vmem:[#allocation11 + $0x1a8] sm:$0xff]
    %v878 = vld [vmem:[#allocation11 + $0x1b0] sm:$0xff]
    %v879 = vld [vmem:[#allocation11 + $0x1b8] sm:$0xff]
    %v880 = vld [vmem:[#allocation11 + $0x1c0] sm:$0xff]
    %v881 = vld [vmem:[#allocation11 + $0x1c8] sm:$0xff]
    %v882 = vld [vmem:[#allocation11 + $0x1d0] sm:$0xff]
    %v883 = vld [vmem:[#allocation11 + $0x1d8] sm:$0xff]
    %v884 = vld [vmem:[#allocation11 + $0x1e0] sm:$0xff]
    %v885 = vld [vmem:[#allocation11 + $0x1e8] sm:$0xff]
    %v886 = vld [vmem:[#allocation11 + $0x1f0] sm:$0xff]
    %v887 = vld [vmem:[#allocation11 + $0x1f8] sm:$0xff]
    %888 = vmatprep.subr.mxu0 %v885
    %889 = vmatpush1.msra.mxu0 %v884
    %890 = vmatprep.subr.mxu0 %v881
    %891 = vmatpush1.msra.mxu0 %v880
    %892 = vmatprep.subr.mxu0 %v877
    %893 = vmatpush1.msra.mxu0 %v876
    %894 = vmatprep.subr.mxu0 %v873
    %895 = vmatpush1.msra.mxu0 %v872
    %896 = vmatprep.subr.mxu0 %v869
    %897 = vmatpush1.msra.mxu0 %v868
    %898 = vmatprep.subr.mxu0 %v865
    %899 = vmatpush1.msra.mxu0 %v864
    %900 = vmatprep.subr.mxu0 %v861
    %901 = vmatpush1.msra.mxu0 %v860
    %902 = vmatprep.subr.mxu0 %v857
    %903 = vmatpush1.msra.mxu0 %v856
    %904 = vmatprep.subr.mxu0 %v853
    %905 = vmatpush1.msra.mxu0 %v852
    %906 = vmatprep.subr.mxu0 %v849
    %907 = vmatpush1.msra.mxu0 %v848
    %908 = vmatprep.subr.mxu0 %v845
    %909 = vmatpush1.msra.mxu0 %v844
    %910 = vmatprep.subr.mxu0 %v841
    %911 = vmatpush1.msra.mxu0 %v840
    %912 = vmatprep.subr.mxu0 %v837
    %913 = vmatpush1.msra.mxu0 %v836
    %914 = vmatprep.subr.mxu0 %v833
    %915 = vmatpush1.msra.mxu0 %v832
    %916 = vmatprep.subr.mxu0 %v829
    %917 = vmatpush1.msra.mxu0 %v828
    %918 = vmatprep.subr.mxu0 %v825
    %919 = vmatpush1.msra.mxu0 %v824
    %920 = vmatprep.subr.mxu0 0.0
    %921 = vmatpush2.msra.mxu0 0.0
    %922 = vmatprep.subr.mxu0 0.0
    %923 = vmatpush2.msra.mxu0 0.0
    %924 = vmatprep.subr.mxu0 0.0
    %925 = vmatpush2.msra.mxu0 0.0
    %926 = vmatprep.subr.mxu0 0.0
    %927 = vmatpush2.msra.mxu0 0.0
    %928 = vmatprep.subr.mxu0 0.0
    %929 = vmatpush2.msra.mxu0 0.0
    %930 = vmatprep.subr.mxu0 0.0
    %931 = vmatpush2.msra.mxu0 0.0
    %932 = vmatprep.subr.mxu0 0.0
    %933 = vmatpush2.msra.mxu0 0.0
    %934 = vmatprep.subr.mxu0 0.0
    %935 = vmatpush2.msra.mxu0 0.0
    %936 = vmatprep.subr.mxu0 0.0
    %937 = vmatpush2.msra.mxu0 0.0
    %938 = vmatprep.subr.mxu0 0.0
    %939 = vmatpush2.msra.mxu0 0.0
    %940 = vmatprep.subr.mxu0 0.0
    %941 = vmatpush2.msra.mxu0 0.0
    %942 = vmatprep.subr.mxu0 0.0
    %943 = vmatpush2.msra.mxu0 0.0
    %944 = vmatprep.subr.mxu0 0.0
    %945 = vmatpush2.msra.mxu0 0.0
    %946 = vmatprep.subr.mxu0 0.0
    %947 = vmatpush2.msra.mxu0 0.0
    %948 = vmatprep.subr.mxu0 0.0
    %949 = vmatpush2.msra.mxu0 0.0
    %950 = vmatprep.subr.mxu0 0.0
    %951 = vmatpush2.msra.mxu0 0.0
    %952 = vmatprep.mubr.f32.mxu0 0.0
    %953 = vmatmul.mubr.f32.gmra.mxu0 0.0
    %v954 = vpop.f32.mrf.mxu0
    %v955 = vadd.f32 0.0, %v954
    %v956 = vpop.f32.mrf.mxu0
    %v957 = vadd.f32 0.0, %v956
    %958 = vdwg.mxu0
    %959 = vmatprep.subr.mxu0 %v887
    %960 = vmatpush1.msra.mxu0 %v886
    %961 = vmatprep.subr.mxu0 %v883
    %962 = vmatpush1.msra.mxu0 %v882
    %963 = vmatprep.subr.mxu0 %v879
    %964 = vmatpush1.msra.mxu0 %v878
    %965 = vmatprep.subr.mxu0 %v875
    %966 = vmatpush1.msra.mxu0 %v874
    %967 = vmatprep.subr.mxu0 %v871
    %968 = vmatpush1.msra.mxu0 %v870
    %969 = vmatprep.subr.mxu0 %v867
    %970 = vmatpush1.msra.mxu0 %v866
    %971 = vmatprep.subr.mxu0 %v863
    %972 = vmatpush1.msra.mxu0 %v862
    %973 = vmatprep.subr.mxu0 %v859
    %974 = vmatpush1.msra.mxu0 %v858
    %975 = vmatprep.subr.mxu0 %v855
    %976 = vmatpush1.msra.mxu0 %v854
    %977 = vmatprep.subr.mxu0 %v851
    %978 = vmatpush1.msra.mxu0 %v850
    %979 = vmatprep.subr.mxu0 %v847
    %980 = vmatpush1.msra.mxu0 %v846
    %981 = vmatprep.subr.mxu0 %v843
    %982 = vmatpush1.msra.mxu0 %v842
    %983 = vmatprep.subr.mxu0 %v839
    %984 = vmatpush1.msra.mxu0 %v838
    %985 = vmatprep.subr.mxu0 %v835
    %986 = vmatpush1.msra.mxu0 %v834
    %987 = vmatprep.subr.mxu0 %v831
    %988 = vmatpush1.msra.mxu0 %v830
    %989 = vmatprep.subr.mxu0 %v827
    %990 = vmatpush1.msra.mxu0 %v826
    %991 = vmatprep.subr.mxu0 0.0
    %992 = vmatpush2.msra.mxu0 0.0
    %993 = vmatprep.subr.mxu0 0.0
    %994 = vmatpush2.msra.mxu0 0.0
    %995 = vmatprep.subr.mxu0 0.0
    %996 = vmatpush2.msra.mxu0 0.0
    %997 = vmatprep.subr.mxu0 0.0
    %998 = vmatpush2.msra.mxu0 0.0
    %999 = vmatprep.subr.mxu0 0.0
    %1000 = vmatpush2.msra.mxu0 0.0
    %1001 = vmatprep.subr.mxu0 0.0
    %1002 = vmatpush2.msra.mxu0 0.0
    %1003 = vmatprep.subr.mxu0 0.0
    %1004 = vmatpush2.msra.mxu0 0.0
    %1005 = vmatprep.subr.mxu0 0.0
    %1006 = vmatpush2.msra.mxu0 0.0
    %1007 = vmatprep.subr.mxu0 0.0
    %1008 = vmatpush2.msra.mxu0 0.0
    %1009 = vmatprep.subr.mxu0 0.0
    %1010 = vmatpush2.msra.mxu0 0.0
    %1011 = vmatprep.subr.mxu0 0.0
    %1012 = vmatpush2.msra.mxu0 0.0
    %1013 = vmatprep.subr.mxu0 0.0
    %1014 = vmatpush2.msra.mxu0 0.0
    %1015 = vmatprep.subr.mxu0 0.0
    %1016 = vmatpush2.msra.mxu0 0.0
    %1017 = vmatprep.subr.mxu0 0.0
    %1018 = vmatpush2.msra.mxu0 0.0
    %1019 = vmatprep.subr.mxu0 0.0
    %1020 = vmatpush2.msra.mxu0 0.0
    %1021 = vmatprep.subr.mxu0 0.0
    %1022 = vmatpush2.msra.mxu0 0.0
    %1023 = vmatprep.mubr.f32.mxu0 0.0
    %1024 = vmatmul.mubr.f32.gmra.mxu0 0.0
    %v1025 = vpop.f32.mrf.mxu0
    %v1026 = vadd.f32 0.0, %v1025
    %v1027 = vpop.f32.mrf.mxu0
    %v1028 = vadd.f32 0.0, %v1027
    %1029 = vdwg.mxu0
    %v1030 = vadd.f32 %v820, %v955
    %v1031 = vadd.f32 %v821, %v957
    %v1032 = vadd.f32 %v822, %v1026
    %v1033 = vadd.f32 %v823, %v1028
    %s1034 = smul.u32 7, 8
    %s1035 = smul.addr %s1034, 8
    %s1036 = scalar_lea.vmem [#allocation2], %s1035
    %v1037 = vld [vmem:[%s1036 + $0x20] sm:$0xff]
    %v1038 = vld [vmem:[%s1036 + $0x28] sm:$0xff]
    %v1039 = vld [vmem:[%s1036 + $0x30] sm:$0xff]
    %v1040 = vld [vmem:[%s1036 + $0x38] sm:$0xff]
    %v1041 = vld [vmem:[#allocation13] sm:$0xff]
    %v1042 = vld [vmem:[#allocation13 + $0x8] sm:$0xff]
    %v1043 = vld [vmem:[#allocation13 + $0x10] sm:$0xff]
    %v1044 = vld [vmem:[#allocation13 + $0x18] sm:$0xff]
    %v1045 = vld [vmem:[#allocation13 + $0x20] sm:$0xff]
    %v1046 = vld [vmem:[#allocation13 + $0x28] sm:$0xff]
    %v1047 = vld [vmem:[#allocation13 + $0x30] sm:$0xff]
    %v1048 = vld [vmem:[#allocation13 + $0x38] sm:$0xff]
    %v1049 = vld [vmem:[#allocation13 + $0x40] sm:$0xff]
    %v1050 = vld [vmem:[#allocation13 + $0x48] sm:$0xff]
    %v1051 = vld [vmem:[#allocation13 + $0x50] sm:$0xff]
    %v1052 = vld [vmem:[#allocation13 + $0x58] sm:$0xff]
    %v1053 = vld [vmem:[#allocation13 + $0x60] sm:$0xff]
    %v1054 = vld [vmem:[#allocation13 + $0x68] sm:$0xff]
    %v1055 = vld [vmem:[#allocation13 + $0x70] sm:$0xff]
    %v1056 = vld [vmem:[#allocation13 + $0x78] sm:$0xff]
    %v1057 = vld [vmem:[#allocation13 + $0x80] sm:$0xff]
    %v1058 = vld [vmem:[#allocation13 + $0x88] sm:$0xff]
    %v1059 = vld [vmem:[#allocation13 + $0x90] sm:$0xff]
    %v1060 = vld [vmem:[#allocation13 + $0x98] sm:$0xff]
    %v1061 = vld [vmem:[#allocation13 + $0xa0] sm:$0xff]
    %v1062 = vld [vmem:[#allocation13 + $0xa8] sm:$0xff]
    %v1063 = vld [vmem:[#allocation13 + $0xb0] sm:$0xff]
    %v1064 = vld [vmem:[#allocation13 + $0xb8] sm:$0xff]
    %v1065 = vld [vmem:[#allocation13 + $0xc0] sm:$0xff]
    %v1066 = vld [vmem:[#allocation13 + $0xc8] sm:$0xff]
    %v1067 = vld [vmem:[#allocation13 + $0xd0] sm:$0xff]
    %v1068 = vld [vmem:[#allocation13 + $0xd8] sm:$0xff]
    %v1069 = vld [vmem:[#allocation13 + $0xe0] sm:$0xff]
    %v1070 = vld [vmem:[#allocation13 + $0xe8] sm:$0xff]
    %v1071 = vld [vmem:[#allocation13 + $0xf0] sm:$0xff]
    %v1072 = vld [vmem:[#allocation13 + $0xf8] sm:$0xff]
    %v1073 = vld [vmem:[#allocation13 + $0x100] sm:$0xff]
    %v1074 = vld [vmem:[#allocation13 + $0x108] sm:$0xff]
    %v1075 = vld [vmem:[#allocation13 + $0x110] sm:$0xff]
    %v1076 = vld [vmem:[#allocation13 + $0x118] sm:$0xff]
    %v1077 = vld [vmem:[#allocation13 + $0x120] sm:$0xff]
    %v1078 = vld [vmem:[#allocation13 + $0x128] sm:$0xff]
    %v1079 = vld [vmem:[#allocation13 + $0x130] sm:$0xff]
    %v1080 = vld [vmem:[#allocation13 + $0x138] sm:$0xff]
    %v1081 = vld [vmem:[#allocation13 + $0x140] sm:$0xff]
    %v1082 = vld [vmem:[#allocation13 + $0x148] sm:$0xff]
    %v1083 = vld [vmem:[#allocation13 + $0x150] sm:$0xff]
    %v1084 = vld [vmem:[#allocation13 + $0x158] sm:$0xff]
    %v1085 = vld [vmem:[#allocation13 + $0x160] sm:$0xff]
    %v1086 = vld [vmem:[#allocation13 + $0x168] sm:$0xff]
    %v1087 = vld [vmem:[#allocation13 + $0x170] sm:$0xff]
    %v1088 = vld [vmem:[#allocation13 + $0x178] sm:$0xff]
    %v1089 = vld [vmem:[#allocation13 + $0x180] sm:$0xff]
    %v1090 = vld [vmem:[#allocation13 + $0x188] sm:$0xff]
    %v1091 = vld [vmem:[#allocation13 + $0x190] sm:$0xff]
    %v1092 = vld [vmem:[#allocation13 + $0x198] sm:$0xff]
    %v1093 = vld [vmem:[#allocation13 + $0x1a0] sm:$0xff]
    %v1094 = vld [vmem:[#allocation13 + $0x1a8] sm:$0xff]
    %v1095 = vld [vmem:[#allocation13 + $0x1b0] sm:$0xff]
    %v1096 = vld [vmem:[#allocation13 + $0x1b8] sm:$0xff]
    %v1097 = vld [vmem:[#allocation13 + $0x1c0] sm:$0xff]
    %v1098 = vld [vmem:[#allocation13 + $0x1c8] sm:$0xff]
    %v1099 = vld [vmem:[#allocation13 + $0x1d0] sm:$0xff]
    %v1100 = vld [vmem:[#allocation13 + $0x1d8] sm:$0xff]
    %v1101 = vld [vmem:[#allocation13 + $0x1e0] sm:$0xff]
    %v1102 = vld [vmem:[#allocation13 + $0x1e8] sm:$0xff]
    %v1103 = vld [vmem:[#allocation13 + $0x1f0] sm:$0xff]
    %v1104 = vld [vmem:[#allocation13 + $0x1f8] sm:$0xff]
    %1105 = vmatprep.subr.mxu0 %v1102
    %1106 = vmatpush1.msra.mxu0 %v1101
    %1107 = vmatprep.subr.mxu0 %v1098
    %1108 = vmatpush1.msra.mxu0 %v1097
    %1109 = vmatprep.subr.mxu0 %v1094
    %1110 = vmatpush1.msra.mxu0 %v1093
    %1111 = vmatprep.subr.mxu0 %v1090
    %1112 = vmatpush1.msra.mxu0 %v1089
    %1113 = vmatprep.subr.mxu0 %v1086
    %1114 = vmatpush1.msra.mxu0 %v1085
    %1115 = vmatprep.subr.mxu0 %v1082
    %1116 = vmatpush1.msra.mxu0 %v1081
    %1117 = vmatprep.subr.mxu0 %v1078
    %1118 = vmatpush1.msra.mxu0 %v1077
    %1119 = vmatprep.subr.mxu0 %v1074
    %1120 = vmatpush1.msra.mxu0 %v1073
    %1121 = vmatprep.subr.mxu0 %v1070
    %1122 = vmatpush1.msra.mxu0 %v1069
    %1123 = vmatprep.subr.mxu0 %v1066
    %1124 = vmatpush1.msra.mxu0 %v1065
    %1125 = vmatprep.subr.mxu0 %v1062
    %1126 = vmatpush1.msra.mxu0 %v1061
    %1127 = vmatprep.subr.mxu0 %v1058
    %1128 = vmatpush1.msra.mxu0 %v1057
    %1129 = vmatprep.subr.mxu0 %v1054
    %1130 = vmatpush1.msra.mxu0 %v1053
    %1131 = vmatprep.subr.mxu0 %v1050
    %1132 = vmatpush1.msra.mxu0 %v1049
    %1133 = vmatprep.subr.mxu0 %v1046
    %1134 = vmatpush1.msra.mxu0 %v1045
    %1135 = vmatprep.subr.mxu0 %v1042
    %1136 = vmatpush1.msra.mxu0 %v1041
    %1137 = vmatprep.subr.mxu0 0.0
    %1138 = vmatpush2.msra.mxu0 0.0
    %1139 = vmatprep.subr.mxu0 0.0
    %1140 = vmatpush2.msra.mxu0 0.0
    %1141 = vmatprep.subr.mxu0 0.0
    %1142 = vmatpush2.msra.mxu0 0.0
    %1143 = vmatprep.subr.mxu0 0.0
    %1144 = vmatpush2.msra.mxu0 0.0
    %1145 = vmatprep.subr.mxu0 0.0
    %1146 = vmatpush2.msra.mxu0 0.0
    %1147 = vmatprep.subr.mxu0 0.0
    %1148 = vmatpush2.msra.mxu0 0.0
    %1149 = vmatprep.subr.mxu0 0.0
    %1150 = vmatpush2.msra.mxu0 0.0
    %1151 = vmatprep.subr.mxu0 0.0
    %1152 = vmatpush2.msra.mxu0 0.0
    %1153 = vmatprep.subr.mxu0 0.0
    %1154 = vmatpush2.msra.mxu0 0.0
    %1155 = vmatprep.subr.mxu0 0.0
    %1156 = vmatpush2.msra.mxu0 0.0
    %1157 = vmatprep.subr.mxu0 0.0
    %1158 = vmatpush2.msra.mxu0 0.0
    %1159 = vmatprep.subr.mxu0 0.0
    %1160 = vmatpush2.msra.mxu0 0.0
    %1161 = vmatprep.subr.mxu0 0.0
    %1162 = vmatpush2.msra.mxu0 0.0
    %1163 = vmatprep.subr.mxu0 0.0
    %1164 = vmatpush2.msra.mxu0 0.0
    %1165 = vmatprep.subr.mxu0 0.0
    %1166 = vmatpush2.msra.mxu0 0.0
    %1167 = vmatprep.subr.mxu0 0.0
    %1168 = vmatpush2.msra.mxu0 0.0
    %1169 = vmatprep.mubr.f32.mxu0 0.0
    %1170 = vmatmul.mubr.f32.gmra.mxu0 0.0
    %v1171 = vpop.f32.mrf.mxu0
    %v1172 = vadd.f32 0.0, %v1171
    %v1173 = vpop.f32.mrf.mxu0
    %v1174 = vadd.f32 0.0, %v1173
    %1175 = vdwg.mxu0
    %1176 = vmatprep.subr.mxu0 %v1104
    %1177 = vmatpush1.msra.mxu0 %v1103
    %1178 = vmatprep.subr.mxu0 %v1100
    %1179 = vmatpush1.msra.mxu0 %v1099
    %1180 = vmatprep.subr.mxu0 %v1096
    %1181 = vmatpush1.msra.mxu0 %v1095
    %1182 = vmatprep.subr.mxu0 %v1092
    %1183 = vmatpush1.msra.mxu0 %v1091
    %1184 = vmatprep.subr.mxu0 %v1088
    %1185 = vmatpush1.msra.mxu0 %v1087
    %1186 = vmatprep.subr.mxu0 %v1084
    %1187 = vmatpush1.msra.mxu0 %v1083
    %1188 = vmatprep.subr.mxu0 %v1080
    %1189 = vmatpush1.msra.mxu0 %v1079
    %1190 = vmatprep.subr.mxu0 %v1076
    %1191 = vmatpush1.msra.mxu0 %v1075
    %1192 = vmatprep.subr.mxu0 %v1072
    %1193 = vmatpush1.msra.mxu0 %v1071
    %1194 = vmatprep.subr.mxu0 %v1068
    %1195 = vmatpush1.msra.mxu0 %v1067
    %1196 = vmatprep.subr.mxu0 %v1064
    %1197 = vmatpush1.msra.mxu0 %v1063
    %1198 = vmatprep.subr.mxu0 %v1060
    %1199 = vmatpush1.msra.mxu0 %v1059
    %1200 = vmatprep.subr.mxu0 %v1056
    %1201 = vmatpush1.msra.mxu0 %v1055
    %1202 = vmatprep.subr.mxu0 %v1052
    %1203 = vmatpush1.msra.mxu0 %v1051
    %1204 = vmatprep.subr.mxu0 %v1048
    %1205 = vmatpush1.msra.mxu0 %v1047
    %1206 = vmatprep.subr.mxu0 %v1044
    %1207 = vmatpush1.msra.mxu0 %v1043
    %1208 = vmatprep.subr.mxu0 0.0
    %1209 = vmatpush2.msra.mxu0 0.0
    %1210 = vmatprep.subr.mxu0 0.0
    %1211 = vmatpush2.msra.mxu0 0.0
    %1212 = vmatprep.subr.mxu0 0.0
    %1213 = vmatpush2.msra.mxu0 0.0
    %1214 = vmatprep.subr.mxu0 0.0
    %1215 = vmatpush2.msra.mxu0 0.0
    %1216 = vmatprep.subr.mxu0 0.0
    %1217 = vmatpush2.msra.mxu0 0.0
    %1218 = vmatprep.subr.mxu0 0.0
    %1219 = vmatpush2.msra.mxu0 0.0
    %1220 = vmatprep.subr.mxu0 0.0
    %1221 = vmatpush2.msra.mxu0 0.0
    %1222 = vmatprep.subr.mxu0 0.0
    %1223 = vmatpush2.msra.mxu0 0.0
    %1224 = vmatprep.subr.mxu0 0.0
    %1225 = vmatpush2.msra.mxu0 0.0
    %1226 = vmatprep.subr.mxu0 0.0
    %1227 = vmatpush2.msra.mxu0 0.0
    %1228 = vmatprep.subr.mxu0 0.0
    %1229 = vmatpush2.msra.mxu0 0.0
    %1230 = vmatprep.subr.mxu0 0.0
    %1231 = vmatpush2.msra.mxu0 0.0
    %1232 = vmatprep.subr.mxu0 0.0
    %1233 = vmatpush2.msra.mxu0 0.0
    %1234 = vmatprep.subr.mxu0 0.0
    %1235 = vmatpush2.msra.mxu0 0.0
    %1236 = vmatprep.subr.mxu0 0.0
    %1237 = vmatpush2.msra.mxu0 0.0
    %1238 = vmatprep.subr.mxu0 0.0
    %1239 = vmatpush2.msra.mxu0 0.0
    %1240 = vmatprep.mubr.f32.mxu0 0.0
    %1241 = vmatmul.mubr.f32.gmra.mxu0 0.0
    %v1242 = vpop.f32.mrf.mxu0
    %v1243 = vadd.f32 0.0, %v1242
    %v1244 = vpop.f32.mrf.mxu0
    %v1245 = vadd.f32 0.0, %v1244
    %1246 = vdwg.mxu0
    %v1247 = vadd.f32 %v1037, %v1172
    %v1248 = vadd.f32 %v1038, %v1174
    %v1249 = vadd.f32 %v1039, %v1243
    %v1250 = vadd.f32 %v1040, %v1245
    %v1251 = vxor.u32 %v1030, 2147483648
    %v1252 = vmul.f32 %v1251, 1.442695
    %v1253 = vpow.pop %v1252
    %v1254 = vadd.f32 %v1253, 1.0
    %v1255 = vrcp.pop %v1254
    %v1256 = vmul.f32 1.0, %v1255
    %v1257 = vxor.u32 %v1031, 2147483648
    %v1258 = vmul.f32 %v1257, 1.442695
    %v1259 = vpow.pop %v1258
    %v1260 = vadd.f32 %v1259, 1.0
    %v1261 = vrcp.pop %v1260
    %v1262 = vmul.f32 1.0, %v1261
    %v1263 = vtanh.pop %v1032
    %v1264 = vxor.u32 %v1033, 2147483648
    %v1265 = vmul.f32 %v1264, 1.442695
    %v1266 = vpow.pop %v1265
    %v1267 = vadd.f32 %v1266, 1.0
    %v1268 = vrcp.pop %v1267
    %v1269 = vmul.f32 1.0, %v1268
    %v1270 = vmul.f32 %v1262, 0.0
    %v1271 = vmul.f32 %v1256, %v1263
    %v1272 = vadd.f32 %v1270, %v1271
    %v1273 = vtanh.pop %v1272
    %v1274 = vmul.f32 %v1269, %v1273
    %v1275 = vxor.u32 %v1247, 2147483648
    %v1276 = vmul.f32 %v1275, 1.442695
    %v1277 = vpow.pop %v1276
    %v1278 = vadd.f32 %v1277, 1.0
    %v1279 = vrcp.pop %v1278
    %v1280 = vmul.f32 1.0, %v1279
    %v1281 = vxor.u32 %v1248, 2147483648
    %v1282 = vmul.f32 %v1281, 1.442695
    %v1283 = vpow.pop %v1282
    %v1284 = vadd.f32 %v1283, 1.0
    %v1285 = vrcp.pop %v1284
    %v1286 = vmul.f32 1.0, %v1285
    %v1287 = vtanh.pop %v1249
    %v1288 = vxor.u32 %v1250, 2147483648
    %v1289 = vmul.f32 %v1288, 1.442695
    %v1290 = vpow.pop %v1289
    %v1291 = vadd.f32 %v1290, 1.0
    %v1292 = vrcp.pop %v1291
    %v1293 = vmul.f32 1.0, %v1292
    %v1294 = vmul.f32 %v1286, 0.0
    %v1295 = vmul.f32 %v1280, %v1287
    %v1296 = vadd.f32 %v1294, %v1295
    %v1297 = vtanh.pop %v1296
    %v1298 = vmul.f32 %v1293, %v1297
    %1299 = vst [vmem:[#allocation3] sm:$0xff] %v1274
    %s1300 = scalar_lea.vmem [#allocation4], 56
    %1301 = vst [vmem:[%s1300] sm:$0xff] %v1298
    %s1302 = smul.u32 1, 8
    %s1303 = smul.addr %s1302, 8
    %s1304 = scalar_lea.vmem [#allocation2], %s1303
    %v1305 = vld [vmem:[%s1304] sm:$0xff]
    %v1306 = vld [vmem:[%s1304 + $0x8] sm:$0xff]
    %v1307 = vld [vmem:[%s1304 + $0x10] sm:$0xff]
    %v1308 = vld [vmem:[%s1304 + $0x18] sm:$0xff]
    %v1309 = vld [vmem:[#allocation11] sm:$0xff]
    %v1310 = vld [vmem:[#allocation11 + $0x8] sm:$0xff]
    %v1311 = vld [vmem:[#allocation11 + $0x10] sm:$0xff]
    %v1312 = vld [vmem:[#allocation11 + $0x18] sm:$0xff]
    %v1313 = vld [vmem:[#allocation11 + $0x20] sm:$0xff]
    %v1314 = vld [vmem:[#allocation11 + $0x28] sm:$0xff]
    %v1315 = vld [vmem:[#allocation11 + $0x30] sm:$0xff]
    %v1316 = vld [vmem:[#allocation11 + $0x38] sm:$0xff]
    %v1317 = vld [vmem:[#allocation11 + $0x40] sm:$0xff]
    %v1318 = vld [vmem:[#allocation11 + $0x48] sm:$0xff]
    %v1319 = vld [vmem:[#allocation11 + $0x50] sm:$0xff]
    %v1320 = vld [vmem:[#allocation11 + $0x58] sm:$0xff]
    %v1321 = vld [vmem:[#allocation11 + $0x60] sm:$0xff]
    %v1322 = vld [vmem:[#allocation11 + $0x68] sm:$0xff]
    %v1323 = vld [vmem:[#allocation11 + $0x70] sm:$0xff]
    %v1324 = vld [vmem:[#allocation11 + $0x78] sm:$0xff]
    %v1325 = vld [vmem:[#allocation11 + $0x80] sm:$0xff]
    %v1326 = vld [vmem:[#allocation11 + $0x88] sm:$0xff]
    %v1327 = vld [vmem:[#allocation11 + $0x90] sm:$0xff]
    %v1328 = vld [vmem:[#allocation11 + $0x98] sm:$0xff]
    %v1329 = vld [vmem:[#allocation11 + $0xa0] sm:$0xff]
    %v1330 = vld [vmem:[#allocation11 + $0xa8] sm:$0xff]
    %v1331 = vld [vmem:[#allocation11 + $0xb0] sm:$0xff]
    %v1332 = vld [vmem:[#allocation11 + $0xb8] sm:$0xff]
    %v1333 = vld [vmem:[#allocation11 + $0xc0] sm:$0xff]
    %v1334 = vld [vmem:[#allocation11 + $0xc8] sm:$0xff]
    %v1335 = vld [vmem:[#allocation11 + $0xd0] sm:$0xff]
    %v1336 = vld [vmem:[#allocation11 + $0xd8] sm:$0xff]
    %v1337 = vld [vmem:[#allocation11 + $0xe0] sm:$0xff]
    %v1338 = vld [vmem:[#allocation11 + $0xe8] sm:$0xff]
    %v1339 = vld [vmem:[#allocation11 + $0xf0] sm:$0xff]
    %v1340 = vld [vmem:[#allocation11 + $0xf8] sm:$0xff]
    %v1341 = vld [vmem:[#allocation11 + $0x100] sm:$0xff]
    %v1342 = vld [vmem:[#allocation11 + $0x108] sm:$0xff]
    %v1343 = vld [vmem:[#allocation11 + $0x110] sm:$0xff]
    %v1344 = vld [vmem:[#allocation11 + $0x118] sm:$0xff]
    %v1345 = vld [vmem:[#allocation11 + $0x120] sm:$0xff]
    %v1346 = vld [vmem:[#allocation11 + $0x128] sm:$0xff]
    %v1347 = vld [vmem:[#allocation11 + $0x130] sm:$0xff]
    %v1348 = vld [vmem:[#allocation11 + $0x138] sm:$0xff]
    %v1349 = vld [vmem:[#allocation11 + $0x140] sm:$0xff]
    %v1350 = vld [vmem:[#allocation11 + $0x148] sm:$0xff]
    %v1351 = vld [vmem:[#allocation11 + $0x150] sm:$0xff]
    %v1352 = vld [vmem:[#allocation11 + $0x158] sm:$0xff]
    %v1353 = vld [vmem:[#allocation11 + $0x160] sm:$0xff]
    %v1354 = vld [vmem:[#allocation11 + $0x168] sm:$0xff]
    %v1355 = vld [vmem:[#allocation11 + $0x170] sm:$0xff]
    %v1356 = vld [vmem:[#allocation11 + $0x178] sm:$0xff]
    %v1357 = vld [vmem:[#allocation11 + $0x180] sm:$0xff]
    %v1358 = vld [vmem:[#allocation11 + $0x188] sm:$0xff]
    %v1359 = vld [vmem:[#allocation11 + $0x190] sm:$0xff]
    %v1360 = vld [vmem:[#allocation11 + $0x198] sm:$0xff]
    %v1361 = vld [vmem:[#allocation11 + $0x1a0] sm:$0xff]
    %v1362 = vld [vmem:[#allocation11 + $0x1a8] sm:$0xff]
    %v1363 = vld [vmem:[#allocation11 + $0x1b0] sm:$0xff]
    %v1364 = vld [vmem:[#allocation11 + $0x1b8] sm:$0xff]
    %v1365 = vld [vmem:[#allocation11 + $0x1c0] sm:$0xff]
    %v1366 = vld [vmem:[#allocation11 + $0x1c8] sm:$0xff]
    %v1367 = vld [vmem:[#allocation11 + $0x1d0] sm:$0xff]
    %v1368 = vld [vmem:[#allocation11 + $0x1d8] sm:$0xff]
    %v1369 = vld [vmem:[#allocation11 + $0x1e0] sm:$0xff]
    %v1370 = vld [vmem:[#allocation11 + $0x1e8] sm:$0xff]
    %v1371 = vld [vmem:[#allocation11 + $0x1f0] sm:$0xff]
    %v1372 = vld [vmem:[#allocation11 + $0x1f8] sm:$0xff]
    %1373 = vmatprep.subr.mxu0 %v1370
    %1374 = vmatpush1.msra.mxu0 %v1369
    %1375 = vmatprep.subr.mxu0 %v1366
    %1376 = vmatpush1.msra.mxu0 %v1365
    %1377 = vmatprep.subr.mxu0 %v1362
    %1378 = vmatpush1.msra.mxu0 %v1361
    %1379 = vmatprep.subr.mxu0 %v1358
    %1380 = vmatpush1.msra.mxu0 %v1357
    %1381 = vmatprep.subr.mxu0 %v1354
    %1382 = vmatpush1.msra.mxu0 %v1353
    %1383 = vmatprep.subr.mxu0 %v1350
    %1384 = vmatpush1.msra.mxu0 %v1349
    %1385 = vmatprep.subr.mxu0 %v1346
    %1386 = vmatpush1.msra.mxu0 %v1345
    %1387 = vmatprep.subr.mxu0 %v1342
    %1388 = vmatpush1.msra.mxu0 %v1341
    %1389 = vmatprep.subr.mxu0 %v1338
    %1390 = vmatpush1.msra.mxu0 %v1337
    %1391 = vmatprep.subr.mxu0 %v1334
    %1392 = vmatpush1.msra.mxu0 %v1333
    %1393 = vmatprep.subr.mxu0 %v1330
    %1394 = vmatpush1.msra.mxu0 %v1329
    %1395 = vmatprep.subr.mxu0 %v1326
    %1396 = vmatpush1.msra.mxu0 %v1325
    %1397 = vmatprep.subr.mxu0 %v1322
    %1398 = vmatpush1.msra.mxu0 %v1321
    %1399 = vmatprep.subr.mxu0 %v1318
    %1400 = vmatpush1.msra.mxu0 %v1317
    %1401 = vmatprep.subr.mxu0 %v1314
    %1402 = vmatpush1.msra.mxu0 %v1313
    %1403 = vmatprep.subr.mxu0 %v1310
    %1404 = vmatpush1.msra.mxu0 %v1309
    %1405 = vmatprep.subr.mxu0 0.0
    %1406 = vmatpush2.msra.mxu0 0.0
    %1407 = vmatprep.subr.mxu0 0.0
    %1408 = vmatpush2.msra.mxu0 0.0
    %1409 = vmatprep.subr.mxu0 0.0
    %1410 = vmatpush2.msra.mxu0 0.0
    %1411 = vmatprep.subr.mxu0 0.0
    %1412 = vmatpush2.msra.mxu0 0.0
    %1413 = vmatprep.subr.mxu0 0.0
    %1414 = vmatpush2.msra.mxu0 0.0
    %1415 = vmatprep.subr.mxu0 0.0
    %1416 = vmatpush2.msra.mxu0 0.0
    %1417 = vmatprep.subr.mxu0 0.0
    %1418 = vmatpush2.msra.mxu0 0.0
    %1419 = vmatprep.subr.mxu0 0.0
    %1420 = vmatpush2.msra.mxu0 0.0
    %1421 = vmatprep.subr.mxu0 0.0
    %1422 = vmatpush2.msra.mxu0 0.0
    %1423 = vmatprep.subr.mxu0 0.0
    %1424 = vmatpush2.msra.mxu0 0.0
    %1425 = vmatprep.subr.mxu0 0.0
    %1426 = vmatpush2.msra.mxu0 0.0
    %1427 = vmatprep.subr.mxu0 0.0
    %1428 = vmatpush2.msra.mxu0 0.0
    %1429 = vmatprep.subr.mxu0 0.0
    %1430 = vmatpush2.msra.mxu0 0.0
    %1431 = vmatprep.subr.mxu0 0.0
    %1432 = vmatpush2.msra.mxu0 0.0
    %1433 = vmatprep.subr.mxu0 0.0
    %1434 = vmatpush2.msra.mxu0 0.0
    %1435 = vmatprep.subr.mxu0 0.0
    %1436 = vmatpush2.msra.mxu0 0.0
    %1437 = vmatprep.mubr.f32.mxu0 0.0
    %1438 = vmatmul.mubr.f32.gmra.mxu0 %v1274
    %v1439 = vpop.f32.mrf.mxu0
    %v1440 = vadd.f32 0.0, %v1439
    %v1441 = vpop.f32.mrf.mxu0
    %v1442 = vadd.f32 0.0, %v1441
    %1443 = vdwg.mxu0
    %1444 = vmatprep.subr.mxu0 %v1372
    %1445 = vmatpush1.msra.mxu0 %v1371
    %1446 = vmatprep.subr.mxu0 %v1368
    %1447 = vmatpush1.msra.mxu0 %v1367
    %1448 = vmatprep.subr.mxu0 %v1364
    %1449 = vmatpush1.msra.mxu0 %v1363
    %1450 = vmatprep.subr.mxu0 %v1360
    %1451 = vmatpush1.msra.mxu0 %v1359
    %1452 = vmatprep.subr.mxu0 %v1356
    %1453 = vmatpush1.msra.mxu0 %v1355
    %1454 = vmatprep.subr.mxu0 %v1352
    %1455 = vmatpush1.msra.mxu0 %v1351
    %1456 = vmatprep.subr.mxu0 %v1348
    %1457 = vmatpush1.msra.mxu0 %v1347
    %1458 = vmatprep.subr.mxu0 %v1344
    %1459 = vmatpush1.msra.mxu0 %v1343
    %1460 = vmatprep.subr.mxu0 %v1340
    %1461 = vmatpush1.msra.mxu0 %v1339
    %1462 = vmatprep.subr.mxu0 %v1336
    %1463 = vmatpush1.msra.mxu0 %v1335
    %1464 = vmatprep.subr.mxu0 %v1332
    %1465 = vmatpush1.msra.mxu0 %v1331
    %1466 = vmatprep.subr.mxu0 %v1328
    %1467 = vmatpush1.msra.mxu0 %v1327
    %1468 = vmatprep.subr.mxu0 %v1324
    %1469 = vmatpush1.msra.mxu0 %v1323
    %1470 = vmatprep.subr.mxu0 %v1320
    %1471 = vmatpush1.msra.mxu0 %v1319
    %1472 = vmatprep.subr.mxu0 %v1316
    %1473 = vmatpush1.msra.mxu0 %v1315
    %1474 = vmatprep.subr.mxu0 %v1312
    %1475 = vmatpush1.msra.mxu0 %v1311
    %1476 = vmatprep.subr.mxu0 0.0
    %1477 = vmatpush2.msra.mxu0 0.0
    %1478 = vmatprep.subr.mxu0 0.0
    %1479 = vmatpush2.msra.mxu0 0.0
    %1480 = vmatprep.subr.mxu0 0.0
    %1481 = vmatpush2.msra.mxu0 0.0
    %1482 = vmatprep.subr.mxu0 0.0
    %1483 = vmatpush2.msra.mxu0 0.0
    %1484 = vmatprep.subr.mxu0 0.0
    %1485 = vmatpush2.msra.mxu0 0.0
    %1486 = vmatprep.subr.mxu0 0.0
    %1487 = vmatpush2.msra.mxu0 0.0
    %1488 = vmatprep.subr.mxu0 0.0
    %1489 = vmatpush2.msra.mxu0 0.0
    %1490 = vmatprep.subr.mxu0 0.0
    %1491 = vmatpush2.msra.mxu0 0.0
    %1492 = vmatprep.subr.mxu0 0.0
    %1493 = vmatpush2.msra.mxu0 0.0
    %1494 = vmatprep.subr.mxu0 0.0
    %1495 = vmatpush2.msra.mxu0 0.0
    %1496 = vmatprep.subr.mxu0 0.0
    %1497 = vmatpush2.msra.mxu0 0.0
    %1498 = vmatprep.subr.mxu0 0.0
    %1499 = vmatpush2.msra.mxu0 0.0
    %1500 = vmatprep.subr.mxu0 0.0
    %1501 = vmatpush2.msra.mxu0 0.0
    %1502 = vmatprep.subr.mxu0 0.0
    %1503 = vmatpush2.msra.mxu0 0.0
    %1504 = vmatprep.subr.mxu0 0.0
    %1505 = vmatpush2.msra.mxu0 0.0
    %1506 = vmatprep.subr.mxu0 0.0
    %1507 = vmatpush2.msra.mxu0 0.0
    %1508 = vmatprep.mubr.f32.mxu0 0.0
    %1509 = vmatmul.mubr.f32.gmra.mxu0 %v1274
    %v1510 = vpop.f32.mrf.mxu0
    %v1511 = vadd.f32 0.0, %v1510
    %v1512 = vpop.f32.mrf.mxu0
    %v1513 = vadd.f32 0.0, %v1512
    %1514 = vdwg.mxu0
    %v1515 = vadd.f32 %v1305, %v1440
    %v1516 = vadd.f32 %v1306, %v1442
    %v1517 = vadd.f32 %v1307, %v1511
    %v1518 = vadd.f32 %v1308, %v1513
    %s1519 = smul.u32 6, 8
    %s1520 = smul.addr %s1519, 8
    %s1521 = scalar_lea.vmem [#allocation2], %s1520
    %v1522 = vld [vmem:[%s1521 + $0x20] sm:$0xff]
    %v1523 = vld [vmem:[%s1521 + $0x28] sm:$0xff]
    %v1524 = vld [vmem:[%s1521 + $0x30] sm:$0xff]
    %v1525 = vld [vmem:[%s1521 + $0x38] sm:$0xff]
    %v1526 = vld [vmem:[#allocation13] sm:$0xff]
    %v1527 = vld [vmem:[#allocation13 + $0x8] sm:$0xff]
    %v1528 = vld [vmem:[#allocation13 + $0x10] sm:$0xff]
    %v1529 = vld [vmem:[#allocation13 + $0x18] sm:$0xff]
    %v1530 = vld [vmem:[#allocation13 + $0x20] sm:$0xff]
    %v1531 = vld [vmem:[#allocation13 + $0x28] sm:$0xff]
    %v1532 = vld [vmem:[#allocation13 + $0x30] sm:$0xff]
    %v1533 = vld [vmem:[#allocation13 + $0x38] sm:$0xff]
    %v1534 = vld [vmem:[#allocation13 + $0x40] sm:$0xff]
    %v1535 = vld [vmem:[#allocation13 + $0x48] sm:$0xff]
    %v1536 = vld [vmem:[#allocation13 + $0x50] sm:$0xff]
    %v1537 = vld [vmem:[#allocation13 + $0x58] sm:$0xff]
    %v1538 = vld [vmem:[#allocation13 + $0x60] sm:$0xff]
    %v1539 = vld [vmem:[#allocation13 + $0x68] sm:$0xff]
    %v1540 = vld [vmem:[#allocation13 + $0x70] sm:$0xff]
    %v1541 = vld [vmem:[#allocation13 + $0x78] sm:$0xff]
    %v1542 = vld [vmem:[#allocation13 + $0x80] sm:$0xff]
    %v1543 = vld [vmem:[#allocation13 + $0x88] sm:$0xff]
    %v1544 = vld [vmem:[#allocation13 + $0x90] sm:$0xff]
    %v1545 = vld [vmem:[#allocation13 + $0x98] sm:$0xff]
    %v1546 = vld [vmem:[#allocation13 + $0xa0] sm:$0xff]
    %v1547 = vld [vmem:[#allocation13 + $0xa8] sm:$0xff]
    %v1548 = vld [vmem:[#allocation13 + $0xb0] sm:$0xff]
    %v1549 = vld [vmem:[#allocation13 + $0xb8] sm:$0xff]
    %v1550 = vld [vmem:[#allocation13 + $0xc0] sm:$0xff]
    %v1551 = vld [vmem:[#allocation13 + $0xc8] sm:$0xff]
    %v1552 = vld [vmem:[#allocation13 + $0xd0] sm:$0xff]
    %v1553 = vld [vmem:[#allocation13 + $0xd8] sm:$0xff]
    %v1554 = vld [vmem:[#allocation13 + $0xe0] sm:$0xff]
    %v1555 = vld [vmem:[#allocation13 + $0xe8] sm:$0xff]
    %v1556 = vld [vmem:[#allocation13 + $0xf0] sm:$0xff]
    %v1557 = vld [vmem:[#allocation13 + $0xf8] sm:$0xff]
    %v1558 = vld [vmem:[#allocation13 + $0x100] sm:$0xff]
    %v1559 = vld [vmem:[#allocation13 + $0x108] sm:$0xff]
    %v1560 = vld [vmem:[#allocation13 + $0x110] sm:$0xff]
    %v1561 = vld [vmem:[#allocation13 + $0x118] sm:$0xff]
    %v1562 = vld [vmem:[#allocation13 + $0x120] sm:$0xff]
    %v1563 = vld [vmem:[#allocation13 + $0x128] sm:$0xff]
    %v1564 = vld [vmem:[#allocation13 + $0x130] sm:$0xff]
    %v1565 = vld [vmem:[#allocation13 + $0x138] sm:$0xff]
    %v1566 = vld [vmem:[#allocation13 + $0x140] sm:$0xff]
    %v1567 = vld [vmem:[#allocation13 + $0x148] sm:$0xff]
    %v1568 = vld [vmem:[#allocation13 + $0x150] sm:$0xff]
    %v1569 = vld [vmem:[#allocation13 + $0x158] sm:$0xff]
    %v1570 = vld [vmem:[#allocation13 + $0x160] sm:$0xff]
    %v1571 = vld [vmem:[#allocation13 + $0x168] sm:$0xff]
    %v1572 = vld [vmem:[#allocation13 + $0x170] sm:$0xff]
    %v1573 = vld [vmem:[#allocation13 + $0x178] sm:$0xff]
    %v1574 = vld [vmem:[#allocation13 + $0x180] sm:$0xff]
    %v1575 = vld [vmem:[#allocation13 + $0x188] sm:$0xff]
    %v1576 = vld [vmem:[#allocation13 + $0x190] sm:$0xff]
    %v1577 = vld [vmem:[#allocation13 + $0x198] sm:$0xff]
    %v1578 = vld [vmem:[#allocation13 + $0x1a0] sm:$0xff]
    %v1579 = vld [vmem:[#allocation13 + $0x1a8] sm:$0xff]
    %v1580 = vld [vmem:[#allocation13 + $0x1b0] sm:$0xff]
    %v1581 = vld [vmem:[#allocation13 + $0x1b8] sm:$0xff]
    %v1582 = vld [vmem:[#allocation13 + $0x1c0] sm:$0xff]
    %v1583 = vld [vmem:[#allocation13 + $0x1c8] sm:$0xff]
    %v1584 = vld [vmem:[#allocation13 + $0x1d0] sm:$0xff]
    %v1585 = vld [vmem:[#allocation13 + $0x1d8] sm:$0xff]
    %v1586 = vld [vmem:[#allocation13 + $0x1e0] sm:$0xff]
    %v1587 = vld [vmem:[#allocation13 + $0x1e8] sm:$0xff]
    %v1588 = vld [vmem:[#allocation13 + $0x1f0] sm:$0xff]
    %v1589 = vld [vmem:[#allocation13 + $0x1f8] sm:$0xff]
    %1590 = vmatprep.subr.mxu0 %v1587
    %1591 = vmatpush1.msra.mxu0 %v1586
    %1592 = vmatprep.subr.mxu0 %v1583
    %1593 = vmatpush1.msra.mxu0 %v1582
    %1594 = vmatprep.subr.mxu0 %v1579
    %1595 = vmatpush1.msra.mxu0 %v1578
    %1596 = vmatprep.subr.mxu0 %v1575
    %1597 = vmatpush1.msra.mxu0 %v1574
    %1598 = vmatprep.subr.mxu0 %v1571
    %1599 = vmatpush1.msra.mxu0 %v1570
    %1600 = vmatprep.subr.mxu0 %v1567
    %1601 = vmatpush1.msra.mxu0 %v1566
    %1602 = vmatprep.subr.mxu0 %v1563
    %1603 = vmatpush1.msra.mxu0 %v1562
    %1604 = vmatprep.subr.mxu0 %v1559
    %1605 = vmatpush1.msra.mxu0 %v1558
    %1606 = vmatprep.subr.mxu0 %v1555
    %1607 = vmatpush1.msra.mxu0 %v1554
    %1608 = vmatprep.subr.mxu0 %v1551
    %1609 = vmatpush1.msra.mxu0 %v1550
    %1610 = vmatprep.subr.mxu0 %v1547
    %1611 = vmatpush1.msra.mxu0 %v1546
    %1612 = vmatprep.subr.mxu0 %v1543
    %1613 = vmatpush1.msra.mxu0 %v1542
    %1614 = vmatprep.subr.mxu0 %v1539
    %1615 = vmatpush1.msra.mxu0 %v1538
    %1616 = vmatprep.subr.mxu0 %v1535
    %1617 = vmatpush1.msra.mxu0 %v1534
    %1618 = vmatprep.subr.mxu0 %v1531
    %1619 = vmatpush1.msra.mxu0 %v1530
    %1620 = vmatprep.subr.mxu0 %v1527
    %1621 = vmatpush1.msra.mxu0 %v1526
    %1622 = vmatprep.subr.mxu0 0.0
    %1623 = vmatpush2.msra.mxu0 0.0
    %1624 = vmatprep.subr.mxu0 0.0
    %1625 = vmatpush2.msra.mxu0 0.0
    %1626 = vmatprep.subr.mxu0 0.0
    %1627 = vmatpush2.msra.mxu0 0.0
    %1628 = vmatprep.subr.mxu0 0.0
    %1629 = vmatpush2.msra.mxu0 0.0
    %1630 = vmatprep.subr.mxu0 0.0
    %1631 = vmatpush2.msra.mxu0 0.0
    %1632 = vmatprep.subr.mxu0 0.0
    %1633 = vmatpush2.msra.mxu0 0.0
    %1634 = vmatprep.subr.mxu0 0.0
    %1635 = vmatpush2.msra.mxu0 0.0
    %1636 = vmatprep.subr.mxu0 0.0
    %1637 = vmatpush2.msra.mxu0 0.0
    %1638 = vmatprep.subr.mxu0 0.0
    %1639 = vmatpush2.msra.mxu0 0.0
    %1640 = vmatprep.subr.mxu0 0.0
    %1641 = vmatpush2.msra.mxu0 0.0
    %1642 = vmatprep.subr.mxu0 0.0
    %1643 = vmatpush2.msra.mxu0 0.0
    %1644 = vmatprep.subr.mxu0 0.0
    %1645 = vmatpush2.msra.mxu0 0.0
    %1646 = vmatprep.subr.mxu0 0.0
    %1647 = vmatpush2.msra.mxu0 0.0
    %1648 = vmatprep.subr.mxu0 0.0
    %1649 = vmatpush2.msra.mxu0 0.0
    %1650 = vmatprep.subr.mxu0 0.0
    %1651 = vmatpush2.msra.mxu0 0.0
    %1652 = vmatprep.subr.mxu0 0.0
    %1653 = vmatpush2.msra.mxu0 0.0
    %1654 = vmatprep.mubr.f32.mxu0 0.0
    %1655 = vmatmul.mubr.f32.gmra.mxu0 %v1298
    %v1656 = vpop.f32.mrf.mxu0
    %v1657 = vadd.f32 0.0, %v1656
    %v1658 = vpop.f32.mrf.mxu0
    %v1659 = vadd.f32 0.0, %v1658
    %1660 = vdwg.mxu0
    %1661 = vmatprep.subr.mxu0 %v1589
    %1662 = vmatpush1.msra.mxu0 %v1588
    %1663 = vmatprep.subr.mxu0 %v1585
    %1664 = vmatpush1.msra.mxu0 %v1584
    %1665 = vmatprep.subr.mxu0 %v1581
    %1666 = vmatpush1.msra.mxu0 %v1580
    %1667 = vmatprep.subr.mxu0 %v1577
    %1668 = vmatpush1.msra.mxu0 %v1576
    %1669 = vmatprep.subr.mxu0 %v1573
    %1670 = vmatpush1.msra.mxu0 %v1572
    %1671 = vmatprep.subr.mxu0 %v1569
    %1672 = vmatpush1.msra.mxu0 %v1568
    %1673 = vmatprep.subr.mxu0 %v1565
    %1674 = vmatpush1.msra.mxu0 %v1564
    %1675 = vmatprep.subr.mxu0 %v1561
    %1676 = vmatpush1.msra.mxu0 %v1560
    %1677 = vmatprep.subr.mxu0 %v1557
    %1678 = vmatpush1.msra.mxu0 %v1556
    %1679 = vmatprep.subr.mxu0 %v1553
    %1680 = vmatpush1.msra.mxu0 %v1552
    %1681 = vmatprep.subr.mxu0 %v1549
    %1682 = vmatpush1.msra.mxu0 %v1548
    %1683 = vmatprep.subr.mxu0 %v1545
    %1684 = vmatpush1.msra.mxu0 %v1544
    %1685 = vmatprep.subr.mxu0 %v1541
    %1686 = vmatpush1.msra.mxu0 %v1540
    %1687 = vmatprep.subr.mxu0 %v1537
    %1688 = vmatpush1.msra.mxu0 %v1536
    %1689 = vmatprep.subr.mxu0 %v1533
    %1690 = vmatpush1.msra.mxu0 %v1532
    %1691 = vmatprep.subr.mxu0 %v1529
    %1692 = vmatpush1.msra.mxu0 %v1528
    %1693 = vmatprep.subr.mxu0 0.0
    %1694 = vmatpush2.msra.mxu0 0.0
    %1695 = vmatprep.subr.mxu0 0.0
    %1696 = vmatpush2.msra.mxu0 0.0
    %1697 = vmatprep.subr.mxu0 0.0
    %1698 = vmatpush2.msra.mxu0 0.0
    %1699 = vmatprep.subr.mxu0 0.0
    %1700 = vmatpush2.msra.mxu0 0.0
    %1701 = vmatprep.subr.mxu0 0.0
    %1702 = vmatpush2.msra.mxu0 0.0
    %1703 = vmatprep.subr.mxu0 0.0
    %1704 = vmatpush2.msra.mxu0 0.0
    %1705 = vmatprep.subr.mxu0 0.0
    %1706 = vmatpush2.msra.mxu0 0.0
    %1707 = vmatprep.subr.mxu0 0.0
    %1708 = vmatpush2.msra.mxu0 0.0
    %1709 = vmatprep.subr.mxu0 0.0
    %1710 = vmatpush2.msra.mxu0 0.0
    %1711 = vmatprep.subr.mxu0 0.0
    %1712 = vmatpush2.msra.mxu0 0.0
    %1713 = vmatprep.subr.mxu0 0.0
    %1714 = vmatpush2.msra.mxu0 0.0
    %1715 = vmatprep.subr.mxu0 0.0
    %1716 = vmatpush2.msra.mxu0 0.0
    %1717 = vmatprep.subr.mxu0 0.0
    %1718 = vmatpush2.msra.mxu0 0.0
    %1719 = vmatprep.subr.mxu0 0.0
    %1720 = vmatpush2.msra.mxu0 0.0
    %1721 = vmatprep.subr.mxu0 0.0
    %1722 = vmatpush2.msra.mxu0 0.0
    %1723 = vmatprep.subr.mxu0 0.0
    %1724 = vmatpush2.msra.mxu0 0.0
    %1725 = vmatprep.mubr.f32.mxu0 0.0
    %1726 = vmatmul.mubr.f32.gmra.mxu0 %v1298
    %v1727 = vpop.f32.mrf.mxu0
    %v1728 = vadd.f32 0.0, %v1727
    %v1729 = vpop.f32.mrf.mxu0
    %v1730 = vadd.f32 0.0, %v1729
    %1731 = vdwg.mxu0
    %v1732 = vadd.f32 %v1522, %v1657
    %v1733 = vadd.f32 %v1523, %v1659
    %v1734 = vadd.f32 %v1524, %v1728
    %v1735 = vadd.f32 %v1525, %v1730
    %v1736 = vxor.u32 %v1515, 2147483648
    %v1737 = vmul.f32 %v1736, 1.442695
    %v1738 = vpow.pop %v1737
    %v1739 = vadd.f32 %v1738, 1.0
    %v1740 = vrcp.pop %v1739
    %v1741 = vmul.f32 1.0, %v1740
    %v1742 = vxor.u32 %v1516, 2147483648
    %v1743 = vmul.f32 %v1742, 1.442695
    %v1744 = vpow.pop %v1743
    %v1745 = vadd.f32 %v1744, 1.0
    %v1746 = vrcp.pop %v1745
    %v1747 = vmul.f32 1.0, %v1746
    %v1748 = vtanh.pop %v1517
    %v1749 = vxor.u32 %v1518, 2147483648
    %v1750 = vmul.f32 %v1749, 1.442695
    %v1751 = vpow.pop %v1750
    %v1752 = vadd.f32 %v1751, 1.0
    %v1753 = vrcp.pop %v1752
    %v1754 = vmul.f32 1.0, %v1753
    %v1755 = vmul.f32 %v1747, %v1272
    %v1756 = vmul.f32 %v1741, %v1748
    %v1757 = vadd.f32 %v1755, %v1756
    %v1758 = vtanh.pop %v1757
    %v1759 = vmul.f32 %v1754, %v1758
    %v1760 = vxor.u32 %v1732, 2147483648
    %v1761 = vmul.f32 %v1760, 1.442695
    %v1762 = vpow.pop %v1761
    %v1763 = vadd.f32 %v1762, 1.0
    %v1764 = vrcp.pop %v1763
    %v1765 = vmul.f32 1.0, %v1764
    %v1766 = vxor.u32 %v1733, 2147483648
    %v1767 = vmul.f32 %v1766, 1.442695
    %v1768 = vpow.pop %v1767
    %v1769 = vadd.f32 %v1768, 1.0
    %v1770 = vrcp.pop %v1769
    %v1771 = vmul.f32 1.0, %v1770
    %v1772 = vtanh.pop %v1734
    %v1773 = vxor.u32 %v1735, 2147483648
    %v1774 = vmul.f32 %v1773, 1.442695
    %v1775 = vpow.pop %v1774
    %v1776 = vadd.f32 %v1775, 1.0
    %v1777 = vrcp.pop %v1776
    %v1778 = vmul.f32 1.0, %v1777
    %v1779 = vmul.f32 %v1771, %v1296
    %v1780 = vmul.f32 %v1765, %v1772
    %v1781 = vadd.f32 %v1779, %v1780
    %v1782 = vtanh.pop %v1781
    %v1783 = vmul.f32 %v1778, %v1782
    %s1784 = scalar_lea.vmem [#allocation3], 8
    %1785 = vst [vmem:[%s1784] sm:$0xff] %v1759
    %s1786 = scalar_lea.vmem [#allocation4], 48
    %1787 = vst [vmem:[%s1786] sm:$0xff] %v1783
    %s1788 = smul.u32 2, 8
    %s1789 = smul.addr %s1788, 8
    %s1790 = scalar_lea.vmem [#allocation2], %s1789
    %v1791 = vld [vmem:[%s1790] sm:$0xff]
    %v1792 = vld [vmem:[%s1790 + $0x8] sm:$0xff]
    %v1793 = vld [vmem:[%s1790 + $0x10] sm:$0xff]
    %v1794 = vld [vmem:[%s1790 + $0x18] sm:$0xff]
    %v1795 = vld [vmem:[#allocation11] sm:$0xff]
    %v1796 = vld [vmem:[#allocation11 + $0x8] sm:$0xff]
    %v1797 = vld [vmem:[#allocation11 + $0x10] sm:$0xff]
    %v1798 = vld [vmem:[#allocation11 + $0x18] sm:$0xff]
    %v1799 = vld [vmem:[#allocation11 + $0x20] sm:$0xff]
    %v1800 = vld [vmem:[#allocation11 + $0x28] sm:$0xff]
    %v1801 = vld [vmem:[#allocation11 + $0x30] sm:$0xff]
    %v1802 = vld [vmem:[#allocation11 + $0x38] sm:$0xff]
    %v1803 = vld [vmem:[#allocation11 + $0x40] sm:$0xff]
    %v1804 = vld [vmem:[#allocation11 + $0x48] sm:$0xff]
    %v1805 = vld [vmem:[#allocation11 + $0x50] sm:$0xff]
    %v1806 = vld [vmem:[#allocation11 + $0x58] sm:$0xff]
    %v1807 = vld [vmem:[#allocation11 + $0x60] sm:$0xff]
    %v1808 = vld [vmem:[#allocation11 + $0x68] sm:$0xff]
    %v1809 = vld [vmem:[#allocation11 + $0x70] sm:$0xff]
    %v1810 = vld [vmem:[#allocation11 + $0x78] sm:$0xff]
    %v1811 = vld [vmem:[#allocation11 + $0x80] sm:$0xff]
    %v1812 = vld [vmem:[#allocation11 + $0x88] sm:$0xff]
    %v1813 = vld [vmem:[#allocation11 + $0x90] sm:$0xff]
    %v1814 = vld [vmem:[#allocation11 + $0x98] sm:$0xff]
    %v1815 = vld [vmem:[#allocation11 + $0xa0] sm:$0xff]
    %v1816 = vld [vmem:[#allocation11 + $0xa8] sm:$0xff]
    %v1817 = vld [vmem:[#allocation11 + $0xb0] sm:$0xff]
    %v1818 = vld [vmem:[#allocation11 + $0xb8] sm:$0xff]
    %v1819 = vld [vmem:[#allocation11 + $0xc0] sm:$0xff]
    %v1820 = vld [vmem:[#allocation11 + $0xc8] sm:$0xff]
    %v1821 = vld [vmem:[#allocation11 + $0xd0] sm:$0xff]
    %v1822 = vld [vmem:[#allocation11 + $0xd8] sm:$0xff]
    %v1823 = vld [vmem:[#allocation11 + $0xe0] sm:$0xff]
    %v1824 = vld [vmem:[#allocation11 + $0xe8] sm:$0xff]
    %v1825 = vld [vmem:[#allocation11 + $0xf0] sm:$0xff]
    %v1826 = vld [vmem:[#allocation11 + $0xf8] sm:$0xff]
    %v1827 = vld [vmem:[#allocation11 + $0x100] sm:$0xff]
    %v1828 = vld [vmem:[#allocation11 + $0x108] sm:$0xff]
    %v1829 = vld [vmem:[#allocation11 + $0x110] sm:$0xff]
    %v1830 = vld [vmem:[#allocation11 + $0x118] sm:$0xff]
    %v1831 = vld [vmem:[#allocation11 + $0x120] sm:$0xff]
    %v1832 = vld [vmem:[#allocation11 + $0x128] sm:$0xff]
    %v1833 = vld [vmem:[#allocation11 + $0x130] sm:$0xff]
    %v1834 = vld [vmem:[#allocation11 + $0x138] sm:$0xff]
    %v1835 = vld [vmem:[#allocation11 + $0x140] sm:$0xff]
    %v1836 = vld [vmem:[#allocation11 + $0x148] sm:$0xff]
    %v1837 = vld [vmem:[#allocation11 + $0x150] sm:$0xff]
    %v1838 = vld [vmem:[#allocation11 + $0x158] sm:$0xff]
    %v1839 = vld [vmem:[#allocation11 + $0x160] sm:$0xff]
    %v1840 = vld [vmem:[#allocation11 + $0x168] sm:$0xff]
    %v1841 = vld [vmem:[#allocation11 + $0x170] sm:$0xff]
    %v1842 = vld [vmem:[#allocation11 + $0x178] sm:$0xff]
    %v1843 = vld [vmem:[#allocation11 + $0x180] sm:$0xff]
    %v1844 = vld [vmem:[#allocation11 + $0x188] sm:$0xff]
    %v1845 = vld [vmem:[#allocation11 + $0x190] sm:$0xff]
    %v1846 = vld [vmem:[#allocation11 + $0x198] sm:$0xff]
    %v1847 = vld [vmem:[#allocation11 + $0x1a0] sm:$0xff]
    %v1848 = vld [vmem:[#allocation11 + $0x1a8] sm:$0xff]
    %v1849 = vld [vmem:[#allocation11 + $0x1b0] sm:$0xff]
    %v1850 = vld [vmem:[#allocation11 + $0x1b8] sm:$0xff]
    %v1851 = vld [vmem:[#allocation11 + $0x1c0] sm:$0xff]
    %v1852 = vld [vmem:[#allocation11 + $0x1c8] sm:$0xff]
    %v1853 = vld [vmem:[#allocation11 + $0x1d0] sm:$0xff]
    %v1854 = vld [vmem:[#allocation11 + $0x1d8] sm:$0xff]
    %v1855 = vld [vmem:[#allocation11 + $0x1e0] sm:$0xff]
    %v1856 = vld [vmem:[#allocation11 + $0x1e8] sm:$0xff]
    %v1857 = vld [vmem:[#allocation11 + $0x1f0] sm:$0xff]
    %v1858 = vld [vmem:[#allocation11 + $0x1f8] sm:$0xff]
    %1859 = vmatprep.subr.mxu0 %v1856
    %1860 = vmatpush1.msra.mxu0 %v1855
    %1861 = vmatprep.subr.mxu0 %v1852
    %1862 = vmatpush1.msra.mxu0 %v1851
    %1863 = vmatprep.subr.mxu0 %v1848
    %1864 = vmatpush1.msra.mxu0 %v1847
    %1865 = vmatprep.subr.mxu0 %v1844
    %1866 = vmatpush1.msra.mxu0 %v1843
    %1867 = vmatprep.subr.mxu0 %v1840
    %1868 = vmatpush1.msra.mxu0 %v1839
    %1869 = vmatprep.subr.mxu0 %v1836
    %1870 = vmatpush1.msra.mxu0 %v1835
    %1871 = vmatprep.subr.mxu0 %v1832
    %1872 = vmatpush1.msra.mxu0 %v1831
    %1873 = vmatprep.subr.mxu0 %v1828
    %1874 = vmatpush1.msra.mxu0 %v1827
    %1875 = vmatprep.subr.mxu0 %v1824
    %1876 = vmatpush1.msra.mxu0 %v1823
    %1877 = vmatprep.subr.mxu0 %v1820
    %1878 = vmatpush1.msra.mxu0 %v1819
    %1879 = vmatprep.subr.mxu0 %v1816
    %1880 = vmatpush1.msra.mxu0 %v1815
    %1881 = vmatprep.subr.mxu0 %v1812
    %1882 = vmatpush1.msra.mxu0 %v1811
    %1883 = vmatprep.subr.mxu0 %v1808
    %1884 = vmatpush1.msra.mxu0 %v1807
    %1885 = vmatprep.subr.mxu0 %v1804
    %1886 = vmatpush1.msra.mxu0 %v1803
    %1887 = vmatprep.subr.mxu0 %v1800
    %1888 = vmatpush1.msra.mxu0 %v1799
    %1889 = vmatprep.subr.mxu0 %v1796
    %1890 = vmatpush1.msra.mxu0 %v1795
    %1891 = vmatprep.subr.mxu0 0.0
    %1892 = vmatpush2.msra.mxu0 0.0
    %1893 = vmatprep.subr.mxu0 0.0
    %1894 = vmatpush2.msra.mxu0 0.0
    %1895 = vmatprep.subr.mxu0 0.0
    %1896 = vmatpush2.msra.mxu0 0.0
    %1897 = vmatprep.subr.mxu0 0.0
    %1898 = vmatpush2.msra.mxu0 0.0
    %1899 = vmatprep.subr.mxu0 0.0
    %1900 = vmatpush2.msra.mxu0 0.0
    %1901 = vmatprep.subr.mxu0 0.0
    %1902 = vmatpush2.msra.mxu0 0.0
    %1903 = vmatprep.subr.mxu0 0.0
    %1904 = vmatpush2.msra.mxu0 0.0
    %1905 = vmatprep.subr.mxu0 0.0
    %1906 = vmatpush2.msra.mxu0 0.0
    %1907 = vmatprep.subr.mxu0 0.0
    %1908 = vmatpush2.msra.mxu0 0.0
    %1909 = vmatprep.subr.mxu0 0.0
    %1910 = vmatpush2.msra.mxu0 0.0
    %1911 = vmatprep.subr.mxu0 0.0
    %1912 = vmatpush2.msra.mxu0 0.0
    %1913 = vmatprep.subr.mxu0 0.0
    %1914 = vmatpush2.msra.mxu0 0.0
    %1915 = vmatprep.subr.mxu0 0.0
    %1916 = vmatpush2.msra.mxu0 0.0
    %1917 = vmatprep.subr.mxu0 0.0
    %1918 = vmatpush2.msra.mxu0 0.0
    %1919 = vmatprep.subr.mxu0 0.0
    %1920 = vmatpush2.msra.mxu0 0.0
    %1921 = vmatprep.subr.mxu0 0.0
    %1922 = vmatpush2.msra.mxu0 0.0
    %1923 = vmatprep.mubr.f32.mxu0 0.0
    %1924 = vmatmul.mubr.f32.gmra.mxu0 %v1759
    %v1925 = vpop.f32.mrf.mxu0
    %v1926 = vadd.f32 0.0, %v1925
    %v1927 = vpop.f32.mrf.mxu0
    %v1928 = vadd.f32 0.0, %v1927
    %1929 = vdwg.mxu0
    %1930 = vmatprep.subr.mxu0 %v1858
    %1931 = vmatpush1.msra.mxu0 %v1857
    %1932 = vmatprep.subr.mxu0 %v1854
    %1933 = vmatpush1.msra.mxu0 %v1853
    %1934 = vmatprep.subr.mxu0 %v1850
    %1935 = vmatpush1.msra.mxu0 %v1849
    %1936 = vmatprep.subr.mxu0 %v1846
    %1937 = vmatpush1.msra.mxu0 %v1845
    %1938 = vmatprep.subr.mxu0 %v1842
    %1939 = vmatpush1.msra.mxu0 %v1841
    %1940 = vmatprep.subr.mxu0 %v1838
    %1941 = vmatpush1.msra.mxu0 %v1837
    %1942 = vmatprep.subr.mxu0 %v1834
    %1943 = vmatpush1.msra.mxu0 %v1833
    %1944 = vmatprep.subr.mxu0 %v1830
    %1945 = vmatpush1.msra.mxu0 %v1829
    %1946 = vmatprep.subr.mxu0 %v1826
    %1947 = vmatpush1.msra.mxu0 %v1825
    %1948 = vmatprep.subr.mxu0 %v1822
    %1949 = vmatpush1.msra.mxu0 %v1821
    %1950 = vmatprep.subr.mxu0 %v1818
    %1951 = vmatpush1.msra.mxu0 %v1817
    %1952 = vmatprep.subr.mxu0 %v1814
    %1953 = vmatpush1.msra.mxu0 %v1813
    %1954 = vmatprep.subr.mxu0 %v1810
    %1955 = vmatpush1.msra.mxu0 %v1809
    %1956 = vmatprep.subr.mxu0 %v1806
    %1957 = vmatpush1.msra.mxu0 %v1805
    %1958 = vmatprep.subr.mxu0 %v1802
    %1959 = vmatpush1.msra.mxu0 %v1801
    %1960 = vmatprep.subr.mxu0 %v1798
    %1961 = vmatpush1.msra.mxu0 %v1797
    %1962 = vmatprep.subr.mxu0 0.0
    %1963 = vmatpush2.msra.mxu0 0.0
    %1964 = vmatprep.subr.mxu0 0.0
    %1965 = vmatpush2.msra.mxu0 0.0
    %1966 = vmatprep.subr.mxu0 0.0
    %1967 = vmatpush2.msra.mxu0 0.0
    %1968 = vmatprep.subr.mxu0 0.0
    %1969 = vmatpush2.msra.mxu0 0.0
    %1970 = vmatprep.subr.mxu0 0.0
    %1971 = vmatpush2.msra.mxu0 0.0
    %1972 = vmatprep.subr.mxu0 0.0
    %1973 = vmatpush2.msra.mxu0 0.0
    %1974 = vmatprep.subr.mxu0 0.0
    %1975 = vmatpush2.msra.mxu0 0.0
    %1976 = vmatprep.subr.mxu0 0.0
    %1977 = vmatpush2.msra.mxu0 0.0
    %1978 = vmatprep.subr.mxu0 0.0
    %1979 = vmatpush2.msra.mxu0 0.0
    %1980 = vmatprep.subr.mxu0 0.0
    %1981 = vmatpush2.msra.mxu0 0.0
    %1982 = vmatprep.subr.mxu0 0.0
    %1983 = vmatpush2.msra.mxu0 0.0
    %1984 = vmatprep.subr.mxu0 0.0
    %1985 = vmatpush2.msra.mxu0 0.0
    %1986 = vmatprep.subr.mxu0 0.0
    %1987 = vmatpush2.msra.mxu0 0.0
    %1988 = vmatprep.subr.mxu0 0.0
    %1989 = vmatpush2.msra.mxu0 0.0
    %1990 = vmatprep.subr.mxu0 0.0
    %1991 = vmatpush2.msra.mxu0 0.0
    %1992 = vmatprep.subr.mxu0 0.0
    %1993 = vmatpush2.msra.mxu0 0.0
    %1994 = vmatprep.mubr.f32.mxu0 0.0
    %1995 = vmatmul.mubr.f32.gmra.mxu0 %v1759
    %v1996 = vpop.f32.mrf.mxu0
    %v1997 = vadd.f32 0.0, %v1996
    %v1998 = vpop.f32.mrf.mxu0
    %v1999 = vadd.f32 0.0, %v1998
    %2000 = vdwg.mxu0
    %v2001 = vadd.f32 %v1791, %v1926
    %v2002 = vadd.f32 %v1792, %v1928
    %v2003 = vadd.f32 %v1793, %v1997
    %v2004 = vadd.f32 %v1794, %v1999
    %s2005 = smul.u32 5, 8
    %s2006 = smul.addr %s2005, 8
    %s2007 = scalar_lea.vmem [#allocation2], %s2006
    %v2008 = vld [vmem:[%s2007 + $0x20] sm:$0xff]
    %v2009 = vld [vmem:[%s2007 + $0x28] sm:$0xff]
    %v2010 = vld [vmem:[%s2007 + $0x30] sm:$0xff]
    %v2011 = vld [vmem:[%s2007 + $0x38] sm:$0xff]
    %v2012 = vld [vmem:[#allocation13] sm:$0xff]
    %v2013 = vld [vmem:[#allocation13 + $0x8] sm:$0xff]
    %v2014 = vld [vmem:[#allocation13 + $0x10] sm:$0xff]
    %v2015 = vld [vmem:[#allocation13 + $0x18] sm:$0xff]
    %v2016 = vld [vmem:[#allocation13 + $0x20] sm:$0xff]
    %v2017 = vld [vmem:[#allocation13 + $0x28] sm:$0xff]
    %v2018 = vld [vmem:[#allocation13 + $0x30] sm:$0xff]
    %v2019 = vld [vmem:[#allocation13 + $0x38] sm:$0xff]
    %v2020 = vld [vmem:[#allocation13 + $0x40] sm:$0xff]
    %v2021 = vld [vmem:[#allocation13 + $0x48] sm:$0xff]
    %v2022 = vld [vmem:[#allocation13 + $0x50] sm:$0xff]
    %v2023 = vld [vmem:[#allocation13 + $0x58] sm:$0xff]
    %v2024 = vld [vmem:[#allocation13 + $0x60] sm:$0xff]
    %v2025 = vld [vmem:[#allocation13 + $0x68] sm:$0xff]
    %v2026 = vld [vmem:[#allocation13 + $0x70] sm:$0xff]
    %v2027 = vld [vmem:[#allocation13 + $0x78] sm:$0xff]
    %v2028 = vld [vmem:[#allocation13 + $0x80] sm:$0xff]
    %v2029 = vld [vmem:[#allocation13 + $0x88] sm:$0xff]
    %v2030 = vld [vmem:[#allocation13 + $0x90] sm:$0xff]
    %v2031 = vld [vmem:[#allocation13 + $0x98] sm:$0xff]
    %v2032 = vld [vmem:[#allocation13 + $0xa0] sm:$0xff]
    %v2033 = vld [vmem:[#allocation13 + $0xa8] sm:$0xff]
    %v2034 = vld [vmem:[#allocation13 + $0xb0] sm:$0xff]
    %v2035 = vld [vmem:[#allocation13 + $0xb8] sm:$0xff]
    %v2036 = vld [vmem:[#allocation13 + $0xc0] sm:$0xff]
    %v2037 = vld [vmem:[#allocation13 + $0xc8] sm:$0xff]
    %v2038 = vld [vmem:[#allocation13 + $0xd0] sm:$0xff]
    %v2039 = vld [vmem:[#allocation13 + $0xd8] sm:$0xff]
    %v2040 = vld [vmem:[#allocation13 + $0xe0] sm:$0xff]
    %v2041 = vld [vmem:[#allocation13 + $0xe8] sm:$0xff]
    %v2042 = vld [vmem:[#allocation13 + $0xf0] sm:$0xff]
    %v2043 = vld [vmem:[#allocation13 + $0xf8] sm:$0xff]
    %v2044 = vld [vmem:[#allocation13 + $0x100] sm:$0xff]
    %v2045 = vld [vmem:[#allocation13 + $0x108] sm:$0xff]
    %v2046 = vld [vmem:[#allocation13 + $0x110] sm:$0xff]
    %v2047 = vld [vmem:[#allocation13 + $0x118] sm:$0xff]
    %v2048 = vld [vmem:[#allocation13 + $0x120] sm:$0xff]
    %v2049 = vld [vmem:[#allocation13 + $0x128] sm:$0xff]
    %v2050 = vld [vmem:[#allocation13 + $0x130] sm:$0xff]
    %v2051 = vld [vmem:[#allocation13 + $0x138] sm:$0xff]
    %v2052 = vld [vmem:[#allocation13 + $0x140] sm:$0xff]
    %v2053 = vld [vmem:[#allocation13 + $0x148] sm:$0xff]
    %v2054 = vld [vmem:[#allocation13 + $0x150] sm:$0xff]
    %v2055 = vld [vmem:[#allocation13 + $0x158] sm:$0xff]
    %v2056 = vld [vmem:[#allocation13 + $0x160] sm:$0xff]
    %v2057 = vld [vmem:[#allocation13 + $0x168] sm:$0xff]
    %v2058 = vld [vmem:[#allocation13 + $0x170] sm:$0xff]
    %v2059 = vld [vmem:[#allocation13 + $0x178] sm:$0xff]
    %v2060 = vld [vmem:[#allocation13 + $0x180] sm:$0xff]
    %v2061 = vld [vmem:[#allocation13 + $0x188] sm:$0xff]
    %v2062 = vld [vmem:[#allocation13 + $0x190] sm:$0xff]
    %v2063 = vld [vmem:[#allocation13 + $0x198] sm:$0xff]
    %v2064 = vld [vmem:[#allocation13 + $0x1a0] sm:$0xff]
    %v2065 = vld [vmem:[#allocation13 + $0x1a8] sm:$0xff]
    %v2066 = vld [vmem:[#allocation13 + $0x1b0] sm:$0xff]
    %v2067 = vld [vmem:[#allocation13 + $0x1b8] sm:$0xff]
    %v2068 = vld [vmem:[#allocation13 + $0x1c0] sm:$0xff]
    %v2069 = vld [vmem:[#allocation13 + $0x1c8] sm:$0xff]
    %v2070 = vld [vmem:[#allocation13 + $0x1d0] sm:$0xff]
    %v2071 = vld [vmem:[#allocation13 + $0x1d8] sm:$0xff]
    %v2072 = vld [vmem:[#allocation13 + $0x1e0] sm:$0xff]
    %v2073 = vld [vmem:[#allocation13 + $0x1e8] sm:$0xff]
    %v2074 = vld [vmem:[#allocation13 + $0x1f0] sm:$0xff]
    %v2075 = vld [vmem:[#allocation13 + $0x1f8] sm:$0xff]
    %2076 = vmatprep.subr.mxu0 %v2073
    %2077 = vmatpush1.msra.mxu0 %v2072
    %2078 = vmatprep.subr.mxu0 %v2069
    %2079 = vmatpush1.msra.mxu0 %v2068
    %2080 = vmatprep.subr.mxu0 %v2065
    %2081 = vmatpush1.msra.mxu0 %v2064
    %2082 = vmatprep.subr.mxu0 %v2061
    %2083 = vmatpush1.msra.mxu0 %v2060
    %2084 = vmatprep.subr.mxu0 %v2057
    %2085 = vmatpush1.msra.mxu0 %v2056
    %2086 = vmatprep.subr.mxu0 %v2053
    %2087 = vmatpush1.msra.mxu0 %v2052
    %2088 = vmatprep.subr.mxu0 %v2049
    %2089 = vmatpush1.msra.mxu0 %v2048
    %2090 = vmatprep.subr.mxu0 %v2045
    %2091 = vmatpush1.msra.mxu0 %v2044
    %2092 = vmatprep.subr.mxu0 %v2041
    %2093 = vmatpush1.msra.mxu0 %v2040
    %2094 = vmatprep.subr.mxu0 %v2037
    %2095 = vmatpush1.msra.mxu0 %v2036
    %2096 = vmatprep.subr.mxu0 %v2033
    %2097 = vmatpush1.msra.mxu0 %v2032
    %2098 = vmatprep.subr.mxu0 %v2029
    %2099 = vmatpush1.msra.mxu0 %v2028
    %2100 = vmatprep.subr.mxu0 %v2025
    %2101 = vmatpush1.msra.mxu0 %v2024
    %2102 = vmatprep.subr.mxu0 %v2021
    %2103 = vmatpush1.msra.mxu0 %v2020
    %2104 = vmatprep.subr.mxu0 %v2017
    %2105 = vmatpush1.msra.mxu0 %v2016
    %2106 = vmatprep.subr.mxu0 %v2013
    %2107 = vmatpush1.msra.mxu0 %v2012
    %2108 = vmatprep.subr.mxu0 0.0
    %2109 = vmatpush2.msra.mxu0 0.0
    %2110 = vmatprep.subr.mxu0 0.0
    %2111 = vmatpush2.msra.mxu0 0.0
    %2112 = vmatprep.subr.mxu0 0.0
    %2113 = vmatpush2.msra.mxu0 0.0
    %2114 = vmatprep.subr.mxu0 0.0
    %2115 = vmatpush2.msra.mxu0 0.0
    %2116 = vmatprep.subr.mxu0 0.0
    %2117 = vmatpush2.msra.mxu0 0.0
    %2118 = vmatprep.subr.mxu0 0.0
    %2119 = vmatpush2.msra.mxu0 0.0
    %2120 = vmatprep.subr.mxu0 0.0
    %2121 = vmatpush2.msra.mxu0 0.0
    %2122 = vmatprep.subr.mxu0 0.0
    %2123 = vmatpush2.msra.mxu0 0.0
    %2124 = vmatprep.subr.mxu0 0.0
    %2125 = vmatpush2.msra.mxu0 0.0
    %2126 = vmatprep.subr.mxu0 0.0
    %2127 = vmatpush2.msra.mxu0 0.0
    %2128 = vmatprep.subr.mxu0 0.0
    %2129 = vmatpush2.msra.mxu0 0.0
    %2130 = vmatprep.subr.mxu0 0.0
    %2131 = vmatpush2.msra.mxu0 0.0
    %2132 = vmatprep.subr.mxu0 0.0
    %2133 = vmatpush2.msra.mxu0 0.0
    %2134 = vmatprep.subr.mxu0 0.0
    %2135 = vmatpush2.msra.mxu0 0.0
    %2136 = vmatprep.subr.mxu0 0.0
    %2137 = vmatpush2.msra.mxu0 0.0
    %2138 = vmatprep.subr.mxu0 0.0
    %2139 = vmatpush2.msra.mxu0 0.0
    %2140 = vmatprep.mubr.f32.mxu0 0.0
    %2141 = vmatmul.mubr.f32.gmra.mxu0 %v1783
    %v2142 = vpop.f32.mrf.mxu0
    %v2143 = vadd.f32 0.0, %v2142
    %v2144 = vpop.f32.mrf.mxu0
    %v2145 = vadd.f32 0.0, %v2144
    %2146 = vdwg.mxu0
    %2147 = vmatprep.subr.mxu0 %v2075
    %2148 = vmatpush1.msra.mxu0 %v2074
    %2149 = vmatprep.subr.mxu0 %v2071
    %2150 = vmatpush1.msra.mxu0 %v2070
    %2151 = vmatprep.subr.mxu0 %v2067
    %2152 = vmatpush1.msra.mxu0 %v2066
    %2153 = vmatprep.subr.mxu0 %v2063
    %2154 = vmatpush1.msra.mxu0 %v2062
    %2155 = vmatprep.subr.mxu0 %v2059
    %2156 = vmatpush1.msra.mxu0 %v2058
    %2157 = vmatprep.subr.mxu0 %v2055
    %2158 = vmatpush1.msra.mxu0 %v2054
    %2159 = vmatprep.subr.mxu0 %v2051
    %2160 = vmatpush1.msra.mxu0 %v2050
    %2161 = vmatprep.subr.mxu0 %v2047
    %2162 = vmatpush1.msra.mxu0 %v2046
    %2163 = vmatprep.subr.mxu0 %v2043
    %2164 = vmatpush1.msra.mxu0 %v2042
    %2165 = vmatprep.subr.mxu0 %v2039
    %2166 = vmatpush1.msra.mxu0 %v2038
    %2167 = vmatprep.subr.mxu0 %v2035
    %2168 = vmatpush1.msra.mxu0 %v2034
    %2169 = vmatprep.subr.mxu0 %v2031
    %2170 = vmatpush1.msra.mxu0 %v2030
    %2171 = vmatprep.subr.mxu0 %v2027
    %2172 = vmatpush1.msra.mxu0 %v2026
    %2173 = vmatprep.subr.mxu0 %v2023
    %2174 = vmatpush1.msra.mxu0 %v2022
    %2175 = vmatprep.subr.mxu0 %v2019
    %2176 = vmatpush1.msra.mxu0 %v2018
    %2177 = vmatprep.subr.mxu0 %v2015
    %2178 = vmatpush1.msra.mxu0 %v2014
    %2179 = vmatprep.subr.mxu0 0.0
    %2180 = vmatpush2.msra.mxu0 0.0
    %2181 = vmatprep.subr.mxu0 0.0
    %2182 = vmatpush2.msra.mxu0 0.0
    %2183 = vmatprep.subr.mxu0 0.0
    %2184 = vmatpush2.msra.mxu0 0.0
    %2185 = vmatprep.subr.mxu0 0.0
    %2186 = vmatpush2.msra.mxu0 0.0
    %2187 = vmatprep.subr.mxu0 0.0
    %2188 = vmatpush2.msra.mxu0 0.0
    %2189 = vmatprep.subr.mxu0 0.0
    %2190 = vmatpush2.msra.mxu0 0.0
    %2191 = vmatprep.subr.mxu0 0.0
    %2192 = vmatpush2.msra.mxu0 0.0
    %2193 = vmatprep.subr.mxu0 0.0
    %2194 = vmatpush2.msra.mxu0 0.0
    %2195 = vmatprep.subr.mxu0 0.0
    %2196 = vmatpush2.msra.mxu0 0.0
    %2197 = vmatprep.subr.mxu0 0.0
    %2198 = vmatpush2.msra.mxu0 0.0
    %2199 = vmatprep.subr.mxu0 0.0
    %2200 = vmatpush2.msra.mxu0 0.0
    %2201 = vmatprep.subr.mxu0 0.0
    %2202 = vmatpush2.msra.mxu0 0.0
    %2203 = vmatprep.subr.mxu0 0.0
    %2204 = vmatpush2.msra.mxu0 0.0
    %2205 = vmatprep.subr.mxu0 0.0
    %2206 = vmatpush2.msra.mxu0 0.0
    %2207 = vmatprep.subr.mxu0 0.0
    %2208 = vmatpush2.msra.mxu0 0.0
    %2209 = vmatprep.subr.mxu0 0.0
    %2210 = vmatpush2.msra.mxu0 0.0
    %2211 = vmatprep.mubr.f32.mxu0 0.0
    %2212 = vmatmul.mubr.f32.gmra.mxu0 %v1783
    %v2213 = vpop.f32.mrf.mxu0
    %v2214 = vadd.f32 0.0, %v2213
    %v2215 = vpop.f32.mrf.mxu0
    %v2216 = vadd.f32 0.0, %v2215
    %2217 = vdwg.mxu0
    %v2218 = vadd.f32 %v2008, %v2143
    %v2219 = vadd.f32 %v2009, %v2145
    %v2220 = vadd.f32 %v2010, %v2214
    %v2221 = vadd.f32 %v2011, %v2216
    %v2222 = vxor.u32 %v2001, 2147483648
    %v2223 = vmul.f32 %v2222, 1.442695
    %v2224 = vpow.pop %v2223
    %v2225 = vadd.f32 %v2224, 1.0
    %v2226 = vrcp.pop %v2225
    %v2227 = vmul.f32 1.0, %v2226
    %v2228 = vxor.u32 %v2002, 2147483648
    %v2229 = vmul.f32 %v2228, 1.442695
    %v2230 = vpow.pop %v2229
    %v2231 = vadd.f32 %v2230, 1.0
    %v2232 = vrcp.pop %v2231
    %v2233 = vmul.f32 1.0, %v2232
    %v2234 = vtanh.pop %v2003
    %v2235 = vxor.u32 %v2004, 2147483648
    %v2236 = vmul.f32 %v2235, 1.442695
    %v2237 = vpow.pop %v2236
    %v2238 = vadd.f32 %v2237, 1.0
    %v2239 = vrcp.pop %v2238
    %v2240 = vmul.f32 1.0, %v2239
    %v2241 = vmul.f32 %v2233, %v1757
    %v2242 = vmul.f32 %v2227, %v2234
    %v2243 = vadd.f32 %v2241, %v2242
    %v2244 = vtanh.pop %v2243
    %v2245 = vmul.f32 %v2240, %v2244
    %v2246 = vxor.u32 %v2218, 2147483648
    %v2247 = vmul.f32 %v2246, 1.442695
    %v2248 = vpow.pop %v2247
    %v2249 = vadd.f32 %v2248, 1.0
    %v2250 = vrcp.pop %v2249
    %v2251 = vmul.f32 1.0, %v2250
    %v2252 = vxor.u32 %v2219, 2147483648
    %v2253 = vmul.f32 %v2252, 1.442695
    %v2254 = vpow.pop %v2253
    %v2255 = vadd.f32 %v2254, 1.0
    %v2256 = vrcp.pop %v2255
    %v2257 = vmul.f32 1.0, %v2256
    %v2258 = vtanh.pop %v2220
    %v2259 = vxor.u32 %v2221, 2147483648
    %v2260 = vmul.f32 %v2259, 1.442695
    %v2261 = vpow.pop %v2260
    %v2262 = vadd.f32 %v2261, 1.0
    %v2263 = vrcp.pop %v2262
    %v2264 = vmul.f32 1.0, %v2263
    %v2265 = vmul.f32 %v2257, %v1781
    %v2266 = vmul.f32 %v2251, %v2258
    %v2267 = vadd.f32 %v2265, %v2266
    %v2268 = vtanh.pop %v2267
    %v2269 = vmul.f32 %v2264, %v2268
    %s2270 = scalar_lea.vmem [#allocation3], 16
    %2271 = vst [vmem:[%s2270] sm:$0xff] %v2245
    %s2272 = scalar_lea.vmem [#allocation4], 40
    %2273 = vst [vmem:[%s2272] sm:$0xff] %v2269
    %s2274 = smul.u32 3, 8
    %s2275 = smul.addr %s2274, 8
    %s2276 = scalar_lea.vmem [#allocation2], %s2275
    %v2277 = vld [vmem:[%s2276] sm:$0xff]
    %v2278 = vld [vmem:[%s2276 + $0x8] sm:$0xff]
    %v2279 = vld [vmem:[%s2276 + $0x10] sm:$0xff]
    %v2280 = vld [vmem:[%s2276 + $0x18] sm:$0xff]
    %v2281 = vld [vmem:[#allocation11] sm:$0xff]
    %v2282 = vld [vmem:[#allocation11 + $0x8] sm:$0xff]
    %v2283 = vld [vmem:[#allocation11 + $0x10] sm:$0xff]
    %v2284 = vld [vmem:[#allocation11 + $0x18] sm:$0xff]
    %v2285 = vld [vmem:[#allocation11 + $0x20] sm:$0xff]
    %v2286 = vld [vmem:[#allocation11 + $0x28] sm:$0xff]
    %v2287 = vld [vmem:[#allocation11 + $0x30] sm:$0xff]
    %v2288 = vld [vmem:[#allocation11 + $0x38] sm:$0xff]
    %v2289 = vld [vmem:[#allocation11 + $0x40] sm:$0xff]
    %v2290 = vld [vmem:[#allocation11 + $0x48] sm:$0xff]
    %v2291 = vld [vmem:[#allocation11 + $0x50] sm:$0xff]
    %v2292 = vld [vmem:[#allocation11 + $0x58] sm:$0xff]
    %v2293 = vld [vmem:[#allocation11 + $0x60] sm:$0xff]
    %v2294 = vld [vmem:[#allocation11 + $0x68] sm:$0xff]
    %v2295 = vld [vmem:[#allocation11 + $0x70] sm:$0xff]
    %v2296 = vld [vmem:[#allocation11 + $0x78] sm:$0xff]
    %v2297 = vld [vmem:[#allocation11 + $0x80] sm:$0xff]
    %v2298 = vld [vmem:[#allocation11 + $0x88] sm:$0xff]
    %v2299 = vld [vmem:[#allocation11 + $0x90] sm:$0xff]
    %v2300 = vld [vmem:[#allocation11 + $0x98] sm:$0xff]
    %v2301 = vld [vmem:[#allocation11 + $0xa0] sm:$0xff]
    %v2302 = vld [vmem:[#allocation11 + $0xa8] sm:$0xff]
    %v2303 = vld [vmem:[#allocation11 + $0xb0] sm:$0xff]
    %v2304 = vld [vmem:[#allocation11 + $0xb8] sm:$0xff]
    %v2305 = vld [vmem:[#allocation11 + $0xc0] sm:$0xff]
    %v2306 = vld [vmem:[#allocation11 + $0xc8] sm:$0xff]
    %v2307 = vld [vmem:[#allocation11 + $0xd0] sm:$0xff]
    %v2308 = vld [vmem:[#allocation11 + $0xd8] sm:$0xff]
    %v2309 = vld [vmem:[#allocation11 + $0xe0] sm:$0xff]
    %v2310 = vld [vmem:[#allocation11 + $0xe8] sm:$0xff]
    %v2311 = vld [vmem:[#allocation11 + $0xf0] sm:$0xff]
    %v2312 = vld [vmem:[#allocation11 + $0xf8] sm:$0xff]
    %v2313 = vld [vmem:[#allocation11 + $0x100] sm:$0xff]
    %v2314 = vld [vmem:[#allocation11 + $0x108] sm:$0xff]
    %v2315 = vld [vmem:[#allocation11 + $0x110] sm:$0xff]
    %v2316 = vld [vmem:[#allocation11 + $0x118] sm:$0xff]
    %v2317 = vld [vmem:[#allocation11 + $0x120] sm:$0xff]
    %v2318 = vld [vmem:[#allocation11 + $0x128] sm:$0xff]
    %v2319 = vld [vmem:[#allocation11 + $0x130] sm:$0xff]
    %v2320 = vld [vmem:[#allocation11 + $0x138] sm:$0xff]
    %v2321 = vld [vmem:[#allocation11 + $0x140] sm:$0xff]
    %v2322 = vld [vmem:[#allocation11 + $0x148] sm:$0xff]
    %v2323 = vld [vmem:[#allocation11 + $0x150] sm:$0xff]
    %v2324 = vld [vmem:[#allocation11 + $0x158] sm:$0xff]
    %v2325 = vld [vmem:[#allocation11 + $0x160] sm:$0xff]
    %v2326 = vld [vmem:[#allocation11 + $0x168] sm:$0xff]
    %v2327 = vld [vmem:[#allocation11 + $0x170] sm:$0xff]
    %v2328 = vld [vmem:[#allocation11 + $0x178] sm:$0xff]
    %v2329 = vld [vmem:[#allocation11 + $0x180] sm:$0xff]
    %v2330 = vld [vmem:[#allocation11 + $0x188] sm:$0xff]
    %v2331 = vld [vmem:[#allocation11 + $0x190] sm:$0xff]
    %v2332 = vld [vmem:[#allocation11 + $0x198] sm:$0xff]
    %v2333 = vld [vmem:[#allocation11 + $0x1a0] sm:$0xff]
    %v2334 = vld [vmem:[#allocation11 + $0x1a8] sm:$0xff]
    %v2335 = vld [vmem:[#allocation11 + $0x1b0] sm:$0xff]
    %v2336 = vld [vmem:[#allocation11 + $0x1b8] sm:$0xff]
    %v2337 = vld [vmem:[#allocation11 + $0x1c0] sm:$0xff]
    %v2338 = vld [vmem:[#allocation11 + $0x1c8] sm:$0xff]
    %v2339 = vld [vmem:[#allocation11 + $0x1d0] sm:$0xff]
    %v2340 = vld [vmem:[#allocation11 + $0x1d8] sm:$0xff]
    %v2341 = vld [vmem:[#allocation11 + $0x1e0] sm:$0xff]
    %v2342 = vld [vmem:[#allocation11 + $0x1e8] sm:$0xff]
    %v2343 = vld [vmem:[#allocation11 + $0x1f0] sm:$0xff]
    %v2344 = vld [vmem:[#allocation11 + $0x1f8] sm:$0xff]
    %2345 = vmatprep.subr.mxu0 %v2342
    %2346 = vmatpush1.msra.mxu0 %v2341
    %2347 = vmatprep.subr.mxu0 %v2338
    %2348 = vmatpush1.msra.mxu0 %v2337
    %2349 = vmatprep.subr.mxu0 %v2334
    %2350 = vmatpush1.msra.mxu0 %v2333
    %2351 = vmatprep.subr.mxu0 %v2330
    %2352 = vmatpush1.msra.mxu0 %v2329
    %2353 = vmatprep.subr.mxu0 %v2326
    %2354 = vmatpush1.msra.mxu0 %v2325
    %2355 = vmatprep.subr.mxu0 %v2322
    %2356 = vmatpush1.msra.mxu0 %v2321
    %2357 = vmatprep.subr.mxu0 %v2318
    %2358 = vmatpush1.msra.mxu0 %v2317
    %2359 = vmatprep.subr.mxu0 %v2314
    %2360 = vmatpush1.msra.mxu0 %v2313
    %2361 = vmatprep.subr.mxu0 %v2310
    %2362 = vmatpush1.msra.mxu0 %v2309
    %2363 = vmatprep.subr.mxu0 %v2306
    %2364 = vmatpush1.msra.mxu0 %v2305
    %2365 = vmatprep.subr.mxu0 %v2302
    %2366 = vmatpush1.msra.mxu0 %v2301
    %2367 = vmatprep.subr.mxu0 %v2298
    %2368 = vmatpush1.msra.mxu0 %v2297
    %2369 = vmatprep.subr.mxu0 %v2294
    %2370 = vmatpush1.msra.mxu0 %v2293
    %2371 = vmatprep.subr.mxu0 %v2290
    %2372 = vmatpush1.msra.mxu0 %v2289
    %2373 = vmatprep.subr.mxu0 %v2286
    %2374 = vmatpush1.msra.mxu0 %v2285
    %2375 = vmatprep.subr.mxu0 %v2282
    %2376 = vmatpush1.msra.mxu0 %v2281
    %2377 = vmatprep.subr.mxu0 0.0
    %2378 = vmatpush2.msra.mxu0 0.0
    %2379 = vmatprep.subr.mxu0 0.0
    %2380 = vmatpush2.msra.mxu0 0.0
    %2381 = vmatprep.subr.mxu0 0.0
    %2382 = vmatpush2.msra.mxu0 0.0
    %2383 = vmatprep.subr.mxu0 0.0
    %2384 = vmatpush2.msra.mxu0 0.0
    %2385 = vmatprep.subr.mxu0 0.0
    %2386 = vmatpush2.msra.mxu0 0.0
    %2387 = vmatprep.subr.mxu0 0.0
    %2388 = vmatpush2.msra.mxu0 0.0
    %2389 = vmatprep.subr.mxu0 0.0
    %2390 = vmatpush2.msra.mxu0 0.0
    %2391 = vmatprep.subr.mxu0 0.0
    %2392 = vmatpush2.msra.mxu0 0.0
    %2393 = vmatprep.subr.mxu0 0.0
    %2394 = vmatpush2.msra.mxu0 0.0
    %2395 = vmatprep.subr.mxu0 0.0
    %2396 = vmatpush2.msra.mxu0 0.0
    %2397 = vmatprep.subr.mxu0 0.0
    %2398 = vmatpush2.msra.mxu0 0.0
    %2399 = vmatprep.subr.mxu0 0.0
    %2400 = vmatpush2.msra.mxu0 0.0
    %2401 = vmatprep.subr.mxu0 0.0
    %2402 = vmatpush2.msra.mxu0 0.0
    %2403 = vmatprep.subr.mxu0 0.0
    %2404 = vmatpush2.msra.mxu0 0.0
    %2405 = vmatprep.subr.mxu0 0.0
    %2406 = vmatpush2.msra.mxu0 0.0
    %2407 = vmatprep.subr.mxu0 0.0
    %2408 = vmatpush2.msra.mxu0 0.0
    %2409 = vmatprep.mubr.f32.mxu0 0.0
    %2410 = vmatmul.mubr.f32.gmra.mxu0 %v2245
    %v2411 = vpop.f32.mrf.mxu0
    %v2412 = vadd.f32 0.0, %v2411
    %v2413 = vpop.f32.mrf.mxu0
    %v2414 = vadd.f32 0.0, %v2413
    %2415 = vdwg.mxu0
    %2416 = vmatprep.subr.mxu0 %v2344
    %2417 = vmatpush1.msra.mxu0 %v2343
    %2418 = vmatprep.subr.mxu0 %v2340
    %2419 = vmatpush1.msra.mxu0 %v2339
    %2420 = vmatprep.subr.mxu0 %v2336
    %2421 = vmatpush1.msra.mxu0 %v2335
    %2422 = vmatprep.subr.mxu0 %v2332
    %2423 = vmatpush1.msra.mxu0 %v2331
    %2424 = vmatprep.subr.mxu0 %v2328
    %2425 = vmatpush1.msra.mxu0 %v2327
    %2426 = vmatprep.subr.mxu0 %v2324
    %2427 = vmatpush1.msra.mxu0 %v2323
    %2428 = vmatprep.subr.mxu0 %v2320
    %2429 = vmatpush1.msra.mxu0 %v2319
    %2430 = vmatprep.subr.mxu0 %v2316
    %2431 = vmatpush1.msra.mxu0 %v2315
    %2432 = vmatprep.subr.mxu0 %v2312
    %2433 = vmatpush1.msra.mxu0 %v2311
    %2434 = vmatprep.subr.mxu0 %v2308
    %2435 = vmatpush1.msra.mxu0 %v2307
    %2436 = vmatprep.subr.mxu0 %v2304
    %2437 = vmatpush1.msra.mxu0 %v2303
    %2438 = vmatprep.subr.mxu0 %v2300
    %2439 = vmatpush1.msra.mxu0 %v2299
    %2440 = vmatprep.subr.mxu0 %v2296
    %2441 = vmatpush1.msra.mxu0 %v2295
    %2442 = vmatprep.subr.mxu0 %v2292
    %2443 = vmatpush1.msra.mxu0 %v2291
    %2444 = vmatprep.subr.mxu0 %v2288
    %2445 = vmatpush1.msra.mxu0 %v2287
    %2446 = vmatprep.subr.mxu0 %v2284
    %2447 = vmatpush1.msra.mxu0 %v2283
    %2448 = vmatprep.subr.mxu0 0.0
    %2449 = vmatpush2.msra.mxu0 0.0
    %2450 = vmatprep.subr.mxu0 0.0
    %2451 = vmatpush2.msra.mxu0 0.0
    %2452 = vmatprep.subr.mxu0 0.0
    %2453 = vmatpush2.msra.mxu0 0.0
    %2454 = vmatprep.subr.mxu0 0.0
    %2455 = vmatpush2.msra.mxu0 0.0
    %2456 = vmatprep.subr.mxu0 0.0
    %2457 = vmatpush2.msra.mxu0 0.0
    %2458 = vmatprep.subr.mxu0 0.0
    %2459 = vmatpush2.msra.mxu0 0.0
    %2460 = vmatprep.subr.mxu0 0.0
    %2461 = vmatpush2.msra.mxu0 0.0
    %2462 = vmatprep.subr.mxu0 0.0
    %2463 = vmatpush2.msra.mxu0 0.0
    %2464 = vmatprep.subr.mxu0 0.0
    %2465 = vmatpush2.msra.mxu0 0.0
    %2466 = vmatprep.subr.mxu0 0.0
    %2467 = vmatpush2.msra.mxu0 0.0
    %2468 = vmatprep.subr.mxu0 0.0
    %2469 = vmatpush2.msra.mxu0 0.0
    %2470 = vmatprep.subr.mxu0 0.0
    %2471 = vmatpush2.msra.mxu0 0.0
    %2472 = vmatprep.subr.mxu0 0.0
    %2473 = vmatpush2.msra.mxu0 0.0
    %2474 = vmatprep.subr.mxu0 0.0
    %2475 = vmatpush2.msra.mxu0 0.0
    %2476 = vmatprep.subr.mxu0 0.0
    %2477 = vmatpush2.msra.mxu0 0.0
    %2478 = vmatprep.subr.mxu0 0.0
    %2479 = vmatpush2.msra.mxu0 0.0
    %2480 = vmatprep.mubr.f32.mxu0 0.0
    %2481 = vmatmul.mubr.f32.gmra.mxu0 %v2245
    %v2482 = vpop.f32.mrf.mxu0
    %v2483 = vadd.f32 0.0, %v2482
    %v2484 = vpop.f32.mrf.mxu0
    %v2485 = vadd.f32 0.0, %v2484
    %2486 = vdwg.mxu0
    %v2487 = vadd.f32 %v2277, %v2412
    %v2488 = vadd.f32 %v2278, %v2414
    %v2489 = vadd.f32 %v2279, %v2483
    %v2490 = vadd.f32 %v2280, %v2485
    %s2491 = smul.u32 4, 8
    %s2492 = smul.addr %s2491, 8
    %s2493 = scalar_lea.vmem [#allocation2], %s2492
    %v2494 = vld [vmem:[%s2493 + $0x20] sm:$0xff]
    %v2495 = vld [vmem:[%s2493 + $0x28] sm:$0xff]
    %v2496 = vld [vmem:[%s2493 + $0x30] sm:$0xff]
    %v2497 = vld [vmem:[%s2493 + $0x38] sm:$0xff]
    %v2498 = vld [vmem:[#allocation13] sm:$0xff]
    %v2499 = vld [vmem:[#allocation13 + $0x8] sm:$0xff]
    %v2500 = vld [vmem:[#allocation13 + $0x10] sm:$0xff]
    %v2501 = vld [vmem:[#allocation13 + $0x18] sm:$0xff]
    %v2502 = vld [vmem:[#allocation13 + $0x20] sm:$0xff]
    %v2503 = vld [vmem:[#allocation13 + $0x28] sm:$0xff]
    %v2504 = vld [vmem:[#allocation13 + $0x30] sm:$0xff]
    %v2505 = vld [vmem:[#allocation13 + $0x38] sm:$0xff]
    %v2506 = vld [vmem:[#allocation13 + $0x40] sm:$0xff]
    %v2507 = vld [vmem:[#allocation13 + $0x48] sm:$0xff]
    %v2508 = vld [vmem:[#allocation13 + $0x50] sm:$0xff]
    %v2509 = vld [vmem:[#allocation13 + $0x58] sm:$0xff]
    %v2510 = vld [vmem:[#allocation13 + $0x60] sm:$0xff]
    %v2511 = vld [vmem:[#allocation13 + $0x68] sm:$0xff]
    %v2512 = vld [vmem:[#allocation13 + $0x70] sm:$0xff]
    %v2513 = vld [vmem:[#allocation13 + $0x78] sm:$0xff]
    %v2514 = vld [vmem:[#allocation13 + $0x80] sm:$0xff]
    %v2515 = vld [vmem:[#allocation13 + $0x88] sm:$0xff]
    %v2516 = vld [vmem:[#allocation13 + $0x90] sm:$0xff]
    %v2517 = vld [vmem:[#allocation13 + $0x98] sm:$0xff]
    %v2518 = vld [vmem:[#allocation13 + $0xa0] sm:$0xff]
    %v2519 = vld [vmem:[#allocation13 + $0xa8] sm:$0xff]
    %v2520 = vld [vmem:[#allocation13 + $0xb0] sm:$0xff]
    %v2521 = vld [vmem:[#allocation13 + $0xb8] sm:$0xff]
    %v2522 = vld [vmem:[#allocation13 + $0xc0] sm:$0xff]
    %v2523 = vld [vmem:[#allocation13 + $0xc8] sm:$0xff]
    %v2524 = vld [vmem:[#allocation13 + $0xd0] sm:$0xff]
    %v2525 = vld [vmem:[#allocation13 + $0xd8] sm:$0xff]
    %v2526 = vld [vmem:[#allocation13 + $0xe0] sm:$0xff]
    %v2527 = vld [vmem:[#allocation13 + $0xe8] sm:$0xff]
    %v2528 = vld [vmem:[#allocation13 + $0xf0] sm:$0xff]
    %v2529 = vld [vmem:[#allocation13 + $0xf8] sm:$0xff]
    %v2530 = vld [vmem:[#allocation13 + $0x100] sm:$0xff]
    %v2531 = vld [vmem:[#allocation13 + $0x108] sm:$0xff]
    %v2532 = vld [vmem:[#allocation13 + $0x110] sm:$0xff]
    %v2533 = vld [vmem:[#allocation13 + $0x118] sm:$0xff]
    %v2534 = vld [vmem:[#allocation13 + $0x120] sm:$0xff]
    %v2535 = vld [vmem:[#allocation13 + $0x128] sm:$0xff]
    %v2536 = vld [vmem:[#allocation13 + $0x130] sm:$0xff]
    %v2537 = vld [vmem:[#allocation13 + $0x138] sm:$0xff]
    %v2538 = vld [vmem:[#allocation13 + $0x140] sm:$0xff]
    %v2539 = vld [vmem:[#allocation13 + $0x148] sm:$0xff]
    %v2540 = vld [vmem:[#allocation13 + $0x150] sm:$0xff]
    %v2541 = vld [vmem:[#allocation13 + $0x158] sm:$0xff]
    %v2542 = vld [vmem:[#allocation13 + $0x160] sm:$0xff]
    %v2543 = vld [vmem:[#allocation13 + $0x168] sm:$0xff]
    %v2544 = vld [vmem:[#allocation13 + $0x170] sm:$0xff]
    %v2545 = vld [vmem:[#allocation13 + $0x178] sm:$0xff]
    %v2546 = vld [vmem:[#allocation13 + $0x180] sm:$0xff]
    %v2547 = vld [vmem:[#allocation13 + $0x188] sm:$0xff]
    %v2548 = vld [vmem:[#allocation13 + $0x190] sm:$0xff]
    %v2549 = vld [vmem:[#allocation13 + $0x198] sm:$0xff]
    %v2550 = vld [vmem:[#allocation13 + $0x1a0] sm:$0xff]
    %v2551 = vld [vmem:[#allocation13 + $0x1a8] sm:$0xff]
    %v2552 = vld [vmem:[#allocation13 + $0x1b0] sm:$0xff]
    %v2553 = vld [vmem:[#allocation13 + $0x1b8] sm:$0xff]
    %v2554 = vld [vmem:[#allocation13 + $0x1c0] sm:$0xff]
    %v2555 = vld [vmem:[#allocation13 + $0x1c8] sm:$0xff]
    %v2556 = vld [vmem:[#allocation13 + $0x1d0] sm:$0xff]
    %v2557 = vld [vmem:[#allocation13 + $0x1d8] sm:$0xff]
    %v2558 = vld [vmem:[#allocation13 + $0x1e0] sm:$0xff]
    %v2559 = vld [vmem:[#allocation13 + $0x1e8] sm:$0xff]
    %v2560 = vld [vmem:[#allocation13 + $0x1f0] sm:$0xff]
    %v2561 = vld [vmem:[#allocation13 + $0x1f8] sm:$0xff]
    %2562 = vmatprep.subr.mxu0 %v2559
    %2563 = vmatpush1.msra.mxu0 %v2558
    %2564 = vmatprep.subr.mxu0 %v2555
    %2565 = vmatpush1.msra.mxu0 %v2554
    %2566 = vmatprep.subr.mxu0 %v2551
    %2567 = vmatpush1.msra.mxu0 %v2550
    %2568 = vmatprep.subr.mxu0 %v2547
    %2569 = vmatpush1.msra.mxu0 %v2546
    %2570 = vmatprep.subr.mxu0 %v2543
    %2571 = vmatpush1.msra.mxu0 %v2542
    %2572 = vmatprep.subr.mxu0 %v2539
    %2573 = vmatpush1.msra.mxu0 %v2538
    %2574 = vmatprep.subr.mxu0 %v2535
    %2575 = vmatpush1.msra.mxu0 %v2534
    %2576 = vmatprep.subr.mxu0 %v2531
    %2577 = vmatpush1.msra.mxu0 %v2530
    %2578 = vmatprep.subr.mxu0 %v2527
    %2579 = vmatpush1.msra.mxu0 %v2526
    %2580 = vmatprep.subr.mxu0 %v2523
    %2581 = vmatpush1.msra.mxu0 %v2522
    %2582 = vmatprep.subr.mxu0 %v2519
    %2583 = vmatpush1.msra.mxu0 %v2518
    %2584 = vmatprep.subr.mxu0 %v2515
    %2585 = vmatpush1.msra.mxu0 %v2514
    %2586 = vmatprep.subr.mxu0 %v2511
    %2587 = vmatpush1.msra.mxu0 %v2510
    %2588 = vmatprep.subr.mxu0 %v2507
    %2589 = vmatpush1.msra.mxu0 %v2506
    %2590 = vmatprep.subr.mxu0 %v2503
    %2591 = vmatpush1.msra.mxu0 %v2502
    %2592 = vmatprep.subr.mxu0 %v2499
    %2593 = vmatpush1.msra.mxu0 %v2498
    %2594 = vmatprep.subr.mxu0 0.0
    %2595 = vmatpush2.msra.mxu0 0.0
    %2596 = vmatprep.subr.mxu0 0.0
    %2597 = vmatpush2.msra.mxu0 0.0
    %2598 = vmatprep.subr.mxu0 0.0
    %2599 = vmatpush2.msra.mxu0 0.0
    %2600 = vmatprep.subr.mxu0 0.0
    %2601 = vmatpush2.msra.mxu0 0.0
    %2602 = vmatprep.subr.mxu0 0.0
    %2603 = vmatpush2.msra.mxu0 0.0
    %2604 = vmatprep.subr.mxu0 0.0
    %2605 = vmatpush2.msra.mxu0 0.0
    %2606 = vmatprep.subr.mxu0 0.0
    %2607 = vmatpush2.msra.mxu0 0.0
    %2608 = vmatprep.subr.mxu0 0.0
    %2609 = vmatpush2.msra.mxu0 0.0
    %2610 = vmatprep.subr.mxu0 0.0
    %2611 = vmatpush2.msra.mxu0 0.0
    %2612 = vmatprep.subr.mxu0 0.0
    %2613 = vmatpush2.msra.mxu0 0.0
    %2614 = vmatprep.subr.mxu0 0.0
    %2615 = vmatpush2.msra.mxu0 0.0
    %2616 = vmatprep.subr.mxu0 0.0
    %2617 = vmatpush2.msra.mxu0 0.0
    %2618 = vmatprep.subr.mxu0 0.0
    %2619 = vmatpush2.msra.mxu0 0.0
    %2620 = vmatprep.subr.mxu0 0.0
    %2621 = vmatpush2.msra.mxu0 0.0
    %2622 = vmatprep.subr.mxu0 0.0
    %2623 = vmatpush2.msra.mxu0 0.0
    %2624 = vmatprep.subr.mxu0 0.0
    %2625 = vmatpush2.msra.mxu0 0.0
    %2626 = vmatprep.mubr.f32.mxu0 0.0
    %2627 = vmatmul.mubr.f32.gmra.mxu0 %v2269
    %v2628 = vpop.f32.mrf.mxu0
    %v2629 = vadd.f32 0.0, %v2628
    %v2630 = vpop.f32.mrf.mxu0
    %v2631 = vadd.f32 0.0, %v2630
    %2632 = vdwg.mxu0
    %2633 = vmatprep.subr.mxu0 %v2561
    %2634 = vmatpush1.msra.mxu0 %v2560
    %2635 = vmatprep.subr.mxu0 %v2557
    %2636 = vmatpush1.msra.mxu0 %v2556
    %2637 = vmatprep.subr.mxu0 %v2553
    %2638 = vmatpush1.msra.mxu0 %v2552
    %2639 = vmatprep.subr.mxu0 %v2549
    %2640 = vmatpush1.msra.mxu0 %v2548
    %2641 = vmatprep.subr.mxu0 %v2545
    %2642 = vmatpush1.msra.mxu0 %v2544
    %2643 = vmatprep.subr.mxu0 %v2541
    %2644 = vmatpush1.msra.mxu0 %v2540
    %2645 = vmatprep.subr.mxu0 %v2537
    %2646 = vmatpush1.msra.mxu0 %v2536
    %2647 = vmatprep.subr.mxu0 %v2533
    %2648 = vmatpush1.msra.mxu0 %v2532
    %2649 = vmatprep.subr.mxu0 %v2529
    %2650 = vmatpush1.msra.mxu0 %v2528
    %2651 = vmatprep.subr.mxu0 %v2525
    %2652 = vmatpush1.msra.mxu0 %v2524
    %2653 = vmatprep.subr.mxu0 %v2521
    %2654 = vmatpush1.msra.mxu0 %v2520
    %2655 = vmatprep.subr.mxu0 %v2517
    %2656 = vmatpush1.msra.mxu0 %v2516
    %2657 = vmatprep.subr.mxu0 %v2513
    %2658 = vmatpush1.msra.mxu0 %v2512
    %2659 = vmatprep.subr.mxu0 %v2509
    %2660 = vmatpush1.msra.mxu0 %v2508
    %2661 = vmatprep.subr.mxu0 %v2505
    %2662 = vmatpush1.msra.mxu0 %v2504
    %2663 = vmatprep.subr.mxu0 %v2501
    %2664 = vmatpush1.msra.mxu0 %v2500
    %2665 = vmatprep.subr.mxu0 0.0
    %2666 = vmatpush2.msra.mxu0 0.0
    %2667 = vmatprep.subr.mxu0 0.0
    %2668 = vmatpush2.msra.mxu0 0.0
    %2669 = vmatprep.subr.mxu0 0.0
    %2670 = vmatpush2.msra.mxu0 0.0
    %2671 = vmatprep.subr.mxu0 0.0
    %2672 = vmatpush2.msra.mxu0 0.0
    %2673 = vmatprep.subr.mxu0 0.0
    %2674 = vmatpush2.msra.mxu0 0.0
    %2675 = vmatprep.subr.mxu0 0.0
    %2676 = vmatpush2.msra.mxu0 0.0
    %2677 = vmatprep.subr.mxu0 0.0
    %2678 = vmatpush2.msra.mxu0 0.0
    %2679 = vmatprep.subr.mxu0 0.0
    %2680 = vmatpush2.msra.mxu0 0.0
    %2681 = vmatprep.subr.mxu0 0.0
    %2682 = vmatpush2.msra.mxu0 0.0
    %2683 = vmatprep.subr.mxu0 0.0
    %2684 = vmatpush2.msra.mxu0 0.0
    %2685 = vmatprep.subr.mxu0 0.0
    %2686 = vmatpush2.msra.mxu0 0.0
    %2687 = vmatprep.subr.mxu0 0.0
    %2688 = vmatpush2.msra.mxu0 0.0
    %2689 = vmatprep.subr.mxu0 0.0
    %2690 = vmatpush2.msra.mxu0 0.0
    %2691 = vmatprep.subr.mxu0 0.0
    %2692 = vmatpush2.msra.mxu0 0.0
    %2693 = vmatprep.subr.mxu0 0.0
    %2694 = vmatpush2.msra.mxu0 0.0
    %2695 = vmatprep.subr.mxu0 0.0
    %2696 = vmatpush2.msra.mxu0 0.0
    %2697 = vmatprep.mubr.f32.mxu0 0.0
    %2698 = vmatmul.mubr.f32.gmra.mxu0 %v2269
    %v2699 = vpop.f32.mrf.mxu0
    %v2700 = vadd.f32 0.0, %v2699
    %v2701 = vpop.f32.mrf.mxu0
    %v2702 = vadd.f32 0.0, %v2701
    %2703 = vdwg.mxu0
    %v2704 = vadd.f32 %v2494, %v2629
    %v2705 = vadd.f32 %v2495, %v2631
    %v2706 = vadd.f32 %v2496, %v2700
    %v2707 = vadd.f32 %v2497, %v2702
    %v2708 = vxor.u32 %v2487, 2147483648
    %v2709 = vmul.f32 %v2708, 1.442695
    %v2710 = vpow.pop %v2709
    %v2711 = vadd.f32 %v2710, 1.0
    %v2712 = vrcp.pop %v2711
    %v2713 = vmul.f32 1.0, %v2712
    %v2714 = vxor.u32 %v2488, 2147483648
    %v2715 = vmul.f32 %v2714, 1.442695
    %v2716 = vpow.pop %v2715
    %v2717 = vadd.f32 %v2716, 1.0
    %v2718 = vrcp.pop %v2717
    %v2719 = vmul.f32 1.0, %v2718
    %v2720 = vtanh.pop %v2489
    %v2721 = vxor.u32 %v2490, 2147483648
    %v2722 = vmul.f32 %v2721, 1.442695
    %v2723 = vpow.pop %v2722
    %v2724 = vadd.f32 %v2723, 1.0
    %v2725 = vrcp.pop %v2724
    %v2726 = vmul.f32 1.0, %v2725
    %v2727 = vmul.f32 %v2719, %v2243
    %v2728 = vmul.f32 %v2713, %v2720
    %v2729 = vadd.f32 %v2727, %v2728
    %v2730 = vtanh.pop %v2729
    %v2731 = vmul.f32 %v2726, %v2730
    %v2732 = vxor.u32 %v2704, 2147483648
    %v2733 = vmul.f32 %v2732, 1.442695
    %v2734 = vpow.pop %v2733
    %v2735 = vadd.f32 %v2734, 1.0
    %v2736 = vrcp.pop %v2735
    %v2737 = vmul.f32 1.0, %v2736
    %v2738 = vxor.u32 %v2705, 2147483648
    %v2739 = vmul.f32 %v2738, 1.442695
    %v2740 = vpow.pop %v2739
    %v2741 = vadd.f32 %v2740, 1.0
    %v2742 = vrcp.pop %v2741
    %v2743 = vmul.f32 1.0, %v2742
    %v2744 = vtanh.pop %v2706
    %v2745 = vxor.u32 %v2707, 2147483648
    %v2746 = vmul.f32 %v2745, 1.442695
    %v2747 = vpow.pop %v2746
    %v2748 = vadd.f32 %v2747, 1.0
    %v2749 = vrcp.pop %v2748
    %v2750 = vmul.f32 1.0, %v2749
    %v2751 = vmul.f32 %v2743, %v2267
    %v2752 = vmul.f32 %v2737, %v2744
    %v2753 = vadd.f32 %v2751, %v2752
    %v2754 = vtanh.pop %v2753
    %v2755 = vmul.f32 %v2750, %v2754
    %s2756 = scalar_lea.vmem [#allocation3], 24
    %2757 = vst [vmem:[%s2756] sm:$0xff] %v2731
    %s2758 = scalar_lea.vmem [#allocation4], 32
    %2759 = vst [vmem:[%s2758] sm:$0xff] %v2755
    %v2760 = vld [vmem:[%s2493] sm:$0xff]
    %v2761 = vld [vmem:[%s2493 + $0x8] sm:$0xff]
    %v2762 = vld [vmem:[%s2493 + $0x10] sm:$0xff]
    %v2763 = vld [vmem:[%s2493 + $0x18] sm:$0xff]
    %v2764 = vld [vmem:[#allocation11] sm:$0xff]
    %v2765 = vld [vmem:[#allocation11 + $0x8] sm:$0xff]
    %v2766 = vld [vmem:[#allocation11 + $0x10] sm:$0xff]
    %v2767 = vld [vmem:[#allocation11 + $0x18] sm:$0xff]
    %v2768 = vld [vmem:[#allocation11 + $0x20] sm:$0xff]
    %v2769 = vld [vmem:[#allocation11 + $0x28] sm:$0xff]
    %v2770 = vld [vmem:[#allocation11 + $0x30] sm:$0xff]
    %v2771 = vld [vmem:[#allocation11 + $0x38] sm:$0xff]
    %v2772 = vld [vmem:[#allocation11 + $0x40] sm:$0xff]
    %v2773 = vld [vmem:[#allocation11 + $0x48] sm:$0xff]
    %v2774 = vld [vmem:[#allocation11 + $0x50] sm:$0xff]
    %v2775 = vld [vmem:[#allocation11 + $0x58] sm:$0xff]
    %v2776 = vld [vmem:[#allocation11 + $0x60] sm:$0xff]
    %v2777 = vld [vmem:[#allocation11 + $0x68] sm:$0xff]
    %v2778 = vld [vmem:[#allocation11 + $0x70] sm:$0xff]
    %v2779 = vld [vmem:[#allocation11 + $0x78] sm:$0xff]
    %v2780 = vld [vmem:[#allocation11 + $0x80] sm:$0xff]
    %v2781 = vld [vmem:[#allocation11 + $0x88] sm:$0xff]
    %v2782 = vld [vmem:[#allocation11 + $0x90] sm:$0xff]
    %v2783 = vld [vmem:[#allocation11 + $0x98] sm:$0xff]
    %v2784 = vld [vmem:[#allocation11 + $0xa0] sm:$0xff]
    %v2785 = vld [vmem:[#allocation11 + $0xa8] sm:$0xff]
    %v2786 = vld [vmem:[#allocation11 + $0xb0] sm:$0xff]
    %v2787 = vld [vmem:[#allocation11 + $0xb8] sm:$0xff]
    %v2788 = vld [vmem:[#allocation11 + $0xc0] sm:$0xff]
    %v2789 = vld [vmem:[#allocation11 + $0xc8] sm:$0xff]
    %v2790 = vld [vmem:[#allocation11 + $0xd0] sm:$0xff]
    %v2791 = vld [vmem:[#allocation11 + $0xd8] sm:$0xff]
    %v2792 = vld [vmem:[#allocation11 + $0xe0] sm:$0xff]
    %v2793 = vld [vmem:[#allocation11 + $0xe8] sm:$0xff]
    %v2794 = vld [vmem:[#allocation11 + $0xf0] sm:$0xff]
    %v2795 = vld [vmem:[#allocation11 + $0xf8] sm:$0xff]
    %v2796 = vld [vmem:[#allocation11 + $0x100] sm:$0xff]
    %v2797 = vld [vmem:[#allocation11 + $0x108] sm:$0xff]
    %v2798 = vld [vmem:[#allocation11 + $0x110] sm:$0xff]
    %v2799 = vld [vmem:[#allocation11 + $0x118] sm:$0xff]
    %v2800 = vld [vmem:[#allocation11 + $0x120] sm:$0xff]
    %v2801 = vld [vmem:[#allocation11 + $0x128] sm:$0xff]
    %v2802 = vld [vmem:[#allocation11 + $0x130] sm:$0xff]
    %v2803 = vld [vmem:[#allocation11 + $0x138] sm:$0xff]
    %v2804 = vld [vmem:[#allocation11 + $0x140] sm:$0xff]
    %v2805 = vld [vmem:[#allocation11 + $0x148] sm:$0xff]
    %v2806 = vld [vmem:[#allocation11 + $0x150] sm:$0xff]
    %v2807 = vld [vmem:[#allocation11 + $0x158] sm:$0xff]
    %v2808 = vld [vmem:[#allocation11 + $0x160] sm:$0xff]
    %v2809 = vld [vmem:[#allocation11 + $0x168] sm:$0xff]
    %v2810 = vld [vmem:[#allocation11 + $0x170] sm:$0xff]
    %v2811 = vld [vmem:[#allocation11 + $0x178] sm:$0xff]
    %v2812 = vld [vmem:[#allocation11 + $0x180] sm:$0xff]
    %v2813 = vld [vmem:[#allocation11 + $0x188] sm:$0xff]
    %v2814 = vld [vmem:[#allocation11 + $0x190] sm:$0xff]
    %v2815 = vld [vmem:[#allocation11 + $0x198] sm:$0xff]
    %v2816 = vld [vmem:[#allocation11 + $0x1a0] sm:$0xff]
    %v2817 = vld [vmem:[#allocation11 + $0x1a8] sm:$0xff]
    %v2818 = vld [vmem:[#allocation11 + $0x1b0] sm:$0xff]
    %v2819 = vld [vmem:[#allocation11 + $0x1b8] sm:$0xff]
    %v2820 = vld [vmem:[#allocation11 + $0x1c0] sm:$0xff]
    %v2821 = vld [vmem:[#allocation11 + $0x1c8] sm:$0xff]
    %v2822 = vld [vmem:[#allocation11 + $0x1d0] sm:$0xff]
    %v2823 = vld [vmem:[#allocation11 + $0x1d8] sm:$0xff]
    %v2824 = vld [vmem:[#allocation11 + $0x1e0] sm:$0xff]
    %v2825 = vld [vmem:[#allocation11 + $0x1e8] sm:$0xff]
    %v2826 = vld [vmem:[#allocation11 + $0x1f0] sm:$0xff]
    %v2827 = vld [vmem:[#allocation11 + $0x1f8] sm:$0xff]
    %2828 = vmatprep.subr.mxu0 %v2825
    %2829 = vmatpush1.msra.mxu0 %v2824
    %2830 = vmatprep.subr.mxu0 %v2821
    %2831 = vmatpush1.msra.mxu0 %v2820
    %2832 = vmatprep.subr.mxu0 %v2817
    %2833 = vmatpush1.msra.mxu0 %v2816
    %2834 = vmatprep.subr.mxu0 %v2813
    %2835 = vmatpush1.msra.mxu0 %v2812
    %2836 = vmatprep.subr.mxu0 %v2809
    %2837 = vmatpush1.msra.mxu0 %v2808
    %2838 = vmatprep.subr.mxu0 %v2805
    %2839 = vmatpush1.msra.mxu0 %v2804
    %2840 = vmatprep.subr.mxu0 %v2801
    %2841 = vmatpush1.msra.mxu0 %v2800
    %2842 = vmatprep.subr.mxu0 %v2797
    %2843 = vmatpush1.msra.mxu0 %v2796
    %2844 = vmatprep.subr.mxu0 %v2793
    %2845 = vmatpush1.msra.mxu0 %v2792
    %2846 = vmatprep.subr.mxu0 %v2789
    %2847 = vmatpush1.msra.mxu0 %v2788
    %2848 = vmatprep.subr.mxu0 %v2785
    %2849 = vmatpush1.msra.mxu0 %v2784
    %2850 = vmatprep.subr.mxu0 %v2781
    %2851 = vmatpush1.msra.mxu0 %v2780
    %2852 = vmatprep.subr.mxu0 %v2777
    %2853 = vmatpush1.msra.mxu0 %v2776
    %2854 = vmatprep.subr.mxu0 %v2773
    %2855 = vmatpush1.msra.mxu0 %v2772
    %2856 = vmatprep.subr.mxu0 %v2769
    %2857 = vmatpush1.msra.mxu0 %v2768
    %2858 = vmatprep.subr.mxu0 %v2765
    %2859 = vmatpush1.msra.mxu0 %v2764
    %2860 = vmatprep.subr.mxu0 0.0
    %2861 = vmatpush2.msra.mxu0 0.0
    %2862 = vmatprep.subr.mxu0 0.0
    %2863 = vmatpush2.msra.mxu0 0.0
    %2864 = vmatprep.subr.mxu0 0.0
    %2865 = vmatpush2.msra.mxu0 0.0
    %2866 = vmatprep.subr.mxu0 0.0
    %2867 = vmatpush2.msra.mxu0 0.0
    %2868 = vmatprep.subr.mxu0 0.0
    %2869 = vmatpush2.msra.mxu0 0.0
    %2870 = vmatprep.subr.mxu0 0.0
    %2871 = vmatpush2.msra.mxu0 0.0
    %2872 = vmatprep.subr.mxu0 0.0
    %2873 = vmatpush2.msra.mxu0 0.0
    %2874 = vmatprep.subr.mxu0 0.0
    %2875 = vmatpush2.msra.mxu0 0.0
    %2876 = vmatprep.subr.mxu0 0.0
    %2877 = vmatpush2.msra.mxu0 0.0
    %2878 = vmatprep.subr.mxu0 0.0
    %2879 = vmatpush2.msra.mxu0 0.0
    %2880 = vmatprep.subr.mxu0 0.0
    %2881 = vmatpush2.msra.mxu0 0.0
    %2882 = vmatprep.subr.mxu0 0.0
    %2883 = vmatpush2.msra.mxu0 0.0
    %2884 = vmatprep.subr.mxu0 0.0
    %2885 = vmatpush2.msra.mxu0 0.0
    %2886 = vmatprep.subr.mxu0 0.0
    %2887 = vmatpush2.msra.mxu0 0.0
    %2888 = vmatprep.subr.mxu0 0.0
    %2889 = vmatpush2.msra.mxu0 0.0
    %2890 = vmatprep.subr.mxu0 0.0
    %2891 = vmatpush2.msra.mxu0 0.0
    %2892 = vmatprep.mubr.f32.mxu0 0.0
    %2893 = vmatmul.mubr.f32.gmra.mxu0 %v2731
    %v2894 = vpop.f32.mrf.mxu0
    %v2895 = vadd.f32 0.0, %v2894
    %v2896 = vpop.f32.mrf.mxu0
    %v2897 = vadd.f32 0.0, %v2896
    %2898 = vdwg.mxu0
    %2899 = vmatprep.subr.mxu0 %v2827
    %2900 = vmatpush1.msra.mxu0 %v2826
    %2901 = vmatprep.subr.mxu0 %v2823
    %2902 = vmatpush1.msra.mxu0 %v2822
    %2903 = vmatprep.subr.mxu0 %v2819
    %2904 = vmatpush1.msra.mxu0 %v2818
    %2905 = vmatprep.subr.mxu0 %v2815
    %2906 = vmatpush1.msra.mxu0 %v2814
    %2907 = vmatprep.subr.mxu0 %v2811
    %2908 = vmatpush1.msra.mxu0 %v2810
    %2909 = vmatprep.subr.mxu0 %v2807
    %2910 = vmatpush1.msra.mxu0 %v2806
    %2911 = vmatprep.subr.mxu0 %v2803
    %2912 = vmatpush1.msra.mxu0 %v2802
    %2913 = vmatprep.subr.mxu0 %v2799
    %2914 = vmatpush1.msra.mxu0 %v2798
    %2915 = vmatprep.subr.mxu0 %v2795
    %2916 = vmatpush1.msra.mxu0 %v2794
    %2917 = vmatprep.subr.mxu0 %v2791
    %2918 = vmatpush1.msra.mxu0 %v2790
    %2919 = vmatprep.subr.mxu0 %v2787
    %2920 = vmatpush1.msra.mxu0 %v2786
    %2921 = vmatprep.subr.mxu0 %v2783
    %2922 = vmatpush1.msra.mxu0 %v2782
    %2923 = vmatprep.subr.mxu0 %v2779
    %2924 = vmatpush1.msra.mxu0 %v2778
    %2925 = vmatprep.subr.mxu0 %v2775
    %2926 = vmatpush1.msra.mxu0 %v2774
    %2927 = vmatprep.subr.mxu0 %v2771
    %2928 = vmatpush1.msra.mxu0 %v2770
    %2929 = vmatprep.subr.mxu0 %v2767
    %2930 = vmatpush1.msra.mxu0 %v2766
    %2931 = vmatprep.subr.mxu0 0.0
    %2932 = vmatpush2.msra.mxu0 0.0
    %2933 = vmatprep.subr.mxu0 0.0
    %2934 = vmatpush2.msra.mxu0 0.0
    %2935 = vmatprep.subr.mxu0 0.0
    %2936 = vmatpush2.msra.mxu0 0.0
    %2937 = vmatprep.subr.mxu0 0.0
    %2938 = vmatpush2.msra.mxu0 0.0
    %2939 = vmatprep.subr.mxu0 0.0
    %2940 = vmatpush2.msra.mxu0 0.0
    %2941 = vmatprep.subr.mxu0 0.0
    %2942 = vmatpush2.msra.mxu0 0.0
    %2943 = vmatprep.subr.mxu0 0.0
    %2944 = vmatpush2.msra.mxu0 0.0
    %2945 = vmatprep.subr.mxu0 0.0
    %2946 = vmatpush2.msra.mxu0 0.0
    %2947 = vmatprep.subr.mxu0 0.0
    %2948 = vmatpush2.msra.mxu0 0.0
    %2949 = vmatprep.subr.mxu0 0.0
    %2950 = vmatpush2.msra.mxu0 0.0
    %2951 = vmatprep.subr.mxu0 0.0
    %2952 = vmatpush2.msra.mxu0 0.0
    %2953 = vmatprep.subr.mxu0 0.0
    %2954 = vmatpush2.msra.mxu0 0.0
    %2955 = vmatprep.subr.mxu0 0.0
    %2956 = vmatpush2.msra.mxu0 0.0
    %2957 = vmatprep.subr.mxu0 0.0
    %2958 = vmatpush2.msra.mxu0 0.0
    %2959 = vmatprep.subr.mxu0 0.0
    %2960 = vmatpush2.msra.mxu0 0.0
    %2961 = vmatprep.subr.mxu0 0.0
    %2962 = vmatpush2.msra.mxu0 0.0
    %2963 = vmatprep.mubr.f32.mxu0 0.0
    %2964 = vmatmul.mubr.f32.gmra.mxu0 %v2731
    %v2965 = vpop.f32.mrf.mxu0
    %v2966 = vadd.f32 0.0, %v2965
    %v2967 = vpop.f32.mrf.mxu0
    %v2968 = vadd.f32 0.0, %v2967
    %2969 = vdwg.mxu0
    %v2970 = vadd.f32 %v2760, %v2895
    %v2971 = vadd.f32 %v2761, %v2897
    %v2972 = vadd.f32 %v2762, %v2966
    %v2973 = vadd.f32 %v2763, %v2968
    %v2974 = vld [vmem:[%s2276 + $0x20] sm:$0xff]
    %v2975 = vld [vmem:[%s2276 + $0x28] sm:$0xff]
    %v2976 = vld [vmem:[%s2276 + $0x30] sm:$0xff]
    %v2977 = vld [vmem:[%s2276 + $0x38] sm:$0xff]
    %v2978 = vld [vmem:[#allocation13] sm:$0xff]
    %v2979 = vld [vmem:[#allocation13 + $0x8] sm:$0xff]
    %v2980 = vld [vmem:[#allocation13 + $0x10] sm:$0xff]
    %v2981 = vld [vmem:[#allocation13 + $0x18] sm:$0xff]
    %v2982 = vld [vmem:[#allocation13 + $0x20] sm:$0xff]
    %v2983 = vld [vmem:[#allocation13 + $0x28] sm:$0xff]
    %v2984 = vld [vmem:[#allocation13 + $0x30] sm:$0xff]
    %v2985 = vld [vmem:[#allocation13 + $0x38] sm:$0xff]
    %v2986 = vld [vmem:[#allocation13 + $0x40] sm:$0xff]
    %v2987 = vld [vmem:[#allocation13 + $0x48] sm:$0xff]
    %v2988 = vld [vmem:[#allocation13 + $0x50] sm:$0xff]
    %v2989 = vld [vmem:[#allocation13 + $0x58] sm:$0xff]
    %v2990 = vld [vmem:[#allocation13 + $0x60] sm:$0xff]
    %v2991 = vld [vmem:[#allocation13 + $0x68] sm:$0xff]
    %v2992 = vld [vmem:[#allocation13 + $0x70] sm:$0xff]
    %v2993 = vld [vmem:[#allocation13 + $0x78] sm:$0xff]
    %v2994 = vld [vmem:[#allocation13 + $0x80] sm:$0xff]
    %v2995 = vld [vmem:[#allocation13 + $0x88] sm:$0xff]
    %v2996 = vld [vmem:[#allocation13 + $0x90] sm:$0xff]
    %v2997 = vld [vmem:[#allocation13 + $0x98] sm:$0xff]
    %v2998 = vld [vmem:[#allocation13 + $0xa0] sm:$0xff]
    %v2999 = vld [vmem:[#allocation13 + $0xa8] sm:$0xff]
    %v3000 = vld [vmem:[#allocation13 + $0xb0] sm:$0xff]
    %v3001 = vld [vmem:[#allocation13 + $0xb8] sm:$0xff]
    %v3002 = vld [vmem:[#allocation13 + $0xc0] sm:$0xff]
    %v3003 = vld [vmem:[#allocation13 + $0xc8] sm:$0xff]
    %v3004 = vld [vmem:[#allocation13 + $0xd0] sm:$0xff]
    %v3005 = vld [vmem:[#allocation13 + $0xd8] sm:$0xff]
    %v3006 = vld [vmem:[#allocation13 + $0xe0] sm:$0xff]
    %v3007 = vld [vmem:[#allocation13 + $0xe8] sm:$0xff]
    %v3008 = vld [vmem:[#allocation13 + $0xf0] sm:$0xff]
    %v3009 = vld [vmem:[#allocation13 + $0xf8] sm:$0xff]
    %v3010 = vld [vmem:[#allocation13 + $0x100] sm:$0xff]
    %v3011 = vld [vmem:[#allocation13 + $0x108] sm:$0xff]
    %v3012 = vld [vmem:[#allocation13 + $0x110] sm:$0xff]
    %v3013 = vld [vmem:[#allocation13 + $0x118] sm:$0xff]
    %v3014 = vld [vmem:[#allocation13 + $0x120] sm:$0xff]
    %v3015 = vld [vmem:[#allocation13 + $0x128] sm:$0xff]
    %v3016 = vld [vmem:[#allocation13 + $0x130] sm:$0xff]
    %v3017 = vld [vmem:[#allocation13 + $0x138] sm:$0xff]
    %v3018 = vld [vmem:[#allocation13 + $0x140] sm:$0xff]
    %v3019 = vld [vmem:[#allocation13 + $0x148] sm:$0xff]
    %v3020 = vld [vmem:[#allocation13 + $0x150] sm:$0xff]
    %v3021 = vld [vmem:[#allocation13 + $0x158] sm:$0xff]
    %v3022 = vld [vmem:[#allocation13 + $0x160] sm:$0xff]
    %v3023 = vld [vmem:[#allocation13 + $0x168] sm:$0xff]
    %v3024 = vld [vmem:[#allocation13 + $0x170] sm:$0xff]
    %v3025 = vld [vmem:[#allocation13 + $0x178] sm:$0xff]
    %v3026 = vld [vmem:[#allocation13 + $0x180] sm:$0xff]
    %v3027 = vld [vmem:[#allocation13 + $0x188] sm:$0xff]
    %v3028 = vld [vmem:[#allocation13 + $0x190] sm:$0xff]
    %v3029 = vld [vmem:[#allocation13 + $0x198] sm:$0xff]
    %v3030 = vld [vmem:[#allocation13 + $0x1a0] sm:$0xff]
    %v3031 = vld [vmem:[#allocation13 + $0x1a8] sm:$0xff]
    %v3032 = vld [vmem:[#allocation13 + $0x1b0] sm:$0xff]
    %v3033 = vld [vmem:[#allocation13 + $0x1b8] sm:$0xff]
    %v3034 = vld [vmem:[#allocation13 + $0x1c0] sm:$0xff]
    %v3035 = vld [vmem:[#allocation13 + $0x1c8] sm:$0xff]
    %v3036 = vld [vmem:[#allocation13 + $0x1d0] sm:$0xff]
    %v3037 = vld [vmem:[#allocation13 + $0x1d8] sm:$0xff]
    %v3038 = vld [vmem:[#allocation13 + $0x1e0] sm:$0xff]
    %v3039 = vld [vmem:[#allocation13 + $0x1e8] sm:$0xff]
    %v3040 = vld [vmem:[#allocation13 + $0x1f0] sm:$0xff]
    %v3041 = vld [vmem:[#allocation13 + $0x1f8] sm:$0xff]
    %3042 = vmatprep.subr.mxu0 %v3039
    %3043 = vmatpush1.msra.mxu0 %v3038
    %3044 = vmatprep.subr.mxu0 %v3035
    %3045 = vmatpush1.msra.mxu0 %v3034
    %3046 = vmatprep.subr.mxu0 %v3031
    %3047 = vmatpush1.msra.mxu0 %v3030
    %3048 = vmatprep.subr.mxu0 %v3027
    %3049 = vmatpush1.msra.mxu0 %v3026
    %3050 = vmatprep.subr.mxu0 %v3023
    %3051 = vmatpush1.msra.mxu0 %v3022
    %3052 = vmatprep.subr.mxu0 %v3019
    %3053 = vmatpush1.msra.mxu0 %v3018
    %3054 = vmatprep.subr.mxu0 %v3015
    %3055 = vmatpush1.msra.mxu0 %v3014
    %3056 = vmatprep.subr.mxu0 %v3011
    %3057 = vmatpush1.msra.mxu0 %v3010
    %3058 = vmatprep.subr.mxu0 %v3007
    %3059 = vmatpush1.msra.mxu0 %v3006
    %3060 = vmatprep.subr.mxu0 %v3003
    %3061 = vmatpush1.msra.mxu0 %v3002
    %3062 = vmatprep.subr.mxu0 %v2999
    %3063 = vmatpush1.msra.mxu0 %v2998
    %3064 = vmatprep.subr.mxu0 %v2995
    %3065 = vmatpush1.msra.mxu0 %v2994
    %3066 = vmatprep.subr.mxu0 %v2991
    %3067 = vmatpush1.msra.mxu0 %v2990
    %3068 = vmatprep.subr.mxu0 %v2987
    %3069 = vmatpush1.msra.mxu0 %v2986
    %3070 = vmatprep.subr.mxu0 %v2983
    %3071 = vmatpush1.msra.mxu0 %v2982
    %3072 = vmatprep.subr.mxu0 %v2979
    %3073 = vmatpush1.msra.mxu0 %v2978
    %3074 = vmatprep.subr.mxu0 0.0
    %3075 = vmatpush2.msra.mxu0 0.0
    %3076 = vmatprep.subr.mxu0 0.0
    %3077 = vmatpush2.msra.mxu0 0.0
    %3078 = vmatprep.subr.mxu0 0.0
    %3079 = vmatpush2.msra.mxu0 0.0
    %3080 = vmatprep.subr.mxu0 0.0
    %3081 = vmatpush2.msra.mxu0 0.0
    %3082 = vmatprep.subr.mxu0 0.0
    %3083 = vmatpush2.msra.mxu0 0.0
    %3084 = vmatprep.subr.mxu0 0.0
    %3085 = vmatpush2.msra.mxu0 0.0
    %3086 = vmatprep.subr.mxu0 0.0
    %3087 = vmatpush2.msra.mxu0 0.0
    %3088 = vmatprep.subr.mxu0 0.0
    %3089 = vmatpush2.msra.mxu0 0.0
    %3090 = vmatprep.subr.mxu0 0.0
    %3091 = vmatpush2.msra.mxu0 0.0
    %3092 = vmatprep.subr.mxu0 0.0
    %3093 = vmatpush2.msra.mxu0 0.0
    %3094 = vmatprep.subr.mxu0 0.0
    %3095 = vmatpush2.msra.mxu0 0.0
    %3096 = vmatprep.subr.mxu0 0.0
    %3097 = vmatpush2.msra.mxu0 0.0
    %3098 = vmatprep.subr.mxu0 0.0
    %3099 = vmatpush2.msra.mxu0 0.0
    %3100 = vmatprep.subr.mxu0 0.0
    %3101 = vmatpush2.msra.mxu0 0.0
    %3102 = vmatprep.subr.mxu0 0.0
    %3103 = vmatpush2.msra.mxu0 0.0
    %3104 = vmatprep.subr.mxu0 0.0
    %3105 = vmatpush2.msra.mxu0 0.0
    %3106 = vmatprep.mubr.f32.mxu0 0.0
    %3107 = vmatmul.mubr.f32.gmra.mxu0 %v2755
    %v3108 = vpop.f32.mrf.mxu0
    %v3109 = vadd.f32 0.0, %v3108
    %v3110 = vpop.f32.mrf.mxu0
    %v3111 = vadd.f32 0.0, %v3110
    %3112 = vdwg.mxu0
    %3113 = vmatprep.subr.mxu0 %v3041
    %3114 = vmatpush1.msra.mxu0 %v3040
    %3115 = vmatprep.subr.mxu0 %v3037
    %3116 = vmatpush1.msra.mxu0 %v3036
    %3117 = vmatprep.subr.mxu0 %v3033
    %3118 = vmatpush1.msra.mxu0 %v3032
    %3119 = vmatprep.subr.mxu0 %v3029
    %3120 = vmatpush1.msra.mxu0 %v3028
    %3121 = vmatprep.subr.mxu0 %v3025
    %3122 = vmatpush1.msra.mxu0 %v3024
    %3123 = vmatprep.subr.mxu0 %v3021
    %3124 = vmatpush1.msra.mxu0 %v3020
    %3125 = vmatprep.subr.mxu0 %v3017
    %3126 = vmatpush1.msra.mxu0 %v3016
    %3127 = vmatprep.subr.mxu0 %v3013
    %3128 = vmatpush1.msra.mxu0 %v3012
    %3129 = vmatprep.subr.mxu0 %v3009
    %3130 = vmatpush1.msra.mxu0 %v3008
    %3131 = vmatprep.subr.mxu0 %v3005
    %3132 = vmatpush1.msra.mxu0 %v3004
    %3133 = vmatprep.subr.mxu0 %v3001
    %3134 = vmatpush1.msra.mxu0 %v3000
    %3135 = vmatprep.subr.mxu0 %v2997
    %3136 = vmatpush1.msra.mxu0 %v2996
    %3137 = vmatprep.subr.mxu0 %v2993
    %3138 = vmatpush1.msra.mxu0 %v2992
    %3139 = vmatprep.subr.mxu0 %v2989
    %3140 = vmatpush1.msra.mxu0 %v2988
    %3141 = vmatprep.subr.mxu0 %v2985
    %3142 = vmatpush1.msra.mxu0 %v2984
    %3143 = vmatprep.subr.mxu0 %v2981
    %3144 = vmatpush1.msra.mxu0 %v2980
    %3145 = vmatprep.subr.mxu0 0.0
    %3146 = vmatpush2.msra.mxu0 0.0
    %3147 = vmatprep.subr.mxu0 0.0
    %3148 = vmatpush2.msra.mxu0 0.0
    %3149 = vmatprep.subr.mxu0 0.0
    %3150 = vmatpush2.msra.mxu0 0.0
    %3151 = vmatprep.subr.mxu0 0.0
    %3152 = vmatpush2.msra.mxu0 0.0
    %3153 = vmatprep.subr.mxu0 0.0
    %3154 = vmatpush2.msra.mxu0 0.0
    %3155 = vmatprep.subr.mxu0 0.0
    %3156 = vmatpush2.msra.mxu0 0.0
    %3157 = vmatprep.subr.mxu0 0.0
    %3158 = vmatpush2.msra.mxu0 0.0
    %3159 = vmatprep.subr.mxu0 0.0
    %3160 = vmatpush2.msra.mxu0 0.0
    %3161 = vmatprep.subr.mxu0 0.0
    %3162 = vmatpush2.msra.mxu0 0.0
    %3163 = vmatprep.subr.mxu0 0.0
    %3164 = vmatpush2.msra.mxu0 0.0
    %3165 = vmatprep.subr.mxu0 0.0
    %3166 = vmatpush2.msra.mxu0 0.0
    %3167 = vmatprep.subr.mxu0 0.0
    %3168 = vmatpush2.msra.mxu0 0.0
    %3169 = vmatprep.subr.mxu0 0.0
    %3170 = vmatpush2.msra.mxu0 0.0
    %3171 = vmatprep.subr.mxu0 0.0
    %3172 = vmatpush2.msra.mxu0 0.0
    %3173 = vmatprep.subr.mxu0 0.0
    %3174 = vmatpush2.msra.mxu0 0.0
    %3175 = vmatprep.subr.mxu0 0.0
    %3176 = vmatpush2.msra.mxu0 0.0
    %3177 = vmatprep.mubr.f32.mxu0 0.0
    %3178 = vmatmul.mubr.f32.gmra.mxu0 %v2755
    %v3179 = vpop.f32.mrf.mxu0
    %v3180 = vadd.f32 0.0, %v3179
    %v3181 = vpop.f32.mrf.mxu0
    %v3182 = vadd.f32 0.0, %v3181
    %3183 = vdwg.mxu0
    %v3184 = vadd.f32 %v2974, %v3109
    %v3185 = vadd.f32 %v2975, %v3111
    %v3186 = vadd.f32 %v2976, %v3180
    %v3187 = vadd.f32 %v2977, %v3182
    %v3188 = vxor.u32 %v2970, 2147483648
    %v3189 = vmul.f32 %v3188, 1.442695
    %v3190 = vpow.pop %v3189
    %v3191 = vadd.f32 %v3190, 1.0
    %v3192 = vrcp.pop %v3191
    %v3193 = vmul.f32 1.0, %v3192
    %v3194 = vxor.u32 %v2971, 2147483648
    %v3195 = vmul.f32 %v3194, 1.442695
    %v3196 = vpow.pop %v3195
    %v3197 = vadd.f32 %v3196, 1.0
    %v3198 = vrcp.pop %v3197
    %v3199 = vmul.f32 1.0, %v3198
    %v3200 = vtanh.pop %v2972
    %v3201 = vxor.u32 %v2973, 2147483648
    %v3202 = vmul.f32 %v3201, 1.442695
    %v3203 = vpow.pop %v3202
    %v3204 = vadd.f32 %v3203, 1.0
    %v3205 = vrcp.pop %v3204
    %v3206 = vmul.f32 1.0, %v3205
    %v3207 = vmul.f32 %v3199, %v2729
    %v3208 = vmul.f32 %v3193, %v3200
    %v3209 = vadd.f32 %v3207, %v3208
    %v3210 = vtanh.pop %v3209
    %v3211 = vmul.f32 %v3206, %v3210
    %v3212 = vxor.u32 %v3184, 2147483648
    %v3213 = vmul.f32 %v3212, 1.442695
    %v3214 = vpow.pop %v3213
    %v3215 = vadd.f32 %v3214, 1.0
    %v3216 = vrcp.pop %v3215
    %v3217 = vmul.f32 1.0, %v3216
    %v3218 = vxor.u32 %v3185, 2147483648
    %v3219 = vmul.f32 %v3218, 1.442695
    %v3220 = vpow.pop %v3219
    %v3221 = vadd.f32 %v3220, 1.0
    %v3222 = vrcp.pop %v3221
    %v3223 = vmul.f32 1.0, %v3222
    %v3224 = vtanh.pop %v3186
    %v3225 = vxor.u32 %v3187, 2147483648
    %v3226 = vmul.f32 %v3225, 1.442695
    %v3227 = vpow.pop %v3226
    %v3228 = vadd.f32 %v3227, 1.0
    %v3229 = vrcp.pop %v3228
    %v3230 = vmul.f32 1.0, %v3229
    %v3231 = vmul.f32 %v3223, %v2753
    %v3232 = vmul.f32 %v3217, %v3224
    %v3233 = vadd.f32 %v3231, %v3232
    %v3234 = vtanh.pop %v3233
    %v3235 = vmul.f32 %v3230, %v3234
    %s3236 = scalar_lea.vmem [#allocation3], 32
    %3237 = vst [vmem:[%s3236] sm:$0xff] %v3211
    %s3238 = scalar_lea.vmem [#allocation4], 24
    %3239 = vst [vmem:[%s3238] sm:$0xff] %v3235
    %v3240 = vld [vmem:[%s2007] sm:$0xff]
    %v3241 = vld [vmem:[%s2007 + $0x8] sm:$0xff]
    %v3242 = vld [vmem:[%s2007 + $0x10] sm:$0xff]
    %v3243 = vld [vmem:[%s2007 + $0x18] sm:$0xff]
    %v3244 = vld [vmem:[#allocation11] sm:$0xff]
    %v3245 = vld [vmem:[#allocation11 + $0x8] sm:$0xff]
    %v3246 = vld [vmem:[#allocation11 + $0x10] sm:$0xff]
    %v3247 = vld [vmem:[#allocation11 + $0x18] sm:$0xff]
    %v3248 = vld [vmem:[#allocation11 + $0x20] sm:$0xff]
    %v3249 = vld [vmem:[#allocation11 + $0x28] sm:$0xff]
    %v3250 = vld [vmem:[#allocation11 + $0x30] sm:$0xff]
    %v3251 = vld [vmem:[#allocation11 + $0x38] sm:$0xff]
    %v3252 = vld [vmem:[#allocation11 + $0x40] sm:$0xff]
    %v3253 = vld [vmem:[#allocation11 + $0x48] sm:$0xff]
    %v3254 = vld [vmem:[#allocation11 + $0x50] sm:$0xff]
    %v3255 = vld [vmem:[#allocation11 + $0x58] sm:$0xff]
    %v3256 = vld [vmem:[#allocation11 + $0x60] sm:$0xff]
    %v3257 = vld [vmem:[#allocation11 + $0x68] sm:$0xff]
    %v3258 = vld [vmem:[#allocation11 + $0x70] sm:$0xff]
    %v3259 = vld [vmem:[#allocation11 + $0x78] sm:$0xff]
    %v3260 = vld [vmem:[#allocation11 + $0x80] sm:$0xff]
    %v3261 = vld [vmem:[#allocation11 + $0x88] sm:$0xff]
    %v3262 = vld [vmem:[#allocation11 + $0x90] sm:$0xff]
    %v3263 = vld [vmem:[#allocation11 + $0x98] sm:$0xff]
    %v3264 = vld [vmem:[#allocation11 + $0xa0] sm:$0xff]
    %v3265 = vld [vmem:[#allocation11 + $0xa8] sm:$0xff]
    %v3266 = vld [vmem:[#allocation11 + $0xb0] sm:$0xff]
    %v3267 = vld [vmem:[#allocation11 + $0xb8] sm:$0xff]
    %v3268 = vld [vmem:[#allocation11 + $0xc0] sm:$0xff]
    %v3269 = vld [vmem:[#allocation11 + $0xc8] sm:$0xff]
    %v3270 = vld [vmem:[#allocation11 + $0xd0] sm:$0xff]
    %v3271 = vld [vmem:[#allocation11 + $0xd8] sm:$0xff]
    %v3272 = vld [vmem:[#allocation11 + $0xe0] sm:$0xff]
    %v3273 = vld [vmem:[#allocation11 + $0xe8] sm:$0xff]
    %v3274 = vld [vmem:[#allocation11 + $0xf0] sm:$0xff]
    %v3275 = vld [vmem:[#allocation11 + $0xf8] sm:$0xff]
    %v3276 = vld [vmem:[#allocation11 + $0x100] sm:$0xff]
    %v3277 = vld [vmem:[#allocation11 + $0x108] sm:$0xff]
    %v3278 = vld [vmem:[#allocation11 + $0x110] sm:$0xff]
    %v3279 = vld [vmem:[#allocation11 + $0x118] sm:$0xff]
    %v3280 = vld [vmem:[#allocation11 + $0x120] sm:$0xff]
    %v3281 = vld [vmem:[#allocation11 + $0x128] sm:$0xff]
    %v3282 = vld [vmem:[#allocation11 + $0x130] sm:$0xff]
    %v3283 = vld [vmem:[#allocation11 + $0x138] sm:$0xff]
    %v3284 = vld [vmem:[#allocation11 + $0x140] sm:$0xff]
    %v3285 = vld [vmem:[#allocation11 + $0x148] sm:$0xff]
    %v3286 = vld [vmem:[#allocation11 + $0x150] sm:$0xff]
    %v3287 = vld [vmem:[#allocation11 + $0x158] sm:$0xff]
    %v3288 = vld [vmem:[#allocation11 + $0x160] sm:$0xff]
    %v3289 = vld [vmem:[#allocation11 + $0x168] sm:$0xff]
    %v3290 = vld [vmem:[#allocation11 + $0x170] sm:$0xff]
    %v3291 = vld [vmem:[#allocation11 + $0x178] sm:$0xff]
    %v3292 = vld [vmem:[#allocation11 + $0x180] sm:$0xff]
    %v3293 = vld [vmem:[#allocation11 + $0x188] sm:$0xff]
    %v3294 = vld [vmem:[#allocation11 + $0x190] sm:$0xff]
    %v3295 = vld [vmem:[#allocation11 + $0x198] sm:$0xff]
    %v3296 = vld [vmem:[#allocation11 + $0x1a0] sm:$0xff]
    %v3297 = vld [vmem:[#allocation11 + $0x1a8] sm:$0xff]
    %v3298 = vld [vmem:[#allocation11 + $0x1b0] sm:$0xff]
    %v3299 = vld [vmem:[#allocation11 + $0x1b8] sm:$0xff]
    %v3300 = vld [vmem:[#allocation11 + $0x1c0] sm:$0xff]
    %v3301 = vld [vmem:[#allocation11 + $0x1c8] sm:$0xff]
    %v3302 = vld [vmem:[#allocation11 + $0x1d0] sm:$0xff]
    %v3303 = vld [vmem:[#allocation11 + $0x1d8] sm:$0xff]
    %v3304 = vld [vmem:[#allocation11 + $0x1e0] sm:$0xff]
    %v3305 = vld [vmem:[#allocation11 + $0x1e8] sm:$0xff]
    %v3306 = vld [vmem:[#allocation11 + $0x1f0] sm:$0xff]
    %v3307 = vld [vmem:[#allocation11 + $0x1f8] sm:$0xff]
    %3308 = vmatprep.subr.mxu0 %v3305
    %3309 = vmatpush1.msra.mxu0 %v3304
    %3310 = vmatprep.subr.mxu0 %v3301
    %3311 = vmatpush1.msra.mxu0 %v3300
    %3312 = vmatprep.subr.mxu0 %v3297
    %3313 = vmatpush1.msra.mxu0 %v3296
    %3314 = vmatprep.subr.mxu0 %v3293
    %3315 = vmatpush1.msra.mxu0 %v3292
    %3316 = vmatprep.subr.mxu0 %v3289
    %3317 = vmatpush1.msra.mxu0 %v3288
    %3318 = vmatprep.subr.mxu0 %v3285
    %3319 = vmatpush1.msra.mxu0 %v3284
    %3320 = vmatprep.subr.mxu0 %v3281
    %3321 = vmatpush1.msra.mxu0 %v3280
    %3322 = vmatprep.subr.mxu0 %v3277
    %3323 = vmatpush1.msra.mxu0 %v3276
    %3324 = vmatprep.subr.mxu0 %v3273
    %3325 = vmatpush1.msra.mxu0 %v3272
    %3326 = vmatprep.subr.mxu0 %v3269
    %3327 = vmatpush1.msra.mxu0 %v3268
    %3328 = vmatprep.subr.mxu0 %v3265
    %3329 = vmatpush1.msra.mxu0 %v3264
    %3330 = vmatprep.subr.mxu0 %v3261
    %3331 = vmatpush1.msra.mxu0 %v3260
    %3332 = vmatprep.subr.mxu0 %v3257
    %3333 = vmatpush1.msra.mxu0 %v3256
    %3334 = vmatprep.subr.mxu0 %v3253
    %3335 = vmatpush1.msra.mxu0 %v3252
    %3336 = vmatprep.subr.mxu0 %v3249
    %3337 = vmatpush1.msra.mxu0 %v3248
    %3338 = vmatprep.subr.mxu0 %v3245
    %3339 = vmatpush1.msra.mxu0 %v3244
    %3340 = vmatprep.subr.mxu0 0.0
    %3341 = vmatpush2.msra.mxu0 0.0
    %3342 = vmatprep.subr.mxu0 0.0
    %3343 = vmatpush2.msra.mxu0 0.0
    %3344 = vmatprep.subr.mxu0 0.0
    %3345 = vmatpush2.msra.mxu0 0.0
    %3346 = vmatprep.subr.mxu0 0.0
    %3347 = vmatpush2.msra.mxu0 0.0
    %3348 = vmatprep.subr.mxu0 0.0
    %3349 = vmatpush2.msra.mxu0 0.0
    %3350 = vmatprep.subr.mxu0 0.0
    %3351 = vmatpush2.msra.mxu0 0.0
    %3352 = vmatprep.subr.mxu0 0.0
    %3353 = vmatpush2.msra.mxu0 0.0
    %3354 = vmatprep.subr.mxu0 0.0
    %3355 = vmatpush2.msra.mxu0 0.0
    %3356 = vmatprep.subr.mxu0 0.0
    %3357 = vmatpush2.msra.mxu0 0.0
    %3358 = vmatprep.subr.mxu0 0.0
    %3359 = vmatpush2.msra.mxu0 0.0
    %3360 = vmatprep.subr.mxu0 0.0
    %3361 = vmatpush2.msra.mxu0 0.0
    %3362 = vmatprep.subr.mxu0 0.0
    %3363 = vmatpush2.msra.mxu0 0.0
    %3364 = vmatprep.subr.mxu0 0.0
    %3365 = vmatpush2.msra.mxu0 0.0
    %3366 = vmatprep.subr.mxu0 0.0
    %3367 = vmatpush2.msra.mxu0 0.0
    %3368 = vmatprep.subr.mxu0 0.0
    %3369 = vmatpush2.msra.mxu0 0.0
    %3370 = vmatprep.subr.mxu0 0.0
    %3371 = vmatpush2.msra.mxu0 0.0
    %3372 = vmatprep.mubr.f32.mxu0 0.0
    %3373 = vmatmul.mubr.f32.gmra.mxu0 %v3211
    %v3374 = vpop.f32.mrf.mxu0
    %v3375 = vadd.f32 0.0, %v3374
    %v3376 = vpop.f32.mrf.mxu0
    %v3377 = vadd.f32 0.0, %v3376
    %3378 = vdwg.mxu0
    %3379 = vmatprep.subr.mxu0 %v3307
    %3380 = vmatpush1.msra.mxu0 %v3306
    %3381 = vmatprep.subr.mxu0 %v3303
    %3382 = vmatpush1.msra.mxu0 %v3302
    %3383 = vmatprep.subr.mxu0 %v3299
    %3384 = vmatpush1.msra.mxu0 %v3298
    %3385 = vmatprep.subr.mxu0 %v3295
    %3386 = vmatpush1.msra.mxu0 %v3294
    %3387 = vmatprep.subr.mxu0 %v3291
    %3388 = vmatpush1.msra.mxu0 %v3290
    %3389 = vmatprep.subr.mxu0 %v3287
    %3390 = vmatpush1.msra.mxu0 %v3286
    %3391 = vmatprep.subr.mxu0 %v3283
    %3392 = vmatpush1.msra.mxu0 %v3282
    %3393 = vmatprep.subr.mxu0 %v3279
    %3394 = vmatpush1.msra.mxu0 %v3278
    %3395 = vmatprep.subr.mxu0 %v3275
    %3396 = vmatpush1.msra.mxu0 %v3274
    %3397 = vmatprep.subr.mxu0 %v3271
    %3398 = vmatpush1.msra.mxu0 %v3270
    %3399 = vmatprep.subr.mxu0 %v3267
    %3400 = vmatpush1.msra.mxu0 %v3266
    %3401 = vmatprep.subr.mxu0 %v3263
    %3402 = vmatpush1.msra.mxu0 %v3262
    %3403 = vmatprep.subr.mxu0 %v3259
    %3404 = vmatpush1.msra.mxu0 %v3258
    %3405 = vmatprep.subr.mxu0 %v3255
    %3406 = vmatpush1.msra.mxu0 %v3254
    %3407 = vmatprep.subr.mxu0 %v3251
    %3408 = vmatpush1.msra.mxu0 %v3250
    %3409 = vmatprep.subr.mxu0 %v3247
    %3410 = vmatpush1.msra.mxu0 %v3246
    %3411 = vmatprep.subr.mxu0 0.0
    %3412 = vmatpush2.msra.mxu0 0.0
    %3413 = vmatprep.subr.mxu0 0.0
    %3414 = vmatpush2.msra.mxu0 0.0
    %3415 = vmatprep.subr.mxu0 0.0
    %3416 = vmatpush2.msra.mxu0 0.0
    %3417 = vmatprep.subr.mxu0 0.0
    %3418 = vmatpush2.msra.mxu0 0.0
    %3419 = vmatprep.subr.mxu0 0.0
    %3420 = vmatpush2.msra.mxu0 0.0
    %3421 = vmatprep.subr.mxu0 0.0
    %3422 = vmatpush2.msra.mxu0 0.0
    %3423 = vmatprep.subr.mxu0 0.0
    %3424 = vmatpush2.msra.mxu0 0.0
    %3425 = vmatprep.subr.mxu0 0.0
    %3426 = vmatpush2.msra.mxu0 0.0
    %3427 = vmatprep.subr.mxu0 0.0
    %3428 = vmatpush2.msra.mxu0 0.0
    %3429 = vmatprep.subr.mxu0 0.0
    %3430 = vmatpush2.msra.mxu0 0.0
    %3431 = vmatprep.subr.mxu0 0.0
    %3432 = vmatpush2.msra.mxu0 0.0
    %3433 = vmatprep.subr.mxu0 0.0
    %3434 = vmatpush2.msra.mxu0 0.0
    %3435 = vmatprep.subr.mxu0 0.0
    %3436 = vmatpush2.msra.mxu0 0.0
    %3437 = vmatprep.subr.mxu0 0.0
    %3438 = vmatpush2.msra.mxu0 0.0
    %3439 = vmatprep.subr.mxu0 0.0
    %3440 = vmatpush2.msra.mxu0 0.0
    %3441 = vmatprep.subr.mxu0 0.0
    %3442 = vmatpush2.msra.mxu0 0.0
    %3443 = vmatprep.mubr.f32.mxu0 0.0
    %3444 = vmatmul.mubr.f32.gmra.mxu0 %v3211
    %v3445 = vpop.f32.mrf.mxu0
    %v3446 = vadd.f32 0.0, %v3445
    %v3447 = vpop.f32.mrf.mxu0
    %v3448 = vadd.f32 0.0, %v3447
    %3449 = vdwg.mxu0
    %v3450 = vadd.f32 %v3240, %v3375
    %v3451 = vadd.f32 %v3241, %v3377
    %v3452 = vadd.f32 %v3242, %v3446
    %v3453 = vadd.f32 %v3243, %v3448
    %v3454 = vld [vmem:[%s1790 + $0x20] sm:$0xff]
    %v3455 = vld [vmem:[%s1790 + $0x28] sm:$0xff]
    %v3456 = vld [vmem:[%s1790 + $0x30] sm:$0xff]
    %v3457 = vld [vmem:[%s1790 + $0x38] sm:$0xff]
    %v3458 = vld [vmem:[#allocation13] sm:$0xff]
    %v3459 = vld [vmem:[#allocation13 + $0x8] sm:$0xff]
    %v3460 = vld [vmem:[#allocation13 + $0x10] sm:$0xff]
    %v3461 = vld [vmem:[#allocation13 + $0x18] sm:$0xff]
    %v3462 = vld [vmem:[#allocation13 + $0x20] sm:$0xff]
    %v3463 = vld [vmem:[#allocation13 + $0x28] sm:$0xff]
    %v3464 = vld [vmem:[#allocation13 + $0x30] sm:$0xff]
    %v3465 = vld [vmem:[#allocation13 + $0x38] sm:$0xff]
    %v3466 = vld [vmem:[#allocation13 + $0x40] sm:$0xff]
    %v3467 = vld [vmem:[#allocation13 + $0x48] sm:$0xff]
    %v3468 = vld [vmem:[#allocation13 + $0x50] sm:$0xff]
    %v3469 = vld [vmem:[#allocation13 + $0x58] sm:$0xff]
    %v3470 = vld [vmem:[#allocation13 + $0x60] sm:$0xff]
    %v3471 = vld [vmem:[#allocation13 + $0x68] sm:$0xff]
    %v3472 = vld [vmem:[#allocation13 + $0x70] sm:$0xff]
    %v3473 = vld [vmem:[#allocation13 + $0x78] sm:$0xff]
    %v3474 = vld [vmem:[#allocation13 + $0x80] sm:$0xff]
    %v3475 = vld [vmem:[#allocation13 + $0x88] sm:$0xff]
    %v3476 = vld [vmem:[#allocation13 + $0x90] sm:$0xff]
    %v3477 = vld [vmem:[#allocation13 + $0x98] sm:$0xff]
    %v3478 = vld [vmem:[#allocation13 + $0xa0] sm:$0xff]
    %v3479 = vld [vmem:[#allocation13 + $0xa8] sm:$0xff]
    %v3480 = vld [vmem:[#allocation13 + $0xb0] sm:$0xff]
    %v3481 = vld [vmem:[#allocation13 + $0xb8] sm:$0xff]
    %v3482 = vld [vmem:[#allocation13 + $0xc0] sm:$0xff]
    %v3483 = vld [vmem:[#allocation13 + $0xc8] sm:$0xff]
    %v3484 = vld [vmem:[#allocation13 + $0xd0] sm:$0xff]
    %v3485 = vld [vmem:[#allocation13 + $0xd8] sm:$0xff]
    %v3486 = vld [vmem:[#allocation13 + $0xe0] sm:$0xff]
    %v3487 = vld [vmem:[#allocation13 + $0xe8] sm:$0xff]
    %v3488 = vld [vmem:[#allocation13 + $0xf0] sm:$0xff]
    %v3489 = vld [vmem:[#allocation13 + $0xf8] sm:$0xff]
    %v3490 = vld [vmem:[#allocation13 + $0x100] sm:$0xff]
    %v3491 = vld [vmem:[#allocation13 + $0x108] sm:$0xff]
    %v3492 = vld [vmem:[#allocation13 + $0x110] sm:$0xff]
    %v3493 = vld [vmem:[#allocation13 + $0x118] sm:$0xff]
    %v3494 = vld [vmem:[#allocation13 + $0x120] sm:$0xff]
    %v3495 = vld [vmem:[#allocation13 + $0x128] sm:$0xff]
    %v3496 = vld [vmem:[#allocation13 + $0x130] sm:$0xff]
    %v3497 = vld [vmem:[#allocation13 + $0x138] sm:$0xff]
    %v3498 = vld [vmem:[#allocation13 + $0x140] sm:$0xff]
    %v3499 = vld [vmem:[#allocation13 + $0x148] sm:$0xff]
    %v3500 = vld [vmem:[#allocation13 + $0x150] sm:$0xff]
    %v3501 = vld [vmem:[#allocation13 + $0x158] sm:$0xff]
    %v3502 = vld [vmem:[#allocation13 + $0x160] sm:$0xff]
    %v3503 = vld [vmem:[#allocation13 + $0x168] sm:$0xff]
    %v3504 = vld [vmem:[#allocation13 + $0x170] sm:$0xff]
    %v3505 = vld [vmem:[#allocation13 + $0x178] sm:$0xff]
    %v3506 = vld [vmem:[#allocation13 + $0x180] sm:$0xff]
    %v3507 = vld [vmem:[#allocation13 + $0x188] sm:$0xff]
    %v3508 = vld [vmem:[#allocation13 + $0x190] sm:$0xff]
    %v3509 = vld [vmem:[#allocation13 + $0x198] sm:$0xff]
    %v3510 = vld [vmem:[#allocation13 + $0x1a0] sm:$0xff]
    %v3511 = vld [vmem:[#allocation13 + $0x1a8] sm:$0xff]
    %v3512 = vld [vmem:[#allocation13 + $0x1b0] sm:$0xff]
    %v3513 = vld [vmem:[#allocation13 + $0x1b8] sm:$0xff]
    %v3514 = vld [vmem:[#allocation13 + $0x1c0] sm:$0xff]
    %v3515 = vld [vmem:[#allocation13 + $0x1c8] sm:$0xff]
    %v3516 = vld [vmem:[#allocation13 + $0x1d0] sm:$0xff]
    %v3517 = vld [vmem:[#allocation13 + $0x1d8] sm:$0xff]
    %v3518 = vld [vmem:[#allocation13 + $0x1e0] sm:$0xff]
    %v3519 = vld [vmem:[#allocation13 + $0x1e8] sm:$0xff]
    %v3520 = vld [vmem:[#allocation13 + $0x1f0] sm:$0xff]
    %v3521 = vld [vmem:[#allocation13 + $0x1f8] sm:$0xff]
    %3522 = vmatprep.subr.mxu0 %v3519
    %3523 = vmatpush1.msra.mxu0 %v3518
    %3524 = vmatprep.subr.mxu0 %v3515
    %3525 = vmatpush1.msra.mxu0 %v3514
    %3526 = vmatprep.subr.mxu0 %v3511
    %3527 = vmatpush1.msra.mxu0 %v3510
    %3528 = vmatprep.subr.mxu0 %v3507
    %3529 = vmatpush1.msra.mxu0 %v3506
    %3530 = vmatprep.subr.mxu0 %v3503
    %3531 = vmatpush1.msra.mxu0 %v3502
    %3532 = vmatprep.subr.mxu0 %v3499
    %3533 = vmatpush1.msra.mxu0 %v3498
    %3534 = vmatprep.subr.mxu0 %v3495
    %3535 = vmatpush1.msra.mxu0 %v3494
    %3536 = vmatprep.subr.mxu0 %v3491
    %3537 = vmatpush1.msra.mxu0 %v3490
    %3538 = vmatprep.subr.mxu0 %v3487
    %3539 = vmatpush1.msra.mxu0 %v3486
    %3540 = vmatprep.subr.mxu0 %v3483
    %3541 = vmatpush1.msra.mxu0 %v3482
    %3542 = vmatprep.subr.mxu0 %v3479
    %3543 = vmatpush1.msra.mxu0 %v3478
    %3544 = vmatprep.subr.mxu0 %v3475
    %3545 = vmatpush1.msra.mxu0 %v3474
    %3546 = vmatprep.subr.mxu0 %v3471
    %3547 = vmatpush1.msra.mxu0 %v3470
    %3548 = vmatprep.subr.mxu0 %v3467
    %3549 = vmatpush1.msra.mxu0 %v3466
    %3550 = vmatprep.subr.mxu0 %v3463
    %3551 = vmatpush1.msra.mxu0 %v3462
    %3552 = vmatprep.subr.mxu0 %v3459
    %3553 = vmatpush1.msra.mxu0 %v3458
    %3554 = vmatprep.subr.mxu0 0.0
    %3555 = vmatpush2.msra.mxu0 0.0
    %3556 = vmatprep.subr.mxu0 0.0
    %3557 = vmatpush2.msra.mxu0 0.0
    %3558 = vmatprep.subr.mxu0 0.0
    %3559 = vmatpush2.msra.mxu0 0.0
    %3560 = vmatprep.subr.mxu0 0.0
    %3561 = vmatpush2.msra.mxu0 0.0
    %3562 = vmatprep.subr.mxu0 0.0
    %3563 = vmatpush2.msra.mxu0 0.0
    %3564 = vmatprep.subr.mxu0 0.0
    %3565 = vmatpush2.msra.mxu0 0.0
    %3566 = vmatprep.subr.mxu0 0.0
    %3567 = vmatpush2.msra.mxu0 0.0
    %3568 = vmatprep.subr.mxu0 0.0
    %3569 = vmatpush2.msra.mxu0 0.0
    %3570 = vmatprep.subr.mxu0 0.0
    %3571 = vmatpush2.msra.mxu0 0.0
    %3572 = vmatprep.subr.mxu0 0.0
    %3573 = vmatpush2.msra.mxu0 0.0
    %3574 = vmatprep.subr.mxu0 0.0
    %3575 = vmatpush2.msra.mxu0 0.0
    %3576 = vmatprep.subr.mxu0 0.0
    %3577 = vmatpush2.msra.mxu0 0.0
    %3578 = vmatprep.subr.mxu0 0.0
    %3579 = vmatpush2.msra.mxu0 0.0
    %3580 = vmatprep.subr.mxu0 0.0
    %3581 = vmatpush2.msra.mxu0 0.0
    %3582 = vmatprep.subr.mxu0 0.0
    %3583 = vmatpush2.msra.mxu0 0.0
    %3584 = vmatprep.subr.mxu0 0.0
    %3585 = vmatpush2.msra.mxu0 0.0
    %3586 = vmatprep.mubr.f32.mxu0 0.0
    %3587 = vmatmul.mubr.f32.gmra.mxu0 %v3235
    %v3588 = vpop.f32.mrf.mxu0
    %v3589 = vadd.f32 0.0, %v3588
    %v3590 = vpop.f32.mrf.mxu0
    %v3591 = vadd.f32 0.0, %v3590
    %3592 = vdwg.mxu0
    %3593 = vmatprep.subr.mxu0 %v3521
    %3594 = vmatpush1.msra.mxu0 %v3520
    %3595 = vmatprep.subr.mxu0 %v3517
    %3596 = vmatpush1.msra.mxu0 %v3516
    %3597 = vmatprep.subr.mxu0 %v3513
    %3598 = vmatpush1.msra.mxu0 %v3512
    %3599 = vmatprep.subr.mxu0 %v3509
    %3600 = vmatpush1.msra.mxu0 %v3508
    %3601 = vmatprep.subr.mxu0 %v3505
    %3602 = vmatpush1.msra.mxu0 %v3504
    %3603 = vmatprep.subr.mxu0 %v3501
    %3604 = vmatpush1.msra.mxu0 %v3500
    %3605 = vmatprep.subr.mxu0 %v3497
    %3606 = vmatpush1.msra.mxu0 %v3496
    %3607 = vmatprep.subr.mxu0 %v3493
    %3608 = vmatpush1.msra.mxu0 %v3492
    %3609 = vmatprep.subr.mxu0 %v3489
    %3610 = vmatpush1.msra.mxu0 %v3488
    %3611 = vmatprep.subr.mxu0 %v3485
    %3612 = vmatpush1.msra.mxu0 %v3484
    %3613 = vmatprep.subr.mxu0 %v3481
    %3614 = vmatpush1.msra.mxu0 %v3480
    %3615 = vmatprep.subr.mxu0 %v3477
    %3616 = vmatpush1.msra.mxu0 %v3476
    %3617 = vmatprep.subr.mxu0 %v3473
    %3618 = vmatpush1.msra.mxu0 %v3472
    %3619 = vmatprep.subr.mxu0 %v3469
    %3620 = vmatpush1.msra.mxu0 %v3468
    %3621 = vmatprep.subr.mxu0 %v3465
    %3622 = vmatpush1.msra.mxu0 %v3464
    %3623 = vmatprep.subr.mxu0 %v3461
    %3624 = vmatpush1.msra.mxu0 %v3460
    %3625 = vmatprep.subr.mxu0 0.0
    %3626 = vmatpush2.msra.mxu0 0.0
    %3627 = vmatprep.subr.mxu0 0.0
    %3628 = vmatpush2.msra.mxu0 0.0
    %3629 = vmatprep.subr.mxu0 0.0
    %3630 = vmatpush2.msra.mxu0 0.0
    %3631 = vmatprep.subr.mxu0 0.0
    %3632 = vmatpush2.msra.mxu0 0.0
    %3633 = vmatprep.subr.mxu0 0.0
    %3634 = vmatpush2.msra.mxu0 0.0
    %3635 = vmatprep.subr.mxu0 0.0
    %3636 = vmatpush2.msra.mxu0 0.0
    %3637 = vmatprep.subr.mxu0 0.0
    %3638 = vmatpush2.msra.mxu0 0.0
    %3639 = vmatprep.subr.mxu0 0.0
    %3640 = vmatpush2.msra.mxu0 0.0
    %3641 = vmatprep.subr.mxu0 0.0
    %3642 = vmatpush2.msra.mxu0 0.0
    %3643 = vmatprep.subr.mxu0 0.0
    %3644 = vmatpush2.msra.mxu0 0.0
    %3645 = vmatprep.subr.mxu0 0.0
    %3646 = vmatpush2.msra.mxu0 0.0
    %3647 = vmatprep.subr.mxu0 0.0
    %3648 = vmatpush2.msra.mxu0 0.0
    %3649 = vmatprep.subr.mxu0 0.0
    %3650 = vmatpush2.msra.mxu0 0.0
    %3651 = vmatprep.subr.mxu0 0.0
    %3652 = vmatpush2.msra.mxu0 0.0
    %3653 = vmatprep.subr.mxu0 0.0
    %3654 = vmatpush2.msra.mxu0 0.0
    %3655 = vmatprep.subr.mxu0 0.0
    %3656 = vmatpush2.msra.mxu0 0.0
    %3657 = vmatprep.mubr.f32.mxu0 0.0
    %3658 = vmatmul.mubr.f32.gmra.mxu0 %v3235
    %v3659 = vpop.f32.mrf.mxu0
    %v3660 = vadd.f32 0.0, %v3659
    %v3661 = vpop.f32.mrf.mxu0
    %v3662 = vadd.f32 0.0, %v3661
    %3663 = vdwg.mxu0
    %v3664 = vadd.f32 %v3454, %v3589
    %v3665 = vadd.f32 %v3455, %v3591
    %v3666 = vadd.f32 %v3456, %v3660
    %v3667 = vadd.f32 %v3457, %v3662
    %v3668 = vxor.u32 %v3450, 2147483648
    %v3669 = vmul.f32 %v3668, 1.442695
    %v3670 = vpow.pop %v3669
    %v3671 = vadd.f32 %v3670, 1.0
    %v3672 = vrcp.pop %v3671
    %v3673 = vmul.f32 1.0, %v3672
    %v3674 = vxor.u32 %v3451, 2147483648
    %v3675 = vmul.f32 %v3674, 1.442695
    %v3676 = vpow.pop %v3675
    %v3677 = vadd.f32 %v3676, 1.0
    %v3678 = vrcp.pop %v3677
    %v3679 = vmul.f32 1.0, %v3678
    %v3680 = vtanh.pop %v3452
    %v3681 = vxor.u32 %v3453, 2147483648
    %v3682 = vmul.f32 %v3681, 1.442695
    %v3683 = vpow.pop %v3682
    %v3684 = vadd.f32 %v3683, 1.0
    %v3685 = vrcp.pop %v3684
    %v3686 = vmul.f32 1.0, %v3685
    %v3687 = vmul.f32 %v3679, %v3209
    %v3688 = vmul.f32 %v3673, %v3680
    %v3689 = vadd.f32 %v3687, %v3688
    %v3690 = vtanh.pop %v3689
    %v3691 = vmul.f32 %v3686, %v3690
    %v3692 = vxor.u32 %v3664, 2147483648
    %v3693 = vmul.f32 %v3692, 1.442695
    %v3694 = vpow.pop %v3693
    %v3695 = vadd.f32 %v3694, 1.0
    %v3696 = vrcp.pop %v3695
    %v3697 = vmul.f32 1.0, %v3696
    %v3698 = vxor.u32 %v3665, 2147483648
    %v3699 = vmul.f32 %v3698, 1.442695
    %v3700 = vpow.pop %v3699
    %v3701 = vadd.f32 %v3700, 1.0
    %v3702 = vrcp.pop %v3701
    %v3703 = vmul.f32 1.0, %v3702
    %v3704 = vtanh.pop %v3666
    %v3705 = vxor.u32 %v3667, 2147483648
    %v3706 = vmul.f32 %v3705, 1.442695
    %v3707 = vpow.pop %v3706
    %v3708 = vadd.f32 %v3707, 1.0
    %v3709 = vrcp.pop %v3708
    %v3710 = vmul.f32 1.0, %v3709
    %v3711 = vmul.f32 %v3703, %v3233
    %v3712 = vmul.f32 %v3697, %v3704
    %v3713 = vadd.f32 %v3711, %v3712
    %v3714 = vtanh.pop %v3713
    %v3715 = vmul.f32 %v3710, %v3714
    %s3716 = scalar_lea.vmem [#allocation3], 40
    %3717 = vst [vmem:[%s3716] sm:$0xff] %v3691
    %s3718 = scalar_lea.vmem [#allocation4], 16
    %3719 = vst [vmem:[%s3718] sm:$0xff] %v3715
    %v3720 = vld [vmem:[%s1521] sm:$0xff]
    %v3721 = vld [vmem:[%s1521 + $0x8] sm:$0xff]
    %v3722 = vld [vmem:[%s1521 + $0x10] sm:$0xff]
    %v3723 = vld [vmem:[%s1521 + $0x18] sm:$0xff]
    %v3724 = vld [vmem:[#allocation11] sm:$0xff]
    %v3725 = vld [vmem:[#allocation11 + $0x8] sm:$0xff]
    %v3726 = vld [vmem:[#allocation11 + $0x10] sm:$0xff]
    %v3727 = vld [vmem:[#allocation11 + $0x18] sm:$0xff]
    %v3728 = vld [vmem:[#allocation11 + $0x20] sm:$0xff]
    %v3729 = vld [vmem:[#allocation11 + $0x28] sm:$0xff]
    %v3730 = vld [vmem:[#allocation11 + $0x30] sm:$0xff]
    %v3731 = vld [vmem:[#allocation11 + $0x38] sm:$0xff]
    %v3732 = vld [vmem:[#allocation11 + $0x40] sm:$0xff]
    %v3733 = vld [vmem:[#allocation11 + $0x48] sm:$0xff]
    %v3734 = vld [vmem:[#allocation11 + $0x50] sm:$0xff]
    %v3735 = vld [vmem:[#allocation11 + $0x58] sm:$0xff]
    %v3736 = vld [vmem:[#allocation11 + $0x60] sm:$0xff]
    %v3737 = vld [vmem:[#allocation11 + $0x68] sm:$0xff]
    %v3738 = vld [vmem:[#allocation11 + $0x70] sm:$0xff]
    %v3739 = vld [vmem:[#allocation11 + $0x78] sm:$0xff]
    %v3740 = vld [vmem:[#allocation11 + $0x80] sm:$0xff]
    %v3741 = vld [vmem:[#allocation11 + $0x88] sm:$0xff]
    %v3742 = vld [vmem:[#allocation11 + $0x90] sm:$0xff]
    %v3743 = vld [vmem:[#allocation11 + $0x98] sm:$0xff]
    %v3744 = vld [vmem:[#allocation11 + $0xa0] sm:$0xff]
    %v3745 = vld [vmem:[#allocation11 + $0xa8] sm:$0xff]
    %v3746 = vld [vmem:[#allocation11 + $0xb0] sm:$0xff]
    %v3747 = vld [vmem:[#allocation11 + $0xb8] sm:$0xff]
    %v3748 = vld [vmem:[#allocation11 + $0xc0] sm:$0xff]
    %v3749 = vld [vmem:[#allocation11 + $0xc8] sm:$0xff]
    %v3750 = vld [vmem:[#allocation11 + $0xd0] sm:$0xff]
    %v3751 = vld [vmem:[#allocation11 + $0xd8] sm:$0xff]
    %v3752 = vld [vmem:[#allocation11 + $0xe0] sm:$0xff]
    %v3753 = vld [vmem:[#allocation11 + $0xe8] sm:$0xff]
    %v3754 = vld [vmem:[#allocation11 + $0xf0] sm:$0xff]
    %v3755 = vld [vmem:[#allocation11 + $0xf8] sm:$0xff]
    %v3756 = vld [vmem:[#allocation11 + $0x100] sm:$0xff]
    %v3757 = vld [vmem:[#allocation11 + $0x108] sm:$0xff]
    %v3758 = vld [vmem:[#allocation11 + $0x110] sm:$0xff]
    %v3759 = vld [vmem:[#allocation11 + $0x118] sm:$0xff]
    %v3760 = vld [vmem:[#allocation11 + $0x120] sm:$0xff]
    %v3761 = vld [vmem:[#allocation11 + $0x128] sm:$0xff]
    %v3762 = vld [vmem:[#allocation11 + $0x130] sm:$0xff]
    %v3763 = vld [vmem:[#allocation11 + $0x138] sm:$0xff]
    %v3764 = vld [vmem:[#allocation11 + $0x140] sm:$0xff]
    %v3765 = vld [vmem:[#allocation11 + $0x148] sm:$0xff]
    %v3766 = vld [vmem:[#allocation11 + $0x150] sm:$0xff]
    %v3767 = vld [vmem:[#allocation11 + $0x158] sm:$0xff]
    %v3768 = vld [vmem:[#allocation11 + $0x160] sm:$0xff]
    %v3769 = vld [vmem:[#allocation11 + $0x168] sm:$0xff]
    %v3770 = vld [vmem:[#allocation11 + $0x170] sm:$0xff]
    %v3771 = vld [vmem:[#allocation11 + $0x178] sm:$0xff]
    %v3772 = vld [vmem:[#allocation11 + $0x180] sm:$0xff]
    %v3773 = vld [vmem:[#allocation11 + $0x188] sm:$0xff]
    %v3774 = vld [vmem:[#allocation11 + $0x190] sm:$0xff]
    %v3775 = vld [vmem:[#allocation11 + $0x198] sm:$0xff]
    %v3776 = vld [vmem:[#allocation11 + $0x1a0] sm:$0xff]
    %v3777 = vld [vmem:[#allocation11 + $0x1a8] sm:$0xff]
    %v3778 = vld [vmem:[#allocation11 + $0x1b0] sm:$0xff]
    %v3779 = vld [vmem:[#allocation11 + $0x1b8] sm:$0xff]
    %v3780 = vld [vmem:[#allocation11 + $0x1c0] sm:$0xff]
    %v3781 = vld [vmem:[#allocation11 + $0x1c8] sm:$0xff]
    %v3782 = vld [vmem:[#allocation11 + $0x1d0] sm:$0xff]
    %v3783 = vld [vmem:[#allocation11 + $0x1d8] sm:$0xff]
    %v3784 = vld [vmem:[#allocation11 + $0x1e0] sm:$0xff]
    %v3785 = vld [vmem:[#allocation11 + $0x1e8] sm:$0xff]
    %v3786 = vld [vmem:[#allocation11 + $0x1f0] sm:$0xff]
    %v3787 = vld [vmem:[#allocation11 + $0x1f8] sm:$0xff]
    %3788 = vmatprep.subr.mxu0 %v3785
    %3789 = vmatpush1.msra.mxu0 %v3784
    %3790 = vmatprep.subr.mxu0 %v3781
    %3791 = vmatpush1.msra.mxu0 %v3780
    %3792 = vmatprep.subr.mxu0 %v3777
    %3793 = vmatpush1.msra.mxu0 %v3776
    %3794 = vmatprep.subr.mxu0 %v3773
    %3795 = vmatpush1.msra.mxu0 %v3772
    %3796 = vmatprep.subr.mxu0 %v3769
    %3797 = vmatpush1.msra.mxu0 %v3768
    %3798 = vmatprep.subr.mxu0 %v3765
    %3799 = vmatpush1.msra.mxu0 %v3764
    %3800 = vmatprep.subr.mxu0 %v3761
    %3801 = vmatpush1.msra.mxu0 %v3760
    %3802 = vmatprep.subr.mxu0 %v3757
    %3803 = vmatpush1.msra.mxu0 %v3756
    %3804 = vmatprep.subr.mxu0 %v3753
    %3805 = vmatpush1.msra.mxu0 %v3752
    %3806 = vmatprep.subr.mxu0 %v3749
    %3807 = vmatpush1.msra.mxu0 %v3748
    %3808 = vmatprep.subr.mxu0 %v3745
    %3809 = vmatpush1.msra.mxu0 %v3744
    %3810 = vmatprep.subr.mxu0 %v3741
    %3811 = vmatpush1.msra.mxu0 %v3740
    %3812 = vmatprep.subr.mxu0 %v3737
    %3813 = vmatpush1.msra.mxu0 %v3736
    %3814 = vmatprep.subr.mxu0 %v3733
    %3815 = vmatpush1.msra.mxu0 %v3732
    %3816 = vmatprep.subr.mxu0 %v3729
    %3817 = vmatpush1.msra.mxu0 %v3728
    %3818 = vmatprep.subr.mxu0 %v3725
    %3819 = vmatpush1.msra.mxu0 %v3724
    %3820 = vmatprep.subr.mxu0 0.0
    %3821 = vmatpush2.msra.mxu0 0.0
    %3822 = vmatprep.subr.mxu0 0.0
    %3823 = vmatpush2.msra.mxu0 0.0
    %3824 = vmatprep.subr.mxu0 0.0
    %3825 = vmatpush2.msra.mxu0 0.0
    %3826 = vmatprep.subr.mxu0 0.0
    %3827 = vmatpush2.msra.mxu0 0.0
    %3828 = vmatprep.subr.mxu0 0.0
    %3829 = vmatpush2.msra.mxu0 0.0
    %3830 = vmatprep.subr.mxu0 0.0
    %3831 = vmatpush2.msra.mxu0 0.0
    %3832 = vmatprep.subr.mxu0 0.0
    %3833 = vmatpush2.msra.mxu0 0.0
    %3834 = vmatprep.subr.mxu0 0.0
    %3835 = vmatpush2.msra.mxu0 0.0
    %3836 = vmatprep.subr.mxu0 0.0
    %3837 = vmatpush2.msra.mxu0 0.0
    %3838 = vmatprep.subr.mxu0 0.0
    %3839 = vmatpush2.msra.mxu0 0.0
    %3840 = vmatprep.subr.mxu0 0.0
    %3841 = vmatpush2.msra.mxu0 0.0
    %3842 = vmatprep.subr.mxu0 0.0
    %3843 = vmatpush2.msra.mxu0 0.0
    %3844 = vmatprep.subr.mxu0 0.0
    %3845 = vmatpush2.msra.mxu0 0.0
    %3846 = vmatprep.subr.mxu0 0.0
    %3847 = vmatpush2.msra.mxu0 0.0
    %3848 = vmatprep.subr.mxu0 0.0
    %3849 = vmatpush2.msra.mxu0 0.0
    %3850 = vmatprep.subr.mxu0 0.0
    %3851 = vmatpush2.msra.mxu0 0.0
    %3852 = vmatprep.mubr.f32.mxu0 0.0
    %3853 = vmatmul.mubr.f32.gmra.mxu0 %v3691
    %v3854 = vpop.f32.mrf.mxu0
    %v3855 = vadd.f32 0.0, %v3854
    %v3856 = vpop.f32.mrf.mxu0
    %v3857 = vadd.f32 0.0, %v3856
    %3858 = vdwg.mxu0
    %3859 = vmatprep.subr.mxu0 %v3787
    %3860 = vmatpush1.msra.mxu0 %v3786
    %3861 = vmatprep.subr.mxu0 %v3783
    %3862 = vmatpush1.msra.mxu0 %v3782
    %3863 = vmatprep.subr.mxu0 %v3779
    %3864 = vmatpush1.msra.mxu0 %v3778
    %3865 = vmatprep.subr.mxu0 %v3775
    %3866 = vmatpush1.msra.mxu0 %v3774
    %3867 = vmatprep.subr.mxu0 %v3771
    %3868 = vmatpush1.msra.mxu0 %v3770
    %3869 = vmatprep.subr.mxu0 %v3767
    %3870 = vmatpush1.msra.mxu0 %v3766
    %3871 = vmatprep.subr.mxu0 %v3763
    %3872 = vmatpush1.msra.mxu0 %v3762
    %3873 = vmatprep.subr.mxu0 %v3759
    %3874 = vmatpush1.msra.mxu0 %v3758
    %3875 = vmatprep.subr.mxu0 %v3755
    %3876 = vmatpush1.msra.mxu0 %v3754
    %3877 = vmatprep.subr.mxu0 %v3751
    %3878 = vmatpush1.msra.mxu0 %v3750
    %3879 = vmatprep.subr.mxu0 %v3747
    %3880 = vmatpush1.msra.mxu0 %v3746
    %3881 = vmatprep.subr.mxu0 %v3743
    %3882 = vmatpush1.msra.mxu0 %v3742
    %3883 = vmatprep.subr.mxu0 %v3739
    %3884 = vmatpush1.msra.mxu0 %v3738
    %3885 = vmatprep.subr.mxu0 %v3735
    %3886 = vmatpush1.msra.mxu0 %v3734
    %3887 = vmatprep.subr.mxu0 %v3731
    %3888 = vmatpush1.msra.mxu0 %v3730
    %3889 = vmatprep.subr.mxu0 %v3727
    %3890 = vmatpush1.msra.mxu0 %v3726
    %3891 = vmatprep.subr.mxu0 0.0
    %3892 = vmatpush2.msra.mxu0 0.0
    %3893 = vmatprep.subr.mxu0 0.0
    %3894 = vmatpush2.msra.mxu0 0.0
    %3895 = vmatprep.subr.mxu0 0.0
    %3896 = vmatpush2.msra.mxu0 0.0
    %3897 = vmatprep.subr.mxu0 0.0
    %3898 = vmatpush2.msra.mxu0 0.0
    %3899 = vmatprep.subr.mxu0 0.0
    %3900 = vmatpush2.msra.mxu0 0.0
    %3901 = vmatprep.subr.mxu0 0.0
    %3902 = vmatpush2.msra.mxu0 0.0
    %3903 = vmatprep.subr.mxu0 0.0
    %3904 = vmatpush2.msra.mxu0 0.0
    %3905 = vmatprep.subr.mxu0 0.0
    %3906 = vmatpush2.msra.mxu0 0.0
    %3907 = vmatprep.subr.mxu0 0.0
    %3908 = vmatpush2.msra.mxu0 0.0
    %3909 = vmatprep.subr.mxu0 0.0
    %3910 = vmatpush2.msra.mxu0 0.0
    %3911 = vmatprep.subr.mxu0 0.0
    %3912 = vmatpush2.msra.mxu0 0.0
    %3913 = vmatprep.subr.mxu0 0.0
    %3914 = vmatpush2.msra.mxu0 0.0
    %3915 = vmatprep.subr.mxu0 0.0
    %3916 = vmatpush2.msra.mxu0 0.0
    %3917 = vmatprep.subr.mxu0 0.0
    %3918 = vmatpush2.msra.mxu0 0.0
    %3919 = vmatprep.subr.mxu0 0.0
    %3920 = vmatpush2.msra.mxu0 0.0
    %3921 = vmatprep.subr.mxu0 0.0
    %3922 = vmatpush2.msra.mxu0 0.0
    %3923 = vmatprep.mubr.f32.mxu0 0.0
    %3924 = vmatmul.mubr.f32.gmra.mxu0 %v3691
    %v3925 = vpop.f32.mrf.mxu0
    %v3926 = vadd.f32 0.0, %v3925
    %v3927 = vpop.f32.mrf.mxu0
    %v3928 = vadd.f32 0.0, %v3927
    %3929 = vdwg.mxu0
    %v3930 = vadd.f32 %v3720, %v3855
    %v3931 = vadd.f32 %v3721, %v3857
    %v3932 = vadd.f32 %v3722, %v3926
    %v3933 = vadd.f32 %v3723, %v3928
    %v3934 = vld [vmem:[%s1304 + $0x20] sm:$0xff]
    %v3935 = vld [vmem:[%s1304 + $0x28] sm:$0xff]
    %v3936 = vld [vmem:[%s1304 + $0x30] sm:$0xff]
    %v3937 = vld [vmem:[%s1304 + $0x38] sm:$0xff]
    %v3938 = vld [vmem:[#allocation13] sm:$0xff]
    %v3939 = vld [vmem:[#allocation13 + $0x8] sm:$0xff]
    %v3940 = vld [vmem:[#allocation13 + $0x10] sm:$0xff]
    %v3941 = vld [vmem:[#allocation13 + $0x18] sm:$0xff]
    %v3942 = vld [vmem:[#allocation13 + $0x20] sm:$0xff]
    %v3943 = vld [vmem:[#allocation13 + $0x28] sm:$0xff]
    %v3944 = vld [vmem:[#allocation13 + $0x30] sm:$0xff]
    %v3945 = vld [vmem:[#allocation13 + $0x38] sm:$0xff]
    %v3946 = vld [vmem:[#allocation13 + $0x40] sm:$0xff]
    %v3947 = vld [vmem:[#allocation13 + $0x48] sm:$0xff]
    %v3948 = vld [vmem:[#allocation13 + $0x50] sm:$0xff]
    %v3949 = vld [vmem:[#allocation13 + $0x58] sm:$0xff]
    %v3950 = vld [vmem:[#allocation13 + $0x60] sm:$0xff]
    %v3951 = vld [vmem:[#allocation13 + $0x68] sm:$0xff]
    %v3952 = vld [vmem:[#allocation13 + $0x70] sm:$0xff]
    %v3953 = vld [vmem:[#allocation13 + $0x78] sm:$0xff]
    %v3954 = vld [vmem:[#allocation13 + $0x80] sm:$0xff]
    %v3955 = vld [vmem:[#allocation13 + $0x88] sm:$0xff]
    %v3956 = vld [vmem:[#allocation13 + $0x90] sm:$0xff]
    %v3957 = vld [vmem:[#allocation13 + $0x98] sm:$0xff]
    %v3958 = vld [vmem:[#allocation13 + $0xa0] sm:$0xff]
    %v3959 = vld [vmem:[#allocation13 + $0xa8] sm:$0xff]
    %v3960 = vld [vmem:[#allocation13 + $0xb0] sm:$0xff]
    %v3961 = vld [vmem:[#allocation13 + $0xb8] sm:$0xff]
    %v3962 = vld [vmem:[#allocation13 + $0xc0] sm:$0xff]
    %v3963 = vld [vmem:[#allocation13 + $0xc8] sm:$0xff]
    %v3964 = vld [vmem:[#allocation13 + $0xd0] sm:$0xff]
    %v3965 = vld [vmem:[#allocation13 + $0xd8] sm:$0xff]
    %v3966 = vld [vmem:[#allocation13 + $0xe0] sm:$0xff]
    %v3967 = vld [vmem:[#allocation13 + $0xe8] sm:$0xff]
    %v3968 = vld [vmem:[#allocation13 + $0xf0] sm:$0xff]
    %v3969 = vld [vmem:[#allocation13 + $0xf8] sm:$0xff]
    %v3970 = vld [vmem:[#allocation13 + $0x100] sm:$0xff]
    %v3971 = vld [vmem:[#allocation13 + $0x108] sm:$0xff]
    %v3972 = vld [vmem:[#allocation13 + $0x110] sm:$0xff]
    %v3973 = vld [vmem:[#allocation13 + $0x118] sm:$0xff]
    %v3974 = vld [vmem:[#allocation13 + $0x120] sm:$0xff]
    %v3975 = vld [vmem:[#allocation13 + $0x128] sm:$0xff]
    %v3976 = vld [vmem:[#allocation13 + $0x130] sm:$0xff]
    %v3977 = vld [vmem:[#allocation13 + $0x138] sm:$0xff]
    %v3978 = vld [vmem:[#allocation13 + $0x140] sm:$0xff]
    %v3979 = vld [vmem:[#allocation13 + $0x148] sm:$0xff]
    %v3980 = vld [vmem:[#allocation13 + $0x150] sm:$0xff]
    %v3981 = vld [vmem:[#allocation13 + $0x158] sm:$0xff]
    %v3982 = vld [vmem:[#allocation13 + $0x160] sm:$0xff]
    %v3983 = vld [vmem:[#allocation13 + $0x168] sm:$0xff]
    %v3984 = vld [vmem:[#allocation13 + $0x170] sm:$0xff]
    %v3985 = vld [vmem:[#allocation13 + $0x178] sm:$0xff]
    %v3986 = vld [vmem:[#allocation13 + $0x180] sm:$0xff]
    %v3987 = vld [vmem:[#allocation13 + $0x188] sm:$0xff]
    %v3988 = vld [vmem:[#allocation13 + $0x190] sm:$0xff]
    %v3989 = vld [vmem:[#allocation13 + $0x198] sm:$0xff]
    %v3990 = vld [vmem:[#allocation13 + $0x1a0] sm:$0xff]
    %v3991 = vld [vmem:[#allocation13 + $0x1a8] sm:$0xff]
    %v3992 = vld [vmem:[#allocation13 + $0x1b0] sm:$0xff]
    %v3993 = vld [vmem:[#allocation13 + $0x1b8] sm:$0xff]
    %v3994 = vld [vmem:[#allocation13 + $0x1c0] sm:$0xff]
    %v3995 = vld [vmem:[#allocation13 + $0x1c8] sm:$0xff]
    %v3996 = vld [vmem:[#allocation13 + $0x1d0] sm:$0xff]
    %v3997 = vld [vmem:[#allocation13 + $0x1d8] sm:$0xff]
    %v3998 = vld [vmem:[#allocation13 + $0x1e0] sm:$0xff]
    %v3999 = vld [vmem:[#allocation13 + $0x1e8] sm:$0xff]
    %v4000 = vld [vmem:[#allocation13 + $0x1f0] sm:$0xff]
    %v4001 = vld [vmem:[#allocation13 + $0x1f8] sm:$0xff]
    %4002 = vmatprep.subr.mxu0 %v3999
    %4003 = vmatpush1.msra.mxu0 %v3998
    %4004 = vmatprep.subr.mxu0 %v3995
    %4005 = vmatpush1.msra.mxu0 %v3994
    %4006 = vmatprep.subr.mxu0 %v3991
    %4007 = vmatpush1.msra.mxu0 %v3990
    %4008 = vmatprep.subr.mxu0 %v3987
    %4009 = vmatpush1.msra.mxu0 %v3986
    %4010 = vmatprep.subr.mxu0 %v3983
    %4011 = vmatpush1.msra.mxu0 %v3982
    %4012 = vmatprep.subr.mxu0 %v3979
    %4013 = vmatpush1.msra.mxu0 %v3978
    %4014 = vmatprep.subr.mxu0 %v3975
    %4015 = vmatpush1.msra.mxu0 %v3974
    %4016 = vmatprep.subr.mxu0 %v3971
    %4017 = vmatpush1.msra.mxu0 %v3970
    %4018 = vmatprep.subr.mxu0 %v3967
    %4019 = vmatpush1.msra.mxu0 %v3966
    %4020 = vmatprep.subr.mxu0 %v3963
    %4021 = vmatpush1.msra.mxu0 %v3962
    %4022 = vmatprep.subr.mxu0 %v3959
    %4023 = vmatpush1.msra.mxu0 %v3958
    %4024 = vmatprep.subr.mxu0 %v3955
    %4025 = vmatpush1.msra.mxu0 %v3954
    %4026 = vmatprep.subr.mxu0 %v3951
    %4027 = vmatpush1.msra.mxu0 %v3950
    %4028 = vmatprep.subr.mxu0 %v3947
    %4029 = vmatpush1.msra.mxu0 %v3946
    %4030 = vmatprep.subr.mxu0 %v3943
    %4031 = vmatpush1.msra.mxu0 %v3942
    %4032 = vmatprep.subr.mxu0 %v3939
    %4033 = vmatpush1.msra.mxu0 %v3938
    %4034 = vmatprep.subr.mxu0 0.0
    %4035 = vmatpush2.msra.mxu0 0.0
    %4036 = vmatprep.subr.mxu0 0.0
    %4037 = vmatpush2.msra.mxu0 0.0
    %4038 = vmatprep.subr.mxu0 0.0
    %4039 = vmatpush2.msra.mxu0 0.0
    %4040 = vmatprep.subr.mxu0 0.0
    %4041 = vmatpush2.msra.mxu0 0.0
    %4042 = vmatprep.subr.mxu0 0.0
    %4043 = vmatpush2.msra.mxu0 0.0
    %4044 = vmatprep.subr.mxu0 0.0
    %4045 = vmatpush2.msra.mxu0 0.0
    %4046 = vmatprep.subr.mxu0 0.0
    %4047 = vmatpush2.msra.mxu0 0.0
    %4048 = vmatprep.subr.mxu0 0.0
    %4049 = vmatpush2.msra.mxu0 0.0
    %4050 = vmatprep.subr.mxu0 0.0
    %4051 = vmatpush2.msra.mxu0 0.0
    %4052 = vmatprep.subr.mxu0 0.0
    %4053 = vmatpush2.msra.mxu0 0.0
    %4054 = vmatprep.subr.mxu0 0.0
    %4055 = vmatpush2.msra.mxu0 0.0
    %4056 = vmatprep.subr.mxu0 0.0
    %4057 = vmatpush2.msra.mxu0 0.0
    %4058 = vmatprep.subr.mxu0 0.0
    %4059 = vmatpush2.msra.mxu0 0.0
    %4060 = vmatprep.subr.mxu0 0.0
    %4061 = vmatpush2.msra.mxu0 0.0
    %4062 = vmatprep.subr.mxu0 0.0
    %4063 = vmatpush2.msra.mxu0 0.0
    %4064 = vmatprep.subr.mxu0 0.0
    %4065 = vmatpush2.msra.mxu0 0.0
    %4066 = vmatprep.mubr.f32.mxu0 0.0
    %4067 = vmatmul.mubr.f32.gmra.mxu0 %v3715
    %v4068 = vpop.f32.mrf.mxu0
    %v4069 = vadd.f32 0.0, %v4068
    %v4070 = vpop.f32.mrf.mxu0
    %v4071 = vadd.f32 0.0, %v4070
    %4072 = vdwg.mxu0
    %4073 = vmatprep.subr.mxu0 %v4001
    %4074 = vmatpush1.msra.mxu0 %v4000
    %4075 = vmatprep.subr.mxu0 %v3997
    %4076 = vmatpush1.msra.mxu0 %v3996
    %4077 = vmatprep.subr.mxu0 %v3993
    %4078 = vmatpush1.msra.mxu0 %v3992
    %4079 = vmatprep.subr.mxu0 %v3989
    %4080 = vmatpush1.msra.mxu0 %v3988
    %4081 = vmatprep.subr.mxu0 %v3985
    %4082 = vmatpush1.msra.mxu0 %v3984
    %4083 = vmatprep.subr.mxu0 %v3981
    %4084 = vmatpush1.msra.mxu0 %v3980
    %4085 = vmatprep.subr.mxu0 %v3977
    %4086 = vmatpush1.msra.mxu0 %v3976
    %4087 = vmatprep.subr.mxu0 %v3973
    %4088 = vmatpush1.msra.mxu0 %v3972
    %4089 = vmatprep.subr.mxu0 %v3969
    %4090 = vmatpush1.msra.mxu0 %v3968
    %4091 = vmatprep.subr.mxu0 %v3965
    %4092 = vmatpush1.msra.mxu0 %v3964
    %4093 = vmatprep.subr.mxu0 %v3961
    %4094 = vmatpush1.msra.mxu0 %v3960
    %4095 = vmatprep.subr.mxu0 %v3957
    %4096 = vmatpush1.msra.mxu0 %v3956
    %4097 = vmatprep.subr.mxu0 %v3953
    %4098 = vmatpush1.msra.mxu0 %v3952
    %4099 = vmatprep.subr.mxu0 %v3949
    %4100 = vmatpush1.msra.mxu0 %v3948
    %4101 = vmatprep.subr.mxu0 %v3945
    %4102 = vmatpush1.msra.mxu0 %v3944
    %4103 = vmatprep.subr.mxu0 %v3941
    %4104 = vmatpush1.msra.mxu0 %v3940
    %4105 = vmatprep.subr.mxu0 0.0
    %4106 = vmatpush2.msra.mxu0 0.0
    %4107 = vmatprep.subr.mxu0 0.0
    %4108 = vmatpush2.msra.mxu0 0.0
    %4109 = vmatprep.subr.mxu0 0.0
    %4110 = vmatpush2.msra.mxu0 0.0
    %4111 = vmatprep.subr.mxu0 0.0
    %4112 = vmatpush2.msra.mxu0 0.0
    %4113 = vmatprep.subr.mxu0 0.0
    %4114 = vmatpush2.msra.mxu0 0.0
    %4115 = vmatprep.subr.mxu0 0.0
    %4116 = vmatpush2.msra.mxu0 0.0
    %4117 = vmatprep.subr.mxu0 0.0
    %4118 = vmatpush2.msra.mxu0 0.0
    %4119 = vmatprep.subr.mxu0 0.0
    %4120 = vmatpush2.msra.mxu0 0.0
    %4121 = vmatprep.subr.mxu0 0.0
    %4122 = vmatpush2.msra.mxu0 0.0
    %4123 = vmatprep.subr.mxu0 0.0
    %4124 = vmatpush2.msra.mxu0 0.0
    %4125 = vmatprep.subr.mxu0 0.0
    %4126 = vmatpush2.msra.mxu0 0.0
    %4127 = vmatprep.subr.mxu0 0.0
    %4128 = vmatpush2.msra.mxu0 0.0
    %4129 = vmatprep.subr.mxu0 0.0
    %4130 = vmatpush2.msra.mxu0 0.0
    %4131 = vmatprep.subr.mxu0 0.0
    %4132 = vmatpush2.msra.mxu0 0.0
    %4133 = vmatprep.subr.mxu0 0.0
    %4134 = vmatpush2.msra.mxu0 0.0
    %4135 = vmatprep.subr.mxu0 0.0
    %4136 = vmatpush2.msra.mxu0 0.0
    %4137 = vmatprep.mubr.f32.mxu0 0.0
    %4138 = vmatmul.mubr.f32.gmra.mxu0 %v3715
    %v4139 = vpop.f32.mrf.mxu0
    %v4140 = vadd.f32 0.0, %v4139
    %v4141 = vpop.f32.mrf.mxu0
    %v4142 = vadd.f32 0.0, %v4141
    %4143 = vdwg.mxu0
    %v4144 = vadd.f32 %v3934, %v4069
    %v4145 = vadd.f32 %v3935, %v4071
    %v4146 = vadd.f32 %v3936, %v4140
    %v4147 = vadd.f32 %v3937, %v4142
    %v4148 = vxor.u32 %v3930, 2147483648
    %v4149 = vmul.f32 %v4148, 1.442695
    %v4150 = vpow.pop %v4149
    %v4151 = vadd.f32 %v4150, 1.0
    %v4152 = vrcp.pop %v4151
    %v4153 = vmul.f32 1.0, %v4152
    %v4154 = vxor.u32 %v3931, 2147483648
    %v4155 = vmul.f32 %v4154, 1.442695
    %v4156 = vpow.pop %v4155
    %v4157 = vadd.f32 %v4156, 1.0
    %v4158 = vrcp.pop %v4157
    %v4159 = vmul.f32 1.0, %v4158
    %v4160 = vtanh.pop %v3932
    %v4161 = vxor.u32 %v3933, 2147483648
    %v4162 = vmul.f32 %v4161, 1.442695
    %v4163 = vpow.pop %v4162
    %v4164 = vadd.f32 %v4163, 1.0
    %v4165 = vrcp.pop %v4164
    %v4166 = vmul.f32 1.0, %v4165
    %v4167 = vmul.f32 %v4159, %v3689
    %v4168 = vmul.f32 %v4153, %v4160
    %v4169 = vadd.f32 %v4167, %v4168
    %v4170 = vtanh.pop %v4169
    %v4171 = vmul.f32 %v4166, %v4170
    %v4172 = vxor.u32 %v4144, 2147483648
    %v4173 = vmul.f32 %v4172, 1.442695
    %v4174 = vpow.pop %v4173
    %v4175 = vadd.f32 %v4174, 1.0
    %v4176 = vrcp.pop %v4175
    %v4177 = vmul.f32 1.0, %v4176
    %v4178 = vxor.u32 %v4145, 2147483648
    %v4179 = vmul.f32 %v4178, 1.442695
    %v4180 = vpow.pop %v4179
    %v4181 = vadd.f32 %v4180, 1.0
    %v4182 = vrcp.pop %v4181
    %v4183 = vmul.f32 1.0, %v4182
    %v4184 = vtanh.pop %v4146
    %v4185 = vxor.u32 %v4147, 2147483648
    %v4186 = vmul.f32 %v4185, 1.442695
    %v4187 = vpow.pop %v4186
    %v4188 = vadd.f32 %v4187, 1.0
    %v4189 = vrcp.pop %v4188
    %v4190 = vmul.f32 1.0, %v4189
    %v4191 = vmul.f32 %v4183, %v3713
    %v4192 = vmul.f32 %v4177, %v4184
    %v4193 = vadd.f32 %v4191, %v4192
    %v4194 = vtanh.pop %v4193
    %v4195 = vmul.f32 %v4190, %v4194
    %s4196 = scalar_lea.vmem [#allocation3], 48
    %4197 = vst [vmem:[%s4196] sm:$0xff] %v4171
    %s4198 = scalar_lea.vmem [#allocation4], 8
    %4199 = vst [vmem:[%s4198] sm:$0xff] %v4195
    %v4200 = vld [vmem:[%s1036] sm:$0xff]
    %v4201 = vld [vmem:[%s1036 + $0x8] sm:$0xff]
    %v4202 = vld [vmem:[%s1036 + $0x10] sm:$0xff]
    %v4203 = vld [vmem:[%s1036 + $0x18] sm:$0xff]
    %v4204 = vld [vmem:[#allocation11] sm:$0xff]
    %v4205 = vld [vmem:[#allocation11 + $0x8] sm:$0xff]
    %v4206 = vld [vmem:[#allocation11 + $0x10] sm:$0xff]
    %v4207 = vld [vmem:[#allocation11 + $0x18] sm:$0xff]
    %v4208 = vld [vmem:[#allocation11 + $0x20] sm:$0xff]
    %v4209 = vld [vmem:[#allocation11 + $0x28] sm:$0xff]
    %v4210 = vld [vmem:[#allocation11 + $0x30] sm:$0xff]
    %v4211 = vld [vmem:[#allocation11 + $0x38] sm:$0xff]
    %v4212 = vld [vmem:[#allocation11 + $0x40] sm:$0xff]
    %v4213 = vld [vmem:[#allocation11 + $0x48] sm:$0xff]
    %v4214 = vld [vmem:[#allocation11 + $0x50] sm:$0xff]
    %v4215 = vld [vmem:[#allocation11 + $0x58] sm:$0xff]
    %v4216 = vld [vmem:[#allocation11 + $0x60] sm:$0xff]
    %v4217 = vld [vmem:[#allocation11 + $0x68] sm:$0xff]
    %v4218 = vld [vmem:[#allocation11 + $0x70] sm:$0xff]
    %v4219 = vld [vmem:[#allocation11 + $0x78] sm:$0xff]
    %v4220 = vld [vmem:[#allocation11 + $0x80] sm:$0xff]
    %v4221 = vld [vmem:[#allocation11 + $0x88] sm:$0xff]
    %v4222 = vld [vmem:[#allocation11 + $0x90] sm:$0xff]
    %v4223 = vld [vmem:[#allocation11 + $0x98] sm:$0xff]
    %v4224 = vld [vmem:[#allocation11 + $0xa0] sm:$0xff]
    %v4225 = vld [vmem:[#allocation11 + $0xa8] sm:$0xff]
    %v4226 = vld [vmem:[#allocation11 + $0xb0] sm:$0xff]
    %v4227 = vld [vmem:[#allocation11 + $0xb8] sm:$0xff]
    %v4228 = vld [vmem:[#allocation11 + $0xc0] sm:$0xff]
    %v4229 = vld [vmem:[#allocation11 + $0xc8] sm:$0xff]
    %v4230 = vld [vmem:[#allocation11 + $0xd0] sm:$0xff]
    %v4231 = vld [vmem:[#allocation11 + $0xd8] sm:$0xff]
    %v4232 = vld [vmem:[#allocation11 + $0xe0] sm:$0xff]
    %v4233 = vld [vmem:[#allocation11 + $0xe8] sm:$0xff]
    %v4234 = vld [vmem:[#allocation11 + $0xf0] sm:$0xff]
    %v4235 = vld [vmem:[#allocation11 + $0xf8] sm:$0xff]
    %v4236 = vld [vmem:[#allocation11 + $0x100] sm:$0xff]
    %v4237 = vld [vmem:[#allocation11 + $0x108] sm:$0xff]
    %v4238 = vld [vmem:[#allocation11 + $0x110] sm:$0xff]
    %v4239 = vld [vmem:[#allocation11 + $0x118] sm:$0xff]
    %v4240 = vld [vmem:[#allocation11 + $0x120] sm:$0xff]
    %v4241 = vld [vmem:[#allocation11 + $0x128] sm:$0xff]
    %v4242 = vld [vmem:[#allocation11 + $0x130] sm:$0xff]
    %v4243 = vld [vmem:[#allocation11 + $0x138] sm:$0xff]
    %v4244 = vld [vmem:[#allocation11 + $0x140] sm:$0xff]
    %v4245 = vld [vmem:[#allocation11 + $0x148] sm:$0xff]
    %v4246 = vld [vmem:[#allocation11 + $0x150] sm:$0xff]
    %v4247 = vld [vmem:[#allocation11 + $0x158] sm:$0xff]
    %v4248 = vld [vmem:[#allocation11 + $0x160] sm:$0xff]
    %v4249 = vld [vmem:[#allocation11 + $0x168] sm:$0xff]
    %v4250 = vld [vmem:[#allocation11 + $0x170] sm:$0xff]
    %v4251 = vld [vmem:[#allocation11 + $0x178] sm:$0xff]
    %v4252 = vld [vmem:[#allocation11 + $0x180] sm:$0xff]
    %v4253 = vld [vmem:[#allocation11 + $0x188] sm:$0xff]
    %v4254 = vld [vmem:[#allocation11 + $0x190] sm:$0xff]
    %v4255 = vld [vmem:[#allocation11 + $0x198] sm:$0xff]
    %v4256 = vld [vmem:[#allocation11 + $0x1a0] sm:$0xff]
    %v4257 = vld [vmem:[#allocation11 + $0x1a8] sm:$0xff]
    %v4258 = vld [vmem:[#allocation11 + $0x1b0] sm:$0xff]
    %v4259 = vld [vmem:[#allocation11 + $0x1b8] sm:$0xff]
    %v4260 = vld [vmem:[#allocation11 + $0x1c0] sm:$0xff]
    %v4261 = vld [vmem:[#allocation11 + $0x1c8] sm:$0xff]
    %v4262 = vld [vmem:[#allocation11 + $0x1d0] sm:$0xff]
    %v4263 = vld [vmem:[#allocation11 + $0x1d8] sm:$0xff]
    %v4264 = vld [vmem:[#allocation11 + $0x1e0] sm:$0xff]
    %v4265 = vld [vmem:[#allocation11 + $0x1e8] sm:$0xff]
    %v4266 = vld [vmem:[#allocation11 + $0x1f0] sm:$0xff]
    %v4267 = vld [vmem:[#allocation11 + $0x1f8] sm:$0xff]
    %4268 = vmatprep.subr.mxu0 %v4265
    %4269 = vmatpush1.msra.mxu0 %v4264
    %4270 = vmatprep.subr.mxu0 %v4261
    %4271 = vmatpush1.msra.mxu0 %v4260
    %4272 = vmatprep.subr.mxu0 %v4257
    %4273 = vmatpush1.msra.mxu0 %v4256
    %4274 = vmatprep.subr.mxu0 %v4253
    %4275 = vmatpush1.msra.mxu0 %v4252
    %4276 = vmatprep.subr.mxu0 %v4249
    %4277 = vmatpush1.msra.mxu0 %v4248
    %4278 = vmatprep.subr.mxu0 %v4245
    %4279 = vmatpush1.msra.mxu0 %v4244
    %4280 = vmatprep.subr.mxu0 %v4241
    %4281 = vmatpush1.msra.mxu0 %v4240
    %4282 = vmatprep.subr.mxu0 %v4237
    %4283 = vmatpush1.msra.mxu0 %v4236
    %4284 = vmatprep.subr.mxu0 %v4233
    %4285 = vmatpush1.msra.mxu0 %v4232
    %4286 = vmatprep.subr.mxu0 %v4229
    %4287 = vmatpush1.msra.mxu0 %v4228
    %4288 = vmatprep.subr.mxu0 %v4225
    %4289 = vmatpush1.msra.mxu0 %v4224
    %4290 = vmatprep.subr.mxu0 %v4221
    %4291 = vmatpush1.msra.mxu0 %v4220
    %4292 = vmatprep.subr.mxu0 %v4217
    %4293 = vmatpush1.msra.mxu0 %v4216
    %4294 = vmatprep.subr.mxu0 %v4213
    %4295 = vmatpush1.msra.mxu0 %v4212
    %4296 = vmatprep.subr.mxu0 %v4209
    %4297 = vmatpush1.msra.mxu0 %v4208
    %4298 = vmatprep.subr.mxu0 %v4205
    %4299 = vmatpush1.msra.mxu0 %v4204
    %4300 = vmatprep.subr.mxu0 0.0
    %4301 = vmatpush2.msra.mxu0 0.0
    %4302 = vmatprep.subr.mxu0 0.0
    %4303 = vmatpush2.msra.mxu0 0.0
    %4304 = vmatprep.subr.mxu0 0.0
    %4305 = vmatpush2.msra.mxu0 0.0
    %4306 = vmatprep.subr.mxu0 0.0
    %4307 = vmatpush2.msra.mxu0 0.0
    %4308 = vmatprep.subr.mxu0 0.0
    %4309 = vmatpush2.msra.mxu0 0.0
    %4310 = vmatprep.subr.mxu0 0.0
    %4311 = vmatpush2.msra.mxu0 0.0
    %4312 = vmatprep.subr.mxu0 0.0
    %4313 = vmatpush2.msra.mxu0 0.0
    %4314 = vmatprep.subr.mxu0 0.0
    %4315 = vmatpush2.msra.mxu0 0.0
    %4316 = vmatprep.subr.mxu0 0.0
    %4317 = vmatpush2.msra.mxu0 0.0
    %4318 = vmatprep.subr.mxu0 0.0
    %4319 = vmatpush2.msra.mxu0 0.0
    %4320 = vmatprep.subr.mxu0 0.0
    %4321 = vmatpush2.msra.mxu0 0.0
    %4322 = vmatprep.subr.mxu0 0.0
    %4323 = vmatpush2.msra.mxu0 0.0
    %4324 = vmatprep.subr.mxu0 0.0
    %4325 = vmatpush2.msra.mxu0 0.0
    %4326 = vmatprep.subr.mxu0 0.0
    %4327 = vmatpush2.msra.mxu0 0.0
    %4328 = vmatprep.subr.mxu0 0.0
    %4329 = vmatpush2.msra.mxu0 0.0
    %4330 = vmatprep.subr.mxu0 0.0
    %4331 = vmatpush2.msra.mxu0 0.0
    %4332 = vmatprep.mubr.f32.mxu0 0.0
    %4333 = vmatmul.mubr.f32.gmra.mxu0 %v4171
    %v4334 = vpop.f32.mrf.mxu0
    %v4335 = vadd.f32 0.0, %v4334
    %v4336 = vpop.f32.mrf.mxu0
    %v4337 = vadd.f32 0.0, %v4336
    %4338 = vdwg.mxu0
    %4339 = vmatprep.subr.mxu0 %v4267
    %4340 = vmatpush1.msra.mxu0 %v4266
    %4341 = vmatprep.subr.mxu0 %v4263
    %4342 = vmatpush1.msra.mxu0 %v4262
    %4343 = vmatprep.subr.mxu0 %v4259
    %4344 = vmatpush1.msra.mxu0 %v4258
    %4345 = vmatprep.subr.mxu0 %v4255
    %4346 = vmatpush1.msra.mxu0 %v4254
    %4347 = vmatprep.subr.mxu0 %v4251
    %4348 = vmatpush1.msra.mxu0 %v4250
    %4349 = vmatprep.subr.mxu0 %v4247
    %4350 = vmatpush1.msra.mxu0 %v4246
    %4351 = vmatprep.subr.mxu0 %v4243
    %4352 = vmatpush1.msra.mxu0 %v4242
    %4353 = vmatprep.subr.mxu0 %v4239
    %4354 = vmatpush1.msra.mxu0 %v4238
    %4355 = vmatprep.subr.mxu0 %v4235
    %4356 = vmatpush1.msra.mxu0 %v4234
    %4357 = vmatprep.subr.mxu0 %v4231
    %4358 = vmatpush1.msra.mxu0 %v4230
    %4359 = vmatprep.subr.mxu0 %v4227
    %4360 = vmatpush1.msra.mxu0 %v4226
    %4361 = vmatprep.subr.mxu0 %v4223
    %4362 = vmatpush1.msra.mxu0 %v4222
    %4363 = vmatprep.subr.mxu0 %v4219
    %4364 = vmatpush1.msra.mxu0 %v4218
    %4365 = vmatprep.subr.mxu0 %v4215
    %4366 = vmatpush1.msra.mxu0 %v4214
    %4367 = vmatprep.subr.mxu0 %v4211
    %4368 = vmatpush1.msra.mxu0 %v4210
    %4369 = vmatprep.subr.mxu0 %v4207
    %4370 = vmatpush1.msra.mxu0 %v4206
    %4371 = vmatprep.subr.mxu0 0.0
    %4372 = vmatpush2.msra.mxu0 0.0
    %4373 = vmatprep.subr.mxu0 0.0
    %4374 = vmatpush2.msra.mxu0 0.0
    %4375 = vmatprep.subr.mxu0 0.0
    %4376 = vmatpush2.msra.mxu0 0.0
    %4377 = vmatprep.subr.mxu0 0.0
    %4378 = vmatpush2.msra.mxu0 0.0
    %4379 = vmatprep.subr.mxu0 0.0
    %4380 = vmatpush2.msra.mxu0 0.0
    %4381 = vmatprep.subr.mxu0 0.0
    %4382 = vmatpush2.msra.mxu0 0.0
    %4383 = vmatprep.subr.mxu0 0.0
    %4384 = vmatpush2.msra.mxu0 0.0
    %4385 = vmatprep.subr.mxu0 0.0
    %4386 = vmatpush2.msra.mxu0 0.0
    %4387 = vmatprep.subr.mxu0 0.0
    %4388 = vmatpush2.msra.mxu0 0.0
    %4389 = vmatprep.subr.mxu0 0.0
    %4390 = vmatpush2.msra.mxu0 0.0
    %4391 = vmatprep.subr.mxu0 0.0
    %4392 = vmatpush2.msra.mxu0 0.0
    %4393 = vmatprep.subr.mxu0 0.0
    %4394 = vmatpush2.msra.mxu0 0.0
    %4395 = vmatprep.subr.mxu0 0.0
    %4396 = vmatpush2.msra.mxu0 0.0
    %4397 = vmatprep.subr.mxu0 0.0
    %4398 = vmatpush2.msra.mxu0 0.0
    %4399 = vmatprep.subr.mxu0 0.0
    %4400 = vmatpush2.msra.mxu0 0.0
    %4401 = vmatprep.subr.mxu0 0.0
    %4402 = vmatpush2.msra.mxu0 0.0
    %4403 = vmatprep.mubr.f32.mxu0 0.0
    %4404 = vmatmul.mubr.f32.gmra.mxu0 %v4171
    %v4405 = vpop.f32.mrf.mxu0
    %v4406 = vadd.f32 0.0, %v4405
    %v4407 = vpop.f32.mrf.mxu0
    %v4408 = vadd.f32 0.0, %v4407
    %4409 = vdwg.mxu0
    %v4410 = vadd.f32 %v4200, %v4335
    %v4411 = vadd.f32 %v4201, %v4337
    %v4412 = vadd.f32 %v4202, %v4406
    %v4413 = vadd.f32 %v4203, %v4408
    %v4414 = vld [vmem:[%s819 + $0x20] sm:$0xff]
    %v4415 = vld [vmem:[%s819 + $0x28] sm:$0xff]
    %v4416 = vld [vmem:[%s819 + $0x30] sm:$0xff]
    %v4417 = vld [vmem:[%s819 + $0x38] sm:$0xff]
    %v4418 = vld [vmem:[#allocation13] sm:$0xff]
    %v4419 = vld [vmem:[#allocation13 + $0x8] sm:$0xff]
    %v4420 = vld [vmem:[#allocation13 + $0x10] sm:$0xff]
    %v4421 = vld [vmem:[#allocation13 + $0x18] sm:$0xff]
    %v4422 = vld [vmem:[#allocation13 + $0x20] sm:$0xff]
    %v4423 = vld [vmem:[#allocation13 + $0x28] sm:$0xff]
    %v4424 = vld [vmem:[#allocation13 + $0x30] sm:$0xff]
    %v4425 = vld [vmem:[#allocation13 + $0x38] sm:$0xff]
    %v4426 = vld [vmem:[#allocation13 + $0x40] sm:$0xff]
    %v4427 = vld [vmem:[#allocation13 + $0x48] sm:$0xff]
    %v4428 = vld [vmem:[#allocation13 + $0x50] sm:$0xff]
    %v4429 = vld [vmem:[#allocation13 + $0x58] sm:$0xff]
    %v4430 = vld [vmem:[#allocation13 + $0x60] sm:$0xff]
    %v4431 = vld [vmem:[#allocation13 + $0x68] sm:$0xff]
    %v4432 = vld [vmem:[#allocation13 + $0x70] sm:$0xff]
    %v4433 = vld [vmem:[#allocation13 + $0x78] sm:$0xff]
    %v4434 = vld [vmem:[#allocation13 + $0x80] sm:$0xff]
    %v4435 = vld [vmem:[#allocation13 + $0x88] sm:$0xff]
    %v4436 = vld [vmem:[#allocation13 + $0x90] sm:$0xff]
    %v4437 = vld [vmem:[#allocation13 + $0x98] sm:$0xff]
    %v4438 = vld [vmem:[#allocation13 + $0xa0] sm:$0xff]
    %v4439 = vld [vmem:[#allocation13 + $0xa8] sm:$0xff]
    %v4440 = vld [vmem:[#allocation13 + $0xb0] sm:$0xff]
    %v4441 = vld [vmem:[#allocation13 + $0xb8] sm:$0xff]
    %v4442 = vld [vmem:[#allocation13 + $0xc0] sm:$0xff]
    %v4443 = vld [vmem:[#allocation13 + $0xc8] sm:$0xff]
    %v4444 = vld [vmem:[#allocation13 + $0xd0] sm:$0xff]
    %v4445 = vld [vmem:[#allocation13 + $0xd8] sm:$0xff]
    %v4446 = vld [vmem:[#allocation13 + $0xe0] sm:$0xff]
    %v4447 = vld [vmem:[#allocation13 + $0xe8] sm:$0xff]
    %v4448 = vld [vmem:[#allocation13 + $0xf0] sm:$0xff]
    %v4449 = vld [vmem:[#allocation13 + $0xf8] sm:$0xff]
    %v4450 = vld [vmem:[#allocation13 + $0x100] sm:$0xff]
    %v4451 = vld [vmem:[#allocation13 + $0x108] sm:$0xff]
    %v4452 = vld [vmem:[#allocation13 + $0x110] sm:$0xff]
    %v4453 = vld [vmem:[#allocation13 + $0x118] sm:$0xff]
    %v4454 = vld [vmem:[#allocation13 + $0x120] sm:$0xff]
    %v4455 = vld [vmem:[#allocation13 + $0x128] sm:$0xff]
    %v4456 = vld [vmem:[#allocation13 + $0x130] sm:$0xff]
    %v4457 = vld [vmem:[#allocation13 + $0x138] sm:$0xff]
    %v4458 = vld [vmem:[#allocation13 + $0x140] sm:$0xff]
    %v4459 = vld [vmem:[#allocation13 + $0x148] sm:$0xff]
    %v4460 = vld [vmem:[#allocation13 + $0x150] sm:$0xff]
    %v4461 = vld [vmem:[#allocation13 + $0x158] sm:$0xff]
    %v4462 = vld [vmem:[#allocation13 + $0x160] sm:$0xff]
    %v4463 = vld [vmem:[#allocation13 + $0x168] sm:$0xff]
    %v4464 = vld [vmem:[#allocation13 + $0x170] sm:$0xff]
    %v4465 = vld [vmem:[#allocation13 + $0x178] sm:$0xff]
    %v4466 = vld [vmem:[#allocation13 + $0x180] sm:$0xff]
    %v4467 = vld [vmem:[#allocation13 + $0x188] sm:$0xff]
    %v4468 = vld [vmem:[#allocation13 + $0x190] sm:$0xff]
    %v4469 = vld [vmem:[#allocation13 + $0x198] sm:$0xff]
    %v4470 = vld [vmem:[#allocation13 + $0x1a0] sm:$0xff]
    %v4471 = vld [vmem:[#allocation13 + $0x1a8] sm:$0xff]
    %v4472 = vld [vmem:[#allocation13 + $0x1b0] sm:$0xff]
    %v4473 = vld [vmem:[#allocation13 + $0x1b8] sm:$0xff]
    %v4474 = vld [vmem:[#allocation13 + $0x1c0] sm:$0xff]
    %v4475 = vld [vmem:[#allocation13 + $0x1c8] sm:$0xff]
    %v4476 = vld [vmem:[#allocation13 + $0x1d0] sm:$0xff]
    %v4477 = vld [vmem:[#allocation13 + $0x1d8] sm:$0xff]
    %v4478 = vld [vmem:[#allocation13 + $0x1e0] sm:$0xff]
    %v4479 = vld [vmem:[#allocation13 + $0x1e8] sm:$0xff]
    %v4480 = vld [vmem:[#allocation13 + $0x1f0] sm:$0xff]
    %v4481 = vld [vmem:[#allocation13 + $0x1f8] sm:$0xff]
    %4482 = vmatprep.subr.mxu0 %v4479
    %4483 = vmatpush1.msra.mxu0 %v4478
    %4484 = vmatprep.subr.mxu0 %v4475
    %4485 = vmatpush1.msra.mxu0 %v4474
    %4486 = vmatprep.subr.mxu0 %v4471
    %4487 = vmatpush1.msra.mxu0 %v4470
    %4488 = vmatprep.subr.mxu0 %v4467
    %4489 = vmatpush1.msra.mxu0 %v4466
    %4490 = vmatprep.subr.mxu0 %v4463
    %4491 = vmatpush1.msra.mxu0 %v4462
    %4492 = vmatprep.subr.mxu0 %v4459
    %4493 = vmatpush1.msra.mxu0 %v4458
    %4494 = vmatprep.subr.mxu0 %v4455
    %4495 = vmatpush1.msra.mxu0 %v4454
    %4496 = vmatprep.subr.mxu0 %v4451
    %4497 = vmatpush1.msra.mxu0 %v4450
    %4498 = vmatprep.subr.mxu0 %v4447
    %4499 = vmatpush1.msra.mxu0 %v4446
    %4500 = vmatprep.subr.mxu0 %v4443
    %4501 = vmatpush1.msra.mxu0 %v4442
    %4502 = vmatprep.subr.mxu0 %v4439
    %4503 = vmatpush1.msra.mxu0 %v4438
    %4504 = vmatprep.subr.mxu0 %v4435
    %4505 = vmatpush1.msra.mxu0 %v4434
    %4506 = vmatprep.subr.mxu0 %v4431
    %4507 = vmatpush1.msra.mxu0 %v4430
    %4508 = vmatprep.subr.mxu0 %v4427
    %4509 = vmatpush1.msra.mxu0 %v4426
    %4510 = vmatprep.subr.mxu0 %v4423
    %4511 = vmatpush1.msra.mxu0 %v4422
    %4512 = vmatprep.subr.mxu0 %v4419
    %4513 = vmatpush1.msra.mxu0 %v4418
    %4514 = vmatprep.subr.mxu0 0.0
    %4515 = vmatpush2.msra.mxu0 0.0
    %4516 = vmatprep.subr.mxu0 0.0
    %4517 = vmatpush2.msra.mxu0 0.0
    %4518 = vmatprep.subr.mxu0 0.0
    %4519 = vmatpush2.msra.mxu0 0.0
    %4520 = vmatprep.subr.mxu0 0.0
    %4521 = vmatpush2.msra.mxu0 0.0
    %4522 = vmatprep.subr.mxu0 0.0
    %4523 = vmatpush2.msra.mxu0 0.0
    %4524 = vmatprep.subr.mxu0 0.0
    %4525 = vmatpush2.msra.mxu0 0.0
    %4526 = vmatprep.subr.mxu0 0.0
    %4527 = vmatpush2.msra.mxu0 0.0
    %4528 = vmatprep.subr.mxu0 0.0
    %4529 = vmatpush2.msra.mxu0 0.0
    %4530 = vmatprep.subr.mxu0 0.0
    %4531 = vmatpush2.msra.mxu0 0.0
    %4532 = vmatprep.subr.mxu0 0.0
    %4533 = vmatpush2.msra.mxu0 0.0
    %4534 = vmatprep.subr.mxu0 0.0
    %4535 = vmatpush2.msra.mxu0 0.0
    %4536 = vmatprep.subr.mxu0 0.0
    %4537 = vmatpush2.msra.mxu0 0.0
    %4538 = vmatprep.subr.mxu0 0.0
    %4539 = vmatpush2.msra.mxu0 0.0
    %4540 = vmatprep.subr.mxu0 0.0
    %4541 = vmatpush2.msra.mxu0 0.0
    %4542 = vmatprep.subr.mxu0 0.0
    %4543 = vmatpush2.msra.mxu0 0.0
    %4544 = vmatprep.subr.mxu0 0.0
    %4545 = vmatpush2.msra.mxu0 0.0
    %4546 = vmatprep.mubr.f32.mxu0 0.0
    %4547 = vmatmul.mubr.f32.gmra.mxu0 %v4195
    %v4548 = vpop.f32.mrf.mxu0
    %v4549 = vadd.f32 0.0, %v4548
    %v4550 = vpop.f32.mrf.mxu0
    %v4551 = vadd.f32 0.0, %v4550
    %4552 = vdwg.mxu0
    %4553 = vmatprep.subr.mxu0 %v4481
    %4554 = vmatpush1.msra.mxu0 %v4480
    %4555 = vmatprep.subr.mxu0 %v4477
    %4556 = vmatpush1.msra.mxu0 %v4476
    %4557 = vmatprep.subr.mxu0 %v4473
    %4558 = vmatpush1.msra.mxu0 %v4472
    %4559 = vmatprep.subr.mxu0 %v4469
    %4560 = vmatpush1.msra.mxu0 %v4468
    %4561 = vmatprep.subr.mxu0 %v4465
    %4562 = vmatpush1.msra.mxu0 %v4464
    %4563 = vmatprep.subr.mxu0 %v4461
    %4564 = vmatpush1.msra.mxu0 %v4460
    %4565 = vmatprep.subr.mxu0 %v4457
    %4566 = vmatpush1.msra.mxu0 %v4456
    %4567 = vmatprep.subr.mxu0 %v4453
    %4568 = vmatpush1.msra.mxu0 %v4452
    %4569 = vmatprep.subr.mxu0 %v4449
    %4570 = vmatpush1.msra.mxu0 %v4448
    %4571 = vmatprep.subr.mxu0 %v4445
    %4572 = vmatpush1.msra.mxu0 %v4444
    %4573 = vmatprep.subr.mxu0 %v4441
    %4574 = vmatpush1.msra.mxu0 %v4440
    %4575 = vmatprep.subr.mxu0 %v4437
    %4576 = vmatpush1.msra.mxu0 %v4436
    %4577 = vmatprep.subr.mxu0 %v4433
    %4578 = vmatpush1.msra.mxu0 %v4432
    %4579 = vmatprep.subr.mxu0 %v4429
    %4580 = vmatpush1.msra.mxu0 %v4428
    %4581 = vmatprep.subr.mxu0 %v4425
    %4582 = vmatpush1.msra.mxu0 %v4424
    %4583 = vmatprep.subr.mxu0 %v4421
    %4584 = vmatpush1.msra.mxu0 %v4420
    %4585 = vmatprep.subr.mxu0 0.0
    %4586 = vmatpush2.msra.mxu0 0.0
    %4587 = vmatprep.subr.mxu0 0.0
    %4588 = vmatpush2.msra.mxu0 0.0
    %4589 = vmatprep.subr.mxu0 0.0
    %4590 = vmatpush2.msra.mxu0 0.0
    %4591 = vmatprep.subr.mxu0 0.0
    %4592 = vmatpush2.msra.mxu0 0.0
    %4593 = vmatprep.subr.mxu0 0.0
    %4594 = vmatpush2.msra.mxu0 0.0
    %4595 = vmatprep.subr.mxu0 0.0
    %4596 = vmatpush2.msra.mxu0 0.0
    %4597 = vmatprep.subr.mxu0 0.0
    %4598 = vmatpush2.msra.mxu0 0.0
    %4599 = vmatprep.subr.mxu0 0.0
    %4600 = vmatpush2.msra.mxu0 0.0
    %4601 = vmatprep.subr.mxu0 0.0
    %4602 = vmatpush2.msra.mxu0 0.0
    %4603 = vmatprep.subr.mxu0 0.0
    %4604 = vmatpush2.msra.mxu0 0.0
    %4605 = vmatprep.subr.mxu0 0.0
    %4606 = vmatpush2.msra.mxu0 0.0
    %4607 = vmatprep.subr.mxu0 0.0
    %4608 = vmatpush2.msra.mxu0 0.0
    %4609 = vmatprep.subr.mxu0 0.0
    %4610 = vmatpush2.msra.mxu0 0.0
    %4611 = vmatprep.subr.mxu0 0.0
    %4612 = vmatpush2.msra.mxu0 0.0
    %4613 = vmatprep.subr.mxu0 0.0
    %4614 = vmatpush2.msra.mxu0 0.0
    %4615 = vmatprep.subr.mxu0 0.0
    %4616 = vmatpush2.msra.mxu0 0.0
    %4617 = vmatprep.mubr.f32.mxu0 0.0
    %4618 = vmatmul.mubr.f32.gmra.mxu0 %v4195
    %v4619 = vpop.f32.mrf.mxu0
    %v4620 = vadd.f32 0.0, %v4619
    %v4621 = vpop.f32.mrf.mxu0
    %v4622 = vadd.f32 0.0, %v4621
    %4623 = vdwg.mxu0
    %v4624 = vadd.f32 %v4414, %v4549
    %v4625 = vadd.f32 %v4415, %v4551
    %v4626 = vadd.f32 %v4416, %v4620
    %v4627 = vadd.f32 %v4417, %v4622
    %v4628 = vxor.u32 %v4410, 2147483648
    %v4629 = vmul.f32 %v4628, 1.442695
    %v4630 = vpow.pop %v4629
    %v4631 = vadd.f32 %v4630, 1.0
    %v4632 = vrcp.pop %v4631
    %v4633 = vmul.f32 1.0, %v4632
    %v4634 = vxor.u32 %v4411, 2147483648
    %v4635 = vmul.f32 %v4634, 1.442695
    %v4636 = vpow.pop %v4635
    %v4637 = vadd.f32 %v4636, 1.0
    %v4638 = vrcp.pop %v4637
    %v4639 = vmul.f32 1.0, %v4638
    %v4640 = vtanh.pop %v4412
    %v4641 = vxor.u32 %v4413, 2147483648
    %v4642 = vmul.f32 %v4641, 1.442695
    %v4643 = vpow.pop %v4642
    %v4644 = vadd.f32 %v4643, 1.0
    %v4645 = vrcp.pop %v4644
    %v4646 = vmul.f32 1.0, %v4645
    %v4647 = vmul.f32 %v4639, %v4169
    %v4648 = vmul.f32 %v4633, %v4640
    %v4649 = vadd.f32 %v4647, %v4648
    %v4650 = vtanh.pop %v4649
    %v4651 = vmul.f32 %v4646, %v4650
    %v4652 = vxor.u32 %v4624, 2147483648
    %v4653 = vmul.f32 %v4652, 1.442695
    %v4654 = vpow.pop %v4653
    %v4655 = vadd.f32 %v4654, 1.0
    %v4656 = vrcp.pop %v4655
    %v4657 = vmul.f32 1.0, %v4656
    %v4658 = vxor.u32 %v4625, 2147483648
    %v4659 = vmul.f32 %v4658, 1.442695
    %v4660 = vpow.pop %v4659
    %v4661 = vadd.f32 %v4660, 1.0
    %v4662 = vrcp.pop %v4661
    %v4663 = vmul.f32 1.0, %v4662
    %v4664 = vtanh.pop %v4626
    %v4665 = vxor.u32 %v4627, 2147483648
    %v4666 = vmul.f32 %v4665, 1.442695
    %v4667 = vpow.pop %v4666
    %v4668 = vadd.f32 %v4667, 1.0
    %v4669 = vrcp.pop %v4668
    %v4670 = vmul.f32 1.0, %v4669
    %v4671 = vmul.f32 %v4663, %v4193
    %v4672 = vmul.f32 %v4657, %v4664
    %v4673 = vadd.f32 %v4671, %v4672
    %v4674 = vtanh.pop %v4673
    %v4675 = vmul.f32 %v4670, %v4674
    %s4676 = scalar_lea.vmem [#allocation3], 56
    %4677 = vst [vmem:[%s4676] sm:$0xff] %v4651
    %4678 = vst [vmem:[#allocation4] sm:$0xff] %v4675
    %v4679 = vld [vmem:[#allocation3] sm:$0xff]
    %v4680 = vld [vmem:[#allocation3 + $0x8] sm:$0xff]
    %v4681 = vld [vmem:[#allocation3 + $0x10] sm:$0xff]
    %v4682 = vld [vmem:[#allocation3 + $0x18] sm:$0xff]
    %v4683 = vld [vmem:[#allocation3 + $0x20] sm:$0xff]
    %v4684 = vld [vmem:[#allocation3 + $0x28] sm:$0xff]
    %v4685 = vld [vmem:[#allocation3 + $0x30] sm:$0xff]
    %v4686 = vld [vmem:[#allocation3 + $0x38] sm:$0xff]
    %v4687 = vld [vmem:[#allocation14] sm:$0xff]
    %v4688 = vld [vmem:[#allocation14 + $0x8] sm:$0xff]
    %v4689 = vld [vmem:[#allocation14 + $0x10] sm:$0xff]
    %v4690 = vld [vmem:[#allocation14 + $0x18] sm:$0xff]
    %v4691 = vld [vmem:[#allocation14 + $0x20] sm:$0xff]
    %v4692 = vld [vmem:[#allocation14 + $0x28] sm:$0xff]
    %v4693 = vld [vmem:[#allocation14 + $0x30] sm:$0xff]
    %v4694 = vld [vmem:[#allocation14 + $0x38] sm:$0xff]
    %v4695 = vld [vmem:[#allocation14 + $0x40] sm:$0xff]
    %v4696 = vld [vmem:[#allocation14 + $0x48] sm:$0xff]
    %v4697 = vld [vmem:[#allocation14 + $0x50] sm:$0xff]
    %v4698 = vld [vmem:[#allocation14 + $0x58] sm:$0xff]
    %v4699 = vld [vmem:[#allocation14 + $0x60] sm:$0xff]
    %v4700 = vld [vmem:[#allocation14 + $0x68] sm:$0xff]
    %v4701 = vld [vmem:[#allocation14 + $0x70] sm:$0xff]
    %v4702 = vld [vmem:[#allocation14 + $0x78] sm:$0xff]
    %v4703 = vld [vmem:[#allocation4] sm:$0xff]
    %v4704 = vld [vmem:[#allocation4 + $0x8] sm:$0xff]
    %v4705 = vld [vmem:[#allocation4 + $0x10] sm:$0xff]
    %v4706 = vld [vmem:[#allocation4 + $0x18] sm:$0xff]
    %v4707 = vld [vmem:[#allocation4 + $0x20] sm:$0xff]
    %v4708 = vld [vmem:[#allocation4 + $0x28] sm:$0xff]
    %v4709 = vld [vmem:[#allocation4 + $0x30] sm:$0xff]
    %v4710 = vld [vmem:[#allocation4 + $0x38] sm:$0xff]
    %v4711 = vld [vmem:[#allocation16] sm:$0xff]
    %v4712 = vld [vmem:[#allocation16 + $0x8] sm:$0xff]
    %v4713 = vld [vmem:[#allocation16 + $0x10] sm:$0xff]
    %v4714 = vld [vmem:[#allocation16 + $0x18] sm:$0xff]
    %v4715 = vld [vmem:[#allocation16 + $0x20] sm:$0xff]
    %v4716 = vld [vmem:[#allocation16 + $0x28] sm:$0xff]
    %v4717 = vld [vmem:[#allocation16 + $0x30] sm:$0xff]
    %v4718 = vld [vmem:[#allocation16 + $0x38] sm:$0xff]
    %v4719 = vld [vmem:[#allocation16 + $0x40] sm:$0xff]
    %v4720 = vld [vmem:[#allocation16 + $0x48] sm:$0xff]
    %v4721 = vld [vmem:[#allocation16 + $0x50] sm:$0xff]
    %v4722 = vld [vmem:[#allocation16 + $0x58] sm:$0xff]
    %v4723 = vld [vmem:[#allocation16 + $0x60] sm:$0xff]
    %v4724 = vld [vmem:[#allocation16 + $0x68] sm:$0xff]
    %v4725 = vld [vmem:[#allocation16 + $0x70] sm:$0xff]
    %v4726 = vld [vmem:[#allocation16 + $0x78] sm:$0xff]
    %4727 = vmatprep.subr.mxu0 0.0
    %4728 = vmatpush1.msra.mxu0 %v4726
    %4729 = vmatprep.subr.mxu0 0.0
    %4730 = vmatpush1.msra.mxu0 %v4725
    %4731 = vmatprep.subr.mxu0 0.0
    %4732 = vmatpush1.msra.mxu0 %v4724
    %4733 = vmatprep.subr.mxu0 0.0
    %4734 = vmatpush1.msra.mxu0 %v4723
    %4735 = vmatprep.subr.mxu0 0.0
    %4736 = vmatpush1.msra.mxu0 %v4722
    %4737 = vmatprep.subr.mxu0 0.0
    %4738 = vmatpush1.msra.mxu0 %v4721
    %4739 = vmatprep.subr.mxu0 0.0
    %4740 = vmatpush1.msra.mxu0 %v4720
    %4741 = vmatprep.subr.mxu0 0.0
    %4742 = vmatpush1.msra.mxu0 %v4719
    %4743 = vmatprep.subr.mxu0 0.0
    %4744 = vmatpush1.msra.mxu0 %v4718
    %4745 = vmatprep.subr.mxu0 0.0
    %4746 = vmatpush1.msra.mxu0 %v4717
    %4747 = vmatprep.subr.mxu0 0.0
    %4748 = vmatpush1.msra.mxu0 %v4716
    %4749 = vmatprep.subr.mxu0 0.0
    %4750 = vmatpush1.msra.mxu0 %v4715
    %4751 = vmatprep.subr.mxu0 0.0
    %4752 = vmatpush1.msra.mxu0 %v4714
    %4753 = vmatprep.subr.mxu0 0.0
    %4754 = vmatpush1.msra.mxu0 %v4713
    %4755 = vmatprep.subr.mxu0 0.0
    %4756 = vmatpush1.msra.mxu0 %v4712
    %4757 = vmatprep.subr.mxu0 0.0
    %4758 = vmatpush1.msra.mxu0 %v4711
    %4759 = vmatprep.subr.mxu0 0.0
    %4760 = vmatpush2.msra.mxu0 0.0
    %4761 = vmatprep.subr.mxu0 0.0
    %4762 = vmatpush2.msra.mxu0 0.0
    %4763 = vmatprep.subr.mxu0 0.0
    %4764 = vmatpush2.msra.mxu0 0.0
    %4765 = vmatprep.subr.mxu0 0.0
    %4766 = vmatpush2.msra.mxu0 0.0
    %4767 = vmatprep.subr.mxu0 0.0
    %4768 = vmatpush2.msra.mxu0 0.0
    %4769 = vmatprep.subr.mxu0 0.0
    %4770 = vmatpush2.msra.mxu0 0.0
    %4771 = vmatprep.subr.mxu0 0.0
    %4772 = vmatpush2.msra.mxu0 0.0
    %4773 = vmatprep.subr.mxu0 0.0
    %4774 = vmatpush2.msra.mxu0 0.0
    %4775 = vmatprep.subr.mxu0 0.0
    %4776 = vmatpush2.msra.mxu0 0.0
    %4777 = vmatprep.subr.mxu0 0.0
    %4778 = vmatpush2.msra.mxu0 0.0
    %4779 = vmatprep.subr.mxu0 0.0
    %4780 = vmatpush2.msra.mxu0 0.0
    %4781 = vmatprep.subr.mxu0 0.0
    %4782 = vmatpush2.msra.mxu0 0.0
    %4783 = vmatprep.subr.mxu0 0.0
    %4784 = vmatpush2.msra.mxu0 0.0
    %4785 = vmatprep.subr.mxu0 0.0
    %4786 = vmatpush2.msra.mxu0 0.0
    %4787 = vmatprep.subr.mxu0 0.0
    %4788 = vmatpush2.msra.mxu0 0.0
    %4789 = vmatprep.subr.mxu0 0.0
    %4790 = vmatpush2.msra.mxu0 0.0
    %4791 = vmatprep.mubr.f32.mxu0 0.0
    %4792 = vmatmul.mubr.f32.gmra.mxu0 %v4703
    %v4793 = vpop.f32.mrf.mxu0
    %v4794 = vadd.f32 0.0, %v4793
    %v4795 = vpop.f32.mrf.mxu0
    %4796 = vmatprep.mubr.f32.mxu0 0.0
    %4797 = vmatmul.mubr.f32.gmra.mxu0 %v4704
    %v4798 = vpop.f32.mrf.mxu0
    %v4799 = vadd.f32 0.0, %v4798
    %v4800 = vpop.f32.mrf.mxu0
    %4801 = vmatprep.mubr.f32.mxu0 0.0
    %4802 = vmatmul.mubr.f32.gmra.mxu0 %v4705
    %v4803 = vpop.f32.mrf.mxu0
    %v4804 = vadd.f32 0.0, %v4803
    %v4805 = vpop.f32.mrf.mxu0
    %4806 = vmatprep.mubr.f32.mxu0 0.0
    %4807 = vmatmul.mubr.f32.gmra.mxu0 %v4706
    %v4808 = vpop.f32.mrf.mxu0
    %v4809 = vadd.f32 0.0, %v4808
    %v4810 = vpop.f32.mrf.mxu0
    %4811 = vmatprep.mubr.f32.mxu0 0.0
    %4812 = vmatmul.mubr.f32.gmra.mxu0 %v4707
    %v4813 = vpop.f32.mrf.mxu0
    %v4814 = vadd.f32 0.0, %v4813
    %v4815 = vpop.f32.mrf.mxu0
    %4816 = vmatprep.mubr.f32.mxu0 0.0
    %4817 = vmatmul.mubr.f32.gmra.mxu0 %v4708
    %v4818 = vpop.f32.mrf.mxu0
    %v4819 = vadd.f32 0.0, %v4818
    %v4820 = vpop.f32.mrf.mxu0
    %4821 = vmatprep.mubr.f32.mxu0 0.0
    %4822 = vmatmul.mubr.f32.gmra.mxu0 %v4709
    %v4823 = vpop.f32.mrf.mxu0
    %v4824 = vadd.f32 0.0, %v4823
    %v4825 = vpop.f32.mrf.mxu0
    %4826 = vmatprep.mubr.f32.mxu0 0.0
    %4827 = vmatmul.mubr.f32.gmra.mxu0 %v4710
    %v4828 = vpop.f32.mrf.mxu0
    %v4829 = vadd.f32 0.0, %v4828
    %v4830 = vpop.f32.mrf.mxu0
    %4831 = vdwg.mxu0
    %4832 = vmatprep.subr.mxu0 0.0
    %4833 = vmatpush1.msra.mxu0 %v4702
    %4834 = vmatprep.subr.mxu0 0.0
    %4835 = vmatpush1.msra.mxu0 %v4701
    %4836 = vmatprep.subr.mxu0 0.0
    %4837 = vmatpush1.msra.mxu0 %v4700
    %4838 = vmatprep.subr.mxu0 0.0
    %4839 = vmatpush1.msra.mxu0 %v4699
    %4840 = vmatprep.subr.mxu0 0.0
    %4841 = vmatpush1.msra.mxu0 %v4698
    %4842 = vmatprep.subr.mxu0 0.0
    %4843 = vmatpush1.msra.mxu0 %v4697
    %4844 = vmatprep.subr.mxu0 0.0
    %4845 = vmatpush1.msra.mxu0 %v4696
    %4846 = vmatprep.subr.mxu0 0.0
    %4847 = vmatpush1.msra.mxu0 %v4695
    %4848 = vmatprep.subr.mxu0 0.0
    %4849 = vmatpush1.msra.mxu0 %v4694
    %4850 = vmatprep.subr.mxu0 0.0
    %4851 = vmatpush1.msra.mxu0 %v4693
    %4852 = vmatprep.subr.mxu0 0.0
    %4853 = vmatpush1.msra.mxu0 %v4692
    %4854 = vmatprep.subr.mxu0 0.0
    %4855 = vmatpush1.msra.mxu0 %v4691
    %4856 = vmatprep.subr.mxu0 0.0
    %4857 = vmatpush1.msra.mxu0 %v4690
    %4858 = vmatprep.subr.mxu0 0.0
    %4859 = vmatpush1.msra.mxu0 %v4689
    %4860 = vmatprep.subr.mxu0 0.0
    %4861 = vmatpush1.msra.mxu0 %v4688
    %4862 = vmatprep.subr.mxu0 0.0
    %4863 = vmatpush1.msra.mxu0 %v4687
    %4864 = vmatprep.subr.mxu0 0.0
    %4865 = vmatpush2.msra.mxu0 0.0
    %4866 = vmatprep.subr.mxu0 0.0
    %4867 = vmatpush2.msra.mxu0 0.0
    %4868 = vmatprep.subr.mxu0 0.0
    %4869 = vmatpush2.msra.mxu0 0.0
    %4870 = vmatprep.subr.mxu0 0.0
    %4871 = vmatpush2.msra.mxu0 0.0
    %4872 = vmatprep.subr.mxu0 0.0
    %4873 = vmatpush2.msra.mxu0 0.0
    %4874 = vmatprep.subr.mxu0 0.0
    %4875 = vmatpush2.msra.mxu0 0.0
    %4876 = vmatprep.subr.mxu0 0.0
    %4877 = vmatpush2.msra.mxu0 0.0
    %4878 = vmatprep.subr.mxu0 0.0
    %4879 = vmatpush2.msra.mxu0 0.0
    %4880 = vmatprep.subr.mxu0 0.0
    %4881 = vmatpush2.msra.mxu0 0.0
    %4882 = vmatprep.subr.mxu0 0.0
    %4883 = vmatpush2.msra.mxu0 0.0
    %4884 = vmatprep.subr.mxu0 0.0
    %4885 = vmatpush2.msra.mxu0 0.0
    %4886 = vmatprep.subr.mxu0 0.0
    %4887 = vmatpush2.msra.mxu0 0.0
    %4888 = vmatprep.subr.mxu0 0.0
    %4889 = vmatpush2.msra.mxu0 0.0
    %4890 = vmatprep.subr.mxu0 0.0
    %4891 = vmatpush2.msra.mxu0 0.0
    %4892 = vmatprep.subr.mxu0 0.0
    %4893 = vmatpush2.msra.mxu0 0.0
    %4894 = vmatprep.subr.mxu0 0.0
    %4895 = vmatpush2.msra.mxu0 0.0
    %4896 = vmatprep.mubr.f32.mxu0 0.0
    %4897 = vmatmul.mubr.f32.gmra.mxu0 %v4679
    %v4898 = vpop.f32.mrf.mxu0
    %v4899 = vadd.f32 %v4794, %v4898
    %v4900 = vpop.f32.mrf.mxu0
    %4901 = vmatprep.mubr.f32.mxu0 0.0
    %4902 = vmatmul.mubr.f32.gmra.mxu0 %v4680
    %v4903 = vpop.f32.mrf.mxu0
    %v4904 = vadd.f32 %v4799, %v4903
    %v4905 = vpop.f32.mrf.mxu0
    %4906 = vmatprep.mubr.f32.mxu0 0.0
    %4907 = vmatmul.mubr.f32.gmra.mxu0 %v4681
    %v4908 = vpop.f32.mrf.mxu0
    %v4909 = vadd.f32 %v4804, %v4908
    %v4910 = vpop.f32.mrf.mxu0
    %4911 = vmatprep.mubr.f32.mxu0 0.0
    %4912 = vmatmul.mubr.f32.gmra.mxu0 %v4682
    %v4913 = vpop.f32.mrf.mxu0
    %v4914 = vadd.f32 %v4809, %v4913
    %v4915 = vpop.f32.mrf.mxu0
    %4916 = vmatprep.mubr.f32.mxu0 0.0
    %4917 = vmatmul.mubr.f32.gmra.mxu0 %v4683
    %v4918 = vpop.f32.mrf.mxu0
    %v4919 = vadd.f32 %v4814, %v4918
    %v4920 = vpop.f32.mrf.mxu0
    %4921 = vmatprep.mubr.f32.mxu0 0.0
    %4922 = vmatmul.mubr.f32.gmra.mxu0 %v4684
    %v4923 = vpop.f32.mrf.mxu0
    %v4924 = vadd.f32 %v4819, %v4923
    %v4925 = vpop.f32.mrf.mxu0
    %4926 = vmatprep.mubr.f32.mxu0 0.0
    %4927 = vmatmul.mubr.f32.gmra.mxu0 %v4685
    %v4928 = vpop.f32.mrf.mxu0
    %v4929 = vadd.f32 %v4824, %v4928
    %v4930 = vpop.f32.mrf.mxu0
    %4931 = vmatprep.mubr.f32.mxu0 0.0
    %4932 = vmatmul.mubr.f32.gmra.mxu0 %v4686
    %v4933 = vpop.f32.mrf.mxu0
    %v4934 = vadd.f32 %v4829, %v4933
    %v4935 = vpop.f32.mrf.mxu0
    %4936 = vdwg.mxu0
    %v4937 = vld [vmem:[%s7] sm:$0x1]
    %v4939 = vlaneseq
    %v4940 = vshrl.u32 %v4939, 7
    %v4941 = vsub.s32 0, %v4940
    %v4942 = vrot.slane %v4937, %v4941
    %v4944 = vadd.f32 %v4899, %v4942
    %v4945 = vadd.f32 %v4904, %v4942
    %v4946 = vadd.f32 %v4909, %v4942
    %v4947 = vadd.f32 %v4914, %v4942
    %v4948 = vadd.f32 %v4919, %v4942
    %v4949 = vadd.f32 %v4924, %v4942
    %v4950 = vadd.f32 %v4929, %v4942
    %v4951 = vadd.f32 %v4934, %v4942
    %4952 = vst [vmem:[#allocation17] sm:$0xff] %v4944
    %4953 = vst [vmem:[#allocation17 + $0x8] sm:$0xff] %v4945
    %4954 = vst [vmem:[#allocation17 + $0x10] sm:$0xff] %v4946
    %4955 = vst [vmem:[#allocation17 + $0x18] sm:$0xff] %v4947
    %4956 = vst [vmem:[#allocation17 + $0x20] sm:$0xff] %v4948
    %4957 = vst [vmem:[#allocation17 + $0x28] sm:$0xff] %v4949
    %4958 = vst [vmem:[#allocation17 + $0x30] sm:$0xff] %v4950
    %4959 = vst [vmem:[#allocation17 + $0x38] sm:$0xff] %v4951
    // Predicated region
    $region62: #{tpu_custom_call.1} parent=1 // pred_check
      _
    $region63: #{tpu_custom_call.1} parent=1 // pred_check_branch
      %4961 = sbr.rel (0) target = $region65
    $region64: #{tpu_custom_call.1} parent=1 // pred_region
      %s4963 = ssub.s32 1024, 1024
      %4964 = vsyncadd [#allocation7], %s4963
      %s4965 = sshll.u32 [#allocation17], 4
      %s4966 = int_to_ptr.vmem [resolvable:$true] %s4965
      %4971 = dma.vmem_to_hbm [thread:$0]  %s4966, 1024, %s8, [#allocation7], 128, 128, 8
    $region65: #{tpu_custom_call.1} parent=1 // pred_fallthru
      _
    // Predicated region
    $region66: #{tpu_custom_call.1} parent=1 // pred_check
      _
    $region67: #{tpu_custom_call.1} parent=1 // pred_check_branch
      %4973 = sbr.rel (0) target = $region69
    $region68: #{tpu_custom_call.1} parent=1 // pred_region
      %4974 = dma.done [#allocation7], 1024
    $region69: #{tpu_custom_call.1} parent=1 // pred_fallthru
      _
    %4975 = vsyncpa [#allocation6], 1
    %4976 = vsyncpa [#allocation9], 1
    %4977 = vsyncpa [#allocation12], 1
    %4978 = vsyncpa [#allocation15], 1
    %4979 = vsyncpa [#allocation7], 1

</llo_original>
